<compile_context>
chip_gen: v5e
topology: v5e:2x2
jax: 0.10.0
libtpu: 0.0.40
codegen_flags: <defaults>
</compile_context>

<pallas_src>
import math

import numpy as np

import jax
import jax.numpy as jnp
from jax.experimental import pallas as pl
from jax.experimental.pallas import tpu as pltpu


_BASE = 128  # lane-aligned start of the padded image inside each activation scratch


# --------------------------- host-side constant builders ---------------------------

def _upsample_matrix_np(n):
    # (2n, n) interpolation matrix: bilinear, scale_factor=2, align_corners=True.
    out = 2 * n
    if n == 1:
        return np.ones((out, 1), np.float32)
    ratio = (n - 1) / (out - 1)
    coord = np.arange(out, dtype=np.float64) * ratio
    i0 = np.clip(np.floor(coord).astype(np.int64), 0, n - 1)
    i1 = np.minimum(i0 + 1, n - 1)
    frac = (coord - i0).astype(np.float32)
    M = np.zeros((out, n), np.float32)
    M[np.arange(out), i0] += (1.0 - frac)
    M[np.arange(out), i1] += frac
    return M


def _upsample_matrix_padded_np(hs, ws):
    # Maps padded-flat (hs+2)(ws+2) -> padded-flat (2hs+2)(2ws+2); halo rows/cols are 0.
    hl, wl = 2 * hs, 2 * ws
    Mh = _upsample_matrix_np(hs)                      # (hl, hs)
    Mw = _upsample_matrix_np(ws)                      # (wl, ws)
    nps, npl = (hs + 2) * (ws + 2), (hl + 2) * (wl + 2)
    U = np.zeros((nps, npl), np.float32)
    K = np.einsum('oh,pw->hwop', Mh, Mw)              # (hs, ws, hl, wl)
    qs = ((np.arange(hs) + 1)[:, None] * (ws + 2) + (np.arange(ws) + 1)[None, :]).reshape(-1)
    ql = ((np.arange(hl) + 1)[:, None] * (wl + 2) + (np.arange(wl) + 1)[None, :]).reshape(-1)
    U[np.ix_(qs, ql)] = K.reshape(hs * ws, hl * wl)
    return U


def _pool_matrix_padded_np(h, w):
    # Selection matrix: padded-flat (h+2)(w+2) -> padded-flat (h/2+2)(w/2+2).
    ho, wo = h // 2, w // 2
    S = np.zeros(((h + 2) * (w + 2), (ho + 2) * (wo + 2)), np.float32)
    for yo in range(ho):
        for xo in range(wo):
            S[(2 * yo + 1) * (w + 2) + (2 * xo + 1), (yo + 1) * (wo + 2) + (xo + 1)] = 1.0
    return S


def _embed_matrix_np(h, w):
    # (h*w, (h+2)(w+2)) selection: unpadded flat -> padded flat (zero halo).
    E = np.zeros((h * w, (h + 2) * (w + 2)), np.float32)
    for y in range(h):
        for x in range(w):
            E[y * w + x, (y + 1) * (w + 2) + (x + 1)] = 1.0
    return E


def _interior_mask_np(h, w):
    m = np.zeros((h + 2, w + 2), np.float32)
    m[1:h + 1, 1:w + 1] = 1.0
    return m.reshape(-1)


# --------------------------------- fused kernel ------------------------------------

def _make_unet_kernel(C, ncls, H, W, cpad):
    BASE = _BASE

    def lvl(h, w):
        wp = w + 2
        return dict(Wp=wp, Np=(h + 2) * wp)

    L = [lvl(H >> i, W >> i) for i in range(4)]          # 16x16, 8x8, 4x4, 2x2
    np_bot = (H // 16 + 2) * (W // 16 + 2)               # padded 1x1 bottleneck

    def kernel(x_ref, wblob_ref, scale_ref, bias_ref, wout_ref, bout_ref, masks_ref,
               S0, S1, S2, S3, U0, U1, U2, U3, epad_ref, eext_ref,
               o_ref,
               a0, p1, p2, p3, s1, s2, s3, s4, t4, t3, t2, t1, col):
        f32 = jnp.float32

        # Zero all VMEM scratches once per grid step: margins/halo must be 0 and the
        # im2col buffer must hold no non-finite garbage in its never-written rows
        # (their weight columns are 0, so finite stale data is harmless).  ~0.2 MB
        # of VMEM stores total -> negligible at this size.
        for r in (a0, p1, p2, p3, s1, s2, s3, s4, t4, t3, t2, t1, col):
            r[...] = jnp.zeros(r.shape, r.dtype)

        def store_level(dst, val, npd):
            dst[:, BASE:BASE + npd] = val.astype(dst.dtype)

        def conv_bn_relu(ci, groups, cout, lv, mask_row=None):
            # groups: list of (src_scratch_ref, cin, weight_slot).  The decoder's
            # channel concat is realised as per-group im2col + split-weight matmuls
            # accumulated into one f32 value.
            npd, wp = lv['Np'], lv['Wp']
            acc = jnp.zeros((cout, npd), f32)
            for src, cin, slot in groups:
                xv = src[...]                                        # (cin, M) bf16
                for kh in range(3):
                    for kw in range(3):
                        d = (kh - 1) * wp + (kw - 1)
                        col[(kh * 3 + kw) * cpad:(kh * 3 + kw) * cpad + cin, :npd] = (
                            xv[:, BASE + d: BASE + d + npd])
                acc = acc + jnp.dot(wblob_ref[slot, :cout, :], col[:, :npd],
                                    preferred_element_type=f32)
            y = acc * scale_ref[ci, :cout, :] + bias_ref[ci, :cout, :]
            y = jnp.maximum(y, 0.0)                                  # folded BN + ReLU
            if mask_row is not None:
                # Encoder outputs are re-read as decoder conv taps -> halo must be 0.
                y = jnp.where(masks_ref[mask_row:mask_row + 1, :npd] > 0.0, y, 0.0)
            return y

        def maxpool(src, lv, S_ref):
            # 2x2 max-pool: 4-way shifted max + selection matmul into the next
            # (smaller) padded-flat layout (halo of the result is 0 by construction).
            npd, wp = lv['Np'], lv['Wp']
            xv = src[...]
            m = jnp.maximum(
                jnp.maximum(xv[:, BASE:BASE + npd], xv[:, BASE + 1:BASE + 1 + npd]),
                jnp.maximum(xv[:, BASE + wp:BASE + wp + npd],
                            xv[:, BASE + wp + 1:BASE + wp + 1 + npd]))
            return jnp.dot(m, S_ref[...], preferred_element_type=f32)

        def upsample(val, U_ref):
            # Bilinear x2 (align_corners=True) as one matmul with a precomputed
            # padded interpolation matrix (halo of the result is 0 by construction).
            return jnp.dot(val, U_ref[...], preferred_element_type=f32)

        # ---- embed the (3, H*W) NCHW input into the padded-flat layout (one matmul)
        store_level(a0, jnp.dot(x_ref[0], epad_ref[...], preferred_element_type=f32),
                    L[0]['Np'])

        # ---- encoder
        store_level(s1, conv_bn_relu(0, [(a0, 3, 0)], C, L[0], 0), L[0]['Np'])
        store_level(p1, maxpool(s1, L[0], S0), L[1]['Np'])
        store_level(s2, conv_bn_relu(1, [(p1, C, 1)], 2 * C, L[1], 1), L[1]['Np'])
        store_level(p2, maxpool(s2, L[1], S1), L[2]['Np'])
        store_level(s3, conv_bn_relu(2, [(p2, 2 * C, 2)], 4 * C, L[2], 2), L[2]['Np'])
        store_level(p3, maxpool(s3, L[2], S2), L[3]['Np'])
        store_level(s4, conv_bn_relu(3, [(p3, 4 * C, 3)], 8 * C, L[3], 3), L[3]['Np'])
        pbot = maxpool(s4, L[3], S3)                       # (8C, 9) f32 value (1x1 level)

        # ---- decoder (upsample -> fused concat-conv with split weights)
        store_level(t4, upsample(pbot, U0), L[3]['Np'])
        u4 = conv_bn_relu(4, [(t4, 8 * C, 4), (s4, 8 * C, 5)], 8 * C, L[3])
        store_level(t3, upsample(u4, U1), L[2]['Np'])
        u3 = conv_bn_relu(5, [(t3, 8 * C, 6), (s3, 4 * C, 7)], 4 * C, L[2])
        store_level(t2, upsample(u3, U2), L[1]['Np'])
        u2 = conv_bn_relu(6, [(t2, 4 * C, 8), (s2, 2 * C, 9)], 2 * C, L[1])
        store_level(t1, upsample(u2, U3), L[0]['Np'])
        u1 = conv_bn_relu(7, [(t1, 2 * C, 10), (s1, C, 11)], C, L[0])

        # ---- 1x1 head fused with the interior extraction -> lane-dense (ncls, H*W)
        head = jnp.dot(wout_ref[...].astype(f32), u1,
                       preferred_element_type=f32) + bout_ref[...]
        o_ref[0] = jnp.dot(head, eext_ref[...], preferred_element_type=f32)

    return kernel


# ------------------------------- Pallas wrapper -------------------------------------

def unet_forward(x_nchw, params):
    N, cin, H, W = x_nchw.shape
    assert cin == 3 and H % 16 == 0 and W % 16 == 0
    C, ncls, cpad = params['C'], params['ncls'], params['cpad']
    HW = H * W
    np_max = (H + 2) * (W + 2)

    def scr_w(h, w):  # scratch width: 128-aligned base + padded image + tap span
        return _BASE + (h + 2) * (w + 2) + (w + 2) + 1

    x = x_nchw.reshape(N, cin, HW).astype(jnp.float32)

    const_names = ('wblob', 'scale', 'bias', 'wout', 'bout', 'masks',
                   'S0', 'S1', 'S2', 'S3', 'U0', 'U1', 'U2', 'U3', 'epad', 'eext')
    consts = [params[k] for k in const_names]

    in_specs = [pl.BlockSpec((1, cin, HW), lambda n: (n, 0, 0))]
    for a in consts:
        in_specs.append(pl.BlockSpec(a.shape, lambda n, nd=a.ndim: (0,) * nd))

    H1, W1, H2, W2, H3, W3 = H // 2, W // 2, H // 4, W // 4, H // 8, W // 8
    bf16 = jnp.bfloat16
    scratch = [
        pltpu.VMEM((3, scr_w(H, W)), bf16),        # a0  embedded input
        pltpu.VMEM((C, scr_w(H1, W1)), bf16),      # p1  pool(s1)
        pltpu.VMEM((2 * C, scr_w(H2, W2)), bf16),  # p2  pool(s2)
        pltpu.VMEM((4 * C, scr_w(H3, W3)), bf16),  # p3  pool(s3)
        pltpu.VMEM((C, scr_w(H, W)), bf16),        # s1  skip
        pltpu.VMEM((2 * C, scr_w(H1, W1)), bf16),  # s2  skip
        pltpu.VMEM((4 * C, scr_w(H2, W2)), bf16),  # s3  skip
        pltpu.VMEM((8 * C, scr_w(H3, W3)), bf16),  # s4  skip
        pltpu.VMEM((8 * C, scr_w(H3, W3)), bf16),  # t4  upsampled bottleneck
        pltpu.VMEM((8 * C, scr_w(H2, W2)), bf16),  # t3
        pltpu.VMEM((4 * C, scr_w(H1, W1)), bf16),  # t2
        pltpu.VMEM((2 * C, scr_w(H, W)), bf16),    # t1
        pltpu.VMEM((9 * cpad, np_max), bf16),      # col im2col buffer
    ]

    out = pl.pallas_call(
        _make_unet_kernel(C, ncls, H, W, cpad),
        out_shape=jax.ShapeDtypeStruct((N, ncls, HW), jnp.float32),
        grid=(N,),
        in_specs=in_specs,
        out_specs=pl.BlockSpec((1, ncls, HW), lambda n: (n, 0, 0)),
        scratch_shapes=scratch,
        compiler_params=pltpu.CompilerParams(
            dimension_semantics=("parallel",)),     # batch split across TCs (v7x)
    )(x, *consts)
    return out.reshape(N, ncls, H, W)               # already NCHW -> free reshape


# --------------------------------- parameters ---------------------------------------

def init_unet_params(key, C, ncls, H, W):
    eps = 1e-5
    cpad = ((8 * C + 15) // 16) * 16                # per-tap channel stride in im2col
    conv_defs = [([3], C), ([C], 2 * C), ([2 * C], 4 * C), ([4 * C], 8 * C),
                 ([8 * C, 8 * C], 8 * C), ([8 * C, 4 * C], 4 * C),
                 ([4 * C, 2 * C], 2 * C), ([2 * C, C], C)]
    n_slots = sum(len(g) for g, _ in conv_defs)
    assert n_slots == 12

    wblob = np.zeros((n_slots, 8 * C, 9 * cpad), np.float32)
    scale_blob = np.zeros((len(conv_defs), 8 * C, 1), np.float32)
    bias_blob = np.zeros((len(conv_defs), 8 * C, 1), np.float32)
    ref_convs = []
    slot = 0
    for i, (cins, cout) in enumerate(conv_defs):
        ks = jax.random.split(jax.random.fold_in(key, 100 + i), 6)
        cin_tot = sum(cins)
        fan_in = 9 * cin_tot
        # torch layout (cout, cin_tot, kh, kw); stored/used in bf16
        w4 = (jax.random.normal(ks[0], (cout, cin_tot, 3, 3), jnp.float32)
              / math.sqrt(fan_in)).astype(jnp.bfloat16)
        b = 0.01 * jax.random.normal(ks[1], (cout,), jnp.float32)
        gamma = 1.0 + 0.1 * jax.random.normal(ks[2], (cout,), jnp.float32)
        beta = 0.1 * jax.random.normal(ks[3], (cout,), jnp.float32)
        mean = 0.1 * jax.random.normal(ks[4], (cout,), jnp.float32)
        var = 1.0 + 0.2 * jax.random.uniform(ks[5], (cout,), jnp.float32)
        scale = gamma / jnp.sqrt(var + eps)                 # eval-mode BN folded
        bias = (b - mean) * scale + beta
        scale_blob[i, :cout, 0] = np.asarray(scale, np.float32)
        bias_blob[i, :cout, 0] = np.asarray(bias, np.float32)
        w4np = np.asarray(w4.astype(jnp.float32))
        off = 0
        for cin in cins:                                    # concat order: [upsampled, skip]
            for kh in range(3):
                for kw in range(3):
                    t = kh * 3 + kw
                    wblob[slot, :cout, t * cpad: t * cpad + cin] = w4np[:, off:off + cin, kh, kw]
            off += cin
            slot += 1
        ref_convs.append((jnp.asarray(w4np), jnp.asarray(scale, jnp.float32),
                          jnp.asarray(bias, jnp.float32)))

    ko = jax.random.split(jax.random.fold_in(key, 999), 2)
    wout = (jax.random.normal(ko[0], (ncls, C), jnp.float32) / math.sqrt(C)).astype(jnp.bfloat16)
    bout = 0.01 * jax.random.normal(ko[1], (ncls,), jnp.float32)

    # fused pool / upsample / embed-extract constants (padded-flat layouts)
    np_max = (H + 2) * (W + 2)
    masks = np.zeros((4, np_max), np.float32)
    for i in range(4):
        m = _interior_mask_np(H >> i, W >> i)
        masks[i, :m.size] = m
    E = _embed_matrix_np(H, W)

    params = dict(
        C=C, ncls=ncls, cpad=cpad,
        wblob=jnp.asarray(wblob, jnp.bfloat16),
        scale=jnp.asarray(scale_blob), bias=jnp.asarray(bias_blob),
        wout=wout, bout=jnp.asarray(np.asarray(bout)[:, None], jnp.float32),
        masks=jnp.asarray(masks),
        S0=jnp.asarray(_pool_matrix_padded_np(H, W)),
        S1=jnp.asarray(_pool_matrix_padded_np(H // 2, W // 2)),
        S2=jnp.asarray(_pool_matrix_padded_np(H // 4, W // 4)),
        S3=jnp.asarray(_pool_matrix_padded_np(H // 8, W // 8)),
        U0=jnp.asarray(_upsample_matrix_padded_np(H // 16, W // 16)),
        U1=jnp.asarray(_upsample_matrix_padded_np(H // 8, W // 8)),
        U2=jnp.asarray(_upsample_matrix_padded_np(H // 4, W // 4)),
        U3=jnp.asarray(_upsample_matrix_padded_np(H // 2, W // 2)),
        epad=jnp.asarray(E), eext=jnp.asarray(E.T.copy()),
    )
    ref_params = dict(convs=ref_convs, wout=wout.astype(jnp.float32),
                      bout=jnp.asarray(bout, jnp.float32))
    return params, ref_params


# ----------------------------- pure-JAX reference -----------------------------------

def unet_reference(x_nchw, rp):
    # Mirrors the kernel's precision flow (bf16 weights, bf16 inter-layer activations,
    # f32 accumulation) with plain XLA ops for a tolerance check.
    hi = jax.lax.Precision.HIGHEST
    f32 = jnp.float32
    bf = lambda a: a.astype(jnp.bfloat16).astype(f32)

    def conv_bn_relu(x, p):
        w4, scale, bias = p
        y = jax.lax.conv_general_dilated(
            x, w4, (1, 1), ((1, 1), (1, 1)),
            dimension_numbers=('NCHW', 'OIHW', 'NCHW'), precision=hi)
        y = y * scale[None, :, None, None] + bias[None, :, None, None]
        return jnp.maximum(y, 0.0)

    def pool(x):
        n, c, h, w = x.shape
        return x.reshape(n, c, h // 2, 2, w // 2, 2).max(axis=(3, 5))

    def upsample(x):
        n, c, h, w = x.shape
        Mh = jnp.asarray(_upsample_matrix_np(h))
        Mw = jnp.asarray(_upsample_matrix_np(w))
        y = jnp.einsum('oh,nchw->ncow', Mh, x, precision=hi)
        return jnp.einsum('pw,ncow->ncop', Mw, y, precision=hi)

    cs = rp['convs']
    x = bf(x_nchw)
    s1 = bf(conv_bn_relu(x, cs[0])); p = pool(s1)
    s2 = bf(conv_bn_relu(p, cs[1])); p = pool(s2)
    s3 = bf(conv_bn_relu(p, cs[2])); p = pool(s3)
    s4 = bf(conv_bn_relu(p, cs[3])); p = pool(s4)
    u = conv_bn_relu(jnp.concatenate([bf(upsample(p)), s4], axis=1), cs[4])
    u = conv_bn_relu(jnp.concatenate([bf(upsample(u)), s3], axis=1), cs[5])
    u = conv_bn_relu(jnp.concatenate([bf(upsample(u)), s2], axis=1), cs[6])
    u = conv_bn_relu(jnp.concatenate([bf(upsample(u)), s1], axis=1), cs[7])
    out = jnp.einsum('kc,nchw->nkhw', rp['wout'], u, precision=hi)
    return out + rp['bout'][None, :, None, None]


# ------------------------------------- main ------------------------------------------

if __name__ == "__main__":
    key = jax.random.PRNGKey(0)
    num_channels = 4        # params.num_channels
    num_classes = 3         # params.num_classes
    H = W = 16
    params, ref_params = init_unet_params(key, num_channels, num_classes, H, W)

    x = jax.random.normal(jax.random.fold_in(key, 123), (2, 3, H, W), jnp.float32)  # NCHW

    fwd = jax.jit(lambda inp: unet_forward(inp, params))
    y = fwd(x)
    jax.block_until_ready(y)
    assert y.shape == (2, num_classes, H, W), y.shape
    assert y.dtype == jnp.float32
    assert bool(jnp.all(jnp.isfinite(y)))

    ref = jax.jit(lambda inp: unet_reference(inp, ref_params))(x)
    np.testing.assert_allclose(np.asarray(y), np.asarray(ref), rtol=5e-2, atol=5e-2)

    print("KERNEL_OK")
</pallas_src>

<mosaic_0001>
module attributes {stable_mosaic.version = 11 : i64} {
  func.func @kernel(%arg0: i32, %arg1: memref<1x3x256xf32, #tpu.memory_space<vmem>>, %arg2: memref<12x32x288xbf16, #tpu.memory_space<vmem>>, %arg3: memref<8x32x1xf32, #tpu.memory_space<vmem>>, %arg4: memref<8x32x1xf32, #tpu.memory_space<vmem>>, %arg5: memref<3x4xbf16, #tpu.memory_space<vmem>>, %arg6: memref<3x1xf32, #tpu.memory_space<vmem>>, %arg7: memref<4x324xf32, #tpu.memory_space<vmem>>, %arg8: memref<324x100xf32, #tpu.memory_space<vmem>>, %arg9: memref<100x36xf32, #tpu.memory_space<vmem>>, %arg10: memref<36x16xf32, #tpu.memory_space<vmem>>, %arg11: memref<16x9xf32, #tpu.memory_space<vmem>>, %arg12: memref<9x16xf32, #tpu.memory_space<vmem>>, %arg13: memref<16x36xf32, #tpu.memory_space<vmem>>, %arg14: memref<36x100xf32, #tpu.memory_space<vmem>>, %arg15: memref<100x324xf32, #tpu.memory_space<vmem>>, %arg16: memref<256x324xf32, #tpu.memory_space<vmem>>, %arg17: memref<324x256xf32, #tpu.memory_space<vmem>>, %arg18: memref<1x3x256xf32, #tpu.memory_space<vmem>>, %arg19: memref<3x471xbf16, #tpu.memory_space<vmem>>, %arg20: memref<4x239xbf16, #tpu.memory_space<vmem>>, %arg21: memref<8x171xbf16, #tpu.memory_space<vmem>>, %arg22: memref<16x149xbf16, #tpu.memory_space<vmem>>, %arg23: memref<4x471xbf16, #tpu.memory_space<vmem>>, %arg24: memref<8x239xbf16, #tpu.memory_space<vmem>>, %arg25: memref<16x171xbf16, #tpu.memory_space<vmem>>, %arg26: memref<32x149xbf16, #tpu.memory_space<vmem>>, %arg27: memref<32x149xbf16, #tpu.memory_space<vmem>>, %arg28: memref<32x171xbf16, #tpu.memory_space<vmem>>, %arg29: memref<16x239xbf16, #tpu.memory_space<vmem>>, %arg30: memref<8x471xbf16, #tpu.memory_space<vmem>>, %arg31: memref<288x324xbf16, #tpu.memory_space<vmem>>) attributes {dimension_semantics = [#tpu.dimension_semantics<parallel>], iteration_bounds = array<i64: 2>, scalar_prefetch = 0 : i64, scratch_operands = 13 : i64, tpu.core_type = #tpu.core_type<tc>, window_params = [{transform_indices = @transform_0, window_bounds = array<i64: 1, 3, 256>}, {pipeline_mode = #tpu.pipeline_mode<synchronous>, transform_indices = @transform_1, window_bounds = array<i64: 12, 32, 288>}, {pipeline_mode = #tpu.pipeline_mode<synchronous>, transform_indices = @transform_2, window_bounds = array<i64: 8, 32, 1>}, {pipeline_mode = #tpu.pipeline_mode<synchronous>, transform_indices = @transform_3, window_bounds = array<i64: 8, 32, 1>}, {pipeline_mode = #tpu.pipeline_mode<synchronous>, transform_indices = @transform_4, window_bounds = array<i64: 3, 4>}, {pipeline_mode = #tpu.pipeline_mode<synchronous>, transform_indices = @transform_5, window_bounds = array<i64: 3, 1>}, {pipeline_mode = #tpu.pipeline_mode<synchronous>, transform_indices = @transform_6, window_bounds = array<i64: 4, 324>}, {pipeline_mode = #tpu.pipeline_mode<synchronous>, transform_indices = @transform_7, window_bounds = array<i64: 324, 100>}, {pipeline_mode = #tpu.pipeline_mode<synchronous>, transform_indices = @transform_8, window_bounds = array<i64: 100, 36>}, {pipeline_mode = #tpu.pipeline_mode<synchronous>, transform_indices = @transform_9, window_bounds = array<i64: 36, 16>}, {pipeline_mode = #tpu.pipeline_mode<synchronous>, transform_indices = @transform_10, window_bounds = array<i64: 16, 9>}, {pipeline_mode = #tpu.pipeline_mode<synchronous>, transform_indices = @transform_11, window_bounds = array<i64: 9, 16>}, {pipeline_mode = #tpu.pipeline_mode<synchronous>, transform_indices = @transform_12, window_bounds = array<i64: 16, 36>}, {pipeline_mode = #tpu.pipeline_mode<synchronous>, transform_indices = @transform_13, window_bounds = array<i64: 36, 100>}, {pipeline_mode = #tpu.pipeline_mode<synchronous>, transform_indices = @transform_14, window_bounds = array<i64: 100, 324>}, {pipeline_mode = #tpu.pipeline_mode<synchronous>, transform_indices = @transform_15, window_bounds = array<i64: 256, 324>}, {pipeline_mode = #tpu.pipeline_mode<synchronous>, transform_indices = @transform_16, window_bounds = array<i64: 324, 256>}, {transform_indices = @transform_17, window_bounds = array<i64: 1, 3, 256>}]} {
    %cst = arith.constant 0.000000e+00 : bf16
    %0 = vector.broadcast %cst : bf16 to vector<3x471xbf16>
    %c0 = arith.constant 0 : index
    %c0_0 = arith.constant 0 : index
    %1 = vector.load %arg19[%c0, %c0_0] : memref<3x471xbf16, #tpu.memory_space<vmem>>, vector<3x471xbf16>
    tpu.vector_store %arg19[%c0, %c0_0], %0 {strides = array<i32>} : memref<3x471xbf16, #tpu.memory_space<vmem>>, vector<3x471xbf16>,
    %cst_1 = arith.constant 0.000000e+00 : bf16
    %2 = vector.broadcast %cst_1 : bf16 to vector<4x239xbf16>
    %c0_2 = arith.constant 0 : index
    %c0_3 = arith.constant 0 : index
    %3 = vector.load %arg20[%c0_2, %c0_3] : memref<4x239xbf16, #tpu.memory_space<vmem>>, vector<4x239xbf16>
    tpu.vector_store %arg20[%c0_2, %c0_3], %2 {strides = array<i32>} : memref<4x239xbf16, #tpu.memory_space<vmem>>, vector<4x239xbf16>,
    %cst_4 = arith.constant 0.000000e+00 : bf16
    %4 = vector.broadcast %cst_4 : bf16 to vector<8x171xbf16>
    %c0_5 = arith.constant 0 : index
    %c0_6 = arith.constant 0 : index
    %5 = vector.load %arg21[%c0_5, %c0_6] : memref<8x171xbf16, #tpu.memory_space<vmem>>, vector<8x171xbf16>
    tpu.vector_store %arg21[%c0_5, %c0_6], %4 {strides = array<i32>} : memref<8x171xbf16, #tpu.memory_space<vmem>>, vector<8x171xbf16>,
    %cst_7 = arith.constant 0.000000e+00 : bf16
    %6 = vector.broadcast %cst_7 : bf16 to vector<16x149xbf16>
    %c0_8 = arith.constant 0 : index
    %c0_9 = arith.constant 0 : index
    %7 = vector.load %arg22[%c0_8, %c0_9] : memref<16x149xbf16, #tpu.memory_space<vmem>>, vector<16x149xbf16>
    tpu.vector_store %arg22[%c0_8, %c0_9], %6 {strides = array<i32>} : memref<16x149xbf16, #tpu.memory_space<vmem>>, vector<16x149xbf16>,
    %cst_10 = arith.constant 0.000000e+00 : bf16
    %8 = vector.broadcast %cst_10 : bf16 to vector<4x471xbf16>
    %c0_11 = arith.constant 0 : index
    %c0_12 = arith.constant 0 : index
    %9 = vector.load %arg23[%c0_11, %c0_12] : memref<4x471xbf16, #tpu.memory_space<vmem>>, vector<4x471xbf16>
    tpu.vector_store %arg23[%c0_11, %c0_12], %8 {strides = array<i32>} : memref<4x471xbf16, #tpu.memory_space<vmem>>, vector<4x471xbf16>,
    %cst_13 = arith.constant 0.000000e+00 : bf16
    %10 = vector.broadcast %cst_13 : bf16 to vector<8x239xbf16>
    %c0_14 = arith.constant 0 : index
    %c0_15 = arith.constant 0 : index
    %11 = vector.load %arg24[%c0_14, %c0_15] : memref<8x239xbf16, #tpu.memory_space<vmem>>, vector<8x239xbf16>
    tpu.vector_store %arg24[%c0_14, %c0_15], %10 {strides = array<i32>} : memref<8x239xbf16, #tpu.memory_space<vmem>>, vector<8x239xbf16>,
    %cst_16 = arith.constant 0.000000e+00 : bf16
    %12 = vector.broadcast %cst_16 : bf16 to vector<16x171xbf16>
    %c0_17 = arith.constant 0 : index
    %c0_18 = arith.constant 0 : index
    %13 = vector.load %arg25[%c0_17, %c0_18] : memref<16x171xbf16, #tpu.memory_space<vmem>>, vector<16x171xbf16>
    tpu.vector_store %arg25[%c0_17, %c0_18], %12 {strides = array<i32>} : memref<16x171xbf16, #tpu.memory_space<vmem>>, vector<16x171xbf16>,
    %cst_19 = arith.constant 0.000000e+00 : bf16
    %14 = vector.broadcast %cst_19 : bf16 to vector<32x149xbf16>
    %c0_20 = arith.constant 0 : index
    %c0_21 = arith.constant 0 : index
    %15 = vector.load %arg26[%c0_20, %c0_21] : memref<32x149xbf16, #tpu.memory_space<vmem>>, vector<32x149xbf16>
    tpu.vector_store %arg26[%c0_20, %c0_21], %14 {strides = array<i32>} : memref<32x149xbf16, #tpu.memory_space<vmem>>, vector<32x149xbf16>,
    %cst_22 = arith.constant 0.000000e+00 : bf16
    %16 = vector.broadcast %cst_22 : bf16 to vector<32x149xbf16>
    %c0_23 = arith.constant 0 : index
    %c0_24 = arith.constant 0 : index
    %17 = vector.load %arg27[%c0_23, %c0_24] : memref<32x149xbf16, #tpu.memory_space<vmem>>, vector<32x149xbf16>
    tpu.vector_store %arg27[%c0_23, %c0_24], %16 {strides = array<i32>} : memref<32x149xbf16, #tpu.memory_space<vmem>>, vector<32x149xbf16>,
    %cst_25 = arith.constant 0.000000e+00 : bf16
    %18 = vector.broadcast %cst_25 : bf16 to vector<32x171xbf16>
    %c0_26 = arith.constant 0 : index
    %c0_27 = arith.constant 0 : index
    %19 = vector.load %arg28[%c0_26, %c0_27] : memref<32x171xbf16, #tpu.memory_space<vmem>>, vector<32x171xbf16>
    tpu.vector_store %arg28[%c0_26, %c0_27], %18 {strides = array<i32>} : memref<32x171xbf16, #tpu.memory_space<vmem>>, vector<32x171xbf16>,
    %cst_28 = arith.constant 0.000000e+00 : bf16
    %20 = vector.broadcast %cst_28 : bf16 to vector<16x239xbf16>
    %c0_29 = arith.constant 0 : index
    %c0_30 = arith.constant 0 : index
    %21 = vector.load %arg29[%c0_29, %c0_30] : memref<16x239xbf16, #tpu.memory_space<vmem>>, vector<16x239xbf16>
    tpu.vector_store %arg29[%c0_29, %c0_30], %20 {strides = array<i32>} : memref<16x239xbf16, #tpu.memory_space<vmem>>, vector<16x239xbf16>,
    %cst_31 = arith.constant 0.000000e+00 : bf16
    %22 = vector.broadcast %cst_31 : bf16 to vector<8x471xbf16>
    %c0_32 = arith.constant 0 : index
    %c0_33 = arith.constant 0 : index
    %23 = vector.load %arg30[%c0_32, %c0_33] : memref<8x471xbf16, #tpu.memory_space<vmem>>, vector<8x471xbf16>
    tpu.vector_store %arg30[%c0_32, %c0_33], %22 {strides = array<i32>} : memref<8x471xbf16, #tpu.memory_space<vmem>>, vector<8x471xbf16>,
    %cst_34 = arith.constant 0.000000e+00 : bf16
    %24 = vector.broadcast %cst_34 : bf16 to vector<288x324xbf16>
    %c0_35 = arith.constant 0 : index
    %c0_36 = arith.constant 0 : index
    %25 = vector.load %arg31[%c0_35, %c0_36] : memref<288x324xbf16, #tpu.memory_space<vmem>>, vector<288x324xbf16>
    tpu.vector_store %arg31[%c0_35, %c0_36], %24 {strides = array<i32>} : memref<288x324xbf16, #tpu.memory_space<vmem>>, vector<288x324xbf16>,
    %c0_37 = arith.constant 0 : index
    %c0_38 = arith.constant 0 : index
    %c0_39 = arith.constant 0 : index
    %26 = vector.load %arg1[%c0_37, %c0_38, %c0_39] : memref<1x3x256xf32, #tpu.memory_space<vmem>>, vector<1x3x256xf32>
    %27 = vector.shape_cast %26 : vector<1x3x256xf32> to vector<3x256xf32>
    %c0_40 = arith.constant 0 : index
    %c0_41 = arith.constant 0 : index
    %28 = vector.load %arg16[%c0_40, %c0_41] : memref<256x324xf32, #tpu.memory_space<vmem>>, vector<256x324xf32>
    %cst_42 = arith.constant dense<0.000000e+00> : vector<3x324xf32>
    %29 = tpu.matmul %27, %28, %cst_42 {dimension_numbers = #tpu.dot_dimension_numbers<[1], [0], [0], [1], [0, 0, 1, 1], [], []>} : vector<3x256xf32>, vector<256x324xf32>, vector<3x324xf32> -> vector<3x324xf32>
    %30 = arith.truncf %29 : vector<3x324xf32> to vector<3x324xbf16>
    %c0_43 = arith.constant 0 : index
    %c128 = arith.constant 128 : index
    %31 = vector.load %arg19[%c0_43, %c128] : memref<3x471xbf16, #tpu.memory_space<vmem>>, vector<3x324xbf16>
    tpu.vector_store %arg19[%c0_43, %c128], %30 {strides = array<i32>} : memref<3x471xbf16, #tpu.memory_space<vmem>>, vector<3x324xbf16>,
    %cst_44 = arith.constant 0.000000e+00 : f32
    %32 = vector.broadcast %cst_44 : f32 to vector<4x324xf32>
    %c0_45 = arith.constant 0 : index
    %c0_46 = arith.constant 0 : index
    %33 = vector.load %arg19[%c0_45, %c0_46] : memref<3x471xbf16, #tpu.memory_space<vmem>>, vector<3x471xbf16>
    %34 = vector.extract_strided_slice %33 {offsets = [0, 109], sizes = [3, 324], strides = [1, 1]} : vector<3x471xbf16> to vector<3x324xbf16>
    %c0_47 = arith.constant 0 : index
    %c0_48 = arith.constant 0 : index
    %35 = vector.load %arg31[%c0_47, %c0_48] : memref<288x324xbf16, #tpu.memory_space<vmem>>, vector<3x324xbf16>
    tpu.vector_store %arg31[%c0_47, %c0_48], %34 {strides = array<i32>} : memref<288x324xbf16, #tpu.memory_space<vmem>>, vector<3x324xbf16>,
    %36 = vector.extract_strided_slice %33 {offsets = [0, 110], sizes = [3, 324], strides = [1, 1]} : vector<3x471xbf16> to vector<3x324xbf16>
    %c32 = arith.constant 32 : index
    %c0_49 = arith.constant 0 : index
    %37 = vector.load %arg31[%c32, %c0_49] : memref<288x324xbf16, #tpu.memory_space<vmem>>, vector<3x324xbf16>
    tpu.vector_store %arg31[%c32, %c0_49], %36 {strides = array<i32>} : memref<288x324xbf16, #tpu.memory_space<vmem>>, vector<3x324xbf16>,
    %38 = vector.extract_strided_slice %33 {offsets = [0, 111], sizes = [3, 324], strides = [1, 1]} : vector<3x471xbf16> to vector<3x324xbf16>
    %c64 = arith.constant 64 : index
    %c0_50 = arith.constant 0 : index
    %39 = vector.load %arg31[%c64, %c0_50] : memref<288x324xbf16, #tpu.memory_space<vmem>>, vector<3x324xbf16>
    tpu.vector_store %arg31[%c64, %c0_50], %38 {strides = array<i32>} : memref<288x324xbf16, #tpu.memory_space<vmem>>, vector<3x324xbf16>,
    %40 = vector.extract_strided_slice %33 {offsets = [0, 127], sizes = [3, 324], strides = [1, 1]} : vector<3x471xbf16> to vector<3x324xbf16>
    %c96 = arith.constant 96 : index
    %c0_51 = arith.constant 0 : index
    %41 = vector.load %arg31[%c96, %c0_51] : memref<288x324xbf16, #tpu.memory_space<vmem>>, vector<3x324xbf16>
    tpu.vector_store %arg31[%c96, %c0_51], %40 {strides = array<i32>} : memref<288x324xbf16, #tpu.memory_space<vmem>>, vector<3x324xbf16>,
    %42 = vector.extract_strided_slice %33 {offsets = [0, 128], sizes = [3, 324], strides = [1, 1]} : vector<3x471xbf16> to vector<3x324xbf16>
    %c128_52 = arith.constant 128 : index
    %c0_53 = arith.constant 0 : index
    %43 = vector.load %arg31[%c128_52, %c0_53] : memref<288x324xbf16, #tpu.memory_space<vmem>>, vector<3x324xbf16>
    tpu.vector_store %arg31[%c128_52, %c0_53], %42 {strides = array<i32>} : memref<288x324xbf16, #tpu.memory_space<vmem>>, vector<3x324xbf16>,
    %44 = vector.extract_strided_slice %33 {offsets = [0, 129], sizes = [3, 324], strides = [1, 1]} : vector<3x471xbf16> to vector<3x324xbf16>
    %c160 = arith.constant 160 : index
    %c0_54 = arith.constant 0 : index
    %45 = vector.load %arg31[%c160, %c0_54] : memref<288x324xbf16, #tpu.memory_space<vmem>>, vector<3x324xbf16>
    tpu.vector_store %arg31[%c160, %c0_54], %44 {strides = array<i32>} : memref<288x324xbf16, #tpu.memory_space<vmem>>, vector<3x324xbf16>,
    %46 = vector.extract_strided_slice %33 {offsets = [0, 145], sizes = [3, 324], strides = [1, 1]} : vector<3x471xbf16> to vector<3x324xbf16>
    %c192 = arith.constant 192 : index
    %c0_55 = arith.constant 0 : index
    %47 = vector.load %arg31[%c192, %c0_55] : memref<288x324xbf16, #tpu.memory_space<vmem>>, vector<3x324xbf16>
    tpu.vector_store %arg31[%c192, %c0_55], %46 {strides = array<i32>} : memref<288x324xbf16, #tpu.memory_space<vmem>>, vector<3x324xbf16>,
    %48 = vector.extract_strided_slice %33 {offsets = [0, 146], sizes = [3, 324], strides = [1, 1]} : vector<3x471xbf16> to vector<3x324xbf16>
    %c224 = arith.constant 224 : index
    %c0_56 = arith.constant 0 : index
    %49 = vector.load %arg31[%c224, %c0_56] : memref<288x324xbf16, #tpu.memory_space<vmem>>, vector<3x324xbf16>
    tpu.vector_store %arg31[%c224, %c0_56], %48 {strides = array<i32>} : memref<288x324xbf16, #tpu.memory_space<vmem>>, vector<3x324xbf16>,
    %50 = vector.extract_strided_slice %33 {offsets = [0, 147], sizes = [3, 324], strides = [1, 1]} : vector<3x471xbf16> to vector<3x324xbf16>
    %c256 = arith.constant 256 : index
    %c0_57 = arith.constant 0 : index
    %51 = vector.load %arg31[%c256, %c0_57] : memref<288x324xbf16, #tpu.memory_space<vmem>>, vector<3x324xbf16>
    tpu.vector_store %arg31[%c256, %c0_57], %50 {strides = array<i32>} : memref<288x324xbf16, #tpu.memory_space<vmem>>, vector<3x324xbf16>,
    %c0_58 = arith.constant 0 : index
    %c0_59 = arith.constant 0 : index
    %c0_60 = arith.constant 0 : index
    %52 = vector.load %arg2[%c0_58, %c0_59, %c0_60] : memref<12x32x288xbf16, #tpu.memory_space<vmem>>, vector<1x4x288xbf16>
    %53 = vector.shape_cast %52 : vector<1x4x288xbf16> to vector<4x288xbf16>
    %c0_61 = arith.constant 0 : index
    %c0_62 = arith.constant 0 : index
    %54 = vector.load %arg31[%c0_61, %c0_62] : memref<288x324xbf16, #tpu.memory_space<vmem>>, vector<288x324xbf16>
    %cst_63 = arith.constant dense<0.000000e+00> : vector<4x324xf32>
    %55 = tpu.matmul %53, %54, %cst_63 {dimension_numbers = #tpu.dot_dimension_numbers<[1], [0], [0], [1], [0, 0, 1, 1], [], []>} : vector<4x288xbf16>, vector<288x324xbf16>, vector<4x324xf32> -> vector<4x324xf32>
    %56 = arith.addf %32, %55 : vector<4x324xf32>
    %c0_64 = arith.constant 0 : index
    %c0_65 = arith.constant 0 : index
    %c0_66 = arith.constant 0 : index
    %57 = vector.load %arg3[%c0_64, %c0_65, %c0_66] : memref<8x32x1xf32, #tpu.memory_space<vmem>>, vector<1x4x1xf32>
    %58 = vector.shape_cast %57 : vector<1x4x1xf32> to vector<4x1xf32>
    %59 = vector.broadcast %58 : vector<4x1xf32> to vector<4x324xf32>
    %60 = arith.mulf %56, %59 : vector<4x324xf32>
    %c0_67 = arith.constant 0 : index
    %c0_68 = arith.constant 0 : index
    %c0_69 = arith.constant 0 : index
    %61 = vector.load %arg4[%c0_67, %c0_68, %c0_69] : memref<8x32x1xf32, #tpu.memory_space<vmem>>, vector<1x4x1xf32>
    %62 = vector.shape_cast %61 : vector<1x4x1xf32> to vector<4x1xf32>
    %63 = vector.broadcast %62 : vector<4x1xf32> to vector<4x324xf32>
    %64 = arith.addf %60, %63 : vector<4x324xf32>
    %cst_70 = arith.constant 0.000000e+00 : f32
    %65 = vector.broadcast %cst_70 : f32 to vector<4x324xf32>
    %66 = arith.maximumf %64, %65 : vector<4x324xf32>
    %c0_71 = arith.constant 0 : index
    %c0_72 = arith.constant 0 : index
    %67 = vector.load %arg7[%c0_71, %c0_72] : memref<4x324xf32, #tpu.memory_space<vmem>>, vector<1x324xf32>
    %cst_73 = arith.constant 0.000000e+00 : f32
    %68 = vector.broadcast %cst_73 : f32 to vector<1x324xf32>
    %69 = arith.cmpf ogt, %67, %68 : vector<1x324xf32>
    %cst_74 = arith.constant 0.000000e+00 : f32
    %70 = vector.shape_cast %69 : vector<1x324xi1> to vector<1x324xi1>
    %71 = vector.broadcast %70 : vector<1x324xi1> to vector<4x324xi1>
    %72 = vector.broadcast %cst_74 : f32 to vector<4x324xf32>
    %73 = arith.select %71, %66, %72 : vector<4x324xi1>, vector<4x324xf32>
    %74 = arith.truncf %73 : vector<4x324xf32> to vector<4x324xbf16>
    %c0_75 = arith.constant 0 : index
    %c128_76 = arith.constant 128 : index
    %75 = vector.load %arg23[%c0_75, %c128_76] : memref<4x471xbf16, #tpu.memory_space<vmem>>, vector<4x324xbf16>
    tpu.vector_store %arg23[%c0_75, %c128_76], %74 {strides = array<i32>} : memref<4x471xbf16, #tpu.memory_space<vmem>>, vector<4x324xbf16>,
    %c0_77 = arith.constant 0 : index
    %c0_78 = arith.constant 0 : index
    %76 = vector.load %arg23[%c0_77, %c0_78] : memref<4x471xbf16, #tpu.memory_space<vmem>>, vector<4x471xbf16>
    %77 = vector.extract_strided_slice %76 {offsets = [0, 128], sizes = [4, 324], strides = [1, 1]} : vector<4x471xbf16> to vector<4x324xbf16>
    %78 = vector.extract_strided_slice %76 {offsets = [0, 129], sizes = [4, 324], strides = [1, 1]} : vector<4x471xbf16> to vector<4x324xbf16>
    %79 = arith.maximumf %77, %78 : vector<4x324xbf16>
    %80 = vector.extract_strided_slice %76 {offsets = [0, 146], sizes = [4, 324], strides = [1, 1]} : vector<4x471xbf16> to vector<4x324xbf16>
    %81 = vector.extract_strided_slice %76 {offsets = [0, 147], sizes = [4, 324], strides = [1, 1]} : vector<4x471xbf16> to vector<4x324xbf16>
    %82 = arith.maximumf %80, %81 : vector<4x324xbf16>
    %83 = arith.maximumf %79, %82 : vector<4x324xbf16>
    %c0_79 = arith.constant 0 : index
    %c0_80 = arith.constant 0 : index
    %84 = vector.load %arg8[%c0_79, %c0_80] : memref<324x100xf32, #tpu.memory_space<vmem>>, vector<324x100xf32>
    %cst_81 = arith.constant dense<0.000000e+00> : vector<4x100xf32>
    %85 = tpu.matmul %83, %84, %cst_81 {dimension_numbers = #tpu.dot_dimension_numbers<[1], [0], [0], [1], [0, 0, 1, 1], [], []>} : vector<4x324xbf16>, vector<324x100xf32>, vector<4x100xf32> -> vector<4x100xf32>
    %86 = arith.truncf %85 : vector<4x100xf32> to vector<4x100xbf16>
    %c0_82 = arith.constant 0 : index
    %c128_83 = arith.constant 128 : index
    %87 = vector.load %arg20[%c0_82, %c128_83] : memref<4x239xbf16, #tpu.memory_space<vmem>>, vector<4x100xbf16>
    tpu.vector_store %arg20[%c0_82, %c128_83], %86 {strides = array<i32>} : memref<4x239xbf16, #tpu.memory_space<vmem>>, vector<4x100xbf16>,
    %cst_84 = arith.constant 0.000000e+00 : f32
    %88 = vector.broadcast %cst_84 : f32 to vector<8x100xf32>
    %c0_85 = arith.constant 0 : index
    %c0_86 = arith.constant 0 : index
    %89 = vector.load %arg20[%c0_85, %c0_86] : memref<4x239xbf16, #tpu.memory_space<vmem>>, vector<4x239xbf16>
    %90 = vector.extract_strided_slice %89 {offsets = [0, 117], sizes = [4, 100], strides = [1, 1]} : vector<4x239xbf16> to vector<4x100xbf16>
    %c0_87 = arith.constant 0 : index
    %c0_88 = arith.constant 0 : index
    %91 = vector.load %arg31[%c0_87, %c0_88] : memref<288x324xbf16, #tpu.memory_space<vmem>>, vector<4x100xbf16>
    tpu.vector_store %arg31[%c0_87, %c0_88], %90 {strides = array<i32>} : memref<288x324xbf16, #tpu.memory_space<vmem>>, vector<4x100xbf16>,
    %92 = vector.extract_strided_slice %89 {offsets = [0, 118], sizes = [4, 100], strides = [1, 1]} : vector<4x239xbf16> to vector<4x100xbf16>
    %c32_89 = arith.constant 32 : index
    %c0_90 = arith.constant 0 : index
    %93 = vector.load %arg31[%c32_89, %c0_90] : memref<288x324xbf16, #tpu.memory_space<vmem>>, vector<4x100xbf16>
    tpu.vector_store %arg31[%c32_89, %c0_90], %92 {strides = array<i32>} : memref<288x324xbf16, #tpu.memory_space<vmem>>, vector<4x100xbf16>,
    %94 = vector.extract_strided_slice %89 {offsets = [0, 119], sizes = [4, 100], strides = [1, 1]} : vector<4x239xbf16> to vector<4x100xbf16>
    %c64_91 = arith.constant 64 : index
    %c0_92 = arith.constant 0 : index
    %95 = vector.load %arg31[%c64_91, %c0_92] : memref<288x324xbf16, #tpu.memory_space<vmem>>, vector<4x100xbf16>
    tpu.vector_store %arg31[%c64_91, %c0_92], %94 {strides = array<i32>} : memref<288x324xbf16, #tpu.memory_space<vmem>>, vector<4x100xbf16>,
    %96 = vector.extract_strided_slice %89 {offsets = [0, 127], sizes = [4, 100], strides = [1, 1]} : vector<4x239xbf16> to vector<4x100xbf16>
    %c96_93 = arith.constant 96 : index
    %c0_94 = arith.constant 0 : index
    %97 = vector.load %arg31[%c96_93, %c0_94] : memref<288x324xbf16, #tpu.memory_space<vmem>>, vector<4x100xbf16>
    tpu.vector_store %arg31[%c96_93, %c0_94], %96 {strides = array<i32>} : memref<288x324xbf16, #tpu.memory_space<vmem>>, vector<4x100xbf16>,
    %98 = vector.extract_strided_slice %89 {offsets = [0, 128], sizes = [4, 100], strides = [1, 1]} : vector<4x239xbf16> to vector<4x100xbf16>
    %c128_95 = arith.constant 128 : index
    %c0_96 = arith.constant 0 : index
    %99 = vector.load %arg31[%c128_95, %c0_96] : memref<288x324xbf16, #tpu.memory_space<vmem>>, vector<4x100xbf16>
    tpu.vector_store %arg31[%c128_95, %c0_96], %98 {strides = array<i32>} : memref<288x324xbf16, #tpu.memory_space<vmem>>, vector<4x100xbf16>,
    %100 = vector.extract_strided_slice %89 {offsets = [0, 129], sizes = [4, 100], strides = [1, 1]} : vector<4x239xbf16> to vector<4x100xbf16>
    %c160_97 = arith.constant 160 : index
    %c0_98 = arith.constant 0 : index
    %101 = vector.load %arg31[%c160_97, %c0_98] : memref<288x324xbf16, #tpu.memory_space<vmem>>, vector<4x100xbf16>
    tpu.vector_store %arg31[%c160_97, %c0_98], %100 {strides = array<i32>} : memref<288x324xbf16, #tpu.memory_space<vmem>>, vector<4x100xbf16>,
    %102 = vector.extract_strided_slice %89 {offsets = [0, 137], sizes = [4, 100], strides = [1, 1]} : vector<4x239xbf16> to vector<4x100xbf16>
    %c192_99 = arith.constant 192 : index
    %c0_100 = arith.constant 0 : index
    %103 = vector.load %arg31[%c192_99, %c0_100] : memref<288x324xbf16, #tpu.memory_space<vmem>>, vector<4x100xbf16>
    tpu.vector_store %arg31[%c192_99, %c0_100], %102 {strides = array<i32>} : memref<288x324xbf16, #tpu.memory_space<vmem>>, vector<4x100xbf16>,
    %104 = vector.extract_strided_slice %89 {offsets = [0, 138], sizes = [4, 100], strides = [1, 1]} : vector<4x239xbf16> to vector<4x100xbf16>
    %c224_101 = arith.constant 224 : index
    %c0_102 = arith.constant 0 : index
    %105 = vector.load %arg31[%c224_101, %c0_102] : memref<288x324xbf16, #tpu.memory_space<vmem>>, vector<4x100xbf16>
    tpu.vector_store %arg31[%c224_101, %c0_102], %104 {strides = array<i32>} : memref<288x324xbf16, #tpu.memory_space<vmem>>, vector<4x100xbf16>,
    %106 = vector.extract_strided_slice %89 {offsets = [0, 139], sizes = [4, 100], strides = [1, 1]} : vector<4x239xbf16> to vector<4x100xbf16>
    %c256_103 = arith.constant 256 : index
    %c0_104 = arith.constant 0 : index
    %107 = vector.load %arg31[%c256_103, %c0_104] : memref<288x324xbf16, #tpu.memory_space<vmem>>, vector<4x100xbf16>
    tpu.vector_store %arg31[%c256_103, %c0_104], %106 {strides = array<i32>} : memref<288x324xbf16, #tpu.memory_space<vmem>>, vector<4x100xbf16>,
    %c1 = arith.constant 1 : index
    %c0_105 = arith.constant 0 : index
    %c0_106 = arith.constant 0 : index
    %108 = vector.load %arg2[%c1, %c0_105, %c0_106] : memref<12x32x288xbf16, #tpu.memory_space<vmem>>, vector<1x8x288xbf16>
    %109 = vector.shape_cast %108 : vector<1x8x288xbf16> to vector<8x288xbf16>
    %c0_107 = arith.constant 0 : index
    %c0_108 = arith.constant 0 : index
    %110 = vector.load %arg31[%c0_107, %c0_108] : memref<288x324xbf16, #tpu.memory_space<vmem>>, vector<288x100xbf16>
    %cst_109 = arith.constant dense<0.000000e+00> : vector<8x100xf32>
    %111 = tpu.matmul %109, %110, %cst_109 {dimension_numbers = #tpu.dot_dimension_numbers<[1], [0], [0], [1], [0, 0, 1, 1], [], []>} : vector<8x288xbf16>, vector<288x100xbf16>, vector<8x100xf32> -> vector<8x100xf32>
    %112 = arith.addf %88, %111 : vector<8x100xf32>
    %c1_110 = arith.constant 1 : index
    %c0_111 = arith.constant 0 : index
    %c0_112 = arith.constant 0 : index
    %113 = vector.load %arg3[%c1_110, %c0_111, %c0_112] : memref<8x32x1xf32, #tpu.memory_space<vmem>>, vector<1x8x1xf32>
    %114 = vector.shape_cast %113 : vector<1x8x1xf32> to vector<8x1xf32>
    %115 = vector.broadcast %114 : vector<8x1xf32> to vector<8x100xf32>
    %116 = arith.mulf %112, %115 : vector<8x100xf32>
    %c1_113 = arith.constant 1 : index
    %c0_114 = arith.constant 0 : index
    %c0_115 = arith.constant 0 : index
    %117 = vector.load %arg4[%c1_113, %c0_114, %c0_115] : memref<8x32x1xf32, #tpu.memory_space<vmem>>, vector<1x8x1xf32>
    %118 = vector.shape_cast %117 : vector<1x8x1xf32> to vector<8x1xf32>
    %119 = vector.broadcast %118 : vector<8x1xf32> to vector<8x100xf32>
    %120 = arith.addf %116, %119 : vector<8x100xf32>
    %cst_116 = arith.constant 0.000000e+00 : f32
    %121 = vector.broadcast %cst_116 : f32 to vector<8x100xf32>
    %122 = arith.maximumf %120, %121 : vector<8x100xf32>
    %c1_117 = arith.constant 1 : index
    %c0_118 = arith.constant 0 : index
    %123 = vector.load %arg7[%c1_117, %c0_118] : memref<4x324xf32, #tpu.memory_space<vmem>>, vector<1x100xf32>
    %cst_119 = arith.constant 0.000000e+00 : f32
    %124 = vector.broadcast %cst_119 : f32 to vector<1x100xf32>
    %125 = arith.cmpf ogt, %123, %124 : vector<1x100xf32>
    %cst_120 = arith.constant 0.000000e+00 : f32
    %126 = vector.shape_cast %125 : vector<1x100xi1> to vector<1x100xi1>
    %127 = vector.broadcast %126 : vector<1x100xi1> to vector<8x100xi1>
    %128 = vector.broadcast %cst_120 : f32 to vector<8x100xf32>
    %129 = arith.select %127, %122, %128 : vector<8x100xi1>, vector<8x100xf32>
    %130 = arith.truncf %129 : vector<8x100xf32> to vector<8x100xbf16>
    %c0_121 = arith.constant 0 : index
    %c128_122 = arith.constant 128 : index
    %131 = vector.load %arg24[%c0_121, %c128_122] : memref<8x239xbf16, #tpu.memory_space<vmem>>, vector<8x100xbf16>
    tpu.vector_store %arg24[%c0_121, %c128_122], %130 {strides = array<i32>} : memref<8x239xbf16, #tpu.memory_space<vmem>>, vector<8x100xbf16>,
    %c0_123 = arith.constant 0 : index
    %c0_124 = arith.constant 0 : index
    %132 = vector.load %arg24[%c0_123, %c0_124] : memref<8x239xbf16, #tpu.memory_space<vmem>>, vector<8x239xbf16>
    %133 = vector.extract_strided_slice %132 {offsets = [0, 128], sizes = [8, 100], strides = [1, 1]} : vector<8x239xbf16> to vector<8x100xbf16>
    %134 = vector.extract_strided_slice %132 {offsets = [0, 129], sizes = [8, 100], strides = [1, 1]} : vector<8x239xbf16> to vector<8x100xbf16>
    %135 = arith.maximumf %133, %134 : vector<8x100xbf16>
    %136 = vector.extract_strided_slice %132 {offsets = [0, 138], sizes = [8, 100], strides = [1, 1]} : vector<8x239xbf16> to vector<8x100xbf16>
    %137 = vector.extract_strided_slice %132 {offsets = [0, 139], sizes = [8, 100], strides = [1, 1]} : vector<8x239xbf16> to vector<8x100xbf16>
    %138 = arith.maximumf %136, %137 : vector<8x100xbf16>
    %139 = arith.maximumf %135, %138 : vector<8x100xbf16>
    %c0_125 = arith.constant 0 : index
    %c0_126 = arith.constant 0 : index
    %140 = vector.load %arg9[%c0_125, %c0_126] : memref<100x36xf32, #tpu.memory_space<vmem>>, vector<100x36xf32>
    %cst_127 = arith.constant dense<0.000000e+00> : vector<8x36xf32>
    %141 = tpu.matmul %139, %140, %cst_127 {dimension_numbers = #tpu.dot_dimension_numbers<[1], [0], [0], [1], [0, 0, 1, 1], [], []>} : vector<8x100xbf16>, vector<100x36xf32>, vector<8x36xf32> -> vector<8x36xf32>
    %142 = arith.truncf %141 : vector<8x36xf32> to vector<8x36xbf16>
    %c0_128 = arith.constant 0 : index
    %c128_129 = arith.constant 128 : index
    %143 = vector.load %arg21[%c0_128, %c128_129] : memref<8x171xbf16, #tpu.memory_space<vmem>>, vector<8x36xbf16>
    tpu.vector_store %arg21[%c0_128, %c128_129], %142 {strides = array<i32>} : memref<8x171xbf16, #tpu.memory_space<vmem>>, vector<8x36xbf16>,
    %cst_130 = arith.constant 0.000000e+00 : f32
    %144 = vector.broadcast %cst_130 : f32 to vector<16x36xf32>
    %c0_131 = arith.constant 0 : index
    %c0_132 = arith.constant 0 : index
    %145 = vector.load %arg21[%c0_131, %c0_132] : memref<8x171xbf16, #tpu.memory_space<vmem>>, vector<8x171xbf16>
    %146 = vector.extract_strided_slice %145 {offsets = [0, 121], sizes = [8, 36], strides = [1, 1]} : vector<8x171xbf16> to vector<8x36xbf16>
    %c0_133 = arith.constant 0 : index
    %c0_134 = arith.constant 0 : index
    %147 = vector.load %arg31[%c0_133, %c0_134] : memref<288x324xbf16, #tpu.memory_space<vmem>>, vector<8x36xbf16>
    tpu.vector_store %arg31[%c0_133, %c0_134], %146 {strides = array<i32>} : memref<288x324xbf16, #tpu.memory_space<vmem>>, vector<8x36xbf16>,
    %148 = vector.extract_strided_slice %145 {offsets = [0, 122], sizes = [8, 36], strides = [1, 1]} : vector<8x171xbf16> to vector<8x36xbf16>
    %c32_135 = arith.constant 32 : index
    %c0_136 = arith.constant 0 : index
    %149 = vector.load %arg31[%c32_135, %c0_136] : memref<288x324xbf16, #tpu.memory_space<vmem>>, vector<8x36xbf16>
    tpu.vector_store %arg31[%c32_135, %c0_136], %148 {strides = array<i32>} : memref<288x324xbf16, #tpu.memory_space<vmem>>, vector<8x36xbf16>,
    %150 = vector.extract_strided_slice %145 {offsets = [0, 123], sizes = [8, 36], strides = [1, 1]} : vector<8x171xbf16> to vector<8x36xbf16>
    %c64_137 = arith.constant 64 : index
    %c0_138 = arith.constant 0 : index
    %151 = vector.load %arg31[%c64_137, %c0_138] : memref<288x324xbf16, #tpu.memory_space<vmem>>, vector<8x36xbf16>
    tpu.vector_store %arg31[%c64_137, %c0_138], %150 {strides = array<i32>} : memref<288x324xbf16, #tpu.memory_space<vmem>>, vector<8x36xbf16>,
    %152 = vector.extract_strided_slice %145 {offsets = [0, 127], sizes = [8, 36], strides = [1, 1]} : vector<8x171xbf16> to vector<8x36xbf16>
    %c96_139 = arith.constant 96 : index
    %c0_140 = arith.constant 0 : index
    %153 = vector.load %arg31[%c96_139, %c0_140] : memref<288x324xbf16, #tpu.memory_space<vmem>>, vector<8x36xbf16>
    tpu.vector_store %arg31[%c96_139, %c0_140], %152 {strides = array<i32>} : memref<288x324xbf16, #tpu.memory_space<vmem>>, vector<8x36xbf16>,
    %154 = vector.extract_strided_slice %145 {offsets = [0, 128], sizes = [8, 36], strides = [1, 1]} : vector<8x171xbf16> to vector<8x36xbf16>
    %c128_141 = arith.constant 128 : index
    %c0_142 = arith.constant 0 : index
    %155 = vector.load %arg31[%c128_141, %c0_142] : memref<288x324xbf16, #tpu.memory_space<vmem>>, vector<8x36xbf16>
    tpu.vector_store %arg31[%c128_141, %c0_142], %154 {strides = array<i32>} : memref<288x324xbf16, #tpu.memory_space<vmem>>, vector<8x36xbf16>,
    %156 = vector.extract_strided_slice %145 {offsets = [0, 129], sizes = [8, 36], strides = [1, 1]} : vector<8x171xbf16> to vector<8x36xbf16>
    %c160_143 = arith.constant 160 : index
    %c0_144 = arith.constant 0 : index
    %157 = vector.load %arg31[%c160_143, %c0_144] : memref<288x324xbf16, #tpu.memory_space<vmem>>, vector<8x36xbf16>
    tpu.vector_store %arg31[%c160_143, %c0_144], %156 {strides = array<i32>} : memref<288x324xbf16, #tpu.memory_space<vmem>>, vector<8x36xbf16>,
    %158 = vector.extract_strided_slice %145 {offsets = [0, 133], sizes = [8, 36], strides = [1, 1]} : vector<8x171xbf16> to vector<8x36xbf16>
    %c192_145 = arith.constant 192 : index
    %c0_146 = arith.constant 0 : index
    %159 = vector.load %arg31[%c192_145, %c0_146] : memref<288x324xbf16, #tpu.memory_space<vmem>>, vector<8x36xbf16>
    tpu.vector_store %arg31[%c192_145, %c0_146], %158 {strides = array<i32>} : memref<288x324xbf16, #tpu.memory_space<vmem>>, vector<8x36xbf16>,
    %160 = vector.extract_strided_slice %145 {offsets = [0, 134], sizes = [8, 36], strides = [1, 1]} : vector<8x171xbf16> to vector<8x36xbf16>
    %c224_147 = arith.constant 224 : index
    %c0_148 = arith.constant 0 : index
    %161 = vector.load %arg31[%c224_147, %c0_148] : memref<288x324xbf16, #tpu.memory_space<vmem>>, vector<8x36xbf16>
    tpu.vector_store %arg31[%c224_147, %c0_148], %160 {strides = array<i32>} : memref<288x324xbf16, #tpu.memory_space<vmem>>, vector<8x36xbf16>,
    %162 = vector.extract_strided_slice %145 {offsets = [0, 135], sizes = [8, 36], strides = [1, 1]} : vector<8x171xbf16> to vector<8x36xbf16>
    %c256_149 = arith.constant 256 : index
    %c0_150 = arith.constant 0 : index
    %163 = vector.load %arg31[%c256_149, %c0_150] : memref<288x324xbf16, #tpu.memory_space<vmem>>, vector<8x36xbf16>
    tpu.vector_store %arg31[%c256_149, %c0_150], %162 {strides = array<i32>} : memref<288x324xbf16, #tpu.memory_space<vmem>>, vector<8x36xbf16>,
    %c2 = arith.constant 2 : index
    %c0_151 = arith.constant 0 : index
    %c0_152 = arith.constant 0 : index
    %164 = vector.load %arg2[%c2, %c0_151, %c0_152] : memref<12x32x288xbf16, #tpu.memory_space<vmem>>, vector<1x16x288xbf16>
    %165 = vector.shape_cast %164 : vector<1x16x288xbf16> to vector<16x288xbf16>
    %c0_153 = arith.constant 0 : index
    %c0_154 = arith.constant 0 : index
    %166 = vector.load %arg31[%c0_153, %c0_154] : memref<288x324xbf16, #tpu.memory_space<vmem>>, vector<288x36xbf16>
    %cst_155 = arith.constant dense<0.000000e+00> : vector<16x36xf32>
    %167 = tpu.matmul %165, %166, %cst_155 {dimension_numbers = #tpu.dot_dimension_numbers<[1], [0], [0], [1], [0, 0, 1, 1], [], []>} : vector<16x288xbf16>, vector<288x36xbf16>, vector<16x36xf32> -> vector<16x36xf32>
    %168 = arith.addf %144, %167 : vector<16x36xf32>
    %c2_156 = arith.constant 2 : index
    %c0_157 = arith.constant 0 : index
    %c0_158 = arith.constant 0 : index
    %169 = vector.load %arg3[%c2_156, %c0_157, %c0_158] : memref<8x32x1xf32, #tpu.memory_space<vmem>>, vector<1x16x1xf32>
    %170 = vector.shape_cast %169 : vector<1x16x1xf32> to vector<16x1xf32>
    %171 = vector.broadcast %170 : vector<16x1xf32> to vector<16x36xf32>
    %172 = arith.mulf %168, %171 : vector<16x36xf32>
    %c2_159 = arith.constant 2 : index
    %c0_160 = arith.constant 0 : index
    %c0_161 = arith.constant 0 : index
    %173 = vector.load %arg4[%c2_159, %c0_160, %c0_161] : memref<8x32x1xf32, #tpu.memory_space<vmem>>, vector<1x16x1xf32>
    %174 = vector.shape_cast %173 : vector<1x16x1xf32> to vector<16x1xf32>
    %175 = vector.broadcast %174 : vector<16x1xf32> to vector<16x36xf32>
    %176 = arith.addf %172, %175 : vector<16x36xf32>
    %cst_162 = arith.constant 0.000000e+00 : f32
    %177 = vector.broadcast %cst_162 : f32 to vector<16x36xf32>
    %178 = arith.maximumf %176, %177 : vector<16x36xf32>
    %c2_163 = arith.constant 2 : index
    %c0_164 = arith.constant 0 : index
    %179 = vector.load %arg7[%c2_163, %c0_164] : memref<4x324xf32, #tpu.memory_space<vmem>>, vector<1x36xf32>
    %cst_165 = arith.constant 0.000000e+00 : f32
    %180 = vector.broadcast %cst_165 : f32 to vector<1x36xf32>
    %181 = arith.cmpf ogt, %179, %180 : vector<1x36xf32>
    %cst_166 = arith.constant 0.000000e+00 : f32
    %182 = vector.shape_cast %181 : vector<1x36xi1> to vector<1x36xi1>
    %183 = vector.broadcast %182 : vector<1x36xi1> to vector<16x36xi1>
    %184 = vector.broadcast %cst_166 : f32 to vector<16x36xf32>
    %185 = arith.select %183, %178, %184 : vector<16x36xi1>, vector<16x36xf32>
    %186 = arith.truncf %185 : vector<16x36xf32> to vector<16x36xbf16>
    %c0_167 = arith.constant 0 : index
    %c128_168 = arith.constant 128 : index
    %187 = vector.load %arg25[%c0_167, %c128_168] : memref<16x171xbf16, #tpu.memory_space<vmem>>, vector<16x36xbf16>
    tpu.vector_store %arg25[%c0_167, %c128_168], %186 {strides = array<i32>} : memref<16x171xbf16, #tpu.memory_space<vmem>>, vector<16x36xbf16>,
    %c0_169 = arith.constant 0 : index
    %c0_170 = arith.constant 0 : index
    %188 = vector.load %arg25[%c0_169, %c0_170] : memref<16x171xbf16, #tpu.memory_space<vmem>>, vector<16x171xbf16>
    %189 = vector.extract_strided_slice %188 {offsets = [0, 128], sizes = [16, 36], strides = [1, 1]} : vector<16x171xbf16> to vector<16x36xbf16>
    %190 = vector.extract_strided_slice %188 {offsets = [0, 129], sizes = [16, 36], strides = [1, 1]} : vector<16x171xbf16> to vector<16x36xbf16>
    %191 = arith.maximumf %189, %190 : vector<16x36xbf16>
    %192 = vector.extract_strided_slice %188 {offsets = [0, 134], sizes = [16, 36], strides = [1, 1]} : vector<16x171xbf16> to vector<16x36xbf16>
    %193 = vector.extract_strided_slice %188 {offsets = [0, 135], sizes = [16, 36], strides = [1, 1]} : vector<16x171xbf16> to vector<16x36xbf16>
    %194 = arith.maximumf %192, %193 : vector<16x36xbf16>
    %195 = arith.maximumf %191, %194 : vector<16x36xbf16>
    %c0_171 = arith.constant 0 : index
    %c0_172 = arith.constant 0 : index
    %196 = vector.load %arg10[%c0_171, %c0_172] : memref<36x16xf32, #tpu.memory_space<vmem>>, vector<36x16xf32>
    %cst_173 = arith.constant dense<0.000000e+00> : vector<16x16xf32>
    %197 = tpu.matmul %195, %196, %cst_173 {dimension_numbers = #tpu.dot_dimension_numbers<[1], [0], [0], [1], [0, 0, 1, 1], [], []>} : vector<16x36xbf16>, vector<36x16xf32>, vector<16x16xf32> -> vector<16x16xf32>
    %198 = arith.truncf %197 : vector<16x16xf32> to vector<16x16xbf16>
    %c0_174 = arith.constant 0 : index
    %c128_175 = arith.constant 128 : index
    %199 = vector.load %arg22[%c0_174, %c128_175] : memref<16x149xbf16, #tpu.memory_space<vmem>>, vector<16x16xbf16>
    tpu.vector_store %arg22[%c0_174, %c128_175], %198 {strides = array<i32>} : memref<16x149xbf16, #tpu.memory_space<vmem>>, vector<16x16xbf16>,
    %cst_176 = arith.constant 0.000000e+00 : f32
    %200 = vector.broadcast %cst_176 : f32 to vector<32x16xf32>
    %c0_177 = arith.constant 0 : index
    %c0_178 = arith.constant 0 : index
    %201 = vector.load %arg22[%c0_177, %c0_178] : memref<16x149xbf16, #tpu.memory_space<vmem>>, vector<16x149xbf16>
    %202 = vector.extract_strided_slice %201 {offsets = [0, 123], sizes = [16, 16], strides = [1, 1]} : vector<16x149xbf16> to vector<16x16xbf16>
    %c0_179 = arith.constant 0 : index
    %c0_180 = arith.constant 0 : index
    %203 = vector.load %arg31[%c0_179, %c0_180] : memref<288x324xbf16, #tpu.memory_space<vmem>>, vector<16x16xbf16>
    tpu.vector_store %arg31[%c0_179, %c0_180], %202 {strides = array<i32>} : memref<288x324xbf16, #tpu.memory_space<vmem>>, vector<16x16xbf16>,
    %204 = vector.extract_strided_slice %201 {offsets = [0, 124], sizes = [16, 16], strides = [1, 1]} : vector<16x149xbf16> to vector<16x16xbf16>
    %c32_181 = arith.constant 32 : index
    %c0_182 = arith.constant 0 : index
    %205 = vector.load %arg31[%c32_181, %c0_182] : memref<288x324xbf16, #tpu.memory_space<vmem>>, vector<16x16xbf16>
    tpu.vector_store %arg31[%c32_181, %c0_182], %204 {strides = array<i32>} : memref<288x324xbf16, #tpu.memory_space<vmem>>, vector<16x16xbf16>,
    %206 = vector.extract_strided_slice %201 {offsets = [0, 125], sizes = [16, 16], strides = [1, 1]} : vector<16x149xbf16> to vector<16x16xbf16>
    %c64_183 = arith.constant 64 : index
    %c0_184 = arith.constant 0 : index
    %207 = vector.load %arg31[%c64_183, %c0_184] : memref<288x324xbf16, #tpu.memory_space<vmem>>, vector<16x16xbf16>
    tpu.vector_store %arg31[%c64_183, %c0_184], %206 {strides = array<i32>} : memref<288x324xbf16, #tpu.memory_space<vmem>>, vector<16x16xbf16>,
    %208 = vector.extract_strided_slice %201 {offsets = [0, 127], sizes = [16, 16], strides = [1, 1]} : vector<16x149xbf16> to vector<16x16xbf16>
    %c96_185 = arith.constant 96 : index
    %c0_186 = arith.constant 0 : index
    %209 = vector.load %arg31[%c96_185, %c0_186] : memref<288x324xbf16, #tpu.memory_space<vmem>>, vector<16x16xbf16>
    tpu.vector_store %arg31[%c96_185, %c0_186], %208 {strides = array<i32>} : memref<288x324xbf16, #tpu.memory_space<vmem>>, vector<16x16xbf16>,
    %210 = vector.extract_strided_slice %201 {offsets = [0, 128], sizes = [16, 16], strides = [1, 1]} : vector<16x149xbf16> to vector<16x16xbf16>
    %c128_187 = arith.constant 128 : index
    %c0_188 = arith.constant 0 : index
    %211 = vector.load %arg31[%c128_187, %c0_188] : memref<288x324xbf16, #tpu.memory_space<vmem>>, vector<16x16xbf16>
    tpu.vector_store %arg31[%c128_187, %c0_188], %210 {strides = array<i32>} : memref<288x324xbf16, #tpu.memory_space<vmem>>, vector<16x16xbf16>,
    %212 = vector.extract_strided_slice %201 {offsets = [0, 129], sizes = [16, 16], strides = [1, 1]} : vector<16x149xbf16> to vector<16x16xbf16>
    %c160_189 = arith.constant 160 : index
    %c0_190 = arith.constant 0 : index
    %213 = vector.load %arg31[%c160_189, %c0_190] : memref<288x324xbf16, #tpu.memory_space<vmem>>, vector<16x16xbf16>
    tpu.vector_store %arg31[%c160_189, %c0_190], %212 {strides = array<i32>} : memref<288x324xbf16, #tpu.memory_space<vmem>>, vector<16x16xbf16>,
    %214 = vector.extract_strided_slice %201 {offsets = [0, 131], sizes = [16, 16], strides = [1, 1]} : vector<16x149xbf16> to vector<16x16xbf16>
    %c192_191 = arith.constant 192 : index
    %c0_192 = arith.constant 0 : index
    %215 = vector.load %arg31[%c192_191, %c0_192] : memref<288x324xbf16, #tpu.memory_space<vmem>>, vector<16x16xbf16>
    tpu.vector_store %arg31[%c192_191, %c0_192], %214 {strides = array<i32>} : memref<288x324xbf16, #tpu.memory_space<vmem>>, vector<16x16xbf16>,
    %216 = vector.extract_strided_slice %201 {offsets = [0, 132], sizes = [16, 16], strides = [1, 1]} : vector<16x149xbf16> to vector<16x16xbf16>
    %c224_193 = arith.constant 224 : index
    %c0_194 = arith.constant 0 : index
    %217 = vector.load %arg31[%c224_193, %c0_194] : memref<288x324xbf16, #tpu.memory_space<vmem>>, vector<16x16xbf16>
    tpu.vector_store %arg31[%c224_193, %c0_194], %216 {strides = array<i32>} : memref<288x324xbf16, #tpu.memory_space<vmem>>, vector<16x16xbf16>,
    %218 = vector.extract_strided_slice %201 {offsets = [0, 133], sizes = [16, 16], strides = [1, 1]} : vector<16x149xbf16> to vector<16x16xbf16>
    %c256_195 = arith.constant 256 : index
    %c0_196 = arith.constant 0 : index
    %219 = vector.load %arg31[%c256_195, %c0_196] : memref<288x324xbf16, #tpu.memory_space<vmem>>, vector<16x16xbf16>
    tpu.vector_store %arg31[%c256_195, %c0_196], %218 {strides = array<i32>} : memref<288x324xbf16, #tpu.memory_space<vmem>>, vector<16x16xbf16>,
    %c3 = arith.constant 3 : index
    %c0_197 = arith.constant 0 : index
    %c0_198 = arith.constant 0 : index
    %220 = vector.load %arg2[%c3, %c0_197, %c0_198] : memref<12x32x288xbf16, #tpu.memory_space<vmem>>, vector<1x32x288xbf16>
    %221 = vector.shape_cast %220 : vector<1x32x288xbf16> to vector<32x288xbf16>
    %c0_199 = arith.constant 0 : index
    %c0_200 = arith.constant 0 : index
    %222 = vector.load %arg31[%c0_199, %c0_200] : memref<288x324xbf16, #tpu.memory_space<vmem>>, vector<288x16xbf16>
    %cst_201 = arith.constant dense<0.000000e+00> : vector<32x16xf32>
    %223 = tpu.matmul %221, %222, %cst_201 {dimension_numbers = #tpu.dot_dimension_numbers<[1], [0], [0], [1], [0, 0, 1, 1], [], []>} : vector<32x288xbf16>, vector<288x16xbf16>, vector<32x16xf32> -> vector<32x16xf32>
    %224 = arith.addf %200, %223 : vector<32x16xf32>
    %c3_202 = arith.constant 3 : index
    %c0_203 = arith.constant 0 : index
    %c0_204 = arith.constant 0 : index
    %225 = vector.load %arg3[%c3_202, %c0_203, %c0_204] : memref<8x32x1xf32, #tpu.memory_space<vmem>>, vector<1x32x1xf32>
    %226 = vector.shape_cast %225 : vector<1x32x1xf32> to vector<32x1xf32>
    %227 = vector.broadcast %226 : vector<32x1xf32> to vector<32x16xf32>
    %228 = arith.mulf %224, %227 : vector<32x16xf32>
    %c3_205 = arith.constant 3 : index
    %c0_206 = arith.constant 0 : index
    %c0_207 = arith.constant 0 : index
    %229 = vector.load %arg4[%c3_205, %c0_206, %c0_207] : memref<8x32x1xf32, #tpu.memory_space<vmem>>, vector<1x32x1xf32>
    %230 = vector.shape_cast %229 : vector<1x32x1xf32> to vector<32x1xf32>
    %231 = vector.broadcast %230 : vector<32x1xf32> to vector<32x16xf32>
    %232 = arith.addf %228, %231 : vector<32x16xf32>
    %cst_208 = arith.constant 0.000000e+00 : f32
    %233 = vector.broadcast %cst_208 : f32 to vector<32x16xf32>
    %234 = arith.maximumf %232, %233 : vector<32x16xf32>
    %c3_209 = arith.constant 3 : index
    %c0_210 = arith.constant 0 : index
    %235 = vector.load %arg7[%c3_209, %c0_210] : memref<4x324xf32, #tpu.memory_space<vmem>>, vector<1x16xf32>
    %cst_211 = arith.constant 0.000000e+00 : f32
    %236 = vector.broadcast %cst_211 : f32 to vector<1x16xf32>
    %237 = arith.cmpf ogt, %235, %236 : vector<1x16xf32>
    %cst_212 = arith.constant 0.000000e+00 : f32
    %238 = vector.shape_cast %237 : vector<1x16xi1> to vector<1x16xi1>
    %239 = vector.broadcast %238 : vector<1x16xi1> to vector<32x16xi1>
    %240 = vector.broadcast %cst_212 : f32 to vector<32x16xf32>
    %241 = arith.select %239, %234, %240 : vector<32x16xi1>, vector<32x16xf32>
    %242 = arith.truncf %241 : vector<32x16xf32> to vector<32x16xbf16>
    %c0_213 = arith.constant 0 : index
    %c128_214 = arith.constant 128 : index
    %243 = vector.load %arg26[%c0_213, %c128_214] : memref<32x149xbf16, #tpu.memory_space<vmem>>, vector<32x16xbf16>
    tpu.vector_store %arg26[%c0_213, %c128_214], %242 {strides = array<i32>} : memref<32x149xbf16, #tpu.memory_space<vmem>>, vector<32x16xbf16>,
    %c0_215 = arith.constant 0 : index
    %c0_216 = arith.constant 0 : index
    %244 = vector.load %arg26[%c0_215, %c0_216] : memref<32x149xbf16, #tpu.memory_space<vmem>>, vector<32x149xbf16>
    %245 = vector.extract_strided_slice %244 {offsets = [0, 128], sizes = [32, 16], strides = [1, 1]} : vector<32x149xbf16> to vector<32x16xbf16>
    %246 = vector.extract_strided_slice %244 {offsets = [0, 129], sizes = [32, 16], strides = [1, 1]} : vector<32x149xbf16> to vector<32x16xbf16>
    %247 = arith.maximumf %245, %246 : vector<32x16xbf16>
    %248 = vector.extract_strided_slice %244 {offsets = [0, 132], sizes = [32, 16], strides = [1, 1]} : vector<32x149xbf16> to vector<32x16xbf16>
    %249 = vector.extract_strided_slice %244 {offsets = [0, 133], sizes = [32, 16], strides = [1, 1]} : vector<32x149xbf16> to vector<32x16xbf16>
    %250 = arith.maximumf %248, %249 : vector<32x16xbf16>
    %251 = arith.maximumf %247, %250 : vector<32x16xbf16>
    %c0_217 = arith.constant 0 : index
    %c0_218 = arith.constant 0 : index
    %252 = vector.load %arg11[%c0_217, %c0_218] : memref<16x9xf32, #tpu.memory_space<vmem>>, vector<16x9xf32>
    %cst_219 = arith.constant dense<0.000000e+00> : vector<32x9xf32>
    %253 = tpu.matmul %251, %252, %cst_219 {dimension_numbers = #tpu.dot_dimension_numbers<[1], [0], [0], [1], [0, 0, 1, 1], [], []>} : vector<32x16xbf16>, vector<16x9xf32>, vector<32x9xf32> -> vector<32x9xf32>
    %c0_220 = arith.constant 0 : index
    %c0_221 = arith.constant 0 : index
    %254 = vector.load %arg12[%c0_220, %c0_221] : memref<9x16xf32, #tpu.memory_space<vmem>>, vector<9x16xf32>
    %cst_222 = arith.constant dense<0.000000e+00> : vector<32x16xf32>
    %255 = tpu.matmul %253, %254, %cst_222 {dimension_numbers = #tpu.dot_dimension_numbers<[1], [0], [0], [1], [0, 0, 1, 1], [], []>} : vector<32x9xf32>, vector<9x16xf32>, vector<32x16xf32> -> vector<32x16xf32>
    %256 = arith.truncf %255 : vector<32x16xf32> to vector<32x16xbf16>
    %c0_223 = arith.constant 0 : index
    %c128_224 = arith.constant 128 : index
    %257 = vector.load %arg27[%c0_223, %c128_224] : memref<32x149xbf16, #tpu.memory_space<vmem>>, vector<32x16xbf16>
    tpu.vector_store %arg27[%c0_223, %c128_224], %256 {strides = array<i32>} : memref<32x149xbf16, #tpu.memory_space<vmem>>, vector<32x16xbf16>,
    %cst_225 = arith.constant 0.000000e+00 : f32
    %258 = vector.broadcast %cst_225 : f32 to vector<32x16xf32>
    %c0_226 = arith.constant 0 : index
    %c0_227 = arith.constant 0 : index
    %259 = vector.load %arg27[%c0_226, %c0_227] : memref<32x149xbf16, #tpu.memory_space<vmem>>, vector<32x149xbf16>
    %260 = vector.extract_strided_slice %259 {offsets = [0, 123], sizes = [32, 16], strides = [1, 1]} : vector<32x149xbf16> to vector<32x16xbf16>
    %c0_228 = arith.constant 0 : index
    %c0_229 = arith.constant 0 : index
    %261 = vector.load %arg31[%c0_228, %c0_229] : memref<288x324xbf16, #tpu.memory_space<vmem>>, vector<32x16xbf16>
    tpu.vector_store %arg31[%c0_228, %c0_229], %260 {strides = array<i32>} : memref<288x324xbf16, #tpu.memory_space<vmem>>, vector<32x16xbf16>,
    %262 = vector.extract_strided_slice %259 {offsets = [0, 124], sizes = [32, 16], strides = [1, 1]} : vector<32x149xbf16> to vector<32x16xbf16>
    %c32_230 = arith.constant 32 : index
    %c0_231 = arith.constant 0 : index
    %263 = vector.load %arg31[%c32_230, %c0_231] : memref<288x324xbf16, #tpu.memory_space<vmem>>, vector<32x16xbf16>
    tpu.vector_store %arg31[%c32_230, %c0_231], %262 {strides = array<i32>} : memref<288x324xbf16, #tpu.memory_space<vmem>>, vector<32x16xbf16>,
    %264 = vector.extract_strided_slice %259 {offsets = [0, 125], sizes = [32, 16], strides = [1, 1]} : vector<32x149xbf16> to vector<32x16xbf16>
    %c64_232 = arith.constant 64 : index
    %c0_233 = arith.constant 0 : index
    %265 = vector.load %arg31[%c64_232, %c0_233] : memref<288x324xbf16, #tpu.memory_space<vmem>>, vector<32x16xbf16>
    tpu.vector_store %arg31[%c64_232, %c0_233], %264 {strides = array<i32>} : memref<288x324xbf16, #tpu.memory_space<vmem>>, vector<32x16xbf16>,
    %266 = vector.extract_strided_slice %259 {offsets = [0, 127], sizes = [32, 16], strides = [1, 1]} : vector<32x149xbf16> to vector<32x16xbf16>
    %c96_234 = arith.constant 96 : index
    %c0_235 = arith.constant 0 : index
    %267 = vector.load %arg31[%c96_234, %c0_235] : memref<288x324xbf16, #tpu.memory_space<vmem>>, vector<32x16xbf16>
    tpu.vector_store %arg31[%c96_234, %c0_235], %266 {strides = array<i32>} : memref<288x324xbf16, #tpu.memory_space<vmem>>, vector<32x16xbf16>,
    %268 = vector.extract_strided_slice %259 {offsets = [0, 128], sizes = [32, 16], strides = [1, 1]} : vector<32x149xbf16> to vector<32x16xbf16>
    %c128_236 = arith.constant 128 : index
    %c0_237 = arith.constant 0 : index
    %269 = vector.load %arg31[%c128_236, %c0_237] : memref<288x324xbf16, #tpu.memory_space<vmem>>, vector<32x16xbf16>
    tpu.vector_store %arg31[%c128_236, %c0_237], %268 {strides = array<i32>} : memref<288x324xbf16, #tpu.memory_space<vmem>>, vector<32x16xbf16>,
    %270 = vector.extract_strided_slice %259 {offsets = [0, 129], sizes = [32, 16], strides = [1, 1]} : vector<32x149xbf16> to vector<32x16xbf16>
    %c160_238 = arith.constant 160 : index
    %c0_239 = arith.constant 0 : index
    %271 = vector.load %arg31[%c160_238, %c0_239] : memref<288x324xbf16, #tpu.memory_space<vmem>>, vector<32x16xbf16>
    tpu.vector_store %arg31[%c160_238, %c0_239], %270 {strides = array<i32>} : memref<288x324xbf16, #tpu.memory_space<vmem>>, vector<32x16xbf16>,
    %272 = vector.extract_strided_slice %259 {offsets = [0, 131], sizes = [32, 16], strides = [1, 1]} : vector<32x149xbf16> to vector<32x16xbf16>
    %c192_240 = arith.constant 192 : index
    %c0_241 = arith.constant 0 : index
    %273 = vector.load %arg31[%c192_240, %c0_241] : memref<288x324xbf16, #tpu.memory_space<vmem>>, vector<32x16xbf16>
    tpu.vector_store %arg31[%c192_240, %c0_241], %272 {strides = array<i32>} : memref<288x324xbf16, #tpu.memory_space<vmem>>, vector<32x16xbf16>,
    %274 = vector.extract_strided_slice %259 {offsets = [0, 132], sizes = [32, 16], strides = [1, 1]} : vector<32x149xbf16> to vector<32x16xbf16>
    %c224_242 = arith.constant 224 : index
    %c0_243 = arith.constant 0 : index
    %275 = vector.load %arg31[%c224_242, %c0_243] : memref<288x324xbf16, #tpu.memory_space<vmem>>, vector<32x16xbf16>
    tpu.vector_store %arg31[%c224_242, %c0_243], %274 {strides = array<i32>} : memref<288x324xbf16, #tpu.memory_space<vmem>>, vector<32x16xbf16>,
    %276 = vector.extract_strided_slice %259 {offsets = [0, 133], sizes = [32, 16], strides = [1, 1]} : vector<32x149xbf16> to vector<32x16xbf16>
    %c256_244 = arith.constant 256 : index
    %c0_245 = arith.constant 0 : index
    %277 = vector.load %arg31[%c256_244, %c0_245] : memref<288x324xbf16, #tpu.memory_space<vmem>>, vector<32x16xbf16>
    tpu.vector_store %arg31[%c256_244, %c0_245], %276 {strides = array<i32>} : memref<288x324xbf16, #tpu.memory_space<vmem>>, vector<32x16xbf16>,
    %c4 = arith.constant 4 : index
    %c0_246 = arith.constant 0 : index
    %c0_247 = arith.constant 0 : index
    %278 = vector.load %arg2[%c4, %c0_246, %c0_247] : memref<12x32x288xbf16, #tpu.memory_space<vmem>>, vector<1x32x288xbf16>
    %279 = vector.shape_cast %278 : vector<1x32x288xbf16> to vector<32x288xbf16>
    %c0_248 = arith.constant 0 : index
    %c0_249 = arith.constant 0 : index
    %280 = vector.load %arg31[%c0_248, %c0_249] : memref<288x324xbf16, #tpu.memory_space<vmem>>, vector<288x16xbf16>
    %cst_250 = arith.constant dense<0.000000e+00> : vector<32x16xf32>
    %281 = tpu.matmul %279, %280, %cst_250 {dimension_numbers = #tpu.dot_dimension_numbers<[1], [0], [0], [1], [0, 0, 1, 1], [], []>} : vector<32x288xbf16>, vector<288x16xbf16>, vector<32x16xf32> -> vector<32x16xf32>
    %282 = arith.addf %258, %281 : vector<32x16xf32>
    %c0_251 = arith.constant 0 : index
    %c0_252 = arith.constant 0 : index
    %283 = vector.load %arg26[%c0_251, %c0_252] : memref<32x149xbf16, #tpu.memory_space<vmem>>, vector<32x149xbf16>
    %284 = vector.extract_strided_slice %283 {offsets = [0, 123], sizes = [32, 16], strides = [1, 1]} : vector<32x149xbf16> to vector<32x16xbf16>
    %c0_253 = arith.constant 0 : index
    %c0_254 = arith.constant 0 : index
    %285 = vector.load %arg31[%c0_253, %c0_254] : memref<288x324xbf16, #tpu.memory_space<vmem>>, vector<32x16xbf16>
    tpu.vector_store %arg31[%c0_253, %c0_254], %284 {strides = array<i32>} : memref<288x324xbf16, #tpu.memory_space<vmem>>, vector<32x16xbf16>,
    %286 = vector.extract_strided_slice %283 {offsets = [0, 124], sizes = [32, 16], strides = [1, 1]} : vector<32x149xbf16> to vector<32x16xbf16>
    %c32_255 = arith.constant 32 : index
    %c0_256 = arith.constant 0 : index
    %287 = vector.load %arg31[%c32_255, %c0_256] : memref<288x324xbf16, #tpu.memory_space<vmem>>, vector<32x16xbf16>
    tpu.vector_store %arg31[%c32_255, %c0_256], %286 {strides = array<i32>} : memref<288x324xbf16, #tpu.memory_space<vmem>>, vector<32x16xbf16>,
    %288 = vector.extract_strided_slice %283 {offsets = [0, 125], sizes = [32, 16], strides = [1, 1]} : vector<32x149xbf16> to vector<32x16xbf16>
    %c64_257 = arith.constant 64 : index
    %c0_258 = arith.constant 0 : index
    %289 = vector.load %arg31[%c64_257, %c0_258] : memref<288x324xbf16, #tpu.memory_space<vmem>>, vector<32x16xbf16>
    tpu.vector_store %arg31[%c64_257, %c0_258], %288 {strides = array<i32>} : memref<288x324xbf16, #tpu.memory_space<vmem>>, vector<32x16xbf16>,
    %290 = vector.extract_strided_slice %283 {offsets = [0, 127], sizes = [32, 16], strides = [1, 1]} : vector<32x149xbf16> to vector<32x16xbf16>
    %c96_259 = arith.constant 96 : index
    %c0_260 = arith.constant 0 : index
    %291 = vector.load %arg31[%c96_259, %c0_260] : memref<288x324xbf16, #tpu.memory_space<vmem>>, vector<32x16xbf16>
    tpu.vector_store %arg31[%c96_259, %c0_260], %290 {strides = array<i32>} : memref<288x324xbf16, #tpu.memory_space<vmem>>, vector<32x16xbf16>,
    %292 = vector.extract_strided_slice %283 {offsets = [0, 128], sizes = [32, 16], strides = [1, 1]} : vector<32x149xbf16> to vector<32x16xbf16>
    %c128_261 = arith.constant 128 : index
    %c0_262 = arith.constant 0 : index
    %293 = vector.load %arg31[%c128_261, %c0_262] : memref<288x324xbf16, #tpu.memory_space<vmem>>, vector<32x16xbf16>
    tpu.vector_store %arg31[%c128_261, %c0_262], %292 {strides = array<i32>} : memref<288x324xbf16, #tpu.memory_space<vmem>>, vector<32x16xbf16>,
    %294 = vector.extract_strided_slice %283 {offsets = [0, 129], sizes = [32, 16], strides = [1, 1]} : vector<32x149xbf16> to vector<32x16xbf16>
    %c160_263 = arith.constant 160 : index
    %c0_264 = arith.constant 0 : index
    %295 = vector.load %arg31[%c160_263, %c0_264] : memref<288x324xbf16, #tpu.memory_space<vmem>>, vector<32x16xbf16>
    tpu.vector_store %arg31[%c160_263, %c0_264], %294 {strides = array<i32>} : memref<288x324xbf16, #tpu.memory_space<vmem>>, vector<32x16xbf16>,
    %296 = vector.extract_strided_slice %283 {offsets = [0, 131], sizes = [32, 16], strides = [1, 1]} : vector<32x149xbf16> to vector<32x16xbf16>
    %c192_265 = arith.constant 192 : index
    %c0_266 = arith.constant 0 : index
    %297 = vector.load %arg31[%c192_265, %c0_266] : memref<288x324xbf16, #tpu.memory_space<vmem>>, vector<32x16xbf16>
    tpu.vector_store %arg31[%c192_265, %c0_266], %296 {strides = array<i32>} : memref<288x324xbf16, #tpu.memory_space<vmem>>, vector<32x16xbf16>,
    %298 = vector.extract_strided_slice %283 {offsets = [0, 132], sizes = [32, 16], strides = [1, 1]} : vector<32x149xbf16> to vector<32x16xbf16>
    %c224_267 = arith.constant 224 : index
    %c0_268 = arith.constant 0 : index
    %299 = vector.load %arg31[%c224_267, %c0_268] : memref<288x324xbf16, #tpu.memory_space<vmem>>, vector<32x16xbf16>
    tpu.vector_store %arg31[%c224_267, %c0_268], %298 {strides = array<i32>} : memref<288x324xbf16, #tpu.memory_space<vmem>>, vector<32x16xbf16>,
    %300 = vector.extract_strided_slice %283 {offsets = [0, 133], sizes = [32, 16], strides = [1, 1]} : vector<32x149xbf16> to vector<32x16xbf16>
    %c256_269 = arith.constant 256 : index
    %c0_270 = arith.constant 0 : index
    %301 = vector.load %arg31[%c256_269, %c0_270] : memref<288x324xbf16, #tpu.memory_space<vmem>>, vector<32x16xbf16>
    tpu.vector_store %arg31[%c256_269, %c0_270], %300 {strides = array<i32>} : memref<288x324xbf16, #tpu.memory_space<vmem>>, vector<32x16xbf16>,
    %c5 = arith.constant 5 : index
    %c0_271 = arith.constant 0 : index
    %c0_272 = arith.constant 0 : index
    %302 = vector.load %arg2[%c5, %c0_271, %c0_272] : memref<12x32x288xbf16, #tpu.memory_space<vmem>>, vector<1x32x288xbf16>
    %303 = vector.shape_cast %302 : vector<1x32x288xbf16> to vector<32x288xbf16>
    %c0_273 = arith.constant 0 : index
    %c0_274 = arith.constant 0 : index
    %304 = vector.load %arg31[%c0_273, %c0_274] : memref<288x324xbf16, #tpu.memory_space<vmem>>, vector<288x16xbf16>
    %cst_275 = arith.constant dense<0.000000e+00> : vector<32x16xf32>
    %305 = tpu.matmul %303, %304, %cst_275 {dimension_numbers = #tpu.dot_dimension_numbers<[1], [0], [0], [1], [0, 0, 1, 1], [], []>} : vector<32x288xbf16>, vector<288x16xbf16>, vector<32x16xf32> -> vector<32x16xf32>
    %306 = arith.addf %282, %305 : vector<32x16xf32>
    %c4_276 = arith.constant 4 : index
    %c0_277 = arith.constant 0 : index
    %c0_278 = arith.constant 0 : index
    %307 = vector.load %arg3[%c4_276, %c0_277, %c0_278] : memref<8x32x1xf32, #tpu.memory_space<vmem>>, vector<1x32x1xf32>
    %308 = vector.shape_cast %307 : vector<1x32x1xf32> to vector<32x1xf32>
    %309 = vector.broadcast %308 : vector<32x1xf32> to vector<32x16xf32>
    %310 = arith.mulf %306, %309 : vector<32x16xf32>
    %c4_279 = arith.constant 4 : index
    %c0_280 = arith.constant 0 : index
    %c0_281 = arith.constant 0 : index
    %311 = vector.load %arg4[%c4_279, %c0_280, %c0_281] : memref<8x32x1xf32, #tpu.memory_space<vmem>>, vector<1x32x1xf32>
    %312 = vector.shape_cast %311 : vector<1x32x1xf32> to vector<32x1xf32>
    %313 = vector.broadcast %312 : vector<32x1xf32> to vector<32x16xf32>
    %314 = arith.addf %310, %313 : vector<32x16xf32>
    %cst_282 = arith.constant 0.000000e+00 : f32
    %315 = vector.broadcast %cst_282 : f32 to vector<32x16xf32>
    %316 = arith.maximumf %314, %315 : vector<32x16xf32>
    %c0_283 = arith.constant 0 : index
    %c0_284 = arith.constant 0 : index
    %317 = vector.load %arg13[%c0_283, %c0_284] : memref<16x36xf32, #tpu.memory_space<vmem>>, vector<16x36xf32>
    %cst_285 = arith.constant dense<0.000000e+00> : vector<32x36xf32>
    %318 = tpu.matmul %316, %317, %cst_285 {dimension_numbers = #tpu.dot_dimension_numbers<[1], [0], [0], [1], [0, 0, 1, 1], [], []>} : vector<32x16xf32>, vector<16x36xf32>, vector<32x36xf32> -> vector<32x36xf32>
    %319 = arith.truncf %318 : vector<32x36xf32> to vector<32x36xbf16>
    %c0_286 = arith.constant 0 : index
    %c128_287 = arith.constant 128 : index
    %320 = vector.load %arg28[%c0_286, %c128_287] : memref<32x171xbf16, #tpu.memory_space<vmem>>, vector<32x36xbf16>
    tpu.vector_store %arg28[%c0_286, %c128_287], %319 {strides = array<i32>} : memref<32x171xbf16, #tpu.memory_space<vmem>>, vector<32x36xbf16>,
    %cst_288 = arith.constant 0.000000e+00 : f32
    %321 = vector.broadcast %cst_288 : f32 to vector<16x36xf32>
    %c0_289 = arith.constant 0 : index
    %c0_290 = arith.constant 0 : index
    %322 = vector.load %arg28[%c0_289, %c0_290] : memref<32x171xbf16, #tpu.memory_space<vmem>>, vector<32x171xbf16>
    %323 = vector.extract_strided_slice %322 {offsets = [0, 121], sizes = [32, 36], strides = [1, 1]} : vector<32x171xbf16> to vector<32x36xbf16>
    %c0_291 = arith.constant 0 : index
    %c0_292 = arith.constant 0 : index
    %324 = vector.load %arg31[%c0_291, %c0_292] : memref<288x324xbf16, #tpu.memory_space<vmem>>, vector<32x36xbf16>
    tpu.vector_store %arg31[%c0_291, %c0_292], %323 {strides = array<i32>} : memref<288x324xbf16, #tpu.memory_space<vmem>>, vector<32x36xbf16>,
    %325 = vector.extract_strided_slice %322 {offsets = [0, 122], sizes = [32, 36], strides = [1, 1]} : vector<32x171xbf16> to vector<32x36xbf16>
    %c32_293 = arith.constant 32 : index
    %c0_294 = arith.constant 0 : index
    %326 = vector.load %arg31[%c32_293, %c0_294] : memref<288x324xbf16, #tpu.memory_space<vmem>>, vector<32x36xbf16>
    tpu.vector_store %arg31[%c32_293, %c0_294], %325 {strides = array<i32>} : memref<288x324xbf16, #tpu.memory_space<vmem>>, vector<32x36xbf16>,
    %327 = vector.extract_strided_slice %322 {offsets = [0, 123], sizes = [32, 36], strides = [1, 1]} : vector<32x171xbf16> to vector<32x36xbf16>
    %c64_295 = arith.constant 64 : index
    %c0_296 = arith.constant 0 : index
    %328 = vector.load %arg31[%c64_295, %c0_296] : memref<288x324xbf16, #tpu.memory_space<vmem>>, vector<32x36xbf16>
    tpu.vector_store %arg31[%c64_295, %c0_296], %327 {strides = array<i32>} : memref<288x324xbf16, #tpu.memory_space<vmem>>, vector<32x36xbf16>,
    %329 = vector.extract_strided_slice %322 {offsets = [0, 127], sizes = [32, 36], strides = [1, 1]} : vector<32x171xbf16> to vector<32x36xbf16>
    %c96_297 = arith.constant 96 : index
    %c0_298 = arith.constant 0 : index
    %330 = vector.load %arg31[%c96_297, %c0_298] : memref<288x324xbf16, #tpu.memory_space<vmem>>, vector<32x36xbf16>
    tpu.vector_store %arg31[%c96_297, %c0_298], %329 {strides = array<i32>} : memref<288x324xbf16, #tpu.memory_space<vmem>>, vector<32x36xbf16>,
    %331 = vector.extract_strided_slice %322 {offsets = [0, 128], sizes = [32, 36], strides = [1, 1]} : vector<32x171xbf16> to vector<32x36xbf16>
    %c128_299 = arith.constant 128 : index
    %c0_300 = arith.constant 0 : index
    %332 = vector.load %arg31[%c128_299, %c0_300] : memref<288x324xbf16, #tpu.memory_space<vmem>>, vector<32x36xbf16>
    tpu.vector_store %arg31[%c128_299, %c0_300], %331 {strides = array<i32>} : memref<288x324xbf16, #tpu.memory_space<vmem>>, vector<32x36xbf16>,
    %333 = vector.extract_strided_slice %322 {offsets = [0, 129], sizes = [32, 36], strides = [1, 1]} : vector<32x171xbf16> to vector<32x36xbf16>
    %c160_301 = arith.constant 160 : index
    %c0_302 = arith.constant 0 : index
    %334 = vector.load %arg31[%c160_301, %c0_302] : memref<288x324xbf16, #tpu.memory_space<vmem>>, vector<32x36xbf16>
    tpu.vector_store %arg31[%c160_301, %c0_302], %333 {strides = array<i32>} : memref<288x324xbf16, #tpu.memory_space<vmem>>, vector<32x36xbf16>,
    %335 = vector.extract_strided_slice %322 {offsets = [0, 133], sizes = [32, 36], strides = [1, 1]} : vector<32x171xbf16> to vector<32x36xbf16>
    %c192_303 = arith.constant 192 : index
    %c0_304 = arith.constant 0 : index
    %336 = vector.load %arg31[%c192_303, %c0_304] : memref<288x324xbf16, #tpu.memory_space<vmem>>, vector<32x36xbf16>
    tpu.vector_store %arg31[%c192_303, %c0_304], %335 {strides = array<i32>} : memref<288x324xbf16, #tpu.memory_space<vmem>>, vector<32x36xbf16>,
    %337 = vector.extract_strided_slice %322 {offsets = [0, 134], sizes = [32, 36], strides = [1, 1]} : vector<32x171xbf16> to vector<32x36xbf16>
    %c224_305 = arith.constant 224 : index
    %c0_306 = arith.constant 0 : index
    %338 = vector.load %arg31[%c224_305, %c0_306] : memref<288x324xbf16, #tpu.memory_space<vmem>>, vector<32x36xbf16>
    tpu.vector_store %arg31[%c224_305, %c0_306], %337 {strides = array<i32>} : memref<288x324xbf16, #tpu.memory_space<vmem>>, vector<32x36xbf16>,
    %339 = vector.extract_strided_slice %322 {offsets = [0, 135], sizes = [32, 36], strides = [1, 1]} : vector<32x171xbf16> to vector<32x36xbf16>
    %c256_307 = arith.constant 256 : index
    %c0_308 = arith.constant 0 : index
    %340 = vector.load %arg31[%c256_307, %c0_308] : memref<288x324xbf16, #tpu.memory_space<vmem>>, vector<32x36xbf16>
    tpu.vector_store %arg31[%c256_307, %c0_308], %339 {strides = array<i32>} : memref<288x324xbf16, #tpu.memory_space<vmem>>, vector<32x36xbf16>,
    %c6 = arith.constant 6 : index
    %c0_309 = arith.constant 0 : index
    %c0_310 = arith.constant 0 : index
    %341 = vector.load %arg2[%c6, %c0_309, %c0_310] : memref<12x32x288xbf16, #tpu.memory_space<vmem>>, vector<1x16x288xbf16>
    %342 = vector.shape_cast %341 : vector<1x16x288xbf16> to vector<16x288xbf16>
    %c0_311 = arith.constant 0 : index
    %c0_312 = arith.constant 0 : index
    %343 = vector.load %arg31[%c0_311, %c0_312] : memref<288x324xbf16, #tpu.memory_space<vmem>>, vector<288x36xbf16>
    %cst_313 = arith.constant dense<0.000000e+00> : vector<16x36xf32>
    %344 = tpu.matmul %342, %343, %cst_313 {dimension_numbers = #tpu.dot_dimension_numbers<[1], [0], [0], [1], [0, 0, 1, 1], [], []>} : vector<16x288xbf16>, vector<288x36xbf16>, vector<16x36xf32> -> vector<16x36xf32>
    %345 = arith.addf %321, %344 : vector<16x36xf32>
    %c0_314 = arith.constant 0 : index
    %c0_315 = arith.constant 0 : index
    %346 = vector.load %arg25[%c0_314, %c0_315] : memref<16x171xbf16, #tpu.memory_space<vmem>>, vector<16x171xbf16>
    %347 = vector.extract_strided_slice %346 {offsets = [0, 121], sizes = [16, 36], strides = [1, 1]} : vector<16x171xbf16> to vector<16x36xbf16>
    %c0_316 = arith.constant 0 : index
    %c0_317 = arith.constant 0 : index
    %348 = vector.load %arg31[%c0_316, %c0_317] : memref<288x324xbf16, #tpu.memory_space<vmem>>, vector<16x36xbf16>
    tpu.vector_store %arg31[%c0_316, %c0_317], %347 {strides = array<i32>} : memref<288x324xbf16, #tpu.memory_space<vmem>>, vector<16x36xbf16>,
    %349 = vector.extract_strided_slice %346 {offsets = [0, 122], sizes = [16, 36], strides = [1, 1]} : vector<16x171xbf16> to vector<16x36xbf16>
    %c32_318 = arith.constant 32 : index
    %c0_319 = arith.constant 0 : index
    %350 = vector.load %arg31[%c32_318, %c0_319] : memref<288x324xbf16, #tpu.memory_space<vmem>>, vector<16x36xbf16>
    tpu.vector_store %arg31[%c32_318, %c0_319], %349 {strides = array<i32>} : memref<288x324xbf16, #tpu.memory_space<vmem>>, vector<16x36xbf16>,
    %351 = vector.extract_strided_slice %346 {offsets = [0, 123], sizes = [16, 36], strides = [1, 1]} : vector<16x171xbf16> to vector<16x36xbf16>
    %c64_320 = arith.constant 64 : index
    %c0_321 = arith.constant 0 : index
    %352 = vector.load %arg31[%c64_320, %c0_321] : memref<288x324xbf16, #tpu.memory_space<vmem>>, vector<16x36xbf16>
    tpu.vector_store %arg31[%c64_320, %c0_321], %351 {strides = array<i32>} : memref<288x324xbf16, #tpu.memory_space<vmem>>, vector<16x36xbf16>,
    %353 = vector.extract_strided_slice %346 {offsets = [0, 127], sizes = [16, 36], strides = [1, 1]} : vector<16x171xbf16> to vector<16x36xbf16>
    %c96_322 = arith.constant 96 : index
    %c0_323 = arith.constant 0 : index
    %354 = vector.load %arg31[%c96_322, %c0_323] : memref<288x324xbf16, #tpu.memory_space<vmem>>, vector<16x36xbf16>
    tpu.vector_store %arg31[%c96_322, %c0_323], %353 {strides = array<i32>} : memref<288x324xbf16, #tpu.memory_space<vmem>>, vector<16x36xbf16>,
    %355 = vector.extract_strided_slice %346 {offsets = [0, 128], sizes = [16, 36], strides = [1, 1]} : vector<16x171xbf16> to vector<16x36xbf16>
    %c128_324 = arith.constant 128 : index
    %c0_325 = arith.constant 0 : index
    %356 = vector.load %arg31[%c128_324, %c0_325] : memref<288x324xbf16, #tpu.memory_space<vmem>>, vector<16x36xbf16>
    tpu.vector_store %arg31[%c128_324, %c0_325], %355 {strides = array<i32>} : memref<288x324xbf16, #tpu.memory_space<vmem>>, vector<16x36xbf16>,
    %357 = vector.extract_strided_slice %346 {offsets = [0, 129], sizes = [16, 36], strides = [1, 1]} : vector<16x171xbf16> to vector<16x36xbf16>
    %c160_326 = arith.constant 160 : index
    %c0_327 = arith.constant 0 : index
    %358 = vector.load %arg31[%c160_326, %c0_327] : memref<288x324xbf16, #tpu.memory_space<vmem>>, vector<16x36xbf16>
    tpu.vector_store %arg31[%c160_326, %c0_327], %357 {strides = array<i32>} : memref<288x324xbf16, #tpu.memory_space<vmem>>, vector<16x36xbf16>,
    %359 = vector.extract_strided_slice %346 {offsets = [0, 133], sizes = [16, 36], strides = [1, 1]} : vector<16x171xbf16> to vector<16x36xbf16>
    %c192_328 = arith.constant 192 : index
    %c0_329 = arith.constant 0 : index
    %360 = vector.load %arg31[%c192_328, %c0_329] : memref<288x324xbf16, #tpu.memory_space<vmem>>, vector<16x36xbf16>
    tpu.vector_store %arg31[%c192_328, %c0_329], %359 {strides = array<i32>} : memref<288x324xbf16, #tpu.memory_space<vmem>>, vector<16x36xbf16>,
    %361 = vector.extract_strided_slice %346 {offsets = [0, 134], sizes = [16, 36], strides = [1, 1]} : vector<16x171xbf16> to vector<16x36xbf16>
    %c224_330 = arith.constant 224 : index
    %c0_331 = arith.constant 0 : index
    %362 = vector.load %arg31[%c224_330, %c0_331] : memref<288x324xbf16, #tpu.memory_space<vmem>>, vector<16x36xbf16>
    tpu.vector_store %arg31[%c224_330, %c0_331], %361 {strides = array<i32>} : memref<288x324xbf16, #tpu.memory_space<vmem>>, vector<16x36xbf16>,
    %363 = vector.extract_strided_slice %346 {offsets = [0, 135], sizes = [16, 36], strides = [1, 1]} : vector<16x171xbf16> to vector<16x36xbf16>
    %c256_332 = arith.constant 256 : index
    %c0_333 = arith.constant 0 : index
    %364 = vector.load %arg31[%c256_332, %c0_333] : memref<288x324xbf16, #tpu.memory_space<vmem>>, vector<16x36xbf16>
    tpu.vector_store %arg31[%c256_332, %c0_333], %363 {strides = array<i32>} : memref<288x324xbf16, #tpu.memory_space<vmem>>, vector<16x36xbf16>,
    %c7 = arith.constant 7 : index
    %c0_334 = arith.constant 0 : index
    %c0_335 = arith.constant 0 : index
    %365 = vector.load %arg2[%c7, %c0_334, %c0_335] : memref<12x32x288xbf16, #tpu.memory_space<vmem>>, vector<1x16x288xbf16>
    %366 = vector.shape_cast %365 : vector<1x16x288xbf16> to vector<16x288xbf16>
    %c0_336 = arith.constant 0 : index
    %c0_337 = arith.constant 0 : index
    %367 = vector.load %arg31[%c0_336, %c0_337] : memref<288x324xbf16, #tpu.memory_space<vmem>>, vector<288x36xbf16>
    %cst_338 = arith.constant dense<0.000000e+00> : vector<16x36xf32>
    %368 = tpu.matmul %366, %367, %cst_338 {dimension_numbers = #tpu.dot_dimension_numbers<[1], [0], [0], [1], [0, 0, 1, 1], [], []>} : vector<16x288xbf16>, vector<288x36xbf16>, vector<16x36xf32> -> vector<16x36xf32>
    %369 = arith.addf %345, %368 : vector<16x36xf32>
    %c5_339 = arith.constant 5 : index
    %c0_340 = arith.constant 0 : index
    %c0_341 = arith.constant 0 : index
    %370 = vector.load %arg3[%c5_339, %c0_340, %c0_341] : memref<8x32x1xf32, #tpu.memory_space<vmem>>, vector<1x16x1xf32>
    %371 = vector.shape_cast %370 : vector<1x16x1xf32> to vector<16x1xf32>
    %372 = vector.broadcast %371 : vector<16x1xf32> to vector<16x36xf32>
    %373 = arith.mulf %369, %372 : vector<16x36xf32>
    %c5_342 = arith.constant 5 : index
    %c0_343 = arith.constant 0 : index
    %c0_344 = arith.constant 0 : index
    %374 = vector.load %arg4[%c5_342, %c0_343, %c0_344] : memref<8x32x1xf32, #tpu.memory_space<vmem>>, vector<1x16x1xf32>
    %375 = vector.shape_cast %374 : vector<1x16x1xf32> to vector<16x1xf32>
    %376 = vector.broadcast %375 : vector<16x1xf32> to vector<16x36xf32>
    %377 = arith.addf %373, %376 : vector<16x36xf32>
    %cst_345 = arith.constant 0.000000e+00 : f32
    %378 = vector.broadcast %cst_345 : f32 to vector<16x36xf32>
    %379 = arith.maximumf %377, %378 : vector<16x36xf32>
    %c0_346 = arith.constant 0 : index
    %c0_347 = arith.constant 0 : index
    %380 = vector.load %arg14[%c0_346, %c0_347] : memref<36x100xf32, #tpu.memory_space<vmem>>, vector<36x100xf32>
    %cst_348 = arith.constant dense<0.000000e+00> : vector<16x100xf32>
    %381 = tpu.matmul %379, %380, %cst_348 {dimension_numbers = #tpu.dot_dimension_numbers<[1], [0], [0], [1], [0, 0, 1, 1], [], []>} : vector<16x36xf32>, vector<36x100xf32>, vector<16x100xf32> -> vector<16x100xf32>
    %382 = arith.truncf %381 : vector<16x100xf32> to vector<16x100xbf16>
    %c0_349 = arith.constant 0 : index
    %c128_350 = arith.constant 128 : index
    %383 = vector.load %arg29[%c0_349, %c128_350] : memref<16x239xbf16, #tpu.memory_space<vmem>>, vector<16x100xbf16>
    tpu.vector_store %arg29[%c0_349, %c128_350], %382 {strides = array<i32>} : memref<16x239xbf16, #tpu.memory_space<vmem>>, vector<16x100xbf16>,
    %cst_351 = arith.constant 0.000000e+00 : f32
    %384 = vector.broadcast %cst_351 : f32 to vector<8x100xf32>
    %c0_352 = arith.constant 0 : index
    %c0_353 = arith.constant 0 : index
    %385 = vector.load %arg29[%c0_352, %c0_353] : memref<16x239xbf16, #tpu.memory_space<vmem>>, vector<16x239xbf16>
    %386 = vector.extract_strided_slice %385 {offsets = [0, 117], sizes = [16, 100], strides = [1, 1]} : vector<16x239xbf16> to vector<16x100xbf16>
    %c0_354 = arith.constant 0 : index
    %c0_355 = arith.constant 0 : index
    %387 = vector.load %arg31[%c0_354, %c0_355] : memref<288x324xbf16, #tpu.memory_space<vmem>>, vector<16x100xbf16>
    tpu.vector_store %arg31[%c0_354, %c0_355], %386 {strides = array<i32>} : memref<288x324xbf16, #tpu.memory_space<vmem>>, vector<16x100xbf16>,
    %388 = vector.extract_strided_slice %385 {offsets = [0, 118], sizes = [16, 100], strides = [1, 1]} : vector<16x239xbf16> to vector<16x100xbf16>
    %c32_356 = arith.constant 32 : index
    %c0_357 = arith.constant 0 : index
    %389 = vector.load %arg31[%c32_356, %c0_357] : memref<288x324xbf16, #tpu.memory_space<vmem>>, vector<16x100xbf16>
    tpu.vector_store %arg31[%c32_356, %c0_357], %388 {strides = array<i32>} : memref<288x324xbf16, #tpu.memory_space<vmem>>, vector<16x100xbf16>,
    %390 = vector.extract_strided_slice %385 {offsets = [0, 119], sizes = [16, 100], strides = [1, 1]} : vector<16x239xbf16> to vector<16x100xbf16>
    %c64_358 = arith.constant 64 : index
    %c0_359 = arith.constant 0 : index
    %391 = vector.load %arg31[%c64_358, %c0_359] : memref<288x324xbf16, #tpu.memory_space<vmem>>, vector<16x100xbf16>
    tpu.vector_store %arg31[%c64_358, %c0_359], %390 {strides = array<i32>} : memref<288x324xbf16, #tpu.memory_space<vmem>>, vector<16x100xbf16>,
    %392 = vector.extract_strided_slice %385 {offsets = [0, 127], sizes = [16, 100], strides = [1, 1]} : vector<16x239xbf16> to vector<16x100xbf16>
    %c96_360 = arith.constant 96 : index
    %c0_361 = arith.constant 0 : index
    %393 = vector.load %arg31[%c96_360, %c0_361] : memref<288x324xbf16, #tpu.memory_space<vmem>>, vector<16x100xbf16>
    tpu.vector_store %arg31[%c96_360, %c0_361], %392 {strides = array<i32>} : memref<288x324xbf16, #tpu.memory_space<vmem>>, vector<16x100xbf16>,
    %394 = vector.extract_strided_slice %385 {offsets = [0, 128], sizes = [16, 100], strides = [1, 1]} : vector<16x239xbf16> to vector<16x100xbf16>
    %c128_362 = arith.constant 128 : index
    %c0_363 = arith.constant 0 : index
    %395 = vector.load %arg31[%c128_362, %c0_363] : memref<288x324xbf16, #tpu.memory_space<vmem>>, vector<16x100xbf16>
    tpu.vector_store %arg31[%c128_362, %c0_363], %394 {strides = array<i32>} : memref<288x324xbf16, #tpu.memory_space<vmem>>, vector<16x100xbf16>,
    %396 = vector.extract_strided_slice %385 {offsets = [0, 129], sizes = [16, 100], strides = [1, 1]} : vector<16x239xbf16> to vector<16x100xbf16>
    %c160_364 = arith.constant 160 : index
    %c0_365 = arith.constant 0 : index
    %397 = vector.load %arg31[%c160_364, %c0_365] : memref<288x324xbf16, #tpu.memory_space<vmem>>, vector<16x100xbf16>
    tpu.vector_store %arg31[%c160_364, %c0_365], %396 {strides = array<i32>} : memref<288x324xbf16, #tpu.memory_space<vmem>>, vector<16x100xbf16>,
    %398 = vector.extract_strided_slice %385 {offsets = [0, 137], sizes = [16, 100], strides = [1, 1]} : vector<16x239xbf16> to vector<16x100xbf16>
    %c192_366 = arith.constant 192 : index
    %c0_367 = arith.constant 0 : index
    %399 = vector.load %arg31[%c192_366, %c0_367] : memref<288x324xbf16, #tpu.memory_space<vmem>>, vector<16x100xbf16>
    tpu.vector_store %arg31[%c192_366, %c0_367], %398 {strides = array<i32>} : memref<288x324xbf16, #tpu.memory_space<vmem>>, vector<16x100xbf16>,
    %400 = vector.extract_strided_slice %385 {offsets = [0, 138], sizes = [16, 100], strides = [1, 1]} : vector<16x239xbf16> to vector<16x100xbf16>
    %c224_368 = arith.constant 224 : index
    %c0_369 = arith.constant 0 : index
    %401 = vector.load %arg31[%c224_368, %c0_369] : memref<288x324xbf16, #tpu.memory_space<vmem>>, vector<16x100xbf16>
    tpu.vector_store %arg31[%c224_368, %c0_369], %400 {strides = array<i32>} : memref<288x324xbf16, #tpu.memory_space<vmem>>, vector<16x100xbf16>,
    %402 = vector.extract_strided_slice %385 {offsets = [0, 139], sizes = [16, 100], strides = [1, 1]} : vector<16x239xbf16> to vector<16x100xbf16>
    %c256_370 = arith.constant 256 : index
    %c0_371 = arith.constant 0 : index
    %403 = vector.load %arg31[%c256_370, %c0_371] : memref<288x324xbf16, #tpu.memory_space<vmem>>, vector<16x100xbf16>
    tpu.vector_store %arg31[%c256_370, %c0_371], %402 {strides = array<i32>} : memref<288x324xbf16, #tpu.memory_space<vmem>>, vector<16x100xbf16>,
    %c8 = arith.constant 8 : index
    %c0_372 = arith.constant 0 : index
    %c0_373 = arith.constant 0 : index
    %404 = vector.load %arg2[%c8, %c0_372, %c0_373] : memref<12x32x288xbf16, #tpu.memory_space<vmem>>, vector<1x8x288xbf16>
    %405 = vector.shape_cast %404 : vector<1x8x288xbf16> to vector<8x288xbf16>
    %c0_374 = arith.constant 0 : index
    %c0_375 = arith.constant 0 : index
    %406 = vector.load %arg31[%c0_374, %c0_375] : memref<288x324xbf16, #tpu.memory_space<vmem>>, vector<288x100xbf16>
    %cst_376 = arith.constant dense<0.000000e+00> : vector<8x100xf32>
    %407 = tpu.matmul %405, %406, %cst_376 {dimension_numbers = #tpu.dot_dimension_numbers<[1], [0], [0], [1], [0, 0, 1, 1], [], []>} : vector<8x288xbf16>, vector<288x100xbf16>, vector<8x100xf32> -> vector<8x100xf32>
    %408 = arith.addf %384, %407 : vector<8x100xf32>
    %c0_377 = arith.constant 0 : index
    %c0_378 = arith.constant 0 : index
    %409 = vector.load %arg24[%c0_377, %c0_378] : memref<8x239xbf16, #tpu.memory_space<vmem>>, vector<8x239xbf16>
    %410 = vector.extract_strided_slice %409 {offsets = [0, 117], sizes = [8, 100], strides = [1, 1]} : vector<8x239xbf16> to vector<8x100xbf16>
    %c0_379 = arith.constant 0 : index
    %c0_380 = arith.constant 0 : index
    %411 = vector.load %arg31[%c0_379, %c0_380] : memref<288x324xbf16, #tpu.memory_space<vmem>>, vector<8x100xbf16>
    tpu.vector_store %arg31[%c0_379, %c0_380], %410 {strides = array<i32>} : memref<288x324xbf16, #tpu.memory_space<vmem>>, vector<8x100xbf16>,
    %412 = vector.extract_strided_slice %409 {offsets = [0, 118], sizes = [8, 100], strides = [1, 1]} : vector<8x239xbf16> to vector<8x100xbf16>
    %c32_381 = arith.constant 32 : index
    %c0_382 = arith.constant 0 : index
    %413 = vector.load %arg31[%c32_381, %c0_382] : memref<288x324xbf16, #tpu.memory_space<vmem>>, vector<8x100xbf16>
    tpu.vector_store %arg31[%c32_381, %c0_382], %412 {strides = array<i32>} : memref<288x324xbf16, #tpu.memory_space<vmem>>, vector<8x100xbf16>,
    %414 = vector.extract_strided_slice %409 {offsets = [0, 119], sizes = [8, 100], strides = [1, 1]} : vector<8x239xbf16> to vector<8x100xbf16>
    %c64_383 = arith.constant 64 : index
    %c0_384 = arith.constant 0 : index
    %415 = vector.load %arg31[%c64_383, %c0_384] : memref<288x324xbf16, #tpu.memory_space<vmem>>, vector<8x100xbf16>
    tpu.vector_store %arg31[%c64_383, %c0_384], %414 {strides = array<i32>} : memref<288x324xbf16, #tpu.memory_space<vmem>>, vector<8x100xbf16>,
    %416 = vector.extract_strided_slice %409 {offsets = [0, 127], sizes = [8, 100], strides = [1, 1]} : vector<8x239xbf16> to vector<8x100xbf16>
    %c96_385 = arith.constant 96 : index
    %c0_386 = arith.constant 0 : index
    %417 = vector.load %arg31[%c96_385, %c0_386] : memref<288x324xbf16, #tpu.memory_space<vmem>>, vector<8x100xbf16>
    tpu.vector_store %arg31[%c96_385, %c0_386], %416 {strides = array<i32>} : memref<288x324xbf16, #tpu.memory_space<vmem>>, vector<8x100xbf16>,
    %418 = vector.extract_strided_slice %409 {offsets = [0, 128], sizes = [8, 100], strides = [1, 1]} : vector<8x239xbf16> to vector<8x100xbf16>
    %c128_387 = arith.constant 128 : index
    %c0_388 = arith.constant 0 : index
    %419 = vector.load %arg31[%c128_387, %c0_388] : memref<288x324xbf16, #tpu.memory_space<vmem>>, vector<8x100xbf16>
    tpu.vector_store %arg31[%c128_387, %c0_388], %418 {strides = array<i32>} : memref<288x324xbf16, #tpu.memory_space<vmem>>, vector<8x100xbf16>,
    %420 = vector.extract_strided_slice %409 {offsets = [0, 129], sizes = [8, 100], strides = [1, 1]} : vector<8x239xbf16> to vector<8x100xbf16>
    %c160_389 = arith.constant 160 : index
    %c0_390 = arith.constant 0 : index
    %421 = vector.load %arg31[%c160_389, %c0_390] : memref<288x324xbf16, #tpu.memory_space<vmem>>, vector<8x100xbf16>
    tpu.vector_store %arg31[%c160_389, %c0_390], %420 {strides = array<i32>} : memref<288x324xbf16, #tpu.memory_space<vmem>>, vector<8x100xbf16>,
    %422 = vector.extract_strided_slice %409 {offsets = [0, 137], sizes = [8, 100], strides = [1, 1]} : vector<8x239xbf16> to vector<8x100xbf16>
    %c192_391 = arith.constant 192 : index
    %c0_392 = arith.constant 0 : index
    %423 = vector.load %arg31[%c192_391, %c0_392] : memref<288x324xbf16, #tpu.memory_space<vmem>>, vector<8x100xbf16>
    tpu.vector_store %arg31[%c192_391, %c0_392], %422 {strides = array<i32>} : memref<288x324xbf16, #tpu.memory_space<vmem>>, vector<8x100xbf16>,
    %424 = vector.extract_strided_slice %409 {offsets = [0, 138], sizes = [8, 100], strides = [1, 1]} : vector<8x239xbf16> to vector<8x100xbf16>
    %c224_393 = arith.constant 224 : index
    %c0_394 = arith.constant 0 : index
    %425 = vector.load %arg31[%c224_393, %c0_394] : memref<288x324xbf16, #tpu.memory_space<vmem>>, vector<8x100xbf16>
    tpu.vector_store %arg31[%c224_393, %c0_394], %424 {strides = array<i32>} : memref<288x324xbf16, #tpu.memory_space<vmem>>, vector<8x100xbf16>,
    %426 = vector.extract_strided_slice %409 {offsets = [0, 139], sizes = [8, 100], strides = [1, 1]} : vector<8x239xbf16> to vector<8x100xbf16>
    %c256_395 = arith.constant 256 : index
    %c0_396 = arith.constant 0 : index
    %427 = vector.load %arg31[%c256_395, %c0_396] : memref<288x324xbf16, #tpu.memory_space<vmem>>, vector<8x100xbf16>
    tpu.vector_store %arg31[%c256_395, %c0_396], %426 {strides = array<i32>} : memref<288x324xbf16, #tpu.memory_space<vmem>>, vector<8x100xbf16>,
    %c9 = arith.constant 9 : index
    %c0_397 = arith.constant 0 : index
    %c0_398 = arith.constant 0 : index
    %428 = vector.load %arg2[%c9, %c0_397, %c0_398] : memref<12x32x288xbf16, #tpu.memory_space<vmem>>, vector<1x8x288xbf16>
    %429 = vector.shape_cast %428 : vector<1x8x288xbf16> to vector<8x288xbf16>
    %c0_399 = arith.constant 0 : index
    %c0_400 = arith.constant 0 : index
    %430 = vector.load %arg31[%c0_399, %c0_400] : memref<288x324xbf16, #tpu.memory_space<vmem>>, vector<288x100xbf16>
    %cst_401 = arith.constant dense<0.000000e+00> : vector<8x100xf32>
    %431 = tpu.matmul %429, %430, %cst_401 {dimension_numbers = #tpu.dot_dimension_numbers<[1], [0], [0], [1], [0, 0, 1, 1], [], []>} : vector<8x288xbf16>, vector<288x100xbf16>, vector<8x100xf32> -> vector<8x100xf32>
    %432 = arith.addf %408, %431 : vector<8x100xf32>
    %c6_402 = arith.constant 6 : index
    %c0_403 = arith.constant 0 : index
    %c0_404 = arith.constant 0 : index
    %433 = vector.load %arg3[%c6_402, %c0_403, %c0_404] : memref<8x32x1xf32, #tpu.memory_space<vmem>>, vector<1x8x1xf32>
    %434 = vector.shape_cast %433 : vector<1x8x1xf32> to vector<8x1xf32>
    %435 = vector.broadcast %434 : vector<8x1xf32> to vector<8x100xf32>
    %436 = arith.mulf %432, %435 : vector<8x100xf32>
    %c6_405 = arith.constant 6 : index
    %c0_406 = arith.constant 0 : index
    %c0_407 = arith.constant 0 : index
    %437 = vector.load %arg4[%c6_405, %c0_406, %c0_407] : memref<8x32x1xf32, #tpu.memory_space<vmem>>, vector<1x8x1xf32>
    %438 = vector.shape_cast %437 : vector<1x8x1xf32> to vector<8x1xf32>
    %439 = vector.broadcast %438 : vector<8x1xf32> to vector<8x100xf32>
    %440 = arith.addf %436, %439 : vector<8x100xf32>
    %cst_408 = arith.constant 0.000000e+00 : f32
    %441 = vector.broadcast %cst_408 : f32 to vector<8x100xf32>
    %442 = arith.maximumf %440, %441 : vector<8x100xf32>
    %c0_409 = arith.constant 0 : index
    %c0_410 = arith.constant 0 : index
    %443 = vector.load %arg15[%c0_409, %c0_410] : memref<100x324xf32, #tpu.memory_space<vmem>>, vector<100x324xf32>
    %cst_411 = arith.constant dense<0.000000e+00> : vector<8x324xf32>
    %444 = tpu.matmul %442, %443, %cst_411 {dimension_numbers = #tpu.dot_dimension_numbers<[1], [0], [0], [1], [0, 0, 1, 1], [], []>} : vector<8x100xf32>, vector<100x324xf32>, vector<8x324xf32> -> vector<8x324xf32>
    %445 = arith.truncf %444 : vector<8x324xf32> to vector<8x324xbf16>
    %c0_412 = arith.constant 0 : index
    %c128_413 = arith.constant 128 : index
    %446 = vector.load %arg30[%c0_412, %c128_413] : memref<8x471xbf16, #tpu.memory_space<vmem>>, vector<8x324xbf16>
    tpu.vector_store %arg30[%c0_412, %c128_413], %445 {strides = array<i32>} : memref<8x471xbf16, #tpu.memory_space<vmem>>, vector<8x324xbf16>,
    %cst_414 = arith.constant 0.000000e+00 : f32
    %447 = vector.broadcast %cst_414 : f32 to vector<4x324xf32>
    %c0_415 = arith.constant 0 : index
    %c0_416 = arith.constant 0 : index
    %448 = vector.load %arg30[%c0_415, %c0_416] : memref<8x471xbf16, #tpu.memory_space<vmem>>, vector<8x471xbf16>
    %449 = vector.extract_strided_slice %448 {offsets = [0, 109], sizes = [8, 324], strides = [1, 1]} : vector<8x471xbf16> to vector<8x324xbf16>
    %c0_417 = arith.constant 0 : index
    %c0_418 = arith.constant 0 : index
    %450 = vector.load %arg31[%c0_417, %c0_418] : memref<288x324xbf16, #tpu.memory_space<vmem>>, vector<8x324xbf16>
    tpu.vector_store %arg31[%c0_417, %c0_418], %449 {strides = array<i32>} : memref<288x324xbf16, #tpu.memory_space<vmem>>, vector<8x324xbf16>,
    %451 = vector.extract_strided_slice %448 {offsets = [0, 110], sizes = [8, 324], strides = [1, 1]} : vector<8x471xbf16> to vector<8x324xbf16>
    %c32_419 = arith.constant 32 : index
    %c0_420 = arith.constant 0 : index
    %452 = vector.load %arg31[%c32_419, %c0_420] : memref<288x324xbf16, #tpu.memory_space<vmem>>, vector<8x324xbf16>
    tpu.vector_store %arg31[%c32_419, %c0_420], %451 {strides = array<i32>} : memref<288x324xbf16, #tpu.memory_space<vmem>>, vector<8x324xbf16>,
    %453 = vector.extract_strided_slice %448 {offsets = [0, 111], sizes = [8, 324], strides = [1, 1]} : vector<8x471xbf16> to vector<8x324xbf16>
    %c64_421 = arith.constant 64 : index
    %c0_422 = arith.constant 0 : index
    %454 = vector.load %arg31[%c64_421, %c0_422] : memref<288x324xbf16, #tpu.memory_space<vmem>>, vector<8x324xbf16>
    tpu.vector_store %arg31[%c64_421, %c0_422], %453 {strides = array<i32>} : memref<288x324xbf16, #tpu.memory_space<vmem>>, vector<8x324xbf16>,
    %455 = vector.extract_strided_slice %448 {offsets = [0, 127], sizes = [8, 324], strides = [1, 1]} : vector<8x471xbf16> to vector<8x324xbf16>
    %c96_423 = arith.constant 96 : index
    %c0_424 = arith.constant 0 : index
    %456 = vector.load %arg31[%c96_423, %c0_424] : memref<288x324xbf16, #tpu.memory_space<vmem>>, vector<8x324xbf16>
    tpu.vector_store %arg31[%c96_423, %c0_424], %455 {strides = array<i32>} : memref<288x324xbf16, #tpu.memory_space<vmem>>, vector<8x324xbf16>,
    %457 = vector.extract_strided_slice %448 {offsets = [0, 128], sizes = [8, 324], strides = [1, 1]} : vector<8x471xbf16> to vector<8x324xbf16>
    %c128_425 = arith.constant 128 : index
    %c0_426 = arith.constant 0 : index
    %458 = vector.load %arg31[%c128_425, %c0_426] : memref<288x324xbf16, #tpu.memory_space<vmem>>, vector<8x324xbf16>
    tpu.vector_store %arg31[%c128_425, %c0_426], %457 {strides = array<i32>} : memref<288x324xbf16, #tpu.memory_space<vmem>>, vector<8x324xbf16>,
    %459 = vector.extract_strided_slice %448 {offsets = [0, 129], sizes = [8, 324], strides = [1, 1]} : vector<8x471xbf16> to vector<8x324xbf16>
    %c160_427 = arith.constant 160 : index
    %c0_428 = arith.constant 0 : index
    %460 = vector.load %arg31[%c160_427, %c0_428] : memref<288x324xbf16, #tpu.memory_space<vmem>>, vector<8x324xbf16>
    tpu.vector_store %arg31[%c160_427, %c0_428], %459 {strides = array<i32>} : memref<288x324xbf16, #tpu.memory_space<vmem>>, vector<8x324xbf16>,
    %461 = vector.extract_strided_slice %448 {offsets = [0, 145], sizes = [8, 324], strides = [1, 1]} : vector<8x471xbf16> to vector<8x324xbf16>
    %c192_429 = arith.constant 192 : index
    %c0_430 = arith.constant 0 : index
    %462 = vector.load %arg31[%c192_429, %c0_430] : memref<288x324xbf16, #tpu.memory_space<vmem>>, vector<8x324xbf16>
    tpu.vector_store %arg31[%c192_429, %c0_430], %461 {strides = array<i32>} : memref<288x324xbf16, #tpu.memory_space<vmem>>, vector<8x324xbf16>,
    %463 = vector.extract_strided_slice %448 {offsets = [0, 146], sizes = [8, 324], strides = [1, 1]} : vector<8x471xbf16> to vector<8x324xbf16>
    %c224_431 = arith.constant 224 : index
    %c0_432 = arith.constant 0 : index
    %464 = vector.load %arg31[%c224_431, %c0_432] : memref<288x324xbf16, #tpu.memory_space<vmem>>, vector<8x324xbf16>
    tpu.vector_store %arg31[%c224_431, %c0_432], %463 {strides = array<i32>} : memref<288x324xbf16, #tpu.memory_space<vmem>>, vector<8x324xbf16>,
    %465 = vector.extract_strided_slice %448 {offsets = [0, 147], sizes = [8, 324], strides = [1, 1]} : vector<8x471xbf16> to vector<8x324xbf16>
    %c256_433 = arith.constant 256 : index
    %c0_434 = arith.constant 0 : index
    %466 = vector.load %arg31[%c256_433, %c0_434] : memref<288x324xbf16, #tpu.memory_space<vmem>>, vector<8x324xbf16>
    tpu.vector_store %arg31[%c256_433, %c0_434], %465 {strides = array<i32>} : memref<288x324xbf16, #tpu.memory_space<vmem>>, vector<8x324xbf16>,
    %c10 = arith.constant 10 : index
    %c0_435 = arith.constant 0 : index
    %c0_436 = arith.constant 0 : index
    %467 = vector.load %arg2[%c10, %c0_435, %c0_436] : memref<12x32x288xbf16, #tpu.memory_space<vmem>>, vector<1x4x288xbf16>
    %468 = vector.shape_cast %467 : vector<1x4x288xbf16> to vector<4x288xbf16>
    %c0_437 = arith.constant 0 : index
    %c0_438 = arith.constant 0 : index
    %469 = vector.load %arg31[%c0_437, %c0_438] : memref<288x324xbf16, #tpu.memory_space<vmem>>, vector<288x324xbf16>
    %cst_439 = arith.constant dense<0.000000e+00> : vector<4x324xf32>
    %470 = tpu.matmul %468, %469, %cst_439 {dimension_numbers = #tpu.dot_dimension_numbers<[1], [0], [0], [1], [0, 0, 1, 1], [], []>} : vector<4x288xbf16>, vector<288x324xbf16>, vector<4x324xf32> -> vector<4x324xf32>
    %471 = arith.addf %447, %470 : vector<4x324xf32>
    %c0_440 = arith.constant 0 : index
    %c0_441 = arith.constant 0 : index
    %472 = vector.load %arg23[%c0_440, %c0_441] : memref<4x471xbf16, #tpu.memory_space<vmem>>, vector<4x471xbf16>
    %473 = vector.extract_strided_slice %472 {offsets = [0, 109], sizes = [4, 324], strides = [1, 1]} : vector<4x471xbf16> to vector<4x324xbf16>
    %c0_442 = arith.constant 0 : index
    %c0_443 = arith.constant 0 : index
    %474 = vector.load %arg31[%c0_442, %c0_443] : memref<288x324xbf16, #tpu.memory_space<vmem>>, vector<4x324xbf16>
    tpu.vector_store %arg31[%c0_442, %c0_443], %473 {strides = array<i32>} : memref<288x324xbf16, #tpu.memory_space<vmem>>, vector<4x324xbf16>,
    %475 = vector.extract_strided_slice %472 {offsets = [0, 110], sizes = [4, 324], strides = [1, 1]} : vector<4x471xbf16> to vector<4x324xbf16>
    %c32_444 = arith.constant 32 : index
    %c0_445 = arith.constant 0 : index
    %476 = vector.load %arg31[%c32_444, %c0_445] : memref<288x324xbf16, #tpu.memory_space<vmem>>, vector<4x324xbf16>
    tpu.vector_store %arg31[%c32_444, %c0_445], %475 {strides = array<i32>} : memref<288x324xbf16, #tpu.memory_space<vmem>>, vector<4x324xbf16>,
    %477 = vector.extract_strided_slice %472 {offsets = [0, 111], sizes = [4, 324], strides = [1, 1]} : vector<4x471xbf16> to vector<4x324xbf16>
    %c64_446 = arith.constant 64 : index
    %c0_447 = arith.constant 0 : index
    %478 = vector.load %arg31[%c64_446, %c0_447] : memref<288x324xbf16, #tpu.memory_space<vmem>>, vector<4x324xbf16>
    tpu.vector_store %arg31[%c64_446, %c0_447], %477 {strides = array<i32>} : memref<288x324xbf16, #tpu.memory_space<vmem>>, vector<4x324xbf16>,
    %479 = vector.extract_strided_slice %472 {offsets = [0, 127], sizes = [4, 324], strides = [1, 1]} : vector<4x471xbf16> to vector<4x324xbf16>
    %c96_448 = arith.constant 96 : index
    %c0_449 = arith.constant 0 : index
    %480 = vector.load %arg31[%c96_448, %c0_449] : memref<288x324xbf16, #tpu.memory_space<vmem>>, vector<4x324xbf16>
    tpu.vector_store %arg31[%c96_448, %c0_449], %479 {strides = array<i32>} : memref<288x324xbf16, #tpu.memory_space<vmem>>, vector<4x324xbf16>,
    %481 = vector.extract_strided_slice %472 {offsets = [0, 128], sizes = [4, 324], strides = [1, 1]} : vector<4x471xbf16> to vector<4x324xbf16>
    %c128_450 = arith.constant 128 : index
    %c0_451 = arith.constant 0 : index
    %482 = vector.load %arg31[%c128_450, %c0_451] : memref<288x324xbf16, #tpu.memory_space<vmem>>, vector<4x324xbf16>
    tpu.vector_store %arg31[%c128_450, %c0_451], %481 {strides = array<i32>} : memref<288x324xbf16, #tpu.memory_space<vmem>>, vector<4x324xbf16>,
    %483 = vector.extract_strided_slice %472 {offsets = [0, 129], sizes = [4, 324], strides = [1, 1]} : vector<4x471xbf16> to vector<4x324xbf16>
    %c160_452 = arith.constant 160 : index
    %c0_453 = arith.constant 0 : index
    %484 = vector.load %arg31[%c160_452, %c0_453] : memref<288x324xbf16, #tpu.memory_space<vmem>>, vector<4x324xbf16>
    tpu.vector_store %arg31[%c160_452, %c0_453], %483 {strides = array<i32>} : memref<288x324xbf16, #tpu.memory_space<vmem>>, vector<4x324xbf16>,
    %485 = vector.extract_strided_slice %472 {offsets = [0, 145], sizes = [4, 324], strides = [1, 1]} : vector<4x471xbf16> to vector<4x324xbf16>
    %c192_454 = arith.constant 192 : index
    %c0_455 = arith.constant 0 : index
    %486 = vector.load %arg31[%c192_454, %c0_455] : memref<288x324xbf16, #tpu.memory_space<vmem>>, vector<4x324xbf16>
    tpu.vector_store %arg31[%c192_454, %c0_455], %485 {strides = array<i32>} : memref<288x324xbf16, #tpu.memory_space<vmem>>, vector<4x324xbf16>,
    %487 = vector.extract_strided_slice %472 {offsets = [0, 146], sizes = [4, 324], strides = [1, 1]} : vector<4x471xbf16> to vector<4x324xbf16>
    %c224_456 = arith.constant 224 : index
    %c0_457 = arith.constant 0 : index
    %488 = vector.load %arg31[%c224_456, %c0_457] : memref<288x324xbf16, #tpu.memory_space<vmem>>, vector<4x324xbf16>
    tpu.vector_store %arg31[%c224_456, %c0_457], %487 {strides = array<i32>} : memref<288x324xbf16, #tpu.memory_space<vmem>>, vector<4x324xbf16>,
    %489 = vector.extract_strided_slice %472 {offsets = [0, 147], sizes = [4, 324], strides = [1, 1]} : vector<4x471xbf16> to vector<4x324xbf16>
    %c256_458 = arith.constant 256 : index
    %c0_459 = arith.constant 0 : index
    %490 = vector.load %arg31[%c256_458, %c0_459] : memref<288x324xbf16, #tpu.memory_space<vmem>>, vector<4x324xbf16>
    tpu.vector_store %arg31[%c256_458, %c0_459], %489 {strides = array<i32>} : memref<288x324xbf16, #tpu.memory_space<vmem>>, vector<4x324xbf16>,
    %c11 = arith.constant 11 : index
    %c0_460 = arith.constant 0 : index
    %c0_461 = arith.constant 0 : index
    %491 = vector.load %arg2[%c11, %c0_460, %c0_461] : memref<12x32x288xbf16, #tpu.memory_space<vmem>>, vector<1x4x288xbf16>
    %492 = vector.shape_cast %491 : vector<1x4x288xbf16> to vector<4x288xbf16>
    %c0_462 = arith.constant 0 : index
    %c0_463 = arith.constant 0 : index
    %493 = vector.load %arg31[%c0_462, %c0_463] : memref<288x324xbf16, #tpu.memory_space<vmem>>, vector<288x324xbf16>
    %cst_464 = arith.constant dense<0.000000e+00> : vector<4x324xf32>
    %494 = tpu.matmul %492, %493, %cst_464 {dimension_numbers = #tpu.dot_dimension_numbers<[1], [0], [0], [1], [0, 0, 1, 1], [], []>} : vector<4x288xbf16>, vector<288x324xbf16>, vector<4x324xf32> -> vector<4x324xf32>
    %495 = arith.addf %471, %494 : vector<4x324xf32>
    %c7_465 = arith.constant 7 : index
    %c0_466 = arith.constant 0 : index
    %c0_467 = arith.constant 0 : index
    %496 = vector.load %arg3[%c7_465, %c0_466, %c0_467] : memref<8x32x1xf32, #tpu.memory_space<vmem>>, vector<1x4x1xf32>
    %497 = vector.shape_cast %496 : vector<1x4x1xf32> to vector<4x1xf32>
    %498 = vector.broadcast %497 : vector<4x1xf32> to vector<4x324xf32>
    %499 = arith.mulf %495, %498 : vector<4x324xf32>
    %c7_468 = arith.constant 7 : index
    %c0_469 = arith.constant 0 : index
    %c0_470 = arith.constant 0 : index
    %500 = vector.load %arg4[%c7_468, %c0_469, %c0_470] : memref<8x32x1xf32, #tpu.memory_space<vmem>>, vector<1x4x1xf32>
    %501 = vector.shape_cast %500 : vector<1x4x1xf32> to vector<4x1xf32>
    %502 = vector.broadcast %501 : vector<4x1xf32> to vector<4x324xf32>
    %503 = arith.addf %499, %502 : vector<4x324xf32>
    %cst_471 = arith.constant 0.000000e+00 : f32
    %504 = vector.broadcast %cst_471 : f32 to vector<4x324xf32>
    %505 = arith.maximumf %503, %504 : vector<4x324xf32>
    %c0_472 = arith.constant 0 : index
    %c0_473 = arith.constant 0 : index
    %506 = vector.load %arg5[%c0_472, %c0_473] : memref<3x4xbf16, #tpu.memory_space<vmem>>, vector<3x4xbf16>
    %507 = arith.extf %506 : vector<3x4xbf16> to vector<3x4xf32>
    %cst_474 = arith.constant dense<0.000000e+00> : vector<3x324xf32>
    %508 = tpu.matmul %507, %505, %cst_474 {dimension_numbers = #tpu.dot_dimension_numbers<[1], [0], [0], [1], [0, 0, 1, 1], [], []>} : vector<3x4xf32>, vector<4x324xf32>, vector<3x324xf32> -> vector<3x324xf32>
    %c0_475 = arith.constant 0 : index
    %c0_476 = arith.constant 0 : index
    %509 = vector.load %arg6[%c0_475, %c0_476] : memref<3x1xf32, #tpu.memory_space<vmem>>, vector<3x1xf32>
    %510 = vector.broadcast %509 : vector<3x1xf32> to vector<3x324xf32>
    %511 = arith.addf %508, %510 : vector<3x324xf32>
    %c0_477 = arith.constant 0 : index
    %c0_478 = arith.constant 0 : index
    %512 = vector.load %arg17[%c0_477, %c0_478] : memref<324x256xf32, #tpu.memory_space<vmem>>, vector<324x256xf32>
    %cst_479 = arith.constant dense<0.000000e+00> : vector<3x256xf32>
    %513 = tpu.matmul %511, %512, %cst_479 {dimension_numbers = #tpu.dot_dimension_numbers<[1], [0], [0], [1], [0, 0, 1, 1], [], []>} : vector<3x324xf32>, vector<324x256xf32>, vector<3x256xf32> -> vector<3x256xf32>
    %c0_480 = arith.constant 0 : index
    %c0_481 = arith.constant 0 : index
    %c0_482 = arith.constant 0 : index
    %514 = vector.load %arg18[%c0_480, %c0_481, %c0_482] : memref<1x3x256xf32, #tpu.memory_space<vmem>>, vector<1x3x256xf32>
    %515 = vector.shape_cast %514 : vector<1x3x256xf32> to vector<3x256xf32>
    %516 = vector.shape_cast %513 : vector<3x256xf32> to vector<1x3x256xf32>
    tpu.vector_store %arg18[%c0_480, %c0_481, %c0_482], %516 {strides = array<i32>} : memref<1x3x256xf32, #tpu.memory_space<vmem>>, vector<1x3x256xf32>,
    return
  }
  func.func @transform_0(%arg0: i32) -> (i32, i32, i32) {
    %c0_i32 = arith.constant 0 : i32
    %c0_i32_0 = arith.constant 0 : i32
    %c0_i32_1 = arith.constant 0 : i32
    return %arg0, %c0_i32, %c0_i32_0 : i32, i32, i32
  }
  func.func @transform_1(%arg0: i32) -> (i32, i32, i32) {
    %c0_i32 = arith.constant 0 : i32
    %c0_i32_0 = arith.constant 0 : i32
    %c0_i32_1 = arith.constant 0 : i32
    %c0_i32_2 = arith.constant 0 : i32
    return %c0_i32, %c0_i32_0, %c0_i32_1 : i32, i32, i32
  }
  func.func @transform_2(%arg0: i32) -> (i32, i32, i32) {
    %c0_i32 = arith.constant 0 : i32
    %c0_i32_0 = arith.constant 0 : i32
    %c0_i32_1 = arith.constant 0 : i32
    %c0_i32_2 = arith.constant 0 : i32
    return %c0_i32, %c0_i32_0, %c0_i32_1 : i32, i32, i32
  }
  func.func @transform_3(%arg0: i32) -> (i32, i32, i32) {
    %c0_i32 = arith.constant 0 : i32
    %c0_i32_0 = arith.constant 0 : i32
    %c0_i32_1 = arith.constant 0 : i32
    %c0_i32_2 = arith.constant 0 : i32
    return %c0_i32, %c0_i32_0, %c0_i32_1 : i32, i32, i32
  }
  func.func @transform_4(%arg0: i32) -> (i32, i32) {
    %c0_i32 = arith.constant 0 : i32
    %c0_i32_0 = arith.constant 0 : i32
    %c0_i32_1 = arith.constant 0 : i32
    return %c0_i32, %c0_i32_0 : i32, i32
  }
  func.func @transform_5(%arg0: i32) -> (i32, i32) {
    %c0_i32 = arith.constant 0 : i32
    %c0_i32_0 = arith.constant 0 : i32
    %c0_i32_1 = arith.constant 0 : i32
    return %c0_i32, %c0_i32_0 : i32, i32
  }
  func.func @transform_6(%arg0: i32) -> (i32, i32) {
    %c0_i32 = arith.constant 0 : i32
    %c0_i32_0 = arith.constant 0 : i32
    %c0_i32_1 = arith.constant 0 : i32
    return %c0_i32, %c0_i32_0 : i32, i32
  }
  func.func @transform_7(%arg0: i32) -> (i32, i32) {
    %c0_i32 = arith.constant 0 : i32
    %c0_i32_0 = arith.constant 0 : i32
    %c0_i32_1 = arith.constant 0 : i32
    return %c0_i32, %c0_i32_0 : i32, i32
  }
  func.func @transform_8(%arg0: i32) -> (i32, i32) {
    %c0_i32 = arith.constant 0 : i32
    %c0_i32_0 = arith.constant 0 : i32
    %c0_i32_1 = arith.constant 0 : i32
    return %c0_i32, %c0_i32_0 : i32, i32
  }
  func.func @transform_9(%arg0: i32) -> (i32, i32) {
    %c0_i32 = arith.constant 0 : i32
    %c0_i32_0 = arith.constant 0 : i32
    %c0_i32_1 = arith.constant 0 : i32
    return %c0_i32, %c0_i32_0 : i32, i32
  }
  func.func @transform_10(%arg0: i32) -> (i32, i32) {
    %c0_i32 = arith.constant 0 : i32
    %c0_i32_0 = arith.constant 0 : i32
    %c0_i32_1 = arith.constant 0 : i32
    return %c0_i32, %c0_i32_0 : i32, i32
  }
  func.func @transform_11(%arg0: i32) -> (i32, i32) {
    %c0_i32 = arith.constant 0 : i32
    %c0_i32_0 = arith.constant 0 : i32
    %c0_i32_1 = arith.constant 0 : i32
    return %c0_i32, %c0_i32_0 : i32, i32
  }
  func.func @transform_12(%arg0: i32) -> (i32, i32) {
    %c0_i32 = arith.constant 0 : i32
    %c0_i32_0 = arith.constant 0 : i32
    %c0_i32_1 = arith.constant 0 : i32
    return %c0_i32, %c0_i32_0 : i32, i32
  }
  func.func @transform_13(%arg0: i32) -> (i32, i32) {
    %c0_i32 = arith.constant 0 : i32
    %c0_i32_0 = arith.constant 0 : i32
    %c0_i32_1 = arith.constant 0 : i32
    return %c0_i32, %c0_i32_0 : i32, i32
  }
  func.func @transform_14(%arg0: i32) -> (i32, i32) {
    %c0_i32 = arith.constant 0 : i32
    %c0_i32_0 = arith.constant 0 : i32
    %c0_i32_1 = arith.constant 0 : i32
    return %c0_i32, %c0_i32_0 : i32, i32
  }
  func.func @transform_15(%arg0: i32) -> (i32, i32) {
    %c0_i32 = arith.constant 0 : i32
    %c0_i32_0 = arith.constant 0 : i32
    %c0_i32_1 = arith.constant 0 : i32
    return %c0_i32, %c0_i32_0 : i32, i32
  }
  func.func @transform_16(%arg0: i32) -> (i32, i32) {
    %c0_i32 = arith.constant 0 : i32
    %c0_i32_0 = arith.constant 0 : i32
    %c0_i32_1 = arith.constant 0 : i32
    return %c0_i32, %c0_i32_0 : i32, i32
  }
  func.func @transform_17(%arg0: i32) -> (i32, i32, i32) {
    %c0_i32 = arith.constant 0 : i32
    %c0_i32_0 = arith.constant 0 : i32
    %c0_i32_1 = arith.constant 0 : i32
    return %arg0, %c0_i32, %c0_i32_0 : i32, i32, i32
  }
}

</mosaic_0001>

<llo_original>
// kernel: _lambda_.1
$region0: #{_lambda_.1}
  #allocation0 [shape = 'u32[]', space=smem, size = 0x4, offset = 0x4, fixed_abs, tag = 'smem constant byte address 0x4 - core index']
  #allocation1 [shape = 'u32[72,128]{1,0:T(1,128)}', space=vmem, size = 0x9000, scoped, tag = 'internal scratch']
  #allocation2 [shape = 'bf16[3,471]{1,0:T(4,128)(2,1)}', space=vmem, size = 0x1000, scoped, tag = 'scratch operand']
  #allocation3 [shape = 'bf16[4,239]{1,0:T(4,128)(2,1)}', space=vmem, size = 0x800, scoped, tag = 'scratch operand']
  #allocation4 [shape = 'bf16[8,171]{1,0:T(8,128)(2,1)}', space=vmem, size = 0x1000, scoped, tag = 'scratch operand']
  #allocation5 [shape = 'bf16[16,149]{1,0:T(8,128)(2,1)}', space=vmem, size = 0x2000, scoped, tag = 'scratch operand']
  #allocation6 [shape = 'bf16[4,471]{1,0:T(4,128)(2,1)}', space=vmem, size = 0x1000, scoped, tag = 'scratch operand']
  #allocation7 [shape = 'bf16[8,239]{1,0:T(8,128)(2,1)}', space=vmem, size = 0x1000, scoped, tag = 'scratch operand']
  #allocation8 [shape = 'bf16[16,171]{1,0:T(8,128)(2,1)}', space=vmem, size = 0x2000, scoped, tag = 'scratch operand']
  #allocation9 [shape = 'bf16[32,149]{1,0:T(8,128)(2,1)}', space=vmem, size = 0x4000, scoped, tag = 'scratch operand']
  #allocation10 [shape = 'bf16[32,149]{1,0:T(8,128)(2,1)}', space=vmem, size = 0x4000, scoped, tag = 'scratch operand']
  #allocation11 [shape = 'bf16[32,171]{1,0:T(8,128)(2,1)}', space=vmem, size = 0x4000, scoped, tag = 'scratch operand']
  #allocation12 [shape = 'bf16[16,239]{1,0:T(8,128)(2,1)}', space=vmem, size = 0x2000, scoped, tag = 'scratch operand']
  #allocation13 [shape = 'bf16[8,471]{1,0:T(8,128)(2,1)}', space=vmem, size = 0x2000, scoped, tag = 'scratch operand']
  #allocation14 [shape = 'bf16[288,324]{1,0:T(8,128)(2,1)}', space=vmem, size = 0x36000, scoped, tag = 'scratch operand']
  %s0 = inlined_call_operand.vmem [shape: f32[2,3,256], index: 0, kind: input, shape index: {}]
  %s1 = inlined_call_operand.hbm [shape: bf16[12,32,288], index: 1, kind: input, shape index: {}]
  %s2 = inlined_call_operand.hbm [shape: f32[8,32,1], index: 2, kind: input, shape index: {}]
  %s3 = inlined_call_operand.hbm [shape: f32[8,32,1], index: 3, kind: input, shape index: {}]
  %s4 = inlined_call_operand.hbm [shape: bf16[3,4], index: 4, kind: input, shape index: {}]
  %s5 = inlined_call_operand.hbm [shape: f32[3,1], index: 5, kind: input, shape index: {}]
  %s6 = inlined_call_operand.hbm [shape: f32[4,324], index: 6, kind: input, shape index: {}]
  %s7 = inlined_call_operand.hbm [shape: f32[324,100], index: 7, kind: input, shape index: {}]
  %s8 = inlined_call_operand.vmem [shape: f32[100,36], index: 8, kind: input, shape index: {}]
  %s9 = inlined_call_operand.hbm [shape: f32[36,16], index: 9, kind: input, shape index: {}]
  %s10 = inlined_call_operand.hbm [shape: f32[16,9], index: 10, kind: input, shape index: {}]
  %s11 = inlined_call_operand.hbm [shape: f32[9,16], index: 11, kind: input, shape index: {}]
  %s12 = inlined_call_operand.vmem [shape: f32[16,36], index: 12, kind: input, shape index: {}]
  %s13 = inlined_call_operand.hbm [shape: f32[36,100], index: 13, kind: input, shape index: {}]
  %s14 = inlined_call_operand.hbm [shape: f32[100,324], index: 14, kind: input, shape index: {}]
  %s15 = inlined_call_operand.hbm [shape: f32[256,324], index: 15, kind: input, shape index: {}]
  %s16 = inlined_call_operand.hbm [shape: f32[324,256], index: 16, kind: input, shape index: {}]
  %s17 = inlined_call_operand.vmem [shape: f32[2,3,256], index: 17, kind: output, shape index: {}]
  %s18 = sld [smem:[#allocation0]]
  $region157: #{_lambda_.1} parent=0
    _
  %s20 = ssub.s32 1, %s18
  %s21 = scalar_select 0, %s20, %s18
  $region1: #{_lambda_.1} parent=0
    #allocation15 [shape = 'u8[294912]{0}', space=vmem, size = 0x48000, scoped, tag = 'input window, operand 1, single buffered']
    #allocation16 [shape = 's32[2]{0}', space=sflag, size = 0x8, scoped, tag = 'scoped memory for _lambda_.1']
    #allocation17 [shape = 'u8[131072]{0}', space=vmem, size = 0x20000, scoped, tag = 'input window, operand 2, single buffered']
    #allocation18 [shape = 's32[1]{0}', space=sflag, size = 0x4, scoped, tag = 'scoped memory for _lambda_.1']
    #allocation19 [shape = 'u8[131072]{0}', space=vmem, size = 0x20000, scoped, tag = 'input window, operand 3, single buffered']
    #allocation20 [shape = 'u8[1024]{0}', space=vmem, size = 0x400, scoped, tag = 'input window, operand 4, single buffered']
    #allocation21 [shape = 's32[1]{0}', space=sflag, size = 0x4, scoped, tag = 'scoped memory for _lambda_.1']
    #allocation22 [shape = 'u8[2048]{0}', space=vmem, size = 0x800, scoped, tag = 'input window, operand 5, single buffered']
    #allocation23 [shape = 'u8[6144]{0}', space=vmem, size = 0x1800, scoped, tag = 'input window, operand 6, single buffered']
    #allocation24 [shape = 's32[1]{0}', space=sflag, size = 0x4, scoped, tag = 'scoped memory for _lambda_.1']
    #allocation25 [shape = 'u8[167936]{0}', space=vmem, size = 0x29000, scoped, tag = 'input window, operand 7, single buffered']
    #allocation26 [shape = 'u8[20480]{0}', space=vmem, size = 0x5000, scoped, tag = 'input window, operand 9, single buffered']
    #allocation27 [shape = 's32[1]{0}', space=sflag, size = 0x4, scoped, tag = 'scoped memory for _lambda_.1']
    #allocation28 [shape = 'u8[8192]{0}', space=vmem, size = 0x2000, scoped, tag = 'input window, operand 10, single buffered']
    #allocation29 [shape = 'u8[8192]{0}', space=vmem, size = 0x2000, scoped, tag = 'input window, operand 11, single buffered']
    #allocation30 [shape = 's32[1]{0}', space=sflag, size = 0x4, scoped, tag = 'scoped memory for _lambda_.1']
    #allocation31 [shape = 'u8[20480]{0}', space=vmem, size = 0x5000, scoped, tag = 'input window, operand 13, single buffered']
    #allocation32 [shape = 'u8[159744]{0}', space=vmem, size = 0x27000, scoped, tag = 'input window, operand 14, single buffered']
    #allocation33 [shape = 's32[1]{0}', space=sflag, size = 0x4, scoped, tag = 'scoped memory for _lambda_.1']
    #allocation34 [shape = 'u8[393216]{0}', space=vmem, size = 0x60000, scoped, tag = 'input window, operand 15, single buffered']
    #allocation35 [shape = 'u8[335872]{0}', space=vmem, size = 0x52000, scoped, tag = 'input window, operand 16, single buffered']
    #allocation36 [shape = 's32[1]{0}', space=sflag, size = 0x4, scoped, tag = 'scoped memory for _lambda_.1']
    %22 = vsyncpa [#allocation16], 0
    %23 = vsyncpa [#allocation18], 0
    %24 = vsyncpa [#allocation21], 0
    %25 = vsyncpa [#allocation24], 0
    %26 = vsyncpa [#allocation27], 0
    %27 = vsyncpa [#allocation30], 0
    %28 = vsyncpa [#allocation33], 0
    %29 = vsyncpa [#allocation36], 0
    loop: start=0, step=1, limit=4
    $region2: #{_lambda_.1} parent=1 // loop_pre_header
      _
    $region3: #{_lambda_.1} parent=1 // loop_header
      %s31 = sphi 0, %s35
      %p32 = scmp.ge.s32.totalorder %s31, 4
      %s41 = sphi 0, %s43
      %s44 = sphi 0, %s41
      %s45 = sphi 0, %s44
      %s61 = sphi 0, %s45
      %s65 = sphi 0, %s65
      %s67 = sphi 0, %s65
      %s68 = sphi 0, %s67
      %s82 = sphi 0, %s68
      %s86 = sphi 0, %s86
      %s88 = sphi 0, %s86
      %s89 = sphi 0, %s88
      %s103 = sphi 0, %s89
      %s107 = sphi 0, %s107
      %s109 = sphi 0, %s107
      %s110 = sphi 0, %s109
      %s124 = sphi 0, %s110
      %s128 = sphi 0, %s128
      %s130 = sphi 0, %s128
      %s131 = sphi 0, %s130
      %s145 = sphi 0, %s131
      %s149 = sphi 0, %s149
      %s151 = sphi 0, %s149
      %s152 = sphi 0, %s151
      %s166 = sphi 0, %s152
      %s170 = sphi 0, %s170
      %s172 = sphi 0, %s170
      %s173 = sphi 0, %s172
      %s187 = sphi 0, %s173
      %s191 = sphi 0, %s191
      %s193 = sphi 0, %s191
      %s194 = sphi 0, %s193
      %s208 = sphi 0, %s194
      %s212 = sphi 0, %s212
      %s214 = sphi 0, %s212
      %s215 = sphi 0, %s214
      %s229 = sphi 0, %s215
      %s233 = sphi 0, %s233
      %s235 = sphi 0, %s233
      %s236 = sphi 0, %s235
      %s250 = sphi 0, %s236
      %s254 = sphi 0, %s254
      %s256 = sphi 0, %s254
      %s257 = sphi 0, %s256
      %s271 = sphi 0, %s257
      %s275 = sphi 0, %s275
      %s277 = sphi 0, %s275
      %s278 = sphi 0, %s277
      %s292 = sphi 0, %s278
      %s296 = sphi 0, %s296
      %s298 = sphi 0, %s296
      %s299 = sphi 0, %s298
      %s313 = sphi 0, %s299
      %s317 = sphi 0, %s317
      %s319 = sphi 0, %s317
      %s320 = sphi 0, %s319
      %s334 = sphi 0, %s320
      %s338 = sphi 0, %s338
      %s340 = sphi 0, %s338
      %s341 = sphi 0, %s340
      %s355 = sphi 0, %s341
      %s359 = sphi 0, %s359
      %s361 = sphi 0, %s359
      %s362 = sphi 0, %s361
      %s376 = sphi 0, %s362
      %s380 = sphi 0, %s380
      %s382 = sphi 0, %s380
      %s383 = sphi 0, %s382
      %s397 = sphi 0, %s383
      %s403 = sphi 0, %s405
      %s406 = sphi 0, %s403
      %s407 = sphi 0, %s406
      %s423 = sphi 0, %s407
    $region4: #{_lambda_.1} parent=1 // loop_header_branch
      %34 = sbr.rel (%p32) target = $region8
    $region5: #{_lambda_.1} parent=1 // loop_body
      %s36 = ssub.s32 %s31, 1
      %s37 = ssub.s32 %s31, 2
      %s38 = sadd.s32 %s31, 1
      %s39 = ssub.s32 %s31, %s38
      %p40 = scmp.eq.s32.totalorder %s39, 0
      %s42 = sadd.s32 %s41, 1
      %s43 = scalar_select %p40, %s41, %s42
      %p46 = pneg %p40
      %p47 = scmp.eq.s32.totalorder %s31, 1
      %p48 = por %p46, %p47
      %p49 = scmp.ne.s32.totalorder %s41, %s44
      %p50 = scmp.eq.s32.totalorder %s31, 0
      %p51 = por %p49, %p50
      %p52 = scmp.ne.s32.totalorder %s41, %s44
      %p53 = scmp.eq.s32.totalorder %s36, 1
      %p54 = por %p52, %p53
      %p55 = scmp.ne.s32.totalorder %s44, %s45
      %p56 = scmp.eq.s32.totalorder %s36, 0
      %p57 = por %p55, %p56
      %p58 = scmp.ne.s32.totalorder %s44, %s45
      %p59 = scmp.eq.s32.totalorder %s37, 1
      %p60 = por %p58, %p59
      %p62 = scmp.ne.s32.totalorder %s45, %s61
      %p63 = scmp.eq.s32.totalorder %s37, 0
      %p64 = por %p62, %p63
      %s66 = sadd.s32 %s65, 1
      %p69 = scmp.eq.s32.totalorder %s31, 1
      %p70 = scmp.ne.s32.totalorder %s65, %s67
      %p71 = scmp.eq.s32.totalorder %s31, 0
      %p72 = por %p70, %p71
      %p73 = scmp.ne.s32.totalorder %s65, %s67
      %p74 = scmp.eq.s32.totalorder %s36, 1
      %p75 = por %p73, %p74
      %p76 = scmp.ne.s32.totalorder %s67, %s68
      %p77 = scmp.eq.s32.totalorder %s36, 0
      %p78 = por %p76, %p77
      %p79 = scmp.ne.s32.totalorder %s67, %s68
      %p80 = scmp.eq.s32.totalorder %s37, 1
      %p81 = por %p79, %p80
      %p83 = scmp.ne.s32.totalorder %s68, %s82
      %p84 = scmp.eq.s32.totalorder %s37, 0
      %p85 = por %p83, %p84
      %s87 = sadd.s32 %s86, 1
      %p90 = scmp.eq.s32.totalorder %s31, 1
      %p91 = scmp.ne.s32.totalorder %s86, %s88
      %p92 = scmp.eq.s32.totalorder %s31, 0
      %p93 = por %p91, %p92
      %p94 = scmp.ne.s32.totalorder %s86, %s88
      %p95 = scmp.eq.s32.totalorder %s36, 1
      %p96 = por %p94, %p95
      %p97 = scmp.ne.s32.totalorder %s88, %s89
      %p98 = scmp.eq.s32.totalorder %s36, 0
      %p99 = por %p97, %p98
      %p100 = scmp.ne.s32.totalorder %s88, %s89
      %p101 = scmp.eq.s32.totalorder %s37, 1
      %p102 = por %p100, %p101
      %p104 = scmp.ne.s32.totalorder %s89, %s103
      %p105 = scmp.eq.s32.totalorder %s37, 0
      %p106 = por %p104, %p105
      %s108 = sadd.s32 %s107, 1
      %p111 = scmp.eq.s32.totalorder %s31, 1
      %p112 = scmp.ne.s32.totalorder %s107, %s109
      %p113 = scmp.eq.s32.totalorder %s31, 0
      %p114 = por %p112, %p113
      %p115 = scmp.ne.s32.totalorder %s107, %s109
      %p116 = scmp.eq.s32.totalorder %s36, 1
      %p117 = por %p115, %p116
      %p118 = scmp.ne.s32.totalorder %s109, %s110
      %p119 = scmp.eq.s32.totalorder %s36, 0
      %p120 = por %p118, %p119
      %p121 = scmp.ne.s32.totalorder %s109, %s110
      %p122 = scmp.eq.s32.totalorder %s37, 1
      %p123 = por %p121, %p122
      %p125 = scmp.ne.s32.totalorder %s110, %s124
      %p126 = scmp.eq.s32.totalorder %s37, 0
      %p127 = por %p125, %p126
      %s129 = sadd.s32 %s128, 1
      %p132 = scmp.eq.s32.totalorder %s31, 1
      %p133 = scmp.ne.s32.totalorder %s128, %s130
      %p134 = scmp.eq.s32.totalorder %s31, 0
      %p135 = por %p133, %p134
      %p136 = scmp.ne.s32.totalorder %s128, %s130
      %p137 = scmp.eq.s32.totalorder %s36, 1
      %p138 = por %p136, %p137
      %p139 = scmp.ne.s32.totalorder %s130, %s131
      %p140 = scmp.eq.s32.totalorder %s36, 0
      %p141 = por %p139, %p140
      %p142 = scmp.ne.s32.totalorder %s130, %s131
      %p143 = scmp.eq.s32.totalorder %s37, 1
      %p144 = por %p142, %p143
      %p146 = scmp.ne.s32.totalorder %s131, %s145
      %p147 = scmp.eq.s32.totalorder %s37, 0
      %p148 = por %p146, %p147
      %s150 = sadd.s32 %s149, 1
      %p153 = scmp.eq.s32.totalorder %s31, 1
      %p154 = scmp.ne.s32.totalorder %s149, %s151
      %p155 = scmp.eq.s32.totalorder %s31, 0
      %p156 = por %p154, %p155
      %p157 = scmp.ne.s32.totalorder %s149, %s151
      %p158 = scmp.eq.s32.totalorder %s36, 1
      %p159 = por %p157, %p158
      %p160 = scmp.ne.s32.totalorder %s151, %s152
      %p161 = scmp.eq.s32.totalorder %s36, 0
      %p162 = por %p160, %p161
      %p163 = scmp.ne.s32.totalorder %s151, %s152
      %p164 = scmp.eq.s32.totalorder %s37, 1
      %p165 = por %p163, %p164
      %p167 = scmp.ne.s32.totalorder %s152, %s166
      %p168 = scmp.eq.s32.totalorder %s37, 0
      %p169 = por %p167, %p168
      %s171 = sadd.s32 %s170, 1
      %p174 = scmp.eq.s32.totalorder %s31, 1
      %p175 = scmp.ne.s32.totalorder %s170, %s172
      %p176 = scmp.eq.s32.totalorder %s31, 0
      %p177 = por %p175, %p176
      %p178 = scmp.ne.s32.totalorder %s170, %s172
      %p179 = scmp.eq.s32.totalorder %s36, 1
      %p180 = por %p178, %p179
      %p181 = scmp.ne.s32.totalorder %s172, %s173
      %p182 = scmp.eq.s32.totalorder %s36, 0
      %p183 = por %p181, %p182
      %p184 = scmp.ne.s32.totalorder %s172, %s173
      %p185 = scmp.eq.s32.totalorder %s37, 1
      %p186 = por %p184, %p185
      %p188 = scmp.ne.s32.totalorder %s173, %s187
      %p189 = scmp.eq.s32.totalorder %s37, 0
      %p190 = por %p188, %p189
      %s192 = sadd.s32 %s191, 1
      %p195 = scmp.eq.s32.totalorder %s31, 1
      %p196 = scmp.ne.s32.totalorder %s191, %s193
      %p197 = scmp.eq.s32.totalorder %s31, 0
      %p198 = por %p196, %p197
      %p199 = scmp.ne.s32.totalorder %s191, %s193
      %p200 = scmp.eq.s32.totalorder %s36, 1
      %p201 = por %p199, %p200
      %p202 = scmp.ne.s32.totalorder %s193, %s194
      %p203 = scmp.eq.s32.totalorder %s36, 0
      %p204 = por %p202, %p203
      %p205 = scmp.ne.s32.totalorder %s193, %s194
      %p206 = scmp.eq.s32.totalorder %s37, 1
      %p207 = por %p205, %p206
      %p209 = scmp.ne.s32.totalorder %s194, %s208
      %p210 = scmp.eq.s32.totalorder %s37, 0
      %p211 = por %p209, %p210
      %s213 = sadd.s32 %s212, 1
      %p216 = scmp.eq.s32.totalorder %s31, 1
      %p217 = scmp.ne.s32.totalorder %s212, %s214
      %p218 = scmp.eq.s32.totalorder %s31, 0
      %p219 = por %p217, %p218
      %p220 = scmp.ne.s32.totalorder %s212, %s214
      %p221 = scmp.eq.s32.totalorder %s36, 1
      %p222 = por %p220, %p221
      %p223 = scmp.ne.s32.totalorder %s214, %s215
      %p224 = scmp.eq.s32.totalorder %s36, 0
      %p225 = por %p223, %p224
      %p226 = scmp.ne.s32.totalorder %s214, %s215
      %p227 = scmp.eq.s32.totalorder %s37, 1
      %p228 = por %p226, %p227
      %p230 = scmp.ne.s32.totalorder %s215, %s229
      %p231 = scmp.eq.s32.totalorder %s37, 0
      %p232 = por %p230, %p231
      %s234 = sadd.s32 %s233, 1
      %p237 = scmp.eq.s32.totalorder %s31, 1
      %p238 = scmp.ne.s32.totalorder %s233, %s235
      %p239 = scmp.eq.s32.totalorder %s31, 0
      %p240 = por %p238, %p239
      %p241 = scmp.ne.s32.totalorder %s233, %s235
      %p242 = scmp.eq.s32.totalorder %s36, 1
      %p243 = por %p241, %p242
      %p244 = scmp.ne.s32.totalorder %s235, %s236
      %p245 = scmp.eq.s32.totalorder %s36, 0
      %p246 = por %p244, %p245
      %p247 = scmp.ne.s32.totalorder %s235, %s236
      %p248 = scmp.eq.s32.totalorder %s37, 1
      %p249 = por %p247, %p248
      %p251 = scmp.ne.s32.totalorder %s236, %s250
      %p252 = scmp.eq.s32.totalorder %s37, 0
      %p253 = por %p251, %p252
      %s255 = sadd.s32 %s254, 1
      %p258 = scmp.eq.s32.totalorder %s31, 1
      %p259 = scmp.ne.s32.totalorder %s254, %s256
      %p260 = scmp.eq.s32.totalorder %s31, 0
      %p261 = por %p259, %p260
      %p262 = scmp.ne.s32.totalorder %s254, %s256
      %p263 = scmp.eq.s32.totalorder %s36, 1
      %p264 = por %p262, %p263
      %p265 = scmp.ne.s32.totalorder %s256, %s257
      %p266 = scmp.eq.s32.totalorder %s36, 0
      %p267 = por %p265, %p266
      %p268 = scmp.ne.s32.totalorder %s256, %s257
      %p269 = scmp.eq.s32.totalorder %s37, 1
      %p270 = por %p268, %p269
      %p272 = scmp.ne.s32.totalorder %s257, %s271
      %p273 = scmp.eq.s32.totalorder %s37, 0
      %p274 = por %p272, %p273
      %s276 = sadd.s32 %s275, 1
      %p279 = scmp.eq.s32.totalorder %s31, 1
      %p280 = scmp.ne.s32.totalorder %s275, %s277
      %p281 = scmp.eq.s32.totalorder %s31, 0
      %p282 = por %p280, %p281
      %p283 = scmp.ne.s32.totalorder %s275, %s277
      %p284 = scmp.eq.s32.totalorder %s36, 1
      %p285 = por %p283, %p284
      %p286 = scmp.ne.s32.totalorder %s277, %s278
      %p287 = scmp.eq.s32.totalorder %s36, 0
      %p288 = por %p286, %p287
      %p289 = scmp.ne.s32.totalorder %s277, %s278
      %p290 = scmp.eq.s32.totalorder %s37, 1
      %p291 = por %p289, %p290
      %p293 = scmp.ne.s32.totalorder %s278, %s292
      %p294 = scmp.eq.s32.totalorder %s37, 0
      %p295 = por %p293, %p294
      %s297 = sadd.s32 %s296, 1
      %p300 = scmp.eq.s32.totalorder %s31, 1
      %p301 = scmp.ne.s32.totalorder %s296, %s298
      %p302 = scmp.eq.s32.totalorder %s31, 0
      %p303 = por %p301, %p302
      %p304 = scmp.ne.s32.totalorder %s296, %s298
      %p305 = scmp.eq.s32.totalorder %s36, 1
      %p306 = por %p304, %p305
      %p307 = scmp.ne.s32.totalorder %s298, %s299
      %p308 = scmp.eq.s32.totalorder %s36, 0
      %p309 = por %p307, %p308
      %p310 = scmp.ne.s32.totalorder %s298, %s299
      %p311 = scmp.eq.s32.totalorder %s37, 1
      %p312 = por %p310, %p311
      %p314 = scmp.ne.s32.totalorder %s299, %s313
      %p315 = scmp.eq.s32.totalorder %s37, 0
      %p316 = por %p314, %p315
      %s318 = sadd.s32 %s317, 1
      %p321 = scmp.eq.s32.totalorder %s31, 1
      %p322 = scmp.ne.s32.totalorder %s317, %s319
      %p323 = scmp.eq.s32.totalorder %s31, 0
      %p324 = por %p322, %p323
      %p325 = scmp.ne.s32.totalorder %s317, %s319
      %p326 = scmp.eq.s32.totalorder %s36, 1
      %p327 = por %p325, %p326
      %p328 = scmp.ne.s32.totalorder %s319, %s320
      %p329 = scmp.eq.s32.totalorder %s36, 0
      %p330 = por %p328, %p329
      %p331 = scmp.ne.s32.totalorder %s319, %s320
      %p332 = scmp.eq.s32.totalorder %s37, 1
      %p333 = por %p331, %p332
      %p335 = scmp.ne.s32.totalorder %s320, %s334
      %p336 = scmp.eq.s32.totalorder %s37, 0
      %p337 = por %p335, %p336
      %s339 = sadd.s32 %s338, 1
      %p342 = scmp.eq.s32.totalorder %s31, 1
      %p343 = scmp.ne.s32.totalorder %s338, %s340
      %p344 = scmp.eq.s32.totalorder %s31, 0
      %p345 = por %p343, %p344
      %p346 = scmp.ne.s32.totalorder %s338, %s340
      %p347 = scmp.eq.s32.totalorder %s36, 1
      %p348 = por %p346, %p347
      %p349 = scmp.ne.s32.totalorder %s340, %s341
      %p350 = scmp.eq.s32.totalorder %s36, 0
      %p351 = por %p349, %p350
      %p352 = scmp.ne.s32.totalorder %s340, %s341
      %p353 = scmp.eq.s32.totalorder %s37, 1
      %p354 = por %p352, %p353
      %p356 = scmp.ne.s32.totalorder %s341, %s355
      %p357 = scmp.eq.s32.totalorder %s37, 0
      %p358 = por %p356, %p357
      %s360 = sadd.s32 %s359, 1
      %p363 = scmp.eq.s32.totalorder %s31, 1
      %p364 = scmp.ne.s32.totalorder %s359, %s361
      %p365 = scmp.eq.s32.totalorder %s31, 0
      %p366 = por %p364, %p365
      %p367 = scmp.ne.s32.totalorder %s359, %s361
      %p368 = scmp.eq.s32.totalorder %s36, 1
      %p369 = por %p367, %p368
      %p370 = scmp.ne.s32.totalorder %s361, %s362
      %p371 = scmp.eq.s32.totalorder %s36, 0
      %p372 = por %p370, %p371
      %p373 = scmp.ne.s32.totalorder %s361, %s362
      %p374 = scmp.eq.s32.totalorder %s37, 1
      %p375 = por %p373, %p374
      %p377 = scmp.ne.s32.totalorder %s362, %s376
      %p378 = scmp.eq.s32.totalorder %s37, 0
      %p379 = por %p377, %p378
      %s381 = sadd.s32 %s380, 1
      %p384 = scmp.eq.s32.totalorder %s31, 1
      %p385 = scmp.ne.s32.totalorder %s380, %s382
      %p386 = scmp.eq.s32.totalorder %s31, 0
      %p387 = por %p385, %p386
      %p388 = scmp.ne.s32.totalorder %s380, %s382
      %p389 = scmp.eq.s32.totalorder %s36, 1
      %p390 = por %p388, %p389
      %p391 = scmp.ne.s32.totalorder %s382, %s383
      %p392 = scmp.eq.s32.totalorder %s36, 0
      %p393 = por %p391, %p392
      %p394 = scmp.ne.s32.totalorder %s382, %s383
      %p395 = scmp.eq.s32.totalorder %s37, 1
      %p396 = por %p394, %p395
      %p398 = scmp.ne.s32.totalorder %s383, %s397
      %p399 = scmp.eq.s32.totalorder %s37, 0
      %p400 = por %p398, %p399
      %s401 = ssub.s32 %s31, %s38
      %p402 = scmp.eq.s32.totalorder %s401, 0
      %s404 = sadd.s32 %s403, 1
      %s405 = scalar_select %p402, %s403, %s404
      %p408 = pneg %p402
      %p409 = scmp.eq.s32.totalorder %s31, 1
      %p410 = por %p408, %p409
      %p411 = scmp.ne.s32.totalorder %s403, %s406
      %p412 = scmp.eq.s32.totalorder %s31, 0
      %p413 = por %p411, %p412
      %p414 = scmp.ne.s32.totalorder %s403, %s406
      %p415 = scmp.eq.s32.totalorder %s36, 1
      %p416 = por %p414, %p415
      %p417 = scmp.ne.s32.totalorder %s406, %s407
      %p418 = scmp.eq.s32.totalorder %s36, 0
      %p419 = por %p417, %p418
      %p420 = scmp.ne.s32.totalorder %s406, %s407
      %p421 = scmp.eq.s32.totalorder %s37, 1
      %p422 = por %p420, %p421
      %p424 = scmp.ne.s32.totalorder %s407, %s423
      %p425 = scmp.eq.s32.totalorder %s37, 0
      %p426 = por %p424, %p425
      %p427 = scmp.le.s32.totalorder 1, %s31
      %p428 = scmp.lt.s32.totalorder %s31, 3
      %p429 = pnand %p427, %p428
      %p430 = pneg %p429
      // Predicated region
      $region9: #{_lambda_.1} parent=5 // pred_check
        _
      $region10: #{_lambda_.1} parent=5 // pred_check_branch
        %432 = sbr.rel (%p429) target = $region12
      $region11: #{_lambda_.1} parent=5 // pred_region
        %s433 = ssub.s32 %s31, 1
        // Predicated region
        $region13: #{_lambda_.1} parent=11 // pred_check
          %p434 = pneg %p78
        $region14: #{_lambda_.1} parent=11 // pred_check_branch
          %436 = sbr.rel (%p434) target = $region16
        $region15: #{_lambda_.1} parent=11 // pred_region
          %438 = vsyncadd [#allocation16], 0
          %s439 = sshll.u32 %s1, 4
          %s440 = int_to_ptr.hbm [resolvable:$true] %s439
          %s441 = sshll.u32 [#allocation15], 4
          %s442 = int_to_ptr.vmem [resolvable:$true] %s441
          %447 = dma.hbm_to_vmem [thread:$0]  %s440, 9216, %s442, [#allocation16], 192, 192, 12
        $region16: #{_lambda_.1} parent=11 // pred_fallthru
          _
        // Predicated region
        $region17: #{_lambda_.1} parent=11 // pred_check
          %p448 = pneg %p99
        $region18: #{_lambda_.1} parent=11 // pred_check_branch
          %450 = sbr.rel (%p448) target = $region20
        $region19: #{_lambda_.1} parent=11 // pred_region
          %452 = vsyncadd [#allocation18], 0
          %s453 = sshll.u32 %s2, 4
          %s454 = int_to_ptr.hbm [resolvable:$true] %s453
          %s455 = sshll.u32 [#allocation17], 4
          %s456 = int_to_ptr.vmem [resolvable:$true] %s455
          %461 = dma.hbm_to_vmem [thread:$0]  %s454, 4096, %s456, [#allocation18], 128, 128, 8
        $region20: #{_lambda_.1} parent=11 // pred_fallthru
          _
        // Predicated region
        $region21: #{_lambda_.1} parent=11 // pred_check
          %p462 = pneg %p120
        $region22: #{_lambda_.1} parent=11 // pred_check_branch
          %464 = sbr.rel (%p462) target = $region24
        $region23: #{_lambda_.1} parent=11 // pred_region
          %466 = vsyncadd [#allocation18], 0
          %s467 = sshll.u32 %s3, 4
          %s468 = int_to_ptr.hbm [resolvable:$true] %s467
          %s469 = sshll.u32 [#allocation19], 4
          %s470 = int_to_ptr.vmem [resolvable:$true] %s469
          %475 = dma.hbm_to_vmem [thread:$0]  %s468, 4096, %s470, [#allocation18], 128, 128, 8
        $region24: #{_lambda_.1} parent=11 // pred_fallthru
          _
        // Predicated region
        $region25: #{_lambda_.1} parent=11 // pred_check
          %p476 = pneg %p141
        $region26: #{_lambda_.1} parent=11 // pred_check_branch
          %478 = sbr.rel (%p476) target = $region28
        $region27: #{_lambda_.1} parent=11 // pred_region
          %480 = vsyncadd [#allocation21], 0
          %s482 = sshll.u32 %s4, 4
          %s483 = int_to_ptr.hbm [resolvable:$true] %s482
          %s484 = sshll.u32 [#allocation20], 4
          %s485 = int_to_ptr.vmem [resolvable:$true] %s484
          %487 = dma.hbm_to_vmem [thread:$0]  %s483, 32, %s485, [#allocation21]
        $region28: #{_lambda_.1} parent=11 // pred_fallthru
          _
        // Predicated region
        $region29: #{_lambda_.1} parent=11 // pred_check
          %p488 = pneg %p162
        $region30: #{_lambda_.1} parent=11 // pred_check_branch
          %490 = sbr.rel (%p488) target = $region32
        $region31: #{_lambda_.1} parent=11 // pred_region
          %492 = vsyncadd [#allocation21], 0
          %s494 = sshll.u32 %s5, 4
          %s495 = int_to_ptr.hbm [resolvable:$true] %s494
          %s496 = sshll.u32 [#allocation22], 4
          %s497 = int_to_ptr.vmem [resolvable:$true] %s496
          %499 = dma.hbm_to_vmem [thread:$0]  %s495, 64, %s497, [#allocation21]
        $region32: #{_lambda_.1} parent=11 // pred_fallthru
          _
        // Predicated region
        $region33: #{_lambda_.1} parent=11 // pred_check
          %p500 = pneg %p183
        $region34: #{_lambda_.1} parent=11 // pred_check_branch
          %502 = sbr.rel (%p500) target = $region36
        $region35: #{_lambda_.1} parent=11 // pred_region
          %504 = vsyncadd [#allocation24], 0
          %s506 = sshll.u32 %s6, 4
          %s507 = int_to_ptr.hbm [resolvable:$true] %s506
          %s508 = sshll.u32 [#allocation23], 4
          %s509 = int_to_ptr.vmem [resolvable:$true] %s508
          %511 = dma.hbm_to_vmem [thread:$0]  %s507, 192, %s509, [#allocation24]
        $region36: #{_lambda_.1} parent=11 // pred_fallthru
          _
        // Predicated region
        $region37: #{_lambda_.1} parent=11 // pred_check
          %p512 = pneg %p204
        $region38: #{_lambda_.1} parent=11 // pred_check_branch
          %514 = sbr.rel (%p512) target = $region40
        $region39: #{_lambda_.1} parent=11 // pred_region
          %516 = vsyncadd [#allocation24], 0
          %s517 = sshll.u32 %s7, 4
          %s518 = int_to_ptr.hbm [resolvable:$true] %s517
          %s519 = sshll.u32 [#allocation25], 4
          %s520 = int_to_ptr.vmem [resolvable:$true] %s519
          %525 = dma.hbm_to_vmem [thread:$0]  %s518, 5248, %s520, [#allocation24], 128, 128, 8
        $region40: #{_lambda_.1} parent=11 // pred_fallthru
          _
        // Predicated region
        $region41: #{_lambda_.1} parent=11 // pred_check
          %p526 = pneg %p225
        $region42: #{_lambda_.1} parent=11 // pred_check_branch
          %528 = sbr.rel (%p526) target = $region44
        $region43: #{_lambda_.1} parent=11 // pred_region
          _
        $region44: #{_lambda_.1} parent=11 // pred_fallthru
          _
        // Predicated region
        $region45: #{_lambda_.1} parent=11 // pred_check
          %p529 = pneg %p246
        $region46: #{_lambda_.1} parent=11 // pred_check_branch
          %531 = sbr.rel (%p529) target = $region48
        $region47: #{_lambda_.1} parent=11 // pred_region
          %533 = vsyncadd [#allocation27], 0
          %s534 = sshll.u32 %s9, 4
          %s535 = int_to_ptr.hbm [resolvable:$true] %s534
          %s536 = sshll.u32 [#allocation26], 4
          %s537 = int_to_ptr.vmem [resolvable:$true] %s536
          %542 = dma.hbm_to_vmem [thread:$0]  %s535, 640, %s537, [#allocation27], 128, 128, 8
        $region48: #{_lambda_.1} parent=11 // pred_fallthru
          _
        // Predicated region
        $region49: #{_lambda_.1} parent=11 // pred_check
          %p543 = pneg %p267
        $region50: #{_lambda_.1} parent=11 // pred_check_branch
          %545 = sbr.rel (%p543) target = $region52
        $region51: #{_lambda_.1} parent=11 // pred_region
          %547 = vsyncadd [#allocation27], 0
          %s548 = sshll.u32 %s10, 4
          %s549 = int_to_ptr.hbm [resolvable:$true] %s548
          %s550 = sshll.u32 [#allocation28], 4
          %s551 = int_to_ptr.vmem [resolvable:$true] %s550
          %556 = dma.hbm_to_vmem [thread:$0]  %s549, 256, %s551, [#allocation27], 128, 128, 8
        $region52: #{_lambda_.1} parent=11 // pred_fallthru
          _
        // Predicated region
        $region53: #{_lambda_.1} parent=11 // pred_check
          %p557 = pneg %p288
        $region54: #{_lambda_.1} parent=11 // pred_check_branch
          %559 = sbr.rel (%p557) target = $region56
        $region55: #{_lambda_.1} parent=11 // pred_region
          %561 = vsyncadd [#allocation30], 0
          %s562 = sshll.u32 %s11, 4
          %s563 = int_to_ptr.hbm [resolvable:$true] %s562
          %s564 = sshll.u32 [#allocation29], 4
          %s565 = int_to_ptr.vmem [resolvable:$true] %s564
          %570 = dma.hbm_to_vmem [thread:$0]  %s563, 256, %s565, [#allocation30], 128, 128, 8
        $region56: #{_lambda_.1} parent=11 // pred_fallthru
          _
        // Predicated region
        $region57: #{_lambda_.1} parent=11 // pred_check
          %p571 = pneg %p309
        $region58: #{_lambda_.1} parent=11 // pred_check_branch
          %573 = sbr.rel (%p571) target = $region60
        $region59: #{_lambda_.1} parent=11 // pred_region
          _
        $region60: #{_lambda_.1} parent=11 // pred_fallthru
          _
        // Predicated region
        $region61: #{_lambda_.1} parent=11 // pred_check
          %p574 = pneg %p330
        $region62: #{_lambda_.1} parent=11 // pred_check_branch
          %576 = sbr.rel (%p574) target = $region64
        $region63: #{_lambda_.1} parent=11 // pred_region
          %578 = vsyncadd [#allocation30], 0
          %s579 = sshll.u32 %s13, 4
          %s580 = int_to_ptr.hbm [resolvable:$true] %s579
          %s581 = sshll.u32 [#allocation31], 4
          %s582 = int_to_ptr.vmem [resolvable:$true] %s581
          %587 = dma.hbm_to_vmem [thread:$0]  %s580, 640, %s582, [#allocation30], 128, 128, 8
        $region64: #{_lambda_.1} parent=11 // pred_fallthru
          _
        // Predicated region
        $region65: #{_lambda_.1} parent=11 // pred_check
          %p588 = pneg %p351
        $region66: #{_lambda_.1} parent=11 // pred_check_branch
          %590 = sbr.rel (%p588) target = $region68
        $region67: #{_lambda_.1} parent=11 // pred_region
          %592 = vsyncadd [#allocation33], 0
          %s593 = sshll.u32 %s14, 4
          %s594 = int_to_ptr.hbm [resolvable:$true] %s593
          %s595 = sshll.u32 [#allocation32], 4
          %s596 = int_to_ptr.vmem [resolvable:$true] %s595
          %601 = dma.hbm_to_vmem [thread:$0]  %s594, 4992, %s596, [#allocation33], 384, 384, 24
        $region68: #{_lambda_.1} parent=11 // pred_fallthru
          _
        // Predicated region
        $region69: #{_lambda_.1} parent=11 // pred_check
          %p602 = pneg %p372
        $region70: #{_lambda_.1} parent=11 // pred_check_branch
          %604 = sbr.rel (%p602) target = $region72
        $region71: #{_lambda_.1} parent=11 // pred_region
          %606 = vsyncadd [#allocation33], 0
          %s607 = sshll.u32 %s15, 4
          %s608 = int_to_ptr.hbm [resolvable:$true] %s607
          %s609 = sshll.u32 [#allocation34], 4
          %s610 = int_to_ptr.vmem [resolvable:$true] %s609
          %615 = dma.hbm_to_vmem [thread:$0]  %s608, 12288, %s610, [#allocation33], 384, 384, 24
        $region72: #{_lambda_.1} parent=11 // pred_fallthru
          _
        // Predicated region
        $region73: #{_lambda_.1} parent=11 // pred_check
          %p616 = pneg %p393
        $region74: #{_lambda_.1} parent=11 // pred_check_branch
          %618 = sbr.rel (%p616) target = $region76
        $region75: #{_lambda_.1} parent=11 // pred_region
          %620 = vsyncadd [#allocation36], 0
          %s621 = sshll.u32 %s16, 4
          %s622 = int_to_ptr.hbm [resolvable:$true] %s621
          %s623 = sshll.u32 [#allocation35], 4
          %s624 = int_to_ptr.vmem [resolvable:$true] %s623
          %629 = dma.hbm_to_vmem [thread:$0]  %s622, 10496, %s624, [#allocation36], 256, 256, 16
        $region76: #{_lambda_.1} parent=11 // pred_fallthru
          _
      $region12: #{_lambda_.1} parent=5 // pred_fallthru
        _
      %p630 = scmp.lt.s32.totalorder %s31, 2
      // Predicated region
      $region77: #{_lambda_.1} parent=5 // pred_check
        %p631 = pneg %p630
      $region78: #{_lambda_.1} parent=5 // pred_check_branch
        %633 = sbr.rel (%p631) target = $region80
      $region79: #{_lambda_.1} parent=5 // pred_region
        // Predicated region
        $region81: #{_lambda_.1} parent=79 // pred_check
          %p634 = pneg %p51
        $region82: #{_lambda_.1} parent=79 // pred_check_branch
          %636 = sbr.rel (%p634) target = $region84
        $region83: #{_lambda_.1} parent=79 // pred_region
          %p637 = scmp.lt.s32.totalorder %s31, 1
          %s638 = scalar_select %p637, %s31, 1
          %s639 = smul.addr %s638, 2
          %s640 = smul.addr %s639, 4
          %s641 = scalar_lea.vmem %s0, %s640
        $region84: #{_lambda_.1} parent=79 // pred_fallthru
          _
      $region80: #{_lambda_.1} parent=5 // pred_fallthru
        _
      %p642 = scmp.le.s32.totalorder 1, %s31
      %p643 = scmp.lt.s32.totalorder %s31, 3
      %p644 = pnand %p642, %p643
      %p645 = pneg %p644
      // Predicated region
      $region85: #{_lambda_.1} parent=5 // pred_check
        _
      $region86: #{_lambda_.1} parent=5 // pred_check_branch
        %647 = sbr.rel (%p644) target = $region88
      $region87: #{_lambda_.1} parent=5 // pred_region
        %s648 = ssub.s32 %s31, 1
        // Predicated region
        $region89: #{_lambda_.1} parent=87 // pred_check
          %p649 = pneg %p78
        $region90: #{_lambda_.1} parent=87 // pred_check_branch
          %651 = sbr.rel (%p649) target = $region92
        $region91: #{_lambda_.1} parent=87 // pred_region
          %653 = dma.done [#allocation16], 9216
        $region92: #{_lambda_.1} parent=87 // pred_fallthru
          _
        // Predicated region
        $region93: #{_lambda_.1} parent=87 // pred_check
          %p654 = pneg %p99
        $region94: #{_lambda_.1} parent=87 // pred_check_branch
          %656 = sbr.rel (%p654) target = $region96
        $region95: #{_lambda_.1} parent=87 // pred_region
          %658 = dma.done [#allocation18], 4096
        $region96: #{_lambda_.1} parent=87 // pred_fallthru
          _
        // Predicated region
        $region97: #{_lambda_.1} parent=87 // pred_check
          %p659 = pneg %p120
        $region98: #{_lambda_.1} parent=87 // pred_check_branch
          %661 = sbr.rel (%p659) target = $region100
        $region99: #{_lambda_.1} parent=87 // pred_region
          %663 = dma.done [#allocation18], 4096
        $region100: #{_lambda_.1} parent=87 // pred_fallthru
          _
        // Predicated region
        $region101: #{_lambda_.1} parent=87 // pred_check
          %p664 = pneg %p141
        $region102: #{_lambda_.1} parent=87 // pred_check_branch
          %666 = sbr.rel (%p664) target = $region104
        $region103: #{_lambda_.1} parent=87 // pred_region
          %668 = dma.done [#allocation21], 32
        $region104: #{_lambda_.1} parent=87 // pred_fallthru
          _
        // Predicated region
        $region105: #{_lambda_.1} parent=87 // pred_check
          %p669 = pneg %p162
        $region106: #{_lambda_.1} parent=87 // pred_check_branch
          %671 = sbr.rel (%p669) target = $region108
        $region107: #{_lambda_.1} parent=87 // pred_region
          %673 = dma.done [#allocation21], 64
        $region108: #{_lambda_.1} parent=87 // pred_fallthru
          _
        // Predicated region
        $region109: #{_lambda_.1} parent=87 // pred_check
          %p674 = pneg %p183
        $region110: #{_lambda_.1} parent=87 // pred_check_branch
          %676 = sbr.rel (%p674) target = $region112
        $region111: #{_lambda_.1} parent=87 // pred_region
          %678 = dma.done [#allocation24], 192
        $region112: #{_lambda_.1} parent=87 // pred_fallthru
          _
        // Predicated region
        $region113: #{_lambda_.1} parent=87 // pred_check
          %p679 = pneg %p204
        $region114: #{_lambda_.1} parent=87 // pred_check_branch
          %681 = sbr.rel (%p679) target = $region116
        $region115: #{_lambda_.1} parent=87 // pred_region
          %683 = dma.done [#allocation24], 5248
        $region116: #{_lambda_.1} parent=87 // pred_fallthru
          _
        // Predicated region
        $region117: #{_lambda_.1} parent=87 // pred_check
          %p684 = pneg %p246
        $region118: #{_lambda_.1} parent=87 // pred_check_branch
          %686 = sbr.rel (%p684) target = $region120
        $region119: #{_lambda_.1} parent=87 // pred_region
          %688 = dma.done [#allocation27], 640
        $region120: #{_lambda_.1} parent=87 // pred_fallthru
          _
        // Predicated region
        $region121: #{_lambda_.1} parent=87 // pred_check
          %p689 = pneg %p267
        $region122: #{_lambda_.1} parent=87 // pred_check_branch
          %691 = sbr.rel (%p689) target = $region124
        $region123: #{_lambda_.1} parent=87 // pred_region
          %693 = dma.done [#allocation27], 256
        $region124: #{_lambda_.1} parent=87 // pred_fallthru
          _
        // Predicated region
        $region125: #{_lambda_.1} parent=87 // pred_check
          %p694 = pneg %p288
        $region126: #{_lambda_.1} parent=87 // pred_check_branch
          %696 = sbr.rel (%p694) target = $region128
        $region127: #{_lambda_.1} parent=87 // pred_region
          %698 = dma.done [#allocation30], 256
        $region128: #{_lambda_.1} parent=87 // pred_fallthru
          _
        // Predicated region
        $region129: #{_lambda_.1} parent=87 // pred_check
          %p699 = pneg %p330
        $region130: #{_lambda_.1} parent=87 // pred_check_branch
          %701 = sbr.rel (%p699) target = $region132
        $region131: #{_lambda_.1} parent=87 // pred_region
          %703 = dma.done [#allocation30], 640
        $region132: #{_lambda_.1} parent=87 // pred_fallthru
          _
        // Predicated region
        $region133: #{_lambda_.1} parent=87 // pred_check
          %p704 = pneg %p351
        $region134: #{_lambda_.1} parent=87 // pred_check_branch
          %706 = sbr.rel (%p704) target = $region136
        $region135: #{_lambda_.1} parent=87 // pred_region
          %708 = dma.done [#allocation33], 4992
        $region136: #{_lambda_.1} parent=87 // pred_fallthru
          _
        // Predicated region
        $region137: #{_lambda_.1} parent=87 // pred_check
          %p709 = pneg %p372
        $region138: #{_lambda_.1} parent=87 // pred_check_branch
          %711 = sbr.rel (%p709) target = $region140
        $region139: #{_lambda_.1} parent=87 // pred_region
          %713 = dma.done [#allocation33], 12288
        $region140: #{_lambda_.1} parent=87 // pred_fallthru
          _
        // Predicated region
        $region141: #{_lambda_.1} parent=87 // pred_check
          %p714 = pneg %p393
        $region142: #{_lambda_.1} parent=87 // pred_check_branch
          %716 = sbr.rel (%p714) target = $region144
        $region143: #{_lambda_.1} parent=87 // pred_region
          %718 = dma.done [#allocation36], 10496
        $region144: #{_lambda_.1} parent=87 // pred_fallthru
          _
        %p719 = scmp.lt.s32.totalorder %s36, 1
        %s720 = scalar_select %p719, %s36, 1
        %s721 = smul.addr %s720, 2
        %s722 = smul.addr %s721, 4
        %s723 = scalar_lea.vmem %s0, %s722
        %p724 = pneg %p57
        %p725 = pneg %p54
        %p726 = pneg %p78
        %p727 = pneg %p75
        %p728 = pneg %p99
        %p729 = pneg %p96
        %p730 = pneg %p120
        %p731 = pneg %p117
        %p732 = pneg %p141
        %p733 = pneg %p138
        %p734 = pneg %p162
        %p735 = pneg %p159
        %p736 = pneg %p183
        %p737 = pneg %p180
        %p738 = pneg %p204
        %p739 = pneg %p201
        %p740 = pneg %p225
        %p741 = pneg %p222
        %p742 = pneg %p246
        %p743 = pneg %p243
        %p744 = pneg %p267
        %p745 = pneg %p264
        %p746 = pneg %p288
        %p747 = pneg %p285
        %p748 = pneg %p309
        %p749 = pneg %p306
        %p750 = pneg %p330
        %p751 = pneg %p327
        %p752 = pneg %p351
        %p753 = pneg %p348
        %p754 = pneg %p372
        %p755 = pneg %p369
        %p756 = pneg %p393
        %p757 = pneg %p390
        %p758 = pneg %p419
        %p759 = pneg %p416
        %p760 = scmp.lt.s32.totalorder %s36, 1
        %s761 = scalar_select %p760, %s36, 1
        %s762 = smul.addr %s761, 2
        %s763 = smul.addr %s762, 4
        %s764 = scalar_lea.vmem %s17, %s763
        %p765 = scmp.lt.s32.totalorder %s36, 1
        %s766 = scalar_select %p765, %s36, 1
        %s767 = smul.addr %s766, 2
        %s768 = smul.addr %s767, 4
        %s769 = scalar_lea.vmem %s0, %s768
        %p770 = scmp.lt.s32.totalorder %s36, 1
        %s771 = scalar_select %p770, %s36, 1
        %s772 = smul.addr %s771, 2
        %s773 = smul.addr %s772, 4
        %s774 = scalar_lea.vmem %s17, %s773
        %vm776 = vcmask 1041408
        %vm777 = vsmask.f32 1280
        %vm778 = vmand %vm776, %vm777
        %vm779 = vcmask 1043458
        %vm780 = vsmask.f32 3328
        %vm781 = vmand %vm779, %vm780
        %vm782 = vmor %vm781, %vm778
        %vm783 = vcmask 1045508
        %vm784 = vsmask.f32 5376
        %vm785 = vmand %vm783, %vm784
        %vm786 = vmor %vm785, %vm782
        %vm787 = vcmask 711686
        %vm788 = vsmask.f32 7424
        %vm789 = vmand %vm787, %vm788
        %vm790 = vmor %vm789, %vm786
        %v791 = vld [vmem:[#allocation2] sm:$0xff]
        %v792 = vsel %vm790, 0, %v791
        %793 = vst [vmem:[#allocation2] sm:$0xff] %v792
        %vm794 = vcmask 1041408
        %vm795 = vcmask 904194
        %vm796 = vmor %vm795, %vm794
        %797 = vst.msk [vmem:[#allocation3] sm:$0xf] %vm796, 0
        %vm798 = vcmask 1043456
        %vm799 = vcmask 351236
        %vm800 = vmor %vm799, %vm798
        %801 = vst.msk [vmem:[#allocation4] sm:$0xff] %vm800, 0
        %vm802 = vcmask 171012
        %vm803 = vmor %vm802, %vm798
        %804 = vst.msk [vmem:[#allocation5] sm:$0xff] %vm803, 0
        %805 = vst.msk [vmem:[#allocation5 + $0x8] sm:$0xff] %vm803, 0
        %vm806 = vcmask 1043458
        %vm807 = vmor %vm806, %vm794
        %vm808 = vcmask 1045508
        %vm809 = vmor %vm808, %vm807
        %vm810 = vcmask 711686
        %vm811 = vmor %vm810, %vm809
        %812 = vst.msk [vmem:[#allocation6] sm:$0xff] %vm811, 0
        %vm813 = vcmask 908292
        %vm814 = vmor %vm813, %vm798
        %815 = vst.msk [vmem:[#allocation7] sm:$0xff] %vm814, 0
        %816 = vst.msk [vmem:[#allocation8] sm:$0xff] %vm800, 0
        %817 = vst.msk [vmem:[#allocation8 + $0x8] sm:$0xff] %vm800, 0
        %818 = vst.msk [vmem:[#allocation9] sm:$0xff] %vm803, 0
        %819 = vst.msk [vmem:[#allocation9 + $0x8] sm:$0xff] %vm803, 0
        %820 = vst.msk [vmem:[#allocation9 + $0x10] sm:$0xff] %vm803, 0
        %821 = vst.msk [vmem:[#allocation9 + $0x18] sm:$0xff] %vm803, 0
        %822 = vst.msk [vmem:[#allocation10] sm:$0xff] %vm803, 0
        %823 = vst.msk [vmem:[#allocation10 + $0x8] sm:$0xff] %vm803, 0
        %824 = vst.msk [vmem:[#allocation10 + $0x10] sm:$0xff] %vm803, 0
        %825 = vst.msk [vmem:[#allocation10 + $0x18] sm:$0xff] %vm803, 0
        %826 = vst.msk [vmem:[#allocation11] sm:$0xff] %vm800, 0
        %827 = vst.msk [vmem:[#allocation11 + $0x8] sm:$0xff] %vm800, 0
        %828 = vst.msk [vmem:[#allocation11 + $0x10] sm:$0xff] %vm800, 0
        %829 = vst.msk [vmem:[#allocation11 + $0x18] sm:$0xff] %vm800, 0
        %830 = vst.msk [vmem:[#allocation12] sm:$0xff] %vm814, 0
        %831 = vst.msk [vmem:[#allocation12 + $0x8] sm:$0xff] %vm814, 0
        %832 = vst [vmem:[#allocation13] sm:$0xff] 0
        %vm833 = vcmask 711684
        %vm834 = vmor %vm833, %vm798
        %835 = vst.msk [vmem:[#allocation13 + $0x8] sm:$0xff] %vm834, 0
        %836 = vst [vmem:[#allocation14] sm:$0xff] 0
        %vm837 = vcmask 551936
        %838 = vst.msk [vmem:[#allocation14 + $0x8] sm:$0xf] %vm837, 0
        %839 = vst [vmem:[#allocation14 + $0xc] sm:$0xff] 0
        %840 = vst.msk [vmem:[#allocation14 + $0x14] sm:$0xf] %vm837, 0
        %841 = vst [vmem:[#allocation14 + $0x18] sm:$0xff] 0
        %842 = vst.msk [vmem:[#allocation14 + $0x20] sm:$0xf] %vm837, 0
        %843 = vst [vmem:[#allocation14 + $0x24] sm:$0xff] 0
        %844 = vst.msk [vmem:[#allocation14 + $0x2c] sm:$0xf] %vm837, 0
        %845 = vst [vmem:[#allocation14 + $0x30] sm:$0xff] 0
        %846 = vst.msk [vmem:[#allocation14 + $0x38] sm:$0xf] %vm837, 0
        %847 = vst [vmem:[#allocation14 + $0x3c] sm:$0xff] 0
        %848 = vst.msk [vmem:[#allocation14 + $0x44] sm:$0xf] %vm837, 0
        %849 = vst [vmem:[#allocation14 + $0x48] sm:$0xff] 0
        %850 = vst.msk [vmem:[#allocation14 + $0x50] sm:$0xf] %vm837, 0
        %851 = vst [vmem:[#allocation14 + $0x54] sm:$0xff] 0
        %852 = vst.msk [vmem:[#allocation14 + $0x5c] sm:$0xf] %vm837, 0
        %853 = vst [vmem:[#allocation14 + $0x60] sm:$0xff] 0
        %854 = vst.msk [vmem:[#allocation14 + $0x68] sm:$0xf] %vm837, 0
        %855 = vst [vmem:[#allocation14 + $0x6c] sm:$0xff] 0
        %856 = vst.msk [vmem:[#allocation14 + $0x74] sm:$0xf] %vm837, 0
        %857 = vst [vmem:[#allocation14 + $0x78] sm:$0xff] 0
        %858 = vst.msk [vmem:[#allocation14 + $0x80] sm:$0xf] %vm837, 0
        %859 = vst [vmem:[#allocation14 + $0x84] sm:$0xff] 0
        %860 = vst.msk [vmem:[#allocation14 + $0x8c] sm:$0xf] %vm837, 0
        %861 = vst [vmem:[#allocation14 + $0x90] sm:$0xff] 0
        %862 = vst.msk [vmem:[#allocation14 + $0x98] sm:$0xf] %vm837, 0
        %863 = vst [vmem:[#allocation14 + $0x9c] sm:$0xff] 0
        %864 = vst.msk [vmem:[#allocation14 + $0xa4] sm:$0xf] %vm837, 0
        %865 = vst [vmem:[#allocation14 + $0xa8] sm:$0xff] 0
        %866 = vst.msk [vmem:[#allocation14 + $0xb0] sm:$0xf] %vm837, 0
        %867 = vst [vmem:[#allocation14 + $0xb4] sm:$0xff] 0
        %868 = vst.msk [vmem:[#allocation14 + $0xbc] sm:$0xf] %vm837, 0
        %869 = vst [vmem:[#allocation14 + $0xc0] sm:$0xff] 0
        %870 = vst.msk [vmem:[#allocation14 + $0xc8] sm:$0xf] %vm837, 0
        %871 = vst [vmem:[#allocation14 + $0xcc] sm:$0xff] 0
        %872 = vst.msk [vmem:[#allocation14 + $0xd4] sm:$0xf] %vm837, 0
        %873 = vst [vmem:[#allocation14 + $0xd8] sm:$0xff] 0
        %874 = vst.msk [vmem:[#allocation14 + $0xe0] sm:$0xf] %vm837, 0
        %875 = vst [vmem:[#allocation14 + $0xe4] sm:$0xff] 0
        %876 = vst.msk [vmem:[#allocation14 + $0xec] sm:$0xf] %vm837, 0
        %877 = vst [vmem:[#allocation14 + $0xf0] sm:$0xff] 0
        %878 = vst.msk [vmem:[#allocation14 + $0xf8] sm:$0xf] %vm837, 0
        %879 = vst [vmem:[#allocation14 + $0xfc] sm:$0xff] 0
        %880 = vst.msk [vmem:[#allocation14 + $0x104] sm:$0xf] %vm837, 0
        %881 = vst [vmem:[#allocation14 + $0x108] sm:$0xff] 0
        %882 = vst.msk [vmem:[#allocation14 + $0x110] sm:$0xf] %vm837, 0
        %883 = vst [vmem:[#allocation14 + $0x114] sm:$0xff] 0
        %884 = vst.msk [vmem:[#allocation14 + $0x11c] sm:$0xf] %vm837, 0
        %885 = vst [vmem:[#allocation14 + $0x120] sm:$0xff] 0
        %886 = vst.msk [vmem:[#allocation14 + $0x128] sm:$0xf] %vm837, 0
        %887 = vst [vmem:[#allocation14 + $0x12c] sm:$0xff] 0
        %888 = vst.msk [vmem:[#allocation14 + $0x134] sm:$0xf] %vm837, 0
        %889 = vst [vmem:[#allocation14 + $0x138] sm:$0xff] 0
        %890 = vst.msk [vmem:[#allocation14 + $0x140] sm:$0xf] %vm837, 0
        %891 = vst [vmem:[#allocation14 + $0x144] sm:$0xff] 0
        %892 = vst.msk [vmem:[#allocation14 + $0x14c] sm:$0xf] %vm837, 0
        %893 = vst [vmem:[#allocation14 + $0x150] sm:$0xff] 0
        %894 = vst.msk [vmem:[#allocation14 + $0x158] sm:$0xf] %vm837, 0
        %895 = vst [vmem:[#allocation14 + $0x15c] sm:$0xff] 0
        %896 = vst.msk [vmem:[#allocation14 + $0x164] sm:$0xf] %vm837, 0
        %897 = vst [vmem:[#allocation14 + $0x168] sm:$0xff] 0
        %898 = vst.msk [vmem:[#allocation14 + $0x170] sm:$0xf] %vm837, 0
        %899 = vst [vmem:[#allocation14 + $0x174] sm:$0xff] 0
        %900 = vst.msk [vmem:[#allocation14 + $0x17c] sm:$0xf] %vm837, 0
        %901 = vst [vmem:[#allocation14 + $0x180] sm:$0xff] 0
        %902 = vst.msk [vmem:[#allocation14 + $0x188] sm:$0xf] %vm837, 0
        %903 = vst [vmem:[#allocation14 + $0x18c] sm:$0xff] 0
        %904 = vst.msk [vmem:[#allocation14 + $0x194] sm:$0xf] %vm837, 0
        %905 = vst [vmem:[#allocation14 + $0x198] sm:$0xff] 0
        %906 = vst.msk [vmem:[#allocation14 + $0x1a0] sm:$0xf] %vm837, 0
        %907 = vst [vmem:[#allocation14 + $0x1a4] sm:$0xff] 0
        %908 = vst.msk [vmem:[#allocation14 + $0x1ac] sm:$0xf] %vm837, 0
        %v909 = vld [vmem:[%s769] sm:$0x77]
        %v910 = vld [vmem:[#allocation34] sm:$0xff]
        %v911 = vld [vmem:[#allocation34 + $0x8] sm:$0xff]
        %v912 = vld [vmem:[#allocation34 + $0x10] sm:$0xff]
        %v913 = vld [vmem:[#allocation34 + $0x18] sm:$0xff]
        %v914 = vld [vmem:[#allocation34 + $0x20] sm:$0xff]
        %v915 = vld [vmem:[#allocation34 + $0x28] sm:$0xff]
        %v916 = vld [vmem:[#allocation34 + $0x30] sm:$0xff]
        %v917 = vld [vmem:[#allocation34 + $0x38] sm:$0xff]
        %v918 = vld [vmem:[#allocation34 + $0x40] sm:$0xff]
        %v919 = vld [vmem:[#allocation34 + $0x48] sm:$0xff]
        %v920 = vld [vmem:[#allocation34 + $0x50] sm:$0xff]
        %v921 = vld [vmem:[#allocation34 + $0x58] sm:$0xff]
        %v922 = vld [vmem:[#allocation34 + $0x60] sm:$0xff]
        %v923 = vld [vmem:[#allocation34 + $0x68] sm:$0xff]
        %v924 = vld [vmem:[#allocation34 + $0x70] sm:$0xff]
        %v925 = vld [vmem:[#allocation34 + $0x78] sm:$0xff]
        %v926 = vld [vmem:[#allocation34 + $0x80] sm:$0xff]
        %v927 = vld [vmem:[#allocation34 + $0x88] sm:$0xff]
        %v928 = vld [vmem:[#allocation34 + $0x90] sm:$0xff]
        %v929 = vld [vmem:[#allocation34 + $0x98] sm:$0xff]
        %v930 = vld [vmem:[#allocation34 + $0xa0] sm:$0xff]
        %v931 = vld [vmem:[#allocation34 + $0xa8] sm:$0xff]
        %v932 = vld [vmem:[#allocation34 + $0xb0] sm:$0xff]
        %v933 = vld [vmem:[#allocation34 + $0xb8] sm:$0xff]
        %v934 = vld [vmem:[#allocation34 + $0xc0] sm:$0xff]
        %v935 = vld [vmem:[#allocation34 + $0xc8] sm:$0xff]
        %v936 = vld [vmem:[#allocation34 + $0xd0] sm:$0xff]
        %v937 = vld [vmem:[#allocation34 + $0xd8] sm:$0xff]
        %v938 = vld [vmem:[#allocation34 + $0xe0] sm:$0xff]
        %v939 = vld [vmem:[#allocation34 + $0xe8] sm:$0xff]
        %v940 = vld [vmem:[#allocation34 + $0xf0] sm:$0xff]
        %v941 = vld [vmem:[#allocation34 + $0xf8] sm:$0xff]
        %v942 = vld [vmem:[#allocation34 + $0x100] sm:$0xff]
        %v943 = vld [vmem:[#allocation34 + $0x108] sm:$0xff]
        %v944 = vld [vmem:[#allocation34 + $0x110] sm:$0xff]
        %v945 = vld [vmem:[#allocation34 + $0x118] sm:$0xff]
        %v946 = vld [vmem:[#allocation34 + $0x120] sm:$0xff]
        %v947 = vld [vmem:[#allocation34 + $0x128] sm:$0xff]
        %v948 = vld [vmem:[#allocation34 + $0x130] sm:$0xff]
        %v949 = vld [vmem:[#allocation34 + $0x138] sm:$0xff]
        %v950 = vld [vmem:[#allocation34 + $0x140] sm:$0xff]
        %v951 = vld [vmem:[#allocation34 + $0x148] sm:$0xff]
        %v952 = vld [vmem:[#allocation34 + $0x150] sm:$0xff]
        %v953 = vld [vmem:[#allocation34 + $0x158] sm:$0xff]
        %v954 = vld [vmem:[#allocation34 + $0x160] sm:$0xff]
        %v955 = vld [vmem:[#allocation34 + $0x168] sm:$0xff]
        %v956 = vld [vmem:[#allocation34 + $0x170] sm:$0xff]
        %v957 = vld [vmem:[#allocation34 + $0x178] sm:$0xff]
        %v958 = vld [vmem:[#allocation34 + $0x180] sm:$0xff]
        %v959 = vld [vmem:[#allocation34 + $0x188] sm:$0xff]
        %v960 = vld [vmem:[#allocation34 + $0x190] sm:$0xff]
        %v961 = vld [vmem:[#allocation34 + $0x198] sm:$0xff]
        %v962 = vld [vmem:[#allocation34 + $0x1a0] sm:$0xff]
        %v963 = vld [vmem:[#allocation34 + $0x1a8] sm:$0xff]
        %v964 = vld [vmem:[#allocation34 + $0x1b0] sm:$0xff]
        %v965 = vld [vmem:[#allocation34 + $0x1b8] sm:$0xff]
        %v966 = vld [vmem:[#allocation34 + $0x1c0] sm:$0xff]
        %v967 = vld [vmem:[#allocation34 + $0x1c8] sm:$0xff]
        %v968 = vld [vmem:[#allocation34 + $0x1d0] sm:$0xff]
        %v969 = vld [vmem:[#allocation34 + $0x1d8] sm:$0xff]
        %v970 = vld [vmem:[#allocation34 + $0x1e0] sm:$0xff]
        %v971 = vld [vmem:[#allocation34 + $0x1e8] sm:$0xff]
        %v972 = vld [vmem:[#allocation34 + $0x1f0] sm:$0xff]
        %v973 = vld [vmem:[#allocation34 + $0x1f8] sm:$0xff]
        %v974 = vld [vmem:[#allocation34 + $0x200] sm:$0xff]
        %v975 = vld [vmem:[#allocation34 + $0x208] sm:$0xff]
        %v976 = vld [vmem:[#allocation34 + $0x210] sm:$0xff]
        %v977 = vld [vmem:[#allocation34 + $0x218] sm:$0xff]
        %v978 = vld [vmem:[#allocation34 + $0x220] sm:$0xff]
        %v979 = vld [vmem:[#allocation34 + $0x228] sm:$0xff]
        %v980 = vld [vmem:[#allocation34 + $0x230] sm:$0xff]
        %v981 = vld [vmem:[#allocation34 + $0x238] sm:$0xff]
        %v982 = vld [vmem:[#allocation34 + $0x240] sm:$0xff]
        %v983 = vld [vmem:[#allocation34 + $0x248] sm:$0xff]
        %v984 = vld [vmem:[#allocation34 + $0x250] sm:$0xff]
        %v985 = vld [vmem:[#allocation34 + $0x258] sm:$0xff]
        %v986 = vld [vmem:[#allocation34 + $0x260] sm:$0xff]
        %v987 = vld [vmem:[#allocation34 + $0x268] sm:$0xff]
        %v988 = vld [vmem:[#allocation34 + $0x270] sm:$0xff]
        %v989 = vld [vmem:[#allocation34 + $0x278] sm:$0xff]
        %v990 = vld [vmem:[#allocation34 + $0x280] sm:$0xff]
        %v991 = vld [vmem:[#allocation34 + $0x288] sm:$0xff]
        %v992 = vld [vmem:[#allocation34 + $0x290] sm:$0xff]
        %v993 = vld [vmem:[#allocation34 + $0x298] sm:$0xff]
        %v994 = vld [vmem:[#allocation34 + $0x2a0] sm:$0xff]
        %v995 = vld [vmem:[#allocation34 + $0x2a8] sm:$0xff]
        %v996 = vld [vmem:[#allocation34 + $0x2b0] sm:$0xff]
        %v997 = vld [vmem:[#allocation34 + $0x2b8] sm:$0xff]
        %v998 = vld [vmem:[#allocation34 + $0x2c0] sm:$0xff]
        %v999 = vld [vmem:[#allocation34 + $0x2c8] sm:$0xff]
        %v1000 = vld [vmem:[#allocation34 + $0x2d0] sm:$0xff]
        %v1001 = vld [vmem:[#allocation34 + $0x2d8] sm:$0xff]
        %v1002 = vld [vmem:[#allocation34 + $0x2e0] sm:$0xff]
        %v1003 = vld [vmem:[#allocation34 + $0x2e8] sm:$0xff]
        %v1004 = vld [vmem:[#allocation34 + $0x2f0] sm:$0xff]
        %v1005 = vld [vmem:[#allocation34 + $0x2f8] sm:$0xff]
        %1007 = vst [vmem:[#allocation1] ss:$2 sm:$0xff] %v909
        %v1008 = vld.sshfl [vmem:[#allocation1] sm:$0xff pattern:$0x75316420]
        %v1009 = vld.sshfl [vmem:[#allocation1 + $0x8] sm:$0xff pattern:$0x75316420]
        %1012 = vmatpush.msra.mxu0 %v955
        %1013 = vmatpush.msra.mxu0 %v952
        %1014 = vmatpush.msra.mxu0 %v949
        %1015 = vmatpush.msra.mxu0 %v946
        %1016 = vmatpush.msra.mxu0 %v943
        %1017 = vmatpush.msra.mxu0 %v940
        %1018 = vmatpush.msra.mxu0 %v937
        %1019 = vmatpush.msra.mxu0 %v934
        %1020 = vmatpush.msra.mxu0 %v931
        %1021 = vmatpush.msra.mxu0 %v928
        %1022 = vmatpush.msra.mxu0 %v925
        %1023 = vmatpush.msra.mxu0 %v922
        %1024 = vmatpush.msra.mxu0 %v919
        %1025 = vmatpush.msra.mxu0 %v916
        %1026 = vmatpush.msra.mxu0 %v913
        %1027 = vmatpush.msra.mxu0 %v910
        %1028 = vmatmul.f32.gmra.mxu0 %v1008
        %v1029 = vpop.f32.mrf.mxu0
        %v1030 = vadd.f32 0.0, %v1029
        %1031 = vdwg.mxu0
        %1032 = vmatpush.msra.mxu0 %v1003
        %1033 = vmatpush.msra.mxu0 %v1000
        %1034 = vmatpush.msra.mxu0 %v997
        %1035 = vmatpush.msra.mxu0 %v994
        %1036 = vmatpush.msra.mxu0 %v991
        %1037 = vmatpush.msra.mxu0 %v988
        %1038 = vmatpush.msra.mxu0 %v985
        %1039 = vmatpush.msra.mxu0 %v982
        %1040 = vmatpush.msra.mxu0 %v979
        %1041 = vmatpush.msra.mxu0 %v976
        %1042 = vmatpush.msra.mxu0 %v973
        %1043 = vmatpush.msra.mxu0 %v970
        %1044 = vmatpush.msra.mxu0 %v967
        %1045 = vmatpush.msra.mxu0 %v964
        %1046 = vmatpush.msra.mxu0 %v961
        %1047 = vmatpush.msra.mxu0 %v958
        %1048 = vmatmul.f32.gmra.mxu0 %v1009
        %v1049 = vpop.f32.mrf.mxu0
        %v1050 = vadd.f32 %v1030, %v1049
        %1051 = vdwg.mxu0
        %1052 = vmatpush.msra.mxu0 %v956
        %1053 = vmatpush.msra.mxu0 %v953
        %1054 = vmatpush.msra.mxu0 %v950
        %1055 = vmatpush.msra.mxu0 %v947
        %1056 = vmatpush.msra.mxu0 %v944
        %1057 = vmatpush.msra.mxu0 %v941
        %1058 = vmatpush.msra.mxu0 %v938
        %1059 = vmatpush.msra.mxu0 %v935
        %1060 = vmatpush.msra.mxu0 %v932
        %1061 = vmatpush.msra.mxu0 %v929
        %1062 = vmatpush.msra.mxu0 %v926
        %1063 = vmatpush.msra.mxu0 %v923
        %1064 = vmatpush.msra.mxu0 %v920
        %1065 = vmatpush.msra.mxu0 %v917
        %1066 = vmatpush.msra.mxu0 %v914
        %1067 = vmatpush.msra.mxu0 %v911
        %1068 = vmatmul.f32.gmra.mxu0 %v1008
        %v1069 = vpop.f32.mrf.mxu0
        %v1070 = vadd.f32 0.0, %v1069
        %1071 = vdwg.mxu0
        %1072 = vmatpush.msra.mxu0 %v1004
        %1073 = vmatpush.msra.mxu0 %v1001
        %1074 = vmatpush.msra.mxu0 %v998
        %1075 = vmatpush.msra.mxu0 %v995
        %1076 = vmatpush.msra.mxu0 %v992
        %1077 = vmatpush.msra.mxu0 %v989
        %1078 = vmatpush.msra.mxu0 %v986
        %1079 = vmatpush.msra.mxu0 %v983
        %1080 = vmatpush.msra.mxu0 %v980
        %1081 = vmatpush.msra.mxu0 %v977
        %1082 = vmatpush.msra.mxu0 %v974
        %1083 = vmatpush.msra.mxu0 %v971
        %1084 = vmatpush.msra.mxu0 %v968
        %1085 = vmatpush.msra.mxu0 %v965
        %1086 = vmatpush.msra.mxu0 %v962
        %1087 = vmatpush.msra.mxu0 %v959
        %1088 = vmatmul.f32.gmra.mxu0 %v1009
        %v1089 = vpop.f32.mrf.mxu0
        %v1090 = vadd.f32 %v1070, %v1089
        %1091 = vdwg.mxu0
        %1092 = vmatpush.msra.mxu0 %v957
        %1093 = vmatpush.msra.mxu0 %v954
        %1094 = vmatpush.msra.mxu0 %v951
        %1095 = vmatpush.msra.mxu0 %v948
        %1096 = vmatpush.msra.mxu0 %v945
        %1097 = vmatpush.msra.mxu0 %v942
        %1098 = vmatpush.msra.mxu0 %v939
        %1099 = vmatpush.msra.mxu0 %v936
        %1100 = vmatpush.msra.mxu0 %v933
        %1101 = vmatpush.msra.mxu0 %v930
        %1102 = vmatpush.msra.mxu0 %v927
        %1103 = vmatpush.msra.mxu0 %v924
        %1104 = vmatpush.msra.mxu0 %v921
        %1105 = vmatpush.msra.mxu0 %v918
        %1106 = vmatpush.msra.mxu0 %v915
        %1107 = vmatpush.msra.mxu0 %v912
        %1108 = vmatmul.f32.gmra.mxu0 %v1008
        %v1109 = vpop.f32.mrf.mxu0
        %v1110 = vadd.f32 0.0, %v1109
        %1111 = vdwg.mxu0
        %1112 = vmatpush.msra.mxu0 %v1005
        %1113 = vmatpush.msra.mxu0 %v1002
        %1114 = vmatpush.msra.mxu0 %v999
        %1115 = vmatpush.msra.mxu0 %v996
        %1116 = vmatpush.msra.mxu0 %v993
        %1117 = vmatpush.msra.mxu0 %v990
        %1118 = vmatpush.msra.mxu0 %v987
        %1119 = vmatpush.msra.mxu0 %v984
        %1120 = vmatpush.msra.mxu0 %v981
        %1121 = vmatpush.msra.mxu0 %v978
        %1122 = vmatpush.msra.mxu0 %v975
        %1123 = vmatpush.msra.mxu0 %v972
        %1124 = vmatpush.msra.mxu0 %v969
        %1125 = vmatpush.msra.mxu0 %v966
        %1126 = vmatpush.msra.mxu0 %v963
        %1127 = vmatpush.msra.mxu0 %v960
        %1128 = vmatmul.f32.gmra.mxu0 %v1009
        %v1129 = vpop.f32.mrf.mxu0
        %v1130 = vadd.f32 %v1110, %v1129
        %1131 = vdwg.mxu0
        %v1132 = vpack.c.bf16 %v1090, %v1050
        %v1133 = vpack.c.bf16 %v1130, %v1130
        %v1136 = vrot.slane %v1132, 2
        %v1137 = vrot.slane %v1133, 4
        %v1138 = vrot.slane %v1133, 6
        %v1141 = vsel %vm794, %v1132, %v1136
        %v1144 = vsel %vm808, %v1137, %v1138
        %v1145 = vsel %vm798, %v1141, %v1144
        %vm1147 = vcmask 553988
        %vm1148 = vmand %vm1147, %vm784
        %vm1149 = vmor %vm1148, %vm782
        %v1150 = vld [vmem:[#allocation2 + $0x2] sm:$0x3f]
        %v1151 = vsel %vm1149, %v1145, %v1150
        %1152 = vst [vmem:[#allocation2 + $0x2] sm:$0x3f] %v1151
        %v1153 = vld [vmem:[#allocation2] sm:$0xff]
        %1155 = vst [vmem:[#allocation1] ss:$2 sm:$0xff] %v1153
        %v1156 = vld.sshfl [vmem:[#allocation1] sm:$0xff pattern:$0x75643120]
        %v1158 = vld.sshfl [vmem:[#allocation1 + $0x8] sm:$0xff pattern:$0x75643120]
        %1160 = vrot.lane.b32.xlu0 %v1156, 19
        %v1161 = vpop.permute.xlu0 %1160
        %1162 = vrot.lane.b32.xlu0 %v1158, 19
        %v1163 = vpop.permute.xlu0 %1162
        %v1164 = vrot.slane %v1161, 4
        %v1165 = vrot.slane %v1163, 4
        %vm1166 = vcmask 1043456
        %v1167 = vsel %vm1166, %v1164, %v1165
        %vm1168 = vcmask 154624
        %v1169 = vsel %vm1168, %v1161, %v1167
        %v1170 = vsel %vm1168, %v1163, %v1165
        %vm1173 = vmor %vm785, %vm778
        %v1174 = vld [vmem:[#allocation14] sm:$0x33]
        %v1175 = vsel %vm1173, %v1169, %v1174
        %1176 = vst [vmem:[#allocation14] sm:$0x33] %v1175
        %vm1177 = vcmask 549888
        %vm1178 = vmand %vm1177, %vm777
        %v1179 = vld [vmem:[#allocation14 + $0x8] sm:$0x3]
        %v1180 = vsel %vm1178, %v1170, %v1179
        %1181 = vst [vmem:[#allocation14 + $0x8] sm:$0x3] %v1180
        %1182 = vst [vmem:[#allocation1] ss:$2 sm:$0xff] %v1153
        %v1183 = vld.sshfl [vmem:[#allocation1] sm:$0xff pattern:$0x75643120]
        %v1185 = vld.sshfl [vmem:[#allocation1 + $0x8] sm:$0xff pattern:$0x75643120]
        %1187 = vrot.lane.b32.xlu0 %v1183, 18
        %v1188 = vpop.permute.xlu0 %1187
        %1189 = vrot.lane.b32.xlu0 %v1185, 18
        %v1190 = vpop.permute.xlu0 %1189
        %v1191 = vrot.slane %v1188, 4
        %v1192 = vrot.slane %v1190, 4
        %v1193 = vsel %vm1166, %v1191, %v1192
        %vm1194 = vcmask 146432
        %v1195 = vsel %vm1194, %v1188, %v1193
        %v1196 = vsel %vm1194, %v1190, %v1192
        %v1199 = vld [vmem:[#allocation14 + $0x30] sm:$0x33]
        %v1200 = vsel %vm1173, %v1195, %v1199
        %1201 = vst [vmem:[#allocation14 + $0x30] sm:$0x33] %v1200
        %v1202 = vld [vmem:[#allocation14 + $0x38] sm:$0x3]
        %v1203 = vsel %vm1178, %v1196, %v1202
        %1204 = vst [vmem:[#allocation14 + $0x38] sm:$0x3] %v1203
        %1205 = vst [vmem:[#allocation1] ss:$2 sm:$0xff] %v1153
        %v1206 = vld.sshfl [vmem:[#allocation1] sm:$0xff pattern:$0x75643120]
        %v1208 = vld.sshfl [vmem:[#allocation1 + $0x8] sm:$0xff pattern:$0x75643120]
        %1210 = vrot.lane.b32.xlu0 %v1206, 17
        %v1211 = vpop.permute.xlu0 %1210
        %1212 = vrot.lane.b32.xlu0 %v1208, 17
        %v1213 = vpop.permute.xlu0 %1212
        %v1214 = vrot.slane %v1211, 4
        %v1215 = vrot.slane %v1213, 4
        %v1216 = vsel %vm1166, %v1214, %v1215
        %vm1217 = vcmask 138240
        %v1218 = vsel %vm1217, %v1211, %v1216
        %v1219 = vsel %vm1217, %v1213, %v1215
        %v1222 = vld [vmem:[#allocation14 + $0x60] sm:$0x33]
        %v1223 = vsel %vm1173, %v1218, %v1222
        %1224 = vst [vmem:[#allocation14 + $0x60] sm:$0x33] %v1223
        %v1225 = vld [vmem:[#allocation14 + $0x68] sm:$0x3]
        %v1226 = vsel %vm1178, %v1219, %v1225
        %1227 = vst [vmem:[#allocation14 + $0x68] sm:$0x3] %v1226
        %1228 = vst [vmem:[#allocation1] ss:$2 sm:$0xff] %v1153
        %v1229 = vld.sshfl [vmem:[#allocation1] sm:$0xff pattern:$0x75643120]
        %v1231 = vld.sshfl [vmem:[#allocation1 + $0x8] sm:$0xff pattern:$0x75643120]
        %1233 = vrot.lane.b32.xlu0 %v1229, 1
        %v1234 = vpop.permute.xlu0 %1233
        %1235 = vrot.lane.b32.xlu0 %v1231, 1
        %v1236 = vpop.permute.xlu0 %1235
        %v1237 = vrot.slane %v1234, 4
        %v1238 = vrot.slane %v1236, 4
        %v1239 = vsel %vm1166, %v1237, %v1238
        %vm1240 = vcmask 7168
        %v1241 = vsel %vm1240, %v1234, %v1239
        %v1242 = vsel %vm1240, %v1236, %v1238
        %v1245 = vld [vmem:[#allocation14 + $0x90] sm:$0x33]
        %v1246 = vsel %vm1173, %v1241, %v1245
        %1247 = vst [vmem:[#allocation14 + $0x90] sm:$0x33] %v1246
        %v1248 = vld [vmem:[#allocation14 + $0x98] sm:$0x3]
        %v1249 = vsel %vm1178, %v1242, %v1248
        %1250 = vst [vmem:[#allocation14 + $0x98] sm:$0x3] %v1249
        %1251 = vst [vmem:[#allocation1] ss:$2 sm:$0xff] %v1153
        %v1252 = vld.sshfl [vmem:[#allocation1] sm:$0xff pattern:$0x75643120]
        %v1254 = vld.sshfl [vmem:[#allocation1 + $0x8] sm:$0xff pattern:$0x75643120]
        %v1256 = vrot.slane %v1252, 4
        %v1257 = vrot.slane %v1254, 4
        %v1258 = vsel %vm1166, %v1256, %v1257
        %v1261 = vld [vmem:[#allocation14 + $0xc0] sm:$0x33]
        %v1262 = vsel %vm1173, %v1258, %v1261
        %1263 = vst [vmem:[#allocation14 + $0xc0] sm:$0x33] %v1262
        %v1264 = vld [vmem:[#allocation14 + $0xc8] sm:$0x3]
        %v1265 = vsel %vm1178, %v1257, %v1264
        %1266 = vst [vmem:[#allocation14 + $0xc8] sm:$0x3] %v1265
        %1267 = vst [vmem:[#allocation1] ss:$2 sm:$0xff] %v1153
        %v1268 = vld.sshfl [vmem:[#allocation1] sm:$0xff pattern:$0x75643120]
        %v1270 = vld.sshfl [vmem:[#allocation1 + $0x8] sm:$0xff pattern:$0x75643120]
        %1272 = vrot.lane.b32.xlu0 %v1268, 127
        %v1273 = vpop.permute.xlu0 %1272
        %1274 = vrot.lane.b32.xlu0 %v1270, 127
        %v1275 = vpop.permute.xlu0 %1274
        %v1276 = vrot.slane %v1273, 4
        %v1277 = vrot.slane %v1275, 4
        %v1278 = vsel %vm1166, %v1276, %v1277
        %vm1279 = vcmask 1039360
        %v1280 = vsel %vm1279, %v1278, %v1275
        %v1283 = vld [vmem:[#allocation14 + $0xf0] sm:$0x33]
        %v1284 = vsel %vm1173, %v1280, %v1283
        %1285 = vst [vmem:[#allocation14 + $0xf0] sm:$0x33] %v1284
        %v1286 = vld [vmem:[#allocation14 + $0xf8] sm:$0x3]
        %v1287 = vsel %vm1178, %v1277, %v1286
        %1288 = vst [vmem:[#allocation14 + $0xf8] sm:$0x3] %v1287
        %1289 = vst [vmem:[#allocation1] ss:$2 sm:$0xff] %v1153
        %v1290 = vld.sshfl [vmem:[#allocation1] sm:$0xff pattern:$0x75643120]
        %v1292 = vld.sshfl [vmem:[#allocation1 + $0x8] sm:$0xff pattern:$0x75643120]
        %1294 = vrot.lane.b32.xlu0 %v1290, 111
        %v1295 = vpop.permute.xlu0 %1294
        %1296 = vrot.lane.b32.xlu0 %v1292, 111
        %v1297 = vpop.permute.xlu0 %1296
        %v1298 = vrot.slane %v1295, 4
        %v1299 = vrot.slane %v1297, 4
        %v1300 = vsel %vm1166, %v1298, %v1299
        %vm1301 = vcmask 908288
        %v1302 = vsel %vm1301, %v1300, %v1297
        %v1305 = vld [vmem:[#allocation14 + $0x120] sm:$0x33]
        %v1306 = vsel %vm1173, %v1302, %v1305
        %1307 = vst [vmem:[#allocation14 + $0x120] sm:$0x33] %v1306
        %v1308 = vld [vmem:[#allocation14 + $0x128] sm:$0x3]
        %v1309 = vsel %vm1178, %v1299, %v1308
        %1310 = vst [vmem:[#allocation14 + $0x128] sm:$0x3] %v1309
        %1311 = vst [vmem:[#allocation1] ss:$2 sm:$0xff] %v1153
        %v1312 = vld.sshfl [vmem:[#allocation1] sm:$0xff pattern:$0x75643120]
        %v1314 = vld.sshfl [vmem:[#allocation1 + $0x8] sm:$0xff pattern:$0x75643120]
        %1316 = vrot.lane.b32.xlu0 %v1312, 110
        %v1317 = vpop.permute.xlu0 %1316
        %1318 = vrot.lane.b32.xlu0 %v1314, 110
        %v1319 = vpop.permute.xlu0 %1318
        %v1320 = vrot.slane %v1317, 4
        %v1321 = vrot.slane %v1319, 4
        %v1322 = vsel %vm1166, %v1320, %v1321
        %vm1323 = vcmask 900096
        %v1324 = vsel %vm1323, %v1322, %v1319
        %v1327 = vld [vmem:[#allocation14 + $0x150] sm:$0x33]
        %v1328 = vsel %vm1173, %v1324, %v1327
        %1329 = vst [vmem:[#allocation14 + $0x150] sm:$0x33] %v1328
        %v1330 = vld [vmem:[#allocation14 + $0x158] sm:$0x3]
        %v1331 = vsel %vm1178, %v1321, %v1330
        %1332 = vst [vmem:[#allocation14 + $0x158] sm:$0x3] %v1331
        %1333 = vst [vmem:[#allocation1] ss:$2 sm:$0xff] %v1153
        %v1334 = vld.sshfl [vmem:[#allocation1] sm:$0xff pattern:$0x75643120]
        %v1336 = vld.sshfl [vmem:[#allocation1 + $0x8] sm:$0xff pattern:$0x75643120]
        %1338 = vrot.lane.b32.xlu0 %v1334, 109
        %v1339 = vpop.permute.xlu0 %1338
        %1340 = vrot.lane.b32.xlu0 %v1336, 109
        %v1341 = vpop.permute.xlu0 %1340
        %v1342 = vrot.slane %v1339, 4
        %v1343 = vrot.slane %v1341, 4
        %v1344 = vsel %vm1166, %v1342, %v1343
        %vm1345 = vcmask 891904
        %v1346 = vsel %vm1345, %v1344, %v1341
        %v1349 = vld [vmem:[#allocation14 + $0x180] sm:$0x33]
        %v1350 = vsel %vm1173, %v1346, %v1349
        %1351 = vst [vmem:[#allocation14 + $0x180] sm:$0x33] %v1350
        %v1352 = vld [vmem:[#allocation14 + $0x188] sm:$0x3]
        %v1353 = vsel %vm1178, %v1343, %v1352
        %1354 = vst [vmem:[#allocation14 + $0x188] sm:$0x3] %v1353
        %v1355 = vld [vmem:[#allocation15] sm:$0x33]
        %v1356 = vld [vmem:[#allocation15 + $0x8] sm:$0x3]
        %v1357 = vld [vmem:[#allocation14] sm:$0xff]
        %v1358 = vld [vmem:[#allocation14 + $0x8] sm:$0xf]
        %v1359 = vld [vmem:[#allocation14 + $0xc] sm:$0xff]
        %v1360 = vld [vmem:[#allocation14 + $0x14] sm:$0xf]
        %v1361 = vld [vmem:[#allocation14 + $0x18] sm:$0xff]
        %v1362 = vld [vmem:[#allocation14 + $0x20] sm:$0xf]
        %v1363 = vld [vmem:[#allocation14 + $0x24] sm:$0xff]
        %v1364 = vld [vmem:[#allocation14 + $0x2c] sm:$0xf]
        %v1365 = vld [vmem:[#allocation14 + $0x30] sm:$0xff]
        %v1366 = vld [vmem:[#allocation14 + $0x38] sm:$0xf]
        %v1367 = vld [vmem:[#allocation14 + $0x3c] sm:$0xff]
        %v1368 = vld [vmem:[#allocation14 + $0x44] sm:$0xf]
        %v1369 = vld [vmem:[#allocation14 + $0x48] sm:$0xff]
        %v1370 = vld [vmem:[#allocation14 + $0x50] sm:$0xf]
        %v1371 = vld [vmem:[#allocation14 + $0x54] sm:$0xff]
        %v1372 = vld [vmem:[#allocation14 + $0x5c] sm:$0xf]
        %v1373 = vld [vmem:[#allocation14 + $0x60] sm:$0xff]
        %v1374 = vld [vmem:[#allocation14 + $0x68] sm:$0xf]
        %v1375 = vld [vmem:[#allocation14 + $0x6c] sm:$0xff]
        %v1376 = vld [vmem:[#allocation14 + $0x74] sm:$0xf]
        %v1377 = vld [vmem:[#allocation14 + $0x78] sm:$0xff]
        %v1378 = vld [vmem:[#allocation14 + $0x80] sm:$0xf]
        %v1379 = vld [vmem:[#allocation14 + $0x84] sm:$0xff]
        %v1380 = vld [vmem:[#allocation14 + $0x8c] sm:$0xf]
        %v1381 = vld [vmem:[#allocation14 + $0x90] sm:$0xff]
        %v1382 = vld [vmem:[#allocation14 + $0x98] sm:$0xf]
        %v1383 = vld [vmem:[#allocation14 + $0x9c] sm:$0xff]
        %v1384 = vld [vmem:[#allocation14 + $0xa4] sm:$0xf]
        %v1385 = vld [vmem:[#allocation14 + $0xa8] sm:$0xff]
        %v1386 = vld [vmem:[#allocation14 + $0xb0] sm:$0xf]
        %v1387 = vld [vmem:[#allocation14 + $0xb4] sm:$0xff]
        %v1388 = vld [vmem:[#allocation14 + $0xbc] sm:$0xf]
        %v1389 = vld [vmem:[#allocation14 + $0xc0] sm:$0xff]
        %v1390 = vld [vmem:[#allocation14 + $0xc8] sm:$0xf]
        %v1391 = vld [vmem:[#allocation14 + $0xcc] sm:$0xff]
        %v1392 = vld [vmem:[#allocation14 + $0xd4] sm:$0xf]
        %v1393 = vld [vmem:[#allocation14 + $0xd8] sm:$0xff]
        %v1394 = vld [vmem:[#allocation14 + $0xe0] sm:$0xf]
        %v1395 = vld [vmem:[#allocation14 + $0xe4] sm:$0xff]
        %v1396 = vld [vmem:[#allocation14 + $0xec] sm:$0xf]
        %v1397 = vld [vmem:[#allocation14 + $0xf0] sm:$0xff]
        %v1398 = vld [vmem:[#allocation14 + $0xf8] sm:$0xf]
        %v1399 = vld [vmem:[#allocation14 + $0xfc] sm:$0xff]
        %v1400 = vld [vmem:[#allocation14 + $0x104] sm:$0xf]
        %v1401 = vld [vmem:[#allocation14 + $0x108] sm:$0xff]
        %v1402 = vld [vmem:[#allocation14 + $0x110] sm:$0xf]
        %v1403 = vld [vmem:[#allocation14 + $0x114] sm:$0xff]
        %v1404 = vld [vmem:[#allocation14 + $0x11c] sm:$0xf]
        %v1405 = vld [vmem:[#allocation14 + $0x120] sm:$0xff]
        %v1406 = vld [vmem:[#allocation14 + $0x128] sm:$0xf]
        %v1407 = vld [vmem:[#allocation14 + $0x12c] sm:$0xff]
        %v1408 = vld [vmem:[#allocation14 + $0x134] sm:$0xf]
        %v1409 = vld [vmem:[#allocation14 + $0x138] sm:$0xff]
        %v1410 = vld [vmem:[#allocation14 + $0x140] sm:$0xf]
        %v1411 = vld [vmem:[#allocation14 + $0x144] sm:$0xff]
        %v1412 = vld [vmem:[#allocation14 + $0x14c] sm:$0xf]
        %v1413 = vld [vmem:[#allocation14 + $0x150] sm:$0xff]
        %v1414 = vld [vmem:[#allocation14 + $0x158] sm:$0xf]
        %v1415 = vld [vmem:[#allocation14 + $0x15c] sm:$0xff]
        %v1416 = vld [vmem:[#allocation14 + $0x164] sm:$0xf]
        %v1417 = vld [vmem:[#allocation14 + $0x168] sm:$0xff]
        %v1418 = vld [vmem:[#allocation14 + $0x170] sm:$0xf]
        %v1419 = vld [vmem:[#allocation14 + $0x174] sm:$0xff]
        %v1420 = vld [vmem:[#allocation14 + $0x17c] sm:$0xf]
        %v1421 = vld [vmem:[#allocation14 + $0x180] sm:$0xff]
        %v1422 = vld [vmem:[#allocation14 + $0x188] sm:$0xf]
        %v1423 = vld [vmem:[#allocation14 + $0x18c] sm:$0xff]
        %v1424 = vld [vmem:[#allocation14 + $0x194] sm:$0xf]
        %v1425 = vld [vmem:[#allocation14 + $0x198] sm:$0xff]
        %v1426 = vld [vmem:[#allocation14 + $0x1a0] sm:$0xf]
        %v1427 = vld [vmem:[#allocation14 + $0x1a4] sm:$0xff]
        %v1428 = vld [vmem:[#allocation14 + $0x1ac] sm:$0xf]
        %v1431 = vunpack.c.l.b16 %v1355
        %v1432 = vunpack.c.h.b16 %v1355
        %v1433 = vunpack.c.l.b16 %v1356
        %v1434 = vpack.c.b16 %v1431, %v1431
        %v1435 = vpack.c.b16 %v1432, %v1432
        %v1436 = vpack.c.b16 %v1433, %v1433
        %v1511 = vunpack.c.l.b16 %v1357
        %v1512 = vunpack.c.h.b16 %v1357
        %v1513 = vunpack.c.l.b16 %v1358
        %v1514 = vunpack.c.l.b16 %v1359
        %v1515 = vunpack.c.h.b16 %v1359
        %v1516 = vunpack.c.l.b16 %v1360
        %v1517 = vunpack.c.l.b16 %v1361
        %v1518 = vunpack.c.h.b16 %v1361
        %v1519 = vunpack.c.l.b16 %v1362
        %v1520 = vunpack.c.l.b16 %v1363
        %v1521 = vunpack.c.h.b16 %v1363
        %v1522 = vunpack.c.l.b16 %v1364
        %v1523 = vunpack.c.l.b16 %v1365
        %v1524 = vunpack.c.h.b16 %v1365
        %v1525 = vunpack.c.l.b16 %v1366
        %v1526 = vunpack.c.l.b16 %v1367
        %v1527 = vunpack.c.h.b16 %v1367
        %v1528 = vunpack.c.l.b16 %v1368
        %v1529 = vunpack.c.l.b16 %v1369
        %v1530 = vunpack.c.h.b16 %v1369
        %v1531 = vunpack.c.l.b16 %v1370
        %v1532 = vunpack.c.l.b16 %v1371
        %v1533 = vunpack.c.h.b16 %v1371
        %v1534 = vunpack.c.l.b16 %v1372
        %v1535 = vunpack.c.l.b16 %v1373
        %v1536 = vunpack.c.h.b16 %v1373
        %v1537 = vunpack.c.l.b16 %v1374
        %v1538 = vunpack.c.l.b16 %v1375
        %v1539 = vunpack.c.h.b16 %v1375
        %v1540 = vunpack.c.l.b16 %v1376
        %v1541 = vunpack.c.l.b16 %v1377
        %v1542 = vunpack.c.h.b16 %v1377
        %v1543 = vunpack.c.l.b16 %v1378
        %v1544 = vunpack.c.l.b16 %v1379
        %v1545 = vunpack.c.h.b16 %v1379
        %v1546 = vunpack.c.l.b16 %v1380
        %v1547 = vunpack.c.l.b16 %v1381
        %v1548 = vunpack.c.h.b16 %v1381
        %v1549 = vunpack.c.l.b16 %v1382
        %v1550 = vunpack.c.l.b16 %v1383
        %v1551 = vunpack.c.h.b16 %v1383
        %v1552 = vunpack.c.l.b16 %v1384
        %v1553 = vunpack.c.l.b16 %v1385
        %v1554 = vunpack.c.h.b16 %v1385
        %v1555 = vunpack.c.l.b16 %v1386
        %v1556 = vunpack.c.l.b16 %v1387
        %v1557 = vunpack.c.h.b16 %v1387
        %v1558 = vunpack.c.l.b16 %v1388
        %v1559 = vunpack.c.l.b16 %v1389
        %v1560 = vunpack.c.h.b16 %v1389
        %v1561 = vunpack.c.l.b16 %v1390
        %v1562 = vunpack.c.l.b16 %v1391
        %v1563 = vunpack.c.h.b16 %v1391
        %v1564 = vunpack.c.l.b16 %v1392
        %v1565 = vunpack.c.l.b16 %v1393
        %v1566 = vunpack.c.h.b16 %v1393
        %v1567 = vunpack.c.l.b16 %v1394
        %v1568 = vunpack.c.l.b16 %v1395
        %v1569 = vunpack.c.h.b16 %v1395
        %v1570 = vunpack.c.l.b16 %v1396
        %v1571 = vunpack.c.l.b16 %v1397
        %v1572 = vunpack.c.h.b16 %v1397
        %v1573 = vunpack.c.l.b16 %v1398
        %v1574 = vunpack.c.l.b16 %v1399
        %v1575 = vunpack.c.h.b16 %v1399
        %v1576 = vunpack.c.l.b16 %v1400
        %v1577 = vunpack.c.l.b16 %v1401
        %v1578 = vunpack.c.h.b16 %v1401
        %v1579 = vunpack.c.l.b16 %v1402
        %v1580 = vunpack.c.l.b16 %v1403
        %v1581 = vunpack.c.h.b16 %v1403
        %v1582 = vunpack.c.l.b16 %v1404
        %v1583 = vunpack.c.l.b16 %v1405
        %v1584 = vunpack.c.h.b16 %v1405
        %v1585 = vunpack.c.l.b16 %v1406
        %v1586 = vunpack.c.l.b16 %v1407
        %v1587 = vunpack.c.h.b16 %v1407
        %v1588 = vunpack.c.l.b16 %v1408
        %v1589 = vunpack.c.l.b16 %v1409
        %v1590 = vunpack.c.h.b16 %v1409
        %v1591 = vunpack.c.l.b16 %v1410
        %v1592 = vunpack.c.l.b16 %v1411
        %v1593 = vunpack.c.h.b16 %v1411
        %v1594 = vunpack.c.l.b16 %v1412
        %v1595 = vunpack.c.l.b16 %v1413
        %v1596 = vunpack.c.h.b16 %v1413
        %v1597 = vunpack.c.l.b16 %v1414
        %v1598 = vunpack.c.l.b16 %v1415
        %v1599 = vunpack.c.h.b16 %v1415
        %v1600 = vunpack.c.l.b16 %v1416
        %v1601 = vunpack.c.l.b16 %v1417
        %v1602 = vunpack.c.h.b16 %v1417
        %v1603 = vunpack.c.l.b16 %v1418
        %v1604 = vunpack.c.l.b16 %v1419
        %v1605 = vunpack.c.h.b16 %v1419
        %v1606 = vunpack.c.l.b16 %v1420
        %v1607 = vunpack.c.l.b16 %v1421
        %v1608 = vunpack.c.h.b16 %v1421
        %v1609 = vunpack.c.l.b16 %v1422
        %v1610 = vunpack.c.l.b16 %v1423
        %v1611 = vunpack.c.h.b16 %v1423
        %v1612 = vunpack.c.l.b16 %v1424
        %v1613 = vunpack.c.l.b16 %v1425
        %v1614 = vunpack.c.h.b16 %v1425
        %v1615 = vunpack.c.l.b16 %v1426
        %v1616 = vunpack.c.l.b16 %v1427
        %v1617 = vunpack.c.h.b16 %v1427
        %v1618 = vunpack.c.l.b16 %v1428
        %v1619 = vpack.c.b16 %v1514, %v1511
        %v1620 = vpack.c.b16 %v1515, %v1512
        %v1621 = vpack.c.b16 %v1516, %v1513
        %v1622 = vpack.c.b16 %v1520, %v1517
        %v1623 = vpack.c.b16 %v1521, %v1518
        %v1624 = vpack.c.b16 %v1522, %v1519
        %v1625 = vpack.c.b16 %v1526, %v1523
        %v1626 = vpack.c.b16 %v1527, %v1524
        %v1627 = vpack.c.b16 %v1528, %v1525
        %v1628 = vpack.c.b16 %v1532, %v1529
        %v1629 = vpack.c.b16 %v1533, %v1530
        %v1630 = vpack.c.b16 %v1534, %v1531
        %v1631 = vpack.c.b16 %v1538, %v1535
        %v1632 = vpack.c.b16 %v1539, %v1536
        %v1633 = vpack.c.b16 %v1540, %v1537
        %v1634 = vpack.c.b16 %v1544, %v1541
        %v1635 = vpack.c.b16 %v1545, %v1542
        %v1636 = vpack.c.b16 %v1546, %v1543
        %v1637 = vpack.c.b16 %v1550, %v1547
        %v1638 = vpack.c.b16 %v1551, %v1548
        %v1639 = vpack.c.b16 %v1552, %v1549
        %v1640 = vpack.c.b16 %v1556, %v1553
        %v1641 = vpack.c.b16 %v1557, %v1554
        %v1642 = vpack.c.b16 %v1558, %v1555
        %v1643 = vpack.c.b16 %v1562, %v1559
        %v1644 = vpack.c.b16 %v1563, %v1560
        %v1645 = vpack.c.b16 %v1564, %v1561
        %v1646 = vpack.c.b16 %v1568, %v1565
        %v1647 = vpack.c.b16 %v1569, %v1566
        %v1648 = vpack.c.b16 %v1570, %v1567
        %v1649 = vpack.c.b16 %v1574, %v1571
        %v1650 = vpack.c.b16 %v1575, %v1572
        %v1651 = vpack.c.b16 %v1576, %v1573
        %v1652 = vpack.c.b16 %v1580, %v1577
        %v1653 = vpack.c.b16 %v1581, %v1578
        %v1654 = vpack.c.b16 %v1582, %v1579
        %v1655 = vpack.c.b16 %v1586, %v1583
        %v1656 = vpack.c.b16 %v1587, %v1584
        %v1657 = vpack.c.b16 %v1588, %v1585
        %v1658 = vpack.c.b16 %v1592, %v1589
        %v1659 = vpack.c.b16 %v1593, %v1590
        %v1660 = vpack.c.b16 %v1594, %v1591
        %v1661 = vpack.c.b16 %v1598, %v1595
        %v1662 = vpack.c.b16 %v1599, %v1596
        %v1663 = vpack.c.b16 %v1600, %v1597
        %v1664 = vpack.c.b16 %v1604, %v1601
        %v1665 = vpack.c.b16 %v1605, %v1602
        %v1666 = vpack.c.b16 %v1606, %v1603
        %v1667 = vpack.c.b16 %v1610, %v1607
        %v1668 = vpack.c.b16 %v1611, %v1608
        %v1669 = vpack.c.b16 %v1612, %v1609
        %v1670 = vpack.c.b16 %v1616, %v1613
        %v1671 = vpack.c.b16 %v1617, %v1614
        %v1672 = vpack.c.b16 %v1618, %v1615
        %vm1727 = vcmask 261120
        %v1729 = vsel %vm1727, %v1436, 0
        %1731 = vmatpush.bf16.msra.mxu0 %v1640
        %1732 = vmatpush.bf16.msra.mxu0 %v1637
        %1733 = vmatpush.bf16.msra.mxu0 %v1634
        %1734 = vmatpush.bf16.msra.mxu0 %v1631
        %1735 = vmatpush.bf16.msra.mxu0 %v1628
        %1736 = vmatpush.bf16.msra.mxu0 %v1625
        %1737 = vmatpush.bf16.msra.mxu0 %v1622
        %1738 = vmatpush.bf16.msra.mxu0 %v1619
        %1739 = vmatmul.bf16.gmra.mxu0 %v1434
        %v1740 = vpop.f32.mrf.mxu0
        %v1741 = vadd.f32 0.0, %v1740
        %v1742 = vpop.f32.mrf.mxu0
        %1743 = vdwg.mxu0
        %1744 = vmatpush.bf16.msra.mxu0 %v1664
        %1745 = vmatpush.bf16.msra.mxu0 %v1661
        %1746 = vmatpush.bf16.msra.mxu0 %v1658
        %1747 = vmatpush.bf16.msra.mxu0 %v1655
        %1748 = vmatpush.bf16.msra.mxu0 %v1652
        %1749 = vmatpush.bf16.msra.mxu0 %v1649
        %1750 = vmatpush.bf16.msra.mxu0 %v1646
        %1751 = vmatpush.bf16.msra.mxu0 %v1643
        %1752 = vmatmul.bf16.gmra.mxu0 %v1435
        %v1753 = vpop.f32.mrf.mxu0
        %v1754 = vadd.f32 %v1741, %v1753
        %v1755 = vpop.f32.mrf.mxu0
        %1756 = vdwg.mxu0
        %1757 = vmatpush.bf16.msra.mxu0 0
        %1758 = vmatpush.bf16.msra.mxu0 0
        %1759 = vmatpush.bf16.msra.mxu0 0
        %1760 = vmatpush.bf16.msra.mxu0 0
        %1761 = vmatpush.bf16.msra.mxu0 0
        %1762 = vmatpush.bf16.msra.mxu0 0
        %1763 = vmatpush.bf16.msra.mxu0 %v1670
        %1764 = vmatpush.bf16.msra.mxu0 %v1667
        %1765 = vmatmul.bf16.gmra.mxu0 %v1729
        %v1766 = vpop.f32.mrf.mxu0
        %v1767 = vadd.f32 %v1754, %v1766
        %v1768 = vpop.f32.mrf.mxu0
        %1769 = vdwg.mxu0
        %1770 = vmatpush.bf16.msra.mxu0 %v1641
        %1771 = vmatpush.bf16.msra.mxu0 %v1638
        %1772 = vmatpush.bf16.msra.mxu0 %v1635
        %1773 = vmatpush.bf16.msra.mxu0 %v1632
        %1774 = vmatpush.bf16.msra.mxu0 %v1629
        %1775 = vmatpush.bf16.msra.mxu0 %v1626
        %1776 = vmatpush.bf16.msra.mxu0 %v1623
        %1777 = vmatpush.bf16.msra.mxu0 %v1620
        %1778 = vmatmul.bf16.gmra.mxu0 %v1434
        %v1779 = vpop.f32.mrf.mxu0
        %v1780 = vadd.f32 0.0, %v1779
        %v1781 = vpop.f32.mrf.mxu0
        %1782 = vdwg.mxu0
        %1783 = vmatpush.bf16.msra.mxu0 %v1665
        %1784 = vmatpush.bf16.msra.mxu0 %v1662
        %1785 = vmatpush.bf16.msra.mxu0 %v1659
        %1786 = vmatpush.bf16.msra.mxu0 %v1656
        %1787 = vmatpush.bf16.msra.mxu0 %v1653
        %1788 = vmatpush.bf16.msra.mxu0 %v1650
        %1789 = vmatpush.bf16.msra.mxu0 %v1647
        %1790 = vmatpush.bf16.msra.mxu0 %v1644
        %1791 = vmatmul.bf16.gmra.mxu0 %v1435
        %v1792 = vpop.f32.mrf.mxu0
        %v1793 = vadd.f32 %v1780, %v1792
        %v1794 = vpop.f32.mrf.mxu0
        %1795 = vdwg.mxu0
        %1796 = vmatpush.bf16.msra.mxu0 0
        %1797 = vmatpush.bf16.msra.mxu0 0
        %1798 = vmatpush.bf16.msra.mxu0 0
        %1799 = vmatpush.bf16.msra.mxu0 0
        %1800 = vmatpush.bf16.msra.mxu0 0
        %1801 = vmatpush.bf16.msra.mxu0 0
        %1802 = vmatpush.bf16.msra.mxu0 %v1671
        %1803 = vmatpush.bf16.msra.mxu0 %v1668
        %1804 = vmatmul.bf16.gmra.mxu0 %v1729
        %v1805 = vpop.f32.mrf.mxu0
        %v1806 = vadd.f32 %v1793, %v1805
        %v1807 = vpop.f32.mrf.mxu0
        %1808 = vdwg.mxu0
        %1809 = vmatpush.bf16.msra.mxu0 %v1642
        %1810 = vmatpush.bf16.msra.mxu0 %v1639
        %1811 = vmatpush.bf16.msra.mxu0 %v1636
        %1812 = vmatpush.bf16.msra.mxu0 %v1633
        %1813 = vmatpush.bf16.msra.mxu0 %v1630
        %1814 = vmatpush.bf16.msra.mxu0 %v1627
        %1815 = vmatpush.bf16.msra.mxu0 %v1624
        %1816 = vmatpush.bf16.msra.mxu0 %v1621
        %1817 = vmatmul.bf16.gmra.mxu0 %v1434
        %v1818 = vpop.f32.mrf.mxu0
        %v1819 = vadd.f32 0.0, %v1818
        %v1820 = vpop.f32.mrf.mxu0
        %1821 = vdwg.mxu0
        %1822 = vmatpush.bf16.msra.mxu0 %v1666
        %1823 = vmatpush.bf16.msra.mxu0 %v1663
        %1824 = vmatpush.bf16.msra.mxu0 %v1660
        %1825 = vmatpush.bf16.msra.mxu0 %v1657
        %1826 = vmatpush.bf16.msra.mxu0 %v1654
        %1827 = vmatpush.bf16.msra.mxu0 %v1651
        %1828 = vmatpush.bf16.msra.mxu0 %v1648
        %1829 = vmatpush.bf16.msra.mxu0 %v1645
        %1830 = vmatmul.bf16.gmra.mxu0 %v1435
        %v1831 = vpop.f32.mrf.mxu0
        %v1832 = vadd.f32 %v1819, %v1831
        %v1833 = vpop.f32.mrf.mxu0
        %1834 = vdwg.mxu0
        %1835 = vmatpush.bf16.msra.mxu0 0
        %1836 = vmatpush.bf16.msra.mxu0 0
        %1837 = vmatpush.bf16.msra.mxu0 0
        %1838 = vmatpush.bf16.msra.mxu0 0
        %1839 = vmatpush.bf16.msra.mxu0 0
        %1840 = vmatpush.bf16.msra.mxu0 0
        %1841 = vmatpush.bf16.msra.mxu0 %v1672
        %1842 = vmatpush.bf16.msra.mxu0 %v1669
        %1843 = vmatmul.bf16.gmra.mxu0 %v1729
        %v1844 = vpop.f32.mrf.mxu0
        %v1845 = vadd.f32 %v1832, %v1844
        %v1846 = vpop.f32.mrf.mxu0
        %1847 = vdwg.mxu0
        %v1848 = vld [vmem:[#allocation17] sm:$0xf]
        %1850 = vset.pattern.permute.xlu0 0
        %1851 = vperm.xlu0 %1850, %v1848
        %v1852 = vpop.permute.xlu0 %1851
        %v1854 = vmul.f32 %v1767, %v1852
        %v1855 = vmul.f32 %v1806, %v1852
        %v1856 = vmul.f32 %v1845, %v1852
        %v1857 = vld [vmem:[#allocation19] sm:$0xf]
        %1859 = vset.pattern.permute.xlu0 0
        %1860 = vperm.xlu0 %1859, %v1857
        %v1861 = vpop.permute.xlu0 %1860
        %v1863 = vadd.f32 %v1854, %v1861
        %v1864 = vadd.f32 %v1855, %v1861
        %v1865 = vadd.f32 %v1856, %v1861
        %v1866 = vmax.f32 %v1863, 0.0
        %v1867 = vmax.f32 %v1864, 0.0
        %v1868 = vmax.f32 %v1865, 0.0
        %v1869 = vld [vmem:[#allocation23] ss:$4 sm:$0x7]
        %vm1870 = vcmp.gt.f32.partialorder %v1869, 0.0
        %v1871 = vsel %vm1870, 1, 0
        %v1872 = vperm.slane %v1871, 0
        %v1873 = vperm.slane %v1871, 1
        %v1874 = vperm.slane %v1871, 2
        %vm1875 = vcmp.eq.s32.totalorder %v1872, 1
        %vm1876 = vcmp.eq.s32.totalorder %v1873, 1
        %vm1877 = vcmp.eq.s32.totalorder %v1874, 1
        %v1878 = vsel %vm1875, %v1866, 0.0
        %v1879 = vsel %vm1876, %v1867, 0.0
        %v1880 = vsel %vm1877, %v1868, 0.0
        %v1881 = vpack.c.bf16 %v1879, %v1878
        %v1882 = vpack.c.bf16 %v1880, %v1880
        %v1885 = vrot.slane %v1881, 2
        %v1886 = vrot.slane %v1882, 4
        %v1887 = vrot.slane %v1882, 6
        %v1890 = vsel %vm794, %v1881, %v1885
        %v1893 = vsel %vm808, %v1886, %v1887
        %v1894 = vsel %vm798, %v1890, %v1893
        %vm1896 = vcmask 553988
        %vm1897 = vmor %vm1896, %vm807
        %1898 = vst.msk [vmem:[#allocation6 + $0x2] sm:$0x3f] %vm1897, %v1894
        %v1899 = vld [vmem:[#allocation6] sm:$0xff]
        %v1901 = vrot.slane %v1899, 2
        %v1903 = vunpack.c.l.bf16 %v1901
        %v1904 = vunpack.c.h.bf16 %v1901
        %1905 = vrot.lane.b32.xlu0 %v1899, 127
        %v1906 = vpop.permute.xlu0 %1905
        %v1907 = vrot.slane %v1906, 2
        %v1908 = vrot.slane %v1906, 4
        %v1909 = vsel %vm1279, %v1907, %v1908
        %v1911 = vunpack.c.l.bf16 %v1909
        %v1912 = vunpack.c.h.bf16 %v1909
        %v1913 = vmax.f32 %v1903, %v1911
        %v1914 = vmax.f32 %v1904, %v1912
        %1917 = vst [vmem:[#allocation1] ss:$2 sm:$0xff] %v1913
        %s1918 = scalar_lea.vmem [#allocation1], 16
        %1919 = vst [vmem:[%s1918] ss:$2 sm:$0xff] %v1914
        %v1920 = vld.sshfl [vmem:[#allocation1] sm:$0xff pattern:$0x75316420]
        %v1921 = vld.sshfl [vmem:[#allocation1 + $0x8] sm:$0xff pattern:$0x75316420]
        %v1922 = vld.sshfl [vmem:[#allocation1 + $0x10] sm:$0xff pattern:$0x75316420]
        %v1926 = vpack.c.bf16 %v1921, %v1920
        %v1927 = vpack.c.bf16 %v1922, %v1922
        %1928 = vrot.lane.b32.xlu0 %v1899, 110
        %v1929 = vpop.permute.xlu0 %1928
        %v1930 = vrot.slane %v1929, 2
        %v1931 = vrot.slane %v1929, 4
        %v1932 = vsel %vm1323, %v1930, %v1931
        %v1934 = vunpack.c.l.bf16 %v1932
        %v1935 = vunpack.c.h.bf16 %v1932
        %1936 = vrot.lane.b32.xlu0 %v1899, 109
        %v1937 = vpop.permute.xlu0 %1936
        %v1938 = vrot.slane %v1937, 2
        %v1939 = vrot.slane %v1937, 4
        %v1940 = vsel %vm1345, %v1938, %v1939
        %v1942 = vunpack.c.l.bf16 %v1940
        %v1943 = vunpack.c.h.bf16 %v1940
        %v1944 = vmax.f32 %v1934, %v1942
        %v1945 = vmax.f32 %v1935, %v1943
        %1948 = vst [vmem:[#allocation1] ss:$2 sm:$0xff] %v1944
        %s1949 = scalar_lea.vmem [#allocation1], 16
        %1950 = vst [vmem:[%s1949] ss:$2 sm:$0xff] %v1945
        %v1951 = vld.sshfl [vmem:[#allocation1] sm:$0xff pattern:$0x75316420]
        %v1952 = vld.sshfl [vmem:[#allocation1 + $0x8] sm:$0xff pattern:$0x75316420]
        %v1953 = vld.sshfl [vmem:[#allocation1 + $0x10] sm:$0xff pattern:$0x75316420]
        %v1957 = vpack.c.bf16 %v1952, %v1951
        %v1958 = vpack.c.bf16 %v1953, %v1953
        %v1959 = vunpack.c.l.bf16 %v1926
        %v1960 = vunpack.c.h.bf16 %v1926
        %v1961 = vunpack.c.l.bf16 %v1927
        %v1962 = vunpack.c.l.bf16 %v1957
        %v1963 = vunpack.c.h.bf16 %v1957
        %v1964 = vunpack.c.l.bf16 %v1958
        %v1965 = vmax.f32 %v1959, %v1962
        %v1966 = vmax.f32 %v1960, %v1963
        %v1967 = vmax.f32 %v1961, %v1964
        %v1968 = vpack.c.bf16 %v1965, %v1965
        %v1969 = vpack.c.bf16 %v1966, %v1966
        %v1970 = vpack.c.bf16 %v1967, %v1967
        %v1971 = vld [vmem:[#allocation25] sm:$0xff]
        %v1972 = vld [vmem:[#allocation25 + $0x8] sm:$0xff]
        %v1973 = vld [vmem:[#allocation25 + $0x10] sm:$0xff]
        %v1974 = vld [vmem:[#allocation25 + $0x18] sm:$0xff]
        %v1975 = vld [vmem:[#allocation25 + $0x20] sm:$0xff]
        %v1976 = vld [vmem:[#allocation25 + $0x28] sm:$0xff]
        %v1977 = vld [vmem:[#allocation25 + $0x30] sm:$0xff]
        %v1978 = vld [vmem:[#allocation25 + $0x38] sm:$0xff]
        %v1979 = vld [vmem:[#allocation25 + $0x40] sm:$0xff]
        %v1980 = vld [vmem:[#allocation25 + $0x48] sm:$0xff]
        %v1981 = vld [vmem:[#allocation25 + $0x50] sm:$0xff]
        %v1982 = vld [vmem:[#allocation25 + $0x58] sm:$0xff]
        %v1983 = vld [vmem:[#allocation25 + $0x60] sm:$0xff]
        %v1984 = vld [vmem:[#allocation25 + $0x68] sm:$0xff]
        %v1985 = vld [vmem:[#allocation25 + $0x70] sm:$0xff]
        %v1986 = vld [vmem:[#allocation25 + $0x78] sm:$0xff]
        %v1987 = vld [vmem:[#allocation25 + $0x80] sm:$0xff]
        %v1988 = vld [vmem:[#allocation25 + $0x88] sm:$0xff]
        %v1989 = vld [vmem:[#allocation25 + $0x90] sm:$0xff]
        %v1990 = vld [vmem:[#allocation25 + $0x98] sm:$0xff]
        %v1991 = vld [vmem:[#allocation25 + $0xa0] sm:$0xff]
        %v1992 = vld [vmem:[#allocation25 + $0xa8] sm:$0xff]
        %v1993 = vld [vmem:[#allocation25 + $0xb0] sm:$0xff]
        %v1994 = vld [vmem:[#allocation25 + $0xb8] sm:$0xff]
        %v1995 = vld [vmem:[#allocation25 + $0xc0] sm:$0xff]
        %v1996 = vld [vmem:[#allocation25 + $0xc8] sm:$0xff]
        %v1997 = vld [vmem:[#allocation25 + $0xd0] sm:$0xff]
        %v1998 = vld [vmem:[#allocation25 + $0xd8] sm:$0xff]
        %v1999 = vld [vmem:[#allocation25 + $0xe0] sm:$0xff]
        %v2000 = vld [vmem:[#allocation25 + $0xe8] sm:$0xff]
        %v2001 = vld [vmem:[#allocation25 + $0xf0] sm:$0xff]
        %v2002 = vld [vmem:[#allocation25 + $0xf8] sm:$0xff]
        %v2003 = vld [vmem:[#allocation25 + $0x100] sm:$0xff]
        %v2004 = vld [vmem:[#allocation25 + $0x108] sm:$0xff]
        %v2005 = vld [vmem:[#allocation25 + $0x110] sm:$0xff]
        %v2006 = vld [vmem:[#allocation25 + $0x118] sm:$0xff]
        %v2007 = vld [vmem:[#allocation25 + $0x120] sm:$0xff]
        %v2008 = vld [vmem:[#allocation25 + $0x128] sm:$0xff]
        %v2009 = vld [vmem:[#allocation25 + $0x130] sm:$0xff]
        %v2010 = vld [vmem:[#allocation25 + $0x138] sm:$0xff]
        %v2011 = vld [vmem:[#allocation25 + $0x140] sm:$0xf]
        %vm2012 = vcmask 556032
        %v2014 = vsel %vm2012, %v1970, 0
        %v2017 = vsel %vm798, %v2011, 0
        %2019 = vmatpush.msra.mxu0 %v1986
        %2020 = vmatpush.msra.mxu0 %v1985
        %2021 = vmatpush.msra.mxu0 %v1984
        %2022 = vmatpush.msra.mxu0 %v1983
        %2023 = vmatpush.msra.mxu0 %v1982
        %2024 = vmatpush.msra.mxu0 %v1981
        %2025 = vmatpush.msra.mxu0 %v1980
        %2026 = vmatpush.msra.mxu0 %v1979
        %2027 = vmatpush.msra.mxu0 %v1978
        %2028 = vmatpush.msra.mxu0 %v1977
        %2029 = vmatpush.msra.mxu0 %v1976
        %2030 = vmatpush.msra.mxu0 %v1975
        %2031 = vmatpush.msra.mxu0 %v1974
        %2032 = vmatpush.msra.mxu0 %v1973
        %2033 = vmatpush.msra.mxu0 %v1972
        %2034 = vmatpush.msra.mxu0 %v1971
        %2035 = vmatmul.bf16.gmra.mxu0 %v1968
        %v2036 = vpop.f32.mrf.mxu0
        %v2037 = vadd.f32 0.0, %v2036
        %v2038 = vpop.f32.mrf.mxu0
        %2039 = vdwg.mxu0
        %2040 = vmatpush.msra.mxu0 %v2002
        %2041 = vmatpush.msra.mxu0 %v2001
        %2042 = vmatpush.msra.mxu0 %v2000
        %2043 = vmatpush.msra.mxu0 %v1999
        %2044 = vmatpush.msra.mxu0 %v1998
        %2045 = vmatpush.msra.mxu0 %v1997
        %2046 = vmatpush.msra.mxu0 %v1996
        %2047 = vmatpush.msra.mxu0 %v1995
        %2048 = vmatpush.msra.mxu0 %v1994
        %2049 = vmatpush.msra.mxu0 %v1993
        %2050 = vmatpush.msra.mxu0 %v1992
        %2051 = vmatpush.msra.mxu0 %v1991
        %2052 = vmatpush.msra.mxu0 %v1990
        %2053 = vmatpush.msra.mxu0 %v1989
        %2054 = vmatpush.msra.mxu0 %v1988
        %2055 = vmatpush.msra.mxu0 %v1987
        %2056 = vmatmul.bf16.gmra.mxu0 %v1969
        %v2057 = vpop.f32.mrf.mxu0
        %v2058 = vadd.f32 %v2037, %v2057
        %v2059 = vpop.f32.mrf.mxu0
        %2060 = vdwg.mxu0
        %2061 = vmatpush.msra.mxu0 0.0
        %2062 = vmatpush.msra.mxu0 0.0
        %2063 = vmatpush.msra.mxu0 0.0
        %2064 = vmatpush.msra.mxu0 0.0
        %2065 = vmatpush.msra.mxu0 0.0
        %2066 = vmatpush.msra.mxu0 0.0
        %2067 = vmatpush.msra.mxu0 0.0
        %2068 = vmatpush.msra.mxu0 %v2017
        %2069 = vmatpush.msra.mxu0 %v2010
        %2070 = vmatpush.msra.mxu0 %v2009
        %2071 = vmatpush.msra.mxu0 %v2008
        %2072 = vmatpush.msra.mxu0 %v2007
        %2073 = vmatpush.msra.mxu0 %v2006
        %2074 = vmatpush.msra.mxu0 %v2005
        %2075 = vmatpush.msra.mxu0 %v2004
        %2076 = vmatpush.msra.mxu0 %v2003
        %2077 = vmatmul.bf16.gmra.mxu0 %v2014
        %v2078 = vpop.f32.mrf.mxu0
        %v2079 = vadd.f32 %v2058, %v2078
        %v2080 = vpop.f32.mrf.mxu0
        %2081 = vdwg.mxu0
        %v2082 = vpack.c.bf16 %v2079, %v2079
        %vm2083 = vcmask 812032
        %2084 = vst.msk [vmem:[#allocation3 + $0x2] sm:$0x3] %vm2083, %v2082
        %v2085 = vld [vmem:[#allocation3] sm:$0xf]
        %2087 = vst [vmem:[#allocation1] ss:$2 sm:$0xff] %v2085
        %v2088 = vld.sshfl [vmem:[#allocation1] sm:$0xff pattern:$0x75643120]
        %2090 = vrot.lane.b32.xlu0 %v2088, 11
        %v2091 = vpop.permute.xlu0 %2090
        %v2092 = vrot.slane %v2091, 4
        %vm2093 = vcmask 89088
        %v2094 = vsel %vm2093, %v2091, %v2092
        %2096 = vst.msk [vmem:[#allocation14] sm:$0x3] %vm2083, %v2094
        %2097 = vst [vmem:[#allocation1] ss:$2 sm:$0xff] %v2085
        %v2098 = vld.sshfl [vmem:[#allocation1] sm:$0xff pattern:$0x75643120]
        %2100 = vrot.lane.b32.xlu0 %v2098, 10
        %v2101 = vpop.permute.xlu0 %2100
        %v2102 = vrot.slane %v2101, 4
        %vm2103 = vcmask 80896
        %v2104 = vsel %vm2103, %v2101, %v2102
        %2106 = vst.msk [vmem:[#allocation14 + $0x30] sm:$0x3] %vm2083, %v2104
        %2107 = vst [vmem:[#allocation1] ss:$2 sm:$0xff] %v2085
        %v2108 = vld.sshfl [vmem:[#allocation1] sm:$0xff pattern:$0x75643120]
        %2110 = vrot.lane.b32.xlu0 %v2108, 9
        %v2111 = vpop.permute.xlu0 %2110
        %v2112 = vrot.slane %v2111, 4
        %vm2113 = vcmask 72704
        %v2114 = vsel %vm2113, %v2111, %v2112
        %2116 = vst.msk [vmem:[#allocation14 + $0x60] sm:$0x3] %vm2083, %v2114
        %2117 = vst [vmem:[#allocation1] ss:$2 sm:$0xff] %v2085
        %v2118 = vld.sshfl [vmem:[#allocation1] sm:$0xff pattern:$0x75643120]
        %2120 = vrot.lane.b32.xlu0 %v2118, 1
        %v2121 = vpop.permute.xlu0 %2120
        %v2122 = vrot.slane %v2121, 4
        %v2123 = vsel %vm1240, %v2121, %v2122
        %2125 = vst.msk [vmem:[#allocation14 + $0x90] sm:$0x3] %vm2083, %v2123
        %2126 = vst [vmem:[#allocation1] ss:$2 sm:$0xff] %v2085
        %v2127 = vld.sshfl [vmem:[#allocation1] sm:$0xff pattern:$0x75643120]
        %v2129 = vrot.slane %v2127, 4
        %2131 = vst.msk [vmem:[#allocation14 + $0xc0] sm:$0x3] %vm2083, %v2129
        %2132 = vst [vmem:[#allocation1] ss:$2 sm:$0xff] %v2085
        %v2133 = vld.sshfl [vmem:[#allocation1] sm:$0xff pattern:$0x75643120]
        %2135 = vrot.lane.b32.xlu0 %v2133, 127
        %v2136 = vpop.permute.xlu0 %2135
        %v2137 = vrot.slane %v2136, 4
        %2139 = vst.msk [vmem:[#allocation14 + $0xf0] sm:$0x3] %vm2083, %v2137
        %2140 = vst [vmem:[#allocation1] ss:$2 sm:$0xff] %v2085
        %v2141 = vld.sshfl [vmem:[#allocation1] sm:$0xff pattern:$0x75643120]
        %2143 = vrot.lane.b32.xlu0 %v2141, 119
        %v2144 = vpop.permute.xlu0 %2143
        %v2145 = vrot.slane %v2144, 4
        %2147 = vst.msk [vmem:[#allocation14 + $0x120] sm:$0x3] %vm2083, %v2145
        %2148 = vst [vmem:[#allocation1] ss:$2 sm:$0xff] %v2085
        %v2149 = vld.sshfl [vmem:[#allocation1] sm:$0xff pattern:$0x75643120]
        %2151 = vrot.lane.b32.xlu0 %v2149, 118
        %v2152 = vpop.permute.xlu0 %2151
        %v2153 = vrot.slane %v2152, 4
        %2155 = vst.msk [vmem:[#allocation14 + $0x150] sm:$0x3] %vm2083, %v2153
        %2156 = vst [vmem:[#allocation1] ss:$2 sm:$0xff] %v2085
        %v2157 = vld.sshfl [vmem:[#allocation1] sm:$0xff pattern:$0x75643120]
        %2159 = vrot.lane.b32.xlu0 %v2157, 117
        %v2160 = vpop.permute.xlu0 %2159
        %v2161 = vrot.slane %v2160, 4
        %2163 = vst.msk [vmem:[#allocation14 + $0x180] sm:$0x3] %vm2083, %v2161
        %s2164 = scalar_lea.vmem [#allocation15], 48
        %v2165 = vld [vmem:[%s2164] sm:$0xff]
        %v2166 = vld [vmem:[%s2164 + $0x8] sm:$0xf]
        %v2167 = vld [vmem:[#allocation14] sm:$0xf]
        %v2168 = vld [vmem:[#allocation14 + $0xc] sm:$0xf]
        %v2169 = vld [vmem:[#allocation14 + $0x18] sm:$0xf]
        %v2170 = vld [vmem:[#allocation14 + $0x24] sm:$0xf]
        %v2171 = vld [vmem:[#allocation14 + $0x30] sm:$0xf]
        %v2172 = vld [vmem:[#allocation14 + $0x3c] sm:$0xf]
        %v2173 = vld [vmem:[#allocation14 + $0x48] sm:$0xf]
        %v2174 = vld [vmem:[#allocation14 + $0x54] sm:$0xf]
        %v2175 = vld [vmem:[#allocation14 + $0x60] sm:$0xf]
        %v2176 = vld [vmem:[#allocation14 + $0x6c] sm:$0xf]
        %v2177 = vld [vmem:[#allocation14 + $0x78] sm:$0xf]
        %v2178 = vld [vmem:[#allocation14 + $0x84] sm:$0xf]
        %v2179 = vld [vmem:[#allocation14 + $0x90] sm:$0xf]
        %v2180 = vld [vmem:[#allocation14 + $0x9c] sm:$0xf]
        %v2181 = vld [vmem:[#allocation14 + $0xa8] sm:$0xf]
        %v2182 = vld [vmem:[#allocation14 + $0xb4] sm:$0xf]
        %v2183 = vld [vmem:[#allocation14 + $0xc0] sm:$0xf]
        %v2184 = vld [vmem:[#allocation14 + $0xcc] sm:$0xf]
        %v2185 = vld [vmem:[#allocation14 + $0xd8] sm:$0xf]
        %v2186 = vld [vmem:[#allocation14 + $0xe4] sm:$0xf]
        %v2187 = vld [vmem:[#allocation14 + $0xf0] sm:$0xf]
        %v2188 = vld [vmem:[#allocation14 + $0xfc] sm:$0xf]
        %v2189 = vld [vmem:[#allocation14 + $0x108] sm:$0xf]
        %v2190 = vld [vmem:[#allocation14 + $0x114] sm:$0xf]
        %v2191 = vld [vmem:[#allocation14 + $0x120] sm:$0xf]
        %v2192 = vld [vmem:[#allocation14 + $0x12c] sm:$0xf]
        %v2193 = vld [vmem:[#allocation14 + $0x138] sm:$0xf]
        %v2194 = vld [vmem:[#allocation14 + $0x144] sm:$0xf]
        %v2195 = vld [vmem:[#allocation14 + $0x150] sm:$0xf]
        %v2196 = vld [vmem:[#allocation14 + $0x15c] sm:$0xf]
        %v2197 = vld [vmem:[#allocation14 + $0x168] sm:$0xf]
        %v2198 = vld [vmem:[#allocation14 + $0x174] sm:$0xf]
        %v2199 = vld [vmem:[#allocation14 + $0x180] sm:$0xf]
        %v2200 = vld [vmem:[#allocation14 + $0x18c] sm:$0xf]
        %v2201 = vld [vmem:[#allocation14 + $0x198] sm:$0xf]
        %v2202 = vld [vmem:[#allocation14 + $0x1a4] sm:$0xf]
        %v2205 = vunpack.c.l.b16 %v2165
        %v2206 = vunpack.c.h.b16 %v2165
        %v2207 = vunpack.c.l.b16 %v2166
        %v2208 = vpack.c.b16 %v2205, %v2205
        %v2209 = vpack.c.b16 %v2206, %v2206
        %v2210 = vpack.c.b16 %v2207, %v2207
        %v2249 = vunpack.c.l.b16 %v2167
        %v2250 = vunpack.c.l.b16 %v2168
        %v2251 = vunpack.c.l.b16 %v2169
        %v2252 = vunpack.c.l.b16 %v2170
        %v2253 = vunpack.c.l.b16 %v2171
        %v2254 = vunpack.c.l.b16 %v2172
        %v2255 = vunpack.c.l.b16 %v2173
        %v2256 = vunpack.c.l.b16 %v2174
        %v2257 = vunpack.c.l.b16 %v2175
        %v2258 = vunpack.c.l.b16 %v2176
        %v2259 = vunpack.c.l.b16 %v2177
        %v2260 = vunpack.c.l.b16 %v2178
        %v2261 = vunpack.c.l.b16 %v2179
        %v2262 = vunpack.c.l.b16 %v2180
        %v2263 = vunpack.c.l.b16 %v2181
        %v2264 = vunpack.c.l.b16 %v2182
        %v2265 = vunpack.c.l.b16 %v2183
        %v2266 = vunpack.c.l.b16 %v2184
        %v2267 = vunpack.c.l.b16 %v2185
        %v2268 = vunpack.c.l.b16 %v2186
        %v2269 = vunpack.c.l.b16 %v2187
        %v2270 = vunpack.c.l.b16 %v2188
        %v2271 = vunpack.c.l.b16 %v2189
        %v2272 = vunpack.c.l.b16 %v2190
        %v2273 = vunpack.c.l.b16 %v2191
        %v2274 = vunpack.c.l.b16 %v2192
        %v2275 = vunpack.c.l.b16 %v2193
        %v2276 = vunpack.c.l.b16 %v2194
        %v2277 = vunpack.c.l.b16 %v2195
        %v2278 = vunpack.c.l.b16 %v2196
        %v2279 = vunpack.c.l.b16 %v2197
        %v2280 = vunpack.c.l.b16 %v2198
        %v2281 = vunpack.c.l.b16 %v2199
        %v2282 = vunpack.c.l.b16 %v2200
        %v2283 = vunpack.c.l.b16 %v2201
        %v2284 = vunpack.c.l.b16 %v2202
        %v2285 = vpack.c.b16 %v2250, %v2249
        %v2286 = vpack.c.b16 %v2252, %v2251
        %v2287 = vpack.c.b16 %v2254, %v2253
        %v2288 = vpack.c.b16 %v2256, %v2255
        %v2289 = vpack.c.b16 %v2258, %v2257
        %v2290 = vpack.c.b16 %v2260, %v2259
        %v2291 = vpack.c.b16 %v2262, %v2261
        %v2292 = vpack.c.b16 %v2264, %v2263
        %v2293 = vpack.c.b16 %v2266, %v2265
        %v2294 = vpack.c.b16 %v2268, %v2267
        %v2295 = vpack.c.b16 %v2270, %v2269
        %v2296 = vpack.c.b16 %v2272, %v2271
        %v2297 = vpack.c.b16 %v2274, %v2273
        %v2298 = vpack.c.b16 %v2276, %v2275
        %v2299 = vpack.c.b16 %v2278, %v2277
        %v2300 = vpack.c.b16 %v2280, %v2279
        %v2301 = vpack.c.b16 %v2282, %v2281
        %v2302 = vpack.c.b16 %v2284, %v2283
        %v2322 = vsel %vm1727, %v2210, 0
        %2324 = vmatpush.bf16.msra.mxu0 %v2292
        %2325 = vmatpush.bf16.msra.mxu0 %v2291
        %2326 = vmatpush.bf16.msra.mxu0 %v2290
        %2327 = vmatpush.bf16.msra.mxu0 %v2289
        %2328 = vmatpush.bf16.msra.mxu0 %v2288
        %2329 = vmatpush.bf16.msra.mxu0 %v2287
        %2330 = vmatpush.bf16.msra.mxu0 %v2286
        %2331 = vmatpush.bf16.msra.mxu0 %v2285
        %2332 = vmatmul.bf16.gmra.mxu0 %v2208
        %v2333 = vpop.f32.mrf.mxu0
        %v2334 = vadd.f32 0.0, %v2333
        %v2335 = vpop.f32.mrf.mxu0
        %2336 = vdwg.mxu0
        %2337 = vmatpush.bf16.msra.mxu0 %v2300
        %2338 = vmatpush.bf16.msra.mxu0 %v2299
        %2339 = vmatpush.bf16.msra.mxu0 %v2298
        %2340 = vmatpush.bf16.msra.mxu0 %v2297
        %2341 = vmatpush.bf16.msra.mxu0 %v2296
        %2342 = vmatpush.bf16.msra.mxu0 %v2295
        %2343 = vmatpush.bf16.msra.mxu0 %v2294
        %2344 = vmatpush.bf16.msra.mxu0 %v2293
        %2345 = vmatmul.bf16.gmra.mxu0 %v2209
        %v2346 = vpop.f32.mrf.mxu0
        %v2347 = vadd.f32 %v2334, %v2346
        %v2348 = vpop.f32.mrf.mxu0
        %2349 = vdwg.mxu0
        %2350 = vmatpush.bf16.msra.mxu0 0
        %2351 = vmatpush.bf16.msra.mxu0 0
        %2352 = vmatpush.bf16.msra.mxu0 0
        %2353 = vmatpush.bf16.msra.mxu0 0
        %2354 = vmatpush.bf16.msra.mxu0 0
        %2355 = vmatpush.bf16.msra.mxu0 0
        %2356 = vmatpush.bf16.msra.mxu0 %v2302
        %2357 = vmatpush.bf16.msra.mxu0 %v2301
        %2358 = vmatmul.bf16.gmra.mxu0 %v2322
        %v2359 = vpop.f32.mrf.mxu0
        %v2360 = vadd.f32 %v2347, %v2359
        %v2361 = vpop.f32.mrf.mxu0
        %2362 = vdwg.mxu0
        %s2363 = scalar_lea.vmem [#allocation17], 32
        %v2364 = vld [vmem:[%s2363] sm:$0xff]
        %2366 = vset.pattern.permute.xlu0 0
        %2367 = vperm.xlu0 %2366, %v2364
        %v2368 = vpop.permute.xlu0 %2367
        %v2370 = vmul.f32 %v2360, %v2368
        %s2371 = scalar_lea.vmem [#allocation19], 32
        %v2372 = vld [vmem:[%s2371] sm:$0xff]
        %2374 = vset.pattern.permute.xlu0 0
        %2375 = vperm.xlu0 %2374, %v2372
        %v2376 = vpop.permute.xlu0 %2375
        %v2378 = vadd.f32 %v2370, %v2376
        %v2379 = vmax.f32 %v2378, 0.0
        %v2380 = vld [vmem:[#allocation23 + $0x1] sm:$0x1]
        %vm2381 = vcmp.gt.f32.partialorder %v2380, 0.0
        %v2382 = vsel %vm2381, 1, 0
        %v2383 = vperm.slane %v2382, 0
        %vm2384 = vcmp.eq.s32.totalorder %v2383, 1
        %v2385 = vsel %vm2384, %v2379, 0.0
        %v2386 = vpack.c.bf16 %v2385, %v2385
        %vm2387 = vcmask 814080
        %2388 = vst.msk [vmem:[#allocation7 + $0x4] sm:$0xf] %vm2387, %v2386
        %v2389 = vld [vmem:[#allocation7] sm:$0xff]
        %v2391 = vrot.slane %v2389, 4
        %v2393 = vunpack.c.l.bf16 %v2391
        %2394 = vrot.lane.b32.xlu0 %v2389, 127
        %v2395 = vpop.permute.xlu0 %2394
        %v2396 = vrot.slane %v2395, 4
        %v2398 = vunpack.c.l.bf16 %v2396
        %v2399 = vmax.f32 %v2393, %v2398
        %v2400 = vpack.c.bf16 %v2399, %v2399
        %2401 = vrot.lane.b32.xlu0 %v2389, 118
        %v2402 = vpop.permute.xlu0 %2401
        %v2403 = vrot.slane %v2402, 4
        %v2405 = vunpack.c.l.bf16 %v2403
        %2406 = vrot.lane.b32.xlu0 %v2389, 117
        %v2407 = vpop.permute.xlu0 %2406
        %v2408 = vrot.slane %v2407, 4
        %v2410 = vunpack.c.l.bf16 %v2408
        %v2411 = vmax.f32 %v2405, %v2410
        %v2412 = vpack.c.bf16 %v2411, %v2411
        %v2413 = vunpack.c.l.bf16 %v2400
        %v2414 = vunpack.c.l.bf16 %v2412
        %v2415 = vmax.f32 %v2413, %v2414
        %v2416 = vpack.c.bf16 %v2415, %v2415
        %v2417 = vld [vmem:[%s8] sm:$0xff]
        %v2418 = vld [vmem:[%s8 + $0x8] sm:$0xff]
        %v2419 = vld [vmem:[%s8 + $0x10] sm:$0xff]
        %v2420 = vld [vmem:[%s8 + $0x18] sm:$0xff]
        %v2421 = vld [vmem:[%s8 + $0x20] sm:$0xff]
        %v2422 = vld [vmem:[%s8 + $0x28] sm:$0xff]
        %v2423 = vld [vmem:[%s8 + $0x30] sm:$0xff]
        %v2424 = vld [vmem:[%s8 + $0x38] sm:$0xff]
        %v2425 = vld [vmem:[%s8 + $0x40] sm:$0xff]
        %v2426 = vld [vmem:[%s8 + $0x48] sm:$0xff]
        %v2427 = vld [vmem:[%s8 + $0x50] sm:$0xff]
        %v2428 = vld [vmem:[%s8 + $0x58] sm:$0xff]
        %v2429 = vld [vmem:[%s8 + $0x60] sm:$0xf]
        %vm2430 = vcmask 818176
        %v2432 = vsel %vm2430, %v2416, 0
        %v2435 = vsel %vm798, %v2429, 0
        %2437 = vmatpush.msra.mxu0 0.0
        %2438 = vmatpush.msra.mxu0 0.0
        %2439 = vmatpush.msra.mxu0 0.0
        %2440 = vmatpush.msra.mxu0 %v2435
        %2441 = vmatpush.msra.mxu0 %v2428
        %2442 = vmatpush.msra.mxu0 %v2427
        %2443 = vmatpush.msra.mxu0 %v2426
        %2444 = vmatpush.msra.mxu0 %v2425
        %2445 = vmatpush.msra.mxu0 %v2424
        %2446 = vmatpush.msra.mxu0 %v2423
        %2447 = vmatpush.msra.mxu0 %v2422
        %2448 = vmatpush.msra.mxu0 %v2421
        %2449 = vmatpush.msra.mxu0 %v2420
        %2450 = vmatpush.msra.mxu0 %v2419
        %2451 = vmatpush.msra.mxu0 %v2418
        %2452 = vmatpush.msra.mxu0 %v2417
        %2453 = vmatmul.bf16.gmra.mxu0 %v2432
        %v2454 = vpop.f32.mrf.mxu0
        %v2455 = vadd.f32 0.0, %v2454
        %v2456 = vpop.f32.mrf.mxu0
        %2457 = vdwg.mxu0
        %v2458 = vpack.c.bf16 %v2455, %v2455
        %vm2459 = vcmask 289792
        %2460 = vst.msk [vmem:[#allocation4 + $0x4] sm:$0xf] %vm2459, %v2458
        %v2461 = vld [vmem:[#allocation4] sm:$0xff]
        %2463 = vrot.lane.b32.xlu0 %v2461, 7
        %v2464 = vpop.permute.xlu0 %2463
        %v2465 = vrot.slane %v2464, 4
        %vm2466 = vcmask 56320
        %v2467 = vsel %vm2466, %v2464, %v2465
        %2469 = vst.msk [vmem:[#allocation14] sm:$0xf] %vm2459, %v2467
        %2470 = vrot.lane.b32.xlu0 %v2461, 6
        %v2471 = vpop.permute.xlu0 %2470
        %v2472 = vrot.slane %v2471, 4
        %vm2473 = vcmask 48128
        %v2474 = vsel %vm2473, %v2471, %v2472
        %2476 = vst.msk [vmem:[#allocation14 + $0x30] sm:$0xf] %vm2459, %v2474
        %2477 = vrot.lane.b32.xlu0 %v2461, 5
        %v2478 = vpop.permute.xlu0 %2477
        %v2479 = vrot.slane %v2478, 4
        %vm2480 = vcmask 39936
        %v2481 = vsel %vm2480, %v2478, %v2479
        %2483 = vst.msk [vmem:[#allocation14 + $0x60] sm:$0xf] %vm2459, %v2481
        %2484 = vrot.lane.b32.xlu0 %v2461, 1
        %v2485 = vpop.permute.xlu0 %2484
        %v2486 = vrot.slane %v2485, 4
        %v2487 = vsel %vm1240, %v2485, %v2486
        %2489 = vst.msk [vmem:[#allocation14 + $0x90] sm:$0xf] %vm2459, %v2487
        %v2490 = vrot.slane %v2461, 4
        %2492 = vst.msk [vmem:[#allocation14 + $0xc0] sm:$0xf] %vm2459, %v2490
        %2493 = vrot.lane.b32.xlu0 %v2461, 127
        %v2494 = vpop.permute.xlu0 %2493
        %v2495 = vrot.slane %v2494, 4
        %2497 = vst.msk [vmem:[#allocation14 + $0xf0] sm:$0xf] %vm2459, %v2495
        %2498 = vrot.lane.b32.xlu0 %v2461, 123
        %v2499 = vpop.permute.xlu0 %2498
        %v2500 = vrot.slane %v2499, 4
        %2502 = vst.msk [vmem:[#allocation14 + $0x120] sm:$0xf] %vm2459, %v2500
        %2503 = vrot.lane.b32.xlu0 %v2461, 122
        %v2504 = vpop.permute.xlu0 %2503
        %v2505 = vrot.slane %v2504, 4
        %2507 = vst.msk [vmem:[#allocation14 + $0x150] sm:$0xf] %vm2459, %v2505
        %2508 = vrot.lane.b32.xlu0 %v2461, 121
        %v2509 = vpop.permute.xlu0 %2508
        %v2510 = vrot.slane %v2509, 4
        %2512 = vst.msk [vmem:[#allocation14 + $0x180] sm:$0xf] %vm2459, %v2510
        %s2513 = scalar_lea.vmem [#allocation15], 96
        %v2514 = vld [vmem:[%s2513] sm:$0xff]
        %v2515 = vld [vmem:[%s2513 + $0x8] sm:$0xf]
        %v2516 = vld [vmem:[%s2513 + $0xc] sm:$0xff]
        %v2517 = vld [vmem:[%s2513 + $0x14] sm:$0xf]
        %v2518 = vld [vmem:[#allocation14] sm:$0xf]
        %v2519 = vld [vmem:[#allocation14 + $0xc] sm:$0xf]
        %v2520 = vld [vmem:[#allocation14 + $0x18] sm:$0xf]
        %v2521 = vld [vmem:[#allocation14 + $0x24] sm:$0xf]
        %v2522 = vld [vmem:[#allocation14 + $0x30] sm:$0xf]
        %v2523 = vld [vmem:[#allocation14 + $0x3c] sm:$0xf]
        %v2524 = vld [vmem:[#allocation14 + $0x48] sm:$0xf]
        %v2525 = vld [vmem:[#allocation14 + $0x54] sm:$0xf]
        %v2526 = vld [vmem:[#allocation14 + $0x60] sm:$0xf]
        %v2527 = vld [vmem:[#allocation14 + $0x6c] sm:$0xf]
        %v2528 = vld [vmem:[#allocation14 + $0x78] sm:$0xf]
        %v2529 = vld [vmem:[#allocation14 + $0x84] sm:$0xf]
        %v2530 = vld [vmem:[#allocation14 + $0x90] sm:$0xf]
        %v2531 = vld [vmem:[#allocation14 + $0x9c] sm:$0xf]
        %v2532 = vld [vmem:[#allocation14 + $0xa8] sm:$0xf]
        %v2533 = vld [vmem:[#allocation14 + $0xb4] sm:$0xf]
        %v2534 = vld [vmem:[#allocation14 + $0xc0] sm:$0xf]
        %v2535 = vld [vmem:[#allocation14 + $0xcc] sm:$0xf]
        %v2536 = vld [vmem:[#allocation14 + $0xd8] sm:$0xf]
        %v2537 = vld [vmem:[#allocation14 + $0xe4] sm:$0xf]
        %v2538 = vld [vmem:[#allocation14 + $0xf0] sm:$0xf]
        %v2539 = vld [vmem:[#allocation14 + $0xfc] sm:$0xf]
        %v2540 = vld [vmem:[#allocation14 + $0x108] sm:$0xf]
        %v2541 = vld [vmem:[#allocation14 + $0x114] sm:$0xf]
        %v2542 = vld [vmem:[#allocation14 + $0x120] sm:$0xf]
        %v2543 = vld [vmem:[#allocation14 + $0x12c] sm:$0xf]
        %v2544 = vld [vmem:[#allocation14 + $0x138] sm:$0xf]
        %v2545 = vld [vmem:[#allocation14 + $0x144] sm:$0xf]
        %v2546 = vld [vmem:[#allocation14 + $0x150] sm:$0xf]
        %v2547 = vld [vmem:[#allocation14 + $0x15c] sm:$0xf]
        %v2548 = vld [vmem:[#allocation14 + $0x168] sm:$0xf]
        %v2549 = vld [vmem:[#allocation14 + $0x174] sm:$0xf]
        %v2550 = vld [vmem:[#allocation14 + $0x180] sm:$0xf]
        %v2551 = vld [vmem:[#allocation14 + $0x18c] sm:$0xf]
        %v2552 = vld [vmem:[#allocation14 + $0x198] sm:$0xf]
        %v2553 = vld [vmem:[#allocation14 + $0x1a4] sm:$0xf]
        %v2558 = vunpack.c.l.b16 %v2514
        %v2559 = vunpack.c.h.b16 %v2514
        %v2560 = vunpack.c.l.b16 %v2515
        %v2561 = vunpack.c.l.b16 %v2516
        %v2562 = vunpack.c.h.b16 %v2516
        %v2563 = vunpack.c.l.b16 %v2517
        %v2564 = vpack.c.b16 %v2561, %v2558
        %v2565 = vpack.c.b16 %v2562, %v2559
        %v2566 = vpack.c.b16 %v2563, %v2560
        %v2605 = vunpack.c.l.b16 %v2518
        %v2606 = vunpack.c.l.b16 %v2519
        %v2607 = vunpack.c.l.b16 %v2520
        %v2608 = vunpack.c.l.b16 %v2521
        %v2609 = vunpack.c.l.b16 %v2522
        %v2610 = vunpack.c.l.b16 %v2523
        %v2611 = vunpack.c.l.b16 %v2524
        %v2612 = vunpack.c.l.b16 %v2525
        %v2613 = vunpack.c.l.b16 %v2526
        %v2614 = vunpack.c.l.b16 %v2527
        %v2615 = vunpack.c.l.b16 %v2528
        %v2616 = vunpack.c.l.b16 %v2529
        %v2617 = vunpack.c.l.b16 %v2530
        %v2618 = vunpack.c.l.b16 %v2531
        %v2619 = vunpack.c.l.b16 %v2532
        %v2620 = vunpack.c.l.b16 %v2533
        %v2621 = vunpack.c.l.b16 %v2534
        %v2622 = vunpack.c.l.b16 %v2535
        %v2623 = vunpack.c.l.b16 %v2536
        %v2624 = vunpack.c.l.b16 %v2537
        %v2625 = vunpack.c.l.b16 %v2538
        %v2626 = vunpack.c.l.b16 %v2539
        %v2627 = vunpack.c.l.b16 %v2540
        %v2628 = vunpack.c.l.b16 %v2541
        %v2629 = vunpack.c.l.b16 %v2542
        %v2630 = vunpack.c.l.b16 %v2543
        %v2631 = vunpack.c.l.b16 %v2544
        %v2632 = vunpack.c.l.b16 %v2545
        %v2633 = vunpack.c.l.b16 %v2546
        %v2634 = vunpack.c.l.b16 %v2547
        %v2635 = vunpack.c.l.b16 %v2548
        %v2636 = vunpack.c.l.b16 %v2549
        %v2637 = vunpack.c.l.b16 %v2550
        %v2638 = vunpack.c.l.b16 %v2551
        %v2639 = vunpack.c.l.b16 %v2552
        %v2640 = vunpack.c.l.b16 %v2553
        %v2641 = vpack.c.b16 %v2606, %v2605
        %v2642 = vpack.c.b16 %v2608, %v2607
        %v2643 = vpack.c.b16 %v2610, %v2609
        %v2644 = vpack.c.b16 %v2612, %v2611
        %v2645 = vpack.c.b16 %v2614, %v2613
        %v2646 = vpack.c.b16 %v2616, %v2615
        %v2647 = vpack.c.b16 %v2618, %v2617
        %v2648 = vpack.c.b16 %v2620, %v2619
        %v2649 = vpack.c.b16 %v2622, %v2621
        %v2650 = vpack.c.b16 %v2624, %v2623
        %v2651 = vpack.c.b16 %v2626, %v2625
        %v2652 = vpack.c.b16 %v2628, %v2627
        %v2653 = vpack.c.b16 %v2630, %v2629
        %v2654 = vpack.c.b16 %v2632, %v2631
        %v2655 = vpack.c.b16 %v2634, %v2633
        %v2656 = vpack.c.b16 %v2636, %v2635
        %v2657 = vpack.c.b16 %v2638, %v2637
        %v2658 = vpack.c.b16 %v2640, %v2639
        %v2678 = vsel %vm1727, %v2566, 0
        %2680 = vmatpush.bf16.msra.mxu0 %v2648
        %2681 = vmatpush.bf16.msra.mxu0 %v2647
        %2682 = vmatpush.bf16.msra.mxu0 %v2646
        %2683 = vmatpush.bf16.msra.mxu0 %v2645
        %2684 = vmatpush.bf16.msra.mxu0 %v2644
        %2685 = vmatpush.bf16.msra.mxu0 %v2643
        %2686 = vmatpush.bf16.msra.mxu0 %v2642
        %2687 = vmatpush.bf16.msra.mxu0 %v2641
        %2688 = vmatmul.bf16.gmra.mxu0 %v2564
        %v2689 = vpop.f32.mrf.mxu0
        %v2690 = vadd.f32 0.0, %v2689
        %v2691 = vpop.f32.mrf.mxu0
        %v2692 = vadd.f32 0.0, %v2691
        %2693 = vdwg.mxu0
        %2694 = vmatpush.bf16.msra.mxu0 %v2656
        %2695 = vmatpush.bf16.msra.mxu0 %v2655
        %2696 = vmatpush.bf16.msra.mxu0 %v2654
        %2697 = vmatpush.bf16.msra.mxu0 %v2653
        %2698 = vmatpush.bf16.msra.mxu0 %v2652
        %2699 = vmatpush.bf16.msra.mxu0 %v2651
        %2700 = vmatpush.bf16.msra.mxu0 %v2650
        %2701 = vmatpush.bf16.msra.mxu0 %v2649
        %2702 = vmatmul.bf16.gmra.mxu0 %v2565
        %v2703 = vpop.f32.mrf.mxu0
        %v2704 = vadd.f32 %v2690, %v2703
        %v2705 = vpop.f32.mrf.mxu0
        %v2706 = vadd.f32 %v2692, %v2705
        %2707 = vdwg.mxu0
        %2708 = vmatpush.bf16.msra.mxu0 0
        %2709 = vmatpush.bf16.msra.mxu0 0
        %2710 = vmatpush.bf16.msra.mxu0 0
        %2711 = vmatpush.bf16.msra.mxu0 0
        %2712 = vmatpush.bf16.msra.mxu0 0
        %2713 = vmatpush.bf16.msra.mxu0 0
        %2714 = vmatpush.bf16.msra.mxu0 %v2658
        %2715 = vmatpush.bf16.msra.mxu0 %v2657
        %2716 = vmatmul.bf16.gmra.mxu0 %v2678
        %v2717 = vpop.f32.mrf.mxu0
        %v2718 = vadd.f32 %v2704, %v2717
        %v2719 = vpop.f32.mrf.mxu0
        %v2720 = vadd.f32 %v2706, %v2719
        %2721 = vdwg.mxu0
        %s2722 = scalar_lea.vmem [#allocation17], 64
        %v2723 = vld [vmem:[%s2722] sm:$0xff]
        %v2724 = vld [vmem:[%s2722 + $0x8] sm:$0xff]
        %2726 = vset.pattern.permute.xlu0 0
        %2727 = vperm.xlu0 %2726, %v2723
        %v2728 = vpop.permute.xlu0 %2727
        %2731 = vset.pattern.permute.xlu0 0
        %2732 = vperm.xlu0 %2731, %v2724
        %v2733 = vpop.permute.xlu0 %2732
        %v2735 = vmul.f32 %v2718, %v2728
        %v2736 = vmul.f32 %v2720, %v2733
        %s2737 = scalar_lea.vmem [#allocation19], 64
        %v2738 = vld [vmem:[%s2737] sm:$0xff]
        %v2739 = vld [vmem:[%s2737 + $0x8] sm:$0xff]
        %2741 = vset.pattern.permute.xlu0 0
        %2742 = vperm.xlu0 %2741, %v2738
        %v2743 = vpop.permute.xlu0 %2742
        %2746 = vset.pattern.permute.xlu0 0
        %2747 = vperm.xlu0 %2746, %v2739
        %v2748 = vpop.permute.xlu0 %2747
        %v2750 = vadd.f32 %v2735, %v2743
        %v2751 = vadd.f32 %v2736, %v2748
        %v2752 = vmax.f32 %v2750, 0.0
        %v2753 = vmax.f32 %v2751, 0.0
        %v2754 = vld [vmem:[#allocation23 + $0x2] sm:$0x1]
        %vm2755 = vcmp.gt.f32.partialorder %v2754, 0.0
        %v2756 = vsel %vm2755, 1, 0
        %v2757 = vperm.slane %v2756, 0
        %vm2758 = vcmp.eq.s32.totalorder %v2757, 1
        %v2759 = vsel %vm2758, %v2752, 0.0
        %v2760 = vsel %vm2758, %v2753, 0.0
        %v2761 = vpack.c.bf16 %v2759, %v2759
        %v2762 = vpack.c.bf16 %v2760, %v2760
        %2763 = vst.msk [vmem:[#allocation8 + $0x4] sm:$0xf] %vm2459, %v2761
        %2764 = vst.msk [vmem:[#allocation8 + $0xc] sm:$0xf] %vm2459, %v2762
        %v2765 = vld [vmem:[#allocation8] sm:$0xff]
        %v2766 = vld [vmem:[#allocation8 + $0x8] sm:$0xff]
        %v2769 = vrot.slane %v2765, 4
        %v2770 = vrot.slane %v2766, 4
        %v2773 = vunpack.c.l.bf16 %v2769
        %v2774 = vunpack.c.l.bf16 %v2770
        %2775 = vrot.lane.b32.xlu0 %v2765, 127
        %v2776 = vpop.permute.xlu0 %2775
        %2777 = vrot.lane.b32.xlu0 %v2766, 127
        %v2778 = vpop.permute.xlu0 %2777
        %v2779 = vrot.slane %v2776, 4
        %v2780 = vrot.slane %v2778, 4
        %v2783 = vunpack.c.l.bf16 %v2779
        %v2784 = vunpack.c.l.bf16 %v2780
        %v2785 = vmax.f32 %v2773, %v2783
        %v2786 = vmax.f32 %v2774, %v2784
        %v2787 = vpack.c.bf16 %v2785, %v2785
        %v2788 = vpack.c.bf16 %v2786, %v2786
        %2789 = vrot.lane.b32.xlu0 %v2765, 122
        %v2790 = vpop.permute.xlu0 %2789
        %2791 = vrot.lane.b32.xlu0 %v2766, 122
        %v2792 = vpop.permute.xlu0 %2791
        %v2793 = vrot.slane %v2790, 4
        %v2794 = vrot.slane %v2792, 4
        %v2797 = vunpack.c.l.bf16 %v2793
        %v2798 = vunpack.c.l.bf16 %v2794
        %2799 = vrot.lane.b32.xlu0 %v2765, 121
        %v2800 = vpop.permute.xlu0 %2799
        %2801 = vrot.lane.b32.xlu0 %v2766, 121
        %v2802 = vpop.permute.xlu0 %2801
        %v2803 = vrot.slane %v2800, 4
        %v2804 = vrot.slane %v2802, 4
        %v2807 = vunpack.c.l.bf16 %v2803
        %v2808 = vunpack.c.l.bf16 %v2804
        %v2809 = vmax.f32 %v2797, %v2807
        %v2810 = vmax.f32 %v2798, %v2808
        %v2811 = vpack.c.bf16 %v2809, %v2809
        %v2812 = vpack.c.bf16 %v2810, %v2810
        %v2813 = vunpack.c.l.bf16 %v2787
        %v2814 = vunpack.c.l.bf16 %v2788
        %v2815 = vunpack.c.l.bf16 %v2811
        %v2816 = vunpack.c.l.bf16 %v2812
        %v2817 = vmax.f32 %v2813, %v2815
        %v2818 = vmax.f32 %v2814, %v2816
        %v2819 = vpack.c.bf16 %v2818, %v2817
        %v2820 = vld [vmem:[#allocation26] sm:$0xff]
        %v2821 = vld [vmem:[#allocation26 + $0x8] sm:$0xff]
        %v2822 = vld [vmem:[#allocation26 + $0x10] sm:$0xff]
        %v2823 = vld [vmem:[#allocation26 + $0x18] sm:$0xff]
        %v2824 = vld [vmem:[#allocation26 + $0x20] sm:$0xf]
        %vm2825 = vcmask 293888
        %v2827 = vsel %vm2825, %v2819, 0
        %v2830 = vsel %vm798, %v2824, 0
        %2832 = vmatpush.msra.mxu0 0.0
        %2833 = vmatpush.msra.mxu0 0.0
        %2834 = vmatpush.msra.mxu0 0.0
        %2835 = vmatpush.msra.mxu0 0.0
        %2836 = vmatpush.msra.mxu0 0.0
        %2837 = vmatpush.msra.mxu0 0.0
        %2838 = vmatpush.msra.mxu0 0.0
        %2839 = vmatpush.msra.mxu0 0.0
        %2840 = vmatpush.msra.mxu0 0.0
        %2841 = vmatpush.msra.mxu0 0.0
        %2842 = vmatpush.msra.mxu0 0.0
        %2843 = vmatpush.msra.mxu0 %v2830
        %2844 = vmatpush.msra.mxu0 %v2823
        %2845 = vmatpush.msra.mxu0 %v2822
        %2846 = vmatpush.msra.mxu0 %v2821
        %2847 = vmatpush.msra.mxu0 %v2820
        %2848 = vmatmul.bf16.gmra.mxu0 %v2827
        %v2849 = vpop.f32.mrf.mxu0
        %v2850 = vadd.f32 0.0, %v2849
        %v2851 = vpop.f32.mrf.mxu0
        %v2852 = vadd.f32 0.0, %v2851
        %2853 = vdwg.mxu0
        %v2854 = vpack.c.bf16 %v2850, %v2850
        %v2855 = vpack.c.bf16 %v2852, %v2852
        %vm2856 = vcmask 125952
        %2857 = vst.msk [vmem:[#allocation5 + $0x4] sm:$0xf] %vm2856, %v2854
        %2858 = vst.msk [vmem:[#allocation5 + $0xc] sm:$0xf] %vm2856, %v2855
        %v2859 = vld [vmem:[#allocation5] sm:$0xff]
        %v2860 = vld [vmem:[#allocation5 + $0x8] sm:$0xff]
        %2863 = vrot.lane.b32.xlu0 %v2859, 5
        %v2864 = vpop.permute.xlu0 %2863
        %2865 = vrot.lane.b32.xlu0 %v2860, 5
        %v2866 = vpop.permute.xlu0 %2865
        %v2867 = vrot.slane %v2864, 4
        %v2868 = vrot.slane %v2866, 4
        %v2869 = vsel %vm2480, %v2864, %v2867
        %v2870 = vsel %vm2480, %v2866, %v2868
        %2873 = vst.msk [vmem:[#allocation14] sm:$0xf] %vm2856, %v2869
        %2874 = vst.msk [vmem:[#allocation14 + $0xc] sm:$0xf] %vm2856, %v2870
        %2875 = vrot.lane.b32.xlu0 %v2859, 4
        %v2876 = vpop.permute.xlu0 %2875
        %2877 = vrot.lane.b32.xlu0 %v2860, 4
        %v2878 = vpop.permute.xlu0 %2877
        %v2879 = vrot.slane %v2876, 4
        %v2880 = vrot.slane %v2878, 4
        %vm2881 = vcmask 31744
        %v2882 = vsel %vm2881, %v2876, %v2879
        %v2883 = vsel %vm2881, %v2878, %v2880
        %2886 = vst.msk [vmem:[#allocation14 + $0x30] sm:$0xf] %vm2856, %v2882
        %2887 = vst.msk [vmem:[#allocation14 + $0x3c] sm:$0xf] %vm2856, %v2883
        %2888 = vrot.lane.b32.xlu0 %v2859, 3
        %v2889 = vpop.permute.xlu0 %2888
        %2890 = vrot.lane.b32.xlu0 %v2860, 3
        %v2891 = vpop.permute.xlu0 %2890
        %v2892 = vrot.slane %v2889, 4
        %v2893 = vrot.slane %v2891, 4
        %vm2894 = vcmask 23552
        %v2895 = vsel %vm2894, %v2889, %v2892
        %v2896 = vsel %vm2894, %v2891, %v2893
        %2899 = vst.msk [vmem:[#allocation14 + $0x60] sm:$0xf] %vm2856, %v2895
        %2900 = vst.msk [vmem:[#allocation14 + $0x6c] sm:$0xf] %vm2856, %v2896
        %2901 = vrot.lane.b32.xlu0 %v2859, 1
        %v2902 = vpop.permute.xlu0 %2901
        %2903 = vrot.lane.b32.xlu0 %v2860, 1
        %v2904 = vpop.permute.xlu0 %2903
        %v2905 = vrot.slane %v2902, 4
        %v2906 = vrot.slane %v2904, 4
        %v2907 = vsel %vm1240, %v2902, %v2905
        %v2908 = vsel %vm1240, %v2904, %v2906
        %2911 = vst.msk [vmem:[#allocation14 + $0x90] sm:$0xf] %vm2856, %v2907
        %2912 = vst.msk [vmem:[#allocation14 + $0x9c] sm:$0xf] %vm2856, %v2908
        %v2913 = vrot.slane %v2859, 4
        %v2914 = vrot.slane %v2860, 4
        %2917 = vst.msk [vmem:[#allocation14 + $0xc0] sm:$0xf] %vm2856, %v2913
        %2918 = vst.msk [vmem:[#allocation14 + $0xcc] sm:$0xf] %vm2856, %v2914
        %2919 = vrot.lane.b32.xlu0 %v2859, 127
        %v2920 = vpop.permute.xlu0 %2919
        %2921 = vrot.lane.b32.xlu0 %v2860, 127
        %v2922 = vpop.permute.xlu0 %2921
        %v2923 = vrot.slane %v2920, 4
        %v2924 = vrot.slane %v2922, 4
        %2927 = vst.msk [vmem:[#allocation14 + $0xf0] sm:$0xf] %vm2856, %v2923
        %2928 = vst.msk [vmem:[#allocation14 + $0xfc] sm:$0xf] %vm2856, %v2924
        %2929 = vrot.lane.b32.xlu0 %v2859, 125
        %v2930 = vpop.permute.xlu0 %2929
        %2931 = vrot.lane.b32.xlu0 %v2860, 125
        %v2932 = vpop.permute.xlu0 %2931
        %v2933 = vrot.slane %v2930, 4
        %v2934 = vrot.slane %v2932, 4
        %2937 = vst.msk [vmem:[#allocation14 + $0x120] sm:$0xf] %vm2856, %v2933
        %2938 = vst.msk [vmem:[#allocation14 + $0x12c] sm:$0xf] %vm2856, %v2934
        %2939 = vrot.lane.b32.xlu0 %v2859, 124
        %v2940 = vpop.permute.xlu0 %2939
        %2941 = vrot.lane.b32.xlu0 %v2860, 124
        %v2942 = vpop.permute.xlu0 %2941
        %v2943 = vrot.slane %v2940, 4
        %v2944 = vrot.slane %v2942, 4
        %2947 = vst.msk [vmem:[#allocation14 + $0x150] sm:$0xf] %vm2856, %v2943
        %2948 = vst.msk [vmem:[#allocation14 + $0x15c] sm:$0xf] %vm2856, %v2944
        %2949 = vrot.lane.b32.xlu0 %v2859, 123
        %v2950 = vpop.permute.xlu0 %2949
        %2951 = vrot.lane.b32.xlu0 %v2860, 123
        %v2952 = vpop.permute.xlu0 %2951
        %v2953 = vrot.slane %v2950, 4
        %v2954 = vrot.slane %v2952, 4
        %2957 = vst.msk [vmem:[#allocation14 + $0x180] sm:$0xf] %vm2856, %v2953
        %2958 = vst.msk [vmem:[#allocation14 + $0x18c] sm:$0xf] %vm2856, %v2954
        %s2959 = scalar_lea.vmem [#allocation15], 144
        %v2960 = vld [vmem:[%s2959] sm:$0xff]
        %v2961 = vld [vmem:[%s2959 + $0x8] sm:$0xf]
        %v2962 = vld [vmem:[%s2959 + $0xc] sm:$0xff]
        %v2963 = vld [vmem:[%s2959 + $0x14] sm:$0xf]
        %v2964 = vld [vmem:[%s2959 + $0x18] sm:$0xff]
        %v2965 = vld [vmem:[%s2959 + $0x20] sm:$0xf]
        %v2966 = vld [vmem:[%s2959 + $0x24] sm:$0xff]
        %v2967 = vld [vmem:[%s2959 + $0x2c] sm:$0xf]
        %v2968 = vld [vmem:[#allocation14] sm:$0xf]
        %v2969 = vld [vmem:[#allocation14 + $0xc] sm:$0xf]
        %v2970 = vld [vmem:[#allocation14 + $0x18] sm:$0xf]
        %v2971 = vld [vmem:[#allocation14 + $0x24] sm:$0xf]
        %v2972 = vld [vmem:[#allocation14 + $0x30] sm:$0xf]
        %v2973 = vld [vmem:[#allocation14 + $0x3c] sm:$0xf]
        %v2974 = vld [vmem:[#allocation14 + $0x48] sm:$0xf]
        %v2975 = vld [vmem:[#allocation14 + $0x54] sm:$0xf]
        %v2976 = vld [vmem:[#allocation14 + $0x60] sm:$0xf]
        %v2977 = vld [vmem:[#allocation14 + $0x6c] sm:$0xf]
        %v2978 = vld [vmem:[#allocation14 + $0x78] sm:$0xf]
        %v2979 = vld [vmem:[#allocation14 + $0x84] sm:$0xf]
        %v2980 = vld [vmem:[#allocation14 + $0x90] sm:$0xf]
        %v2981 = vld [vmem:[#allocation14 + $0x9c] sm:$0xf]
        %v2982 = vld [vmem:[#allocation14 + $0xa8] sm:$0xf]
        %v2983 = vld [vmem:[#allocation14 + $0xb4] sm:$0xf]
        %v2984 = vld [vmem:[#allocation14 + $0xc0] sm:$0xf]
        %v2985 = vld [vmem:[#allocation14 + $0xcc] sm:$0xf]
        %v2986 = vld [vmem:[#allocation14 + $0xd8] sm:$0xf]
        %v2987 = vld [vmem:[#allocation14 + $0xe4] sm:$0xf]
        %v2988 = vld [vmem:[#allocation14 + $0xf0] sm:$0xf]
        %v2989 = vld [vmem:[#allocation14 + $0xfc] sm:$0xf]
        %v2990 = vld [vmem:[#allocation14 + $0x108] sm:$0xf]
        %v2991 = vld [vmem:[#allocation14 + $0x114] sm:$0xf]
        %v2992 = vld [vmem:[#allocation14 + $0x120] sm:$0xf]
        %v2993 = vld [vmem:[#allocation14 + $0x12c] sm:$0xf]
        %v2994 = vld [vmem:[#allocation14 + $0x138] sm:$0xf]
        %v2995 = vld [vmem:[#allocation14 + $0x144] sm:$0xf]
        %v2996 = vld [vmem:[#allocation14 + $0x150] sm:$0xf]
        %v2997 = vld [vmem:[#allocation14 + $0x15c] sm:$0xf]
        %v2998 = vld [vmem:[#allocation14 + $0x168] sm:$0xf]
        %v2999 = vld [vmem:[#allocation14 + $0x174] sm:$0xf]
        %v3000 = vld [vmem:[#allocation14 + $0x180] sm:$0xf]
        %v3001 = vld [vmem:[#allocation14 + $0x18c] sm:$0xf]
        %v3002 = vld [vmem:[#allocation14 + $0x198] sm:$0xf]
        %v3003 = vld [vmem:[#allocation14 + $0x1a4] sm:$0xf]
        %v3012 = vunpack.c.l.b16 %v2960
        %v3013 = vunpack.c.h.b16 %v2960
        %v3014 = vunpack.c.l.b16 %v2961
        %v3015 = vunpack.c.l.b16 %v2962
        %v3016 = vunpack.c.h.b16 %v2962
        %v3017 = vunpack.c.l.b16 %v2963
        %v3018 = vunpack.c.l.b16 %v2964
        %v3019 = vunpack.c.h.b16 %v2964
        %v3020 = vunpack.c.l.b16 %v2965
        %v3021 = vunpack.c.l.b16 %v2966
        %v3022 = vunpack.c.h.b16 %v2966
        %v3023 = vunpack.c.l.b16 %v2967
        %v3024 = vpack.c.b16 %v3015, %v3012
        %v3025 = vpack.c.b16 %v3016, %v3013
        %v3026 = vpack.c.b16 %v3017, %v3014
        %v3027 = vpack.c.b16 %v3021, %v3018
        %v3028 = vpack.c.b16 %v3022, %v3019
        %v3029 = vpack.c.b16 %v3023, %v3020
        %v3070 = vunpack.c.l.b16 %v2968
        %v3071 = vunpack.c.l.b16 %v2969
        %v3072 = vunpack.c.l.b16 %v2970
        %v3073 = vunpack.c.l.b16 %v2971
        %v3074 = vunpack.c.l.b16 %v2972
        %v3075 = vunpack.c.l.b16 %v2973
        %v3076 = vunpack.c.l.b16 %v2974
        %v3077 = vunpack.c.l.b16 %v2975
        %v3078 = vunpack.c.l.b16 %v2976
        %v3079 = vunpack.c.l.b16 %v2977
        %v3080 = vunpack.c.l.b16 %v2978
        %v3081 = vunpack.c.l.b16 %v2979
        %v3082 = vunpack.c.l.b16 %v2980
        %v3083 = vunpack.c.l.b16 %v2981
        %v3084 = vunpack.c.l.b16 %v2982
        %v3085 = vunpack.c.l.b16 %v2983
        %v3086 = vunpack.c.l.b16 %v2984
        %v3087 = vunpack.c.l.b16 %v2985
        %v3088 = vunpack.c.l.b16 %v2986
        %v3089 = vunpack.c.l.b16 %v2987
        %v3090 = vunpack.c.l.b16 %v2988
        %v3091 = vunpack.c.l.b16 %v2989
        %v3092 = vunpack.c.l.b16 %v2990
        %v3093 = vunpack.c.l.b16 %v2991
        %v3094 = vunpack.c.l.b16 %v2992
        %v3095 = vunpack.c.l.b16 %v2993
        %v3096 = vunpack.c.l.b16 %v2994
        %v3097 = vunpack.c.l.b16 %v2995
        %v3098 = vunpack.c.l.b16 %v2996
        %v3099 = vunpack.c.l.b16 %v2997
        %v3100 = vunpack.c.l.b16 %v2998
        %v3101 = vunpack.c.l.b16 %v2999
        %v3102 = vunpack.c.l.b16 %v3000
        %v3103 = vunpack.c.l.b16 %v3001
        %v3104 = vunpack.c.l.b16 %v3002
        %v3105 = vunpack.c.l.b16 %v3003
        %v3106 = vpack.c.b16 %v3071, %v3070
        %v3107 = vpack.c.b16 %v3073, %v3072
        %v3108 = vpack.c.b16 %v3075, %v3074
        %v3109 = vpack.c.b16 %v3077, %v3076
        %v3110 = vpack.c.b16 %v3079, %v3078
        %v3111 = vpack.c.b16 %v3081, %v3080
        %v3112 = vpack.c.b16 %v3083, %v3082
        %v3113 = vpack.c.b16 %v3085, %v3084
        %v3114 = vpack.c.b16 %v3087, %v3086
        %v3115 = vpack.c.b16 %v3089, %v3088
        %v3116 = vpack.c.b16 %v3091, %v3090
        %v3117 = vpack.c.b16 %v3093, %v3092
        %v3118 = vpack.c.b16 %v3095, %v3094
        %v3119 = vpack.c.b16 %v3097, %v3096
        %v3120 = vpack.c.b16 %v3099, %v3098
        %v3121 = vpack.c.b16 %v3101, %v3100
        %v3122 = vpack.c.b16 %v3103, %v3102
        %v3123 = vpack.c.b16 %v3105, %v3104
        %v3143 = vsel %vm1727, %v3026, 0
        %v3146 = vsel %vm1727, %v3029, 0
        %3148 = vmatpush.bf16.msra.mxu0 %v3113
        %3149 = vmatpush.bf16.msra.mxu0 %v3112
        %3150 = vmatpush.bf16.msra.mxu0 %v3111
        %3151 = vmatpush.bf16.msra.mxu0 %v3110
        %3152 = vmatpush.bf16.msra.mxu0 %v3109
        %3153 = vmatpush.bf16.msra.mxu0 %v3108
        %3154 = vmatpush.bf16.msra.mxu0 %v3107
        %3155 = vmatpush.bf16.msra.mxu0 %v3106
        %3156 = vmatmul.bf16.gmra.mxu0 %v3024
        %v3157 = vpop.f32.mrf.mxu0
        %v3158 = vadd.f32 0.0, %v3157
        %v3159 = vpop.f32.mrf.mxu0
        %v3160 = vadd.f32 0.0, %v3159
        %3161 = vmatmul.bf16.gmra.mxu0 %v3027
        %v3162 = vpop.f32.mrf.mxu0
        %v3163 = vadd.f32 0.0, %v3162
        %v3164 = vpop.f32.mrf.mxu0
        %v3165 = vadd.f32 0.0, %v3164
        %3166 = vdwg.mxu0
        %3167 = vmatpush.bf16.msra.mxu0 %v3121
        %3168 = vmatpush.bf16.msra.mxu0 %v3120
        %3169 = vmatpush.bf16.msra.mxu0 %v3119
        %3170 = vmatpush.bf16.msra.mxu0 %v3118
        %3171 = vmatpush.bf16.msra.mxu0 %v3117
        %3172 = vmatpush.bf16.msra.mxu0 %v3116
        %3173 = vmatpush.bf16.msra.mxu0 %v3115
        %3174 = vmatpush.bf16.msra.mxu0 %v3114
        %3175 = vmatmul.bf16.gmra.mxu0 %v3025
        %v3176 = vpop.f32.mrf.mxu0
        %v3177 = vadd.f32 %v3158, %v3176
        %v3178 = vpop.f32.mrf.mxu0
        %v3179 = vadd.f32 %v3160, %v3178
        %3180 = vmatmul.bf16.gmra.mxu0 %v3028
        %v3181 = vpop.f32.mrf.mxu0
        %v3182 = vadd.f32 %v3163, %v3181
        %v3183 = vpop.f32.mrf.mxu0
        %v3184 = vadd.f32 %v3165, %v3183
        %3185 = vdwg.mxu0
        %3186 = vmatpush.bf16.msra.mxu0 0
        %3187 = vmatpush.bf16.msra.mxu0 0
        %3188 = vmatpush.bf16.msra.mxu0 0
        %3189 = vmatpush.bf16.msra.mxu0 0
        %3190 = vmatpush.bf16.msra.mxu0 0
        %3191 = vmatpush.bf16.msra.mxu0 0
        %3192 = vmatpush.bf16.msra.mxu0 %v3123
        %3193 = vmatpush.bf16.msra.mxu0 %v3122
        %3194 = vmatmul.bf16.gmra.mxu0 %v3143
        %v3195 = vpop.f32.mrf.mxu0
        %v3196 = vadd.f32 %v3177, %v3195
        %v3197 = vpop.f32.mrf.mxu0
        %v3198 = vadd.f32 %v3179, %v3197
        %3199 = vmatmul.bf16.gmra.mxu0 %v3146
        %v3200 = vpop.f32.mrf.mxu0
        %v3201 = vadd.f32 %v3182, %v3200
        %v3202 = vpop.f32.mrf.mxu0
        %v3203 = vadd.f32 %v3184, %v3202
        %3204 = vdwg.mxu0
        %s3205 = scalar_lea.vmem [#allocation17], 96
        %v3206 = vld [vmem:[%s3205] sm:$0xff]
        %v3207 = vld [vmem:[%s3205 + $0x8] sm:$0xff]
        %v3208 = vld [vmem:[%s3205 + $0x10] sm:$0xff]
        %v3209 = vld [vmem:[%s3205 + $0x18] sm:$0xff]
        %3211 = vset.pattern.permute.xlu0 0
        %3212 = vperm.xlu0 %3211, %v3206
        %v3213 = vpop.permute.xlu0 %3212
        %3216 = vset.pattern.permute.xlu0 0
        %3217 = vperm.xlu0 %3216, %v3207
        %v3218 = vpop.permute.xlu0 %3217
        %3221 = vset.pattern.permute.xlu0 0
        %3222 = vperm.xlu0 %3221, %v3208
        %v3223 = vpop.permute.xlu0 %3222
        %3226 = vset.pattern.permute.xlu0 0
        %3227 = vperm.xlu0 %3226, %v3209
        %v3228 = vpop.permute.xlu0 %3227
        %v3230 = vmul.f32 %v3196, %v3213
        %v3231 = vmul.f32 %v3198, %v3218
        %v3232 = vmul.f32 %v3201, %v3223
        %v3233 = vmul.f32 %v3203, %v3228
        %s3234 = scalar_lea.vmem [#allocation19], 96
        %v3235 = vld [vmem:[%s3234] sm:$0xff]
        %v3236 = vld [vmem:[%s3234 + $0x8] sm:$0xff]
        %v3237 = vld [vmem:[%s3234 + $0x10] sm:$0xff]
        %v3238 = vld [vmem:[%s3234 + $0x18] sm:$0xff]
        %3240 = vset.pattern.permute.xlu0 0
        %3241 = vperm.xlu0 %3240, %v3235
        %v3242 = vpop.permute.xlu0 %3241
        %3245 = vset.pattern.permute.xlu0 0
        %3246 = vperm.xlu0 %3245, %v3236
        %v3247 = vpop.permute.xlu0 %3246
        %3250 = vset.pattern.permute.xlu0 0
        %3251 = vperm.xlu0 %3250, %v3237
        %v3252 = vpop.permute.xlu0 %3251
        %3255 = vset.pattern.permute.xlu0 0
        %3256 = vperm.xlu0 %3255, %v3238
        %v3257 = vpop.permute.xlu0 %3256
        %v3259 = vadd.f32 %v3230, %v3242
        %v3260 = vadd.f32 %v3231, %v3247
        %v3261 = vadd.f32 %v3232, %v3252
        %v3262 = vadd.f32 %v3233, %v3257
        %v3263 = vmax.f32 %v3259, 0.0
        %v3264 = vmax.f32 %v3260, 0.0
        %v3265 = vmax.f32 %v3261, 0.0
        %v3266 = vmax.f32 %v3262, 0.0
        %v3267 = vld [vmem:[#allocation23 + $0x3] sm:$0x1]
        %vm3268 = vcmp.gt.f32.partialorder %v3267, 0.0
        %v3269 = vsel %vm3268, 1, 0
        %v3270 = vperm.slane %v3269, 0
        %vm3271 = vcmp.eq.s32.totalorder %v3270, 1
        %v3272 = vsel %vm3271, %v3263, 0.0
        %v3273 = vsel %vm3271, %v3264, 0.0
        %v3274 = vsel %vm3271, %v3265, 0.0
        %v3275 = vsel %vm3271, %v3266, 0.0
        %v3276 = vpack.c.bf16 %v3272, %v3272
        %v3277 = vpack.c.bf16 %v3273, %v3273
        %v3278 = vpack.c.bf16 %v3274, %v3274
        %v3279 = vpack.c.bf16 %v3275, %v3275
        %3280 = vst.msk [vmem:[#allocation9 + $0x4] sm:$0xf] %vm2856, %v3276
        %3281 = vst.msk [vmem:[#allocation9 + $0xc] sm:$0xf] %vm2856, %v3277
        %3282 = vst.msk [vmem:[#allocation9 + $0x14] sm:$0xf] %vm2856, %v3278
        %3283 = vst.msk [vmem:[#allocation9 + $0x1c] sm:$0xf] %vm2856, %v3279
        %v3284 = vld [vmem:[#allocation9] sm:$0xff]
        %v3285 = vld [vmem:[#allocation9 + $0x8] sm:$0xff]
        %v3286 = vld [vmem:[#allocation9 + $0x10] sm:$0xff]
        %v3287 = vld [vmem:[#allocation9 + $0x18] sm:$0xff]
        %v3292 = vrot.slane %v3284, 4
        %v3293 = vrot.slane %v3285, 4
        %v3294 = vrot.slane %v3286, 4
        %v3295 = vrot.slane %v3287, 4
        %v3300 = vunpack.c.l.bf16 %v3292
        %v3301 = vunpack.c.l.bf16 %v3293
        %v3302 = vunpack.c.l.bf16 %v3294
        %v3303 = vunpack.c.l.bf16 %v3295
        %3304 = vrot.lane.b32.xlu0 %v3284, 127
        %v3305 = vpop.permute.xlu0 %3304
        %3306 = vrot.lane.b32.xlu0 %v3285, 127
        %v3307 = vpop.permute.xlu0 %3306
        %3308 = vrot.lane.b32.xlu0 %v3286, 127
        %v3309 = vpop.permute.xlu0 %3308
        %3310 = vrot.lane.b32.xlu0 %v3287, 127
        %v3311 = vpop.permute.xlu0 %3310
        %v3312 = vrot.slane %v3305, 4
        %v3313 = vrot.slane %v3307, 4
        %v3314 = vrot.slane %v3309, 4
        %v3315 = vrot.slane %v3311, 4
        %v3320 = vunpack.c.l.bf16 %v3312
        %v3321 = vunpack.c.l.bf16 %v3313
        %v3322 = vunpack.c.l.bf16 %v3314
        %v3323 = vunpack.c.l.bf16 %v3315
        %v3324 = vmax.f32 %v3300, %v3320
        %v3325 = vmax.f32 %v3301, %v3321
        %v3326 = vmax.f32 %v3302, %v3322
        %v3327 = vmax.f32 %v3303, %v3323
        %v3328 = vpack.c.bf16 %v3324, %v3324
        %v3329 = vpack.c.bf16 %v3325, %v3325
        %v3330 = vpack.c.bf16 %v3326, %v3326
        %v3331 = vpack.c.bf16 %v3327, %v3327
        %3332 = vrot.lane.b32.xlu0 %v3284, 124
        %v3333 = vpop.permute.xlu0 %3332
        %3334 = vrot.lane.b32.xlu0 %v3285, 124
        %v3335 = vpop.permute.xlu0 %3334
        %3336 = vrot.lane.b32.xlu0 %v3286, 124
        %v3337 = vpop.permute.xlu0 %3336
        %3338 = vrot.lane.b32.xlu0 %v3287, 124
        %v3339 = vpop.permute.xlu0 %3338
        %v3340 = vrot.slane %v3333, 4
        %v3341 = vrot.slane %v3335, 4
        %v3342 = vrot.slane %v3337, 4
        %v3343 = vrot.slane %v3339, 4
        %v3348 = vunpack.c.l.bf16 %v3340
        %v3349 = vunpack.c.l.bf16 %v3341
        %v3350 = vunpack.c.l.bf16 %v3342
        %v3351 = vunpack.c.l.bf16 %v3343
        %3352 = vrot.lane.b32.xlu0 %v3284, 123
        %v3353 = vpop.permute.xlu0 %3352
        %3354 = vrot.lane.b32.xlu0 %v3285, 123
        %v3355 = vpop.permute.xlu0 %3354
        %3356 = vrot.lane.b32.xlu0 %v3286, 123
        %v3357 = vpop.permute.xlu0 %3356
        %3358 = vrot.lane.b32.xlu0 %v3287, 123
        %v3359 = vpop.permute.xlu0 %3358
        %v3360 = vrot.slane %v3353, 4
        %v3361 = vrot.slane %v3355, 4
        %v3362 = vrot.slane %v3357, 4
        %v3363 = vrot.slane %v3359, 4
        %v3368 = vunpack.c.l.bf16 %v3360
        %v3369 = vunpack.c.l.bf16 %v3361
        %v3370 = vunpack.c.l.bf16 %v3362
        %v3371 = vunpack.c.l.bf16 %v3363
        %v3372 = vmax.f32 %v3348, %v3368
        %v3373 = vmax.f32 %v3349, %v3369
        %v3374 = vmax.f32 %v3350, %v3370
        %v3375 = vmax.f32 %v3351, %v3371
        %v3376 = vpack.c.bf16 %v3372, %v3372
        %v3377 = vpack.c.bf16 %v3373, %v3373
        %v3378 = vpack.c.bf16 %v3374, %v3374
        %v3379 = vpack.c.bf16 %v3375, %v3375
        %v3380 = vunpack.c.l.bf16 %v3328
        %v3381 = vunpack.c.l.bf16 %v3329
        %v3382 = vunpack.c.l.bf16 %v3330
        %v3383 = vunpack.c.l.bf16 %v3331
        %v3384 = vunpack.c.l.bf16 %v3376
        %v3385 = vunpack.c.l.bf16 %v3377
        %v3386 = vunpack.c.l.bf16 %v3378
        %v3387 = vunpack.c.l.bf16 %v3379
        %v3388 = vmax.f32 %v3380, %v3384
        %v3389 = vmax.f32 %v3381, %v3385
        %v3390 = vmax.f32 %v3382, %v3386
        %v3391 = vmax.f32 %v3383, %v3387
        %v3392 = vpack.c.bf16 %v3389, %v3388
        %v3393 = vpack.c.bf16 %v3391, %v3390
        %v3394 = vld [vmem:[#allocation28] sm:$0xff]
        %v3395 = vld [vmem:[#allocation28 + $0x8] sm:$0xff]
        %vm3396 = vcmask 130048
        %v3398 = vsel %vm3396, %v3392, 0
        %v3401 = vsel %vm3396, %v3393, 0
        %3403 = vmatpush.msra.mxu0 0.0
        %3404 = vmatpush.msra.mxu0 0.0
        %3405 = vmatpush.msra.mxu0 0.0
        %3406 = vmatpush.msra.mxu0 0.0
        %3407 = vmatpush.msra.mxu0 0.0
        %3408 = vmatpush.msra.mxu0 0.0
        %3409 = vmatpush.msra.mxu0 0.0
        %3410 = vmatpush.msra.mxu0 0.0
        %3411 = vmatpush.msra.mxu0 0.0
        %3412 = vmatpush.msra.mxu0 0.0
        %3413 = vmatpush.msra.mxu0 0.0
        %3414 = vmatpush.msra.mxu0 0.0
        %3415 = vmatpush.msra.mxu0 0.0
        %3416 = vmatpush.msra.mxu0 0.0
        %3417 = vmatpush.msra.mxu0 %v3395
        %3418 = vmatpush.msra.mxu0 %v3394
        %3419 = vmatmul.bf16.gmra.mxu0 %v3398
        %v3420 = vpop.f32.mrf.mxu0
        %v3421 = vadd.f32 0.0, %v3420
        %v3422 = vpop.f32.mrf.mxu0
        %v3423 = vadd.f32 0.0, %v3422
        %3424 = vmatmul.bf16.gmra.mxu0 %v3401
        %v3425 = vpop.f32.mrf.mxu0
        %v3426 = vadd.f32 0.0, %v3425
        %v3427 = vpop.f32.mrf.mxu0
        %v3428 = vadd.f32 0.0, %v3427
        %3429 = vdwg.mxu0
        %v3430 = vld [vmem:[#allocation29] sm:$0xff]
        %v3431 = vld [vmem:[#allocation29 + $0x8] sm:$0x1]
        %vm3432 = vcmask 72704
        %v3434 = vsel %vm3432, %v3421, 0
        %v3437 = vsel %vm3432, %v3423, 0
        %v3440 = vsel %vm3432, %v3426, 0
        %v3443 = vsel %vm3432, %v3428, 0
        %vm3445 = vcmask 1040384
        %v3447 = vsel %vm3445, %v3431, 0
        %3449 = vmatpush.msra.mxu0 0.0
        %3450 = vmatpush.msra.mxu0 0.0
        %3451 = vmatpush.msra.mxu0 0.0
        %3452 = vmatpush.msra.mxu0 0.0
        %3453 = vmatpush.msra.mxu0 0.0
        %3454 = vmatpush.msra.mxu0 0.0
        %3455 = vmatpush.msra.mxu0 0.0
        %3456 = vmatpush.msra.mxu0 0.0
        %3457 = vmatpush.msra.mxu0 0.0
        %3458 = vmatpush.msra.mxu0 0.0
        %3459 = vmatpush.msra.mxu0 0.0
        %3460 = vmatpush.msra.mxu0 0.0
        %3461 = vmatpush.msra.mxu0 0.0
        %3462 = vmatpush.msra.mxu0 0.0
        %3463 = vmatpush.msra.mxu0 %v3447
        %3464 = vmatpush.msra.mxu0 %v3430
        %3465 = vmatmul.f32.gmra.mxu0 %v3434
        %v3466 = vpop.f32.mrf.mxu0
        %v3467 = vadd.f32 0.0, %v3466
        %3468 = vmatmul.f32.gmra.mxu0 %v3437
        %v3469 = vpop.f32.mrf.mxu0
        %v3470 = vadd.f32 0.0, %v3469
        %3471 = vmatmul.f32.gmra.mxu0 %v3440
        %v3472 = vpop.f32.mrf.mxu0
        %v3473 = vadd.f32 0.0, %v3472
        %3474 = vmatmul.f32.gmra.mxu0 %v3443
        %v3475 = vpop.f32.mrf.mxu0
        %v3476 = vadd.f32 0.0, %v3475
        %3477 = vdwg.mxu0
        %v3478 = vpack.c.bf16 %v3467, %v3467
        %v3479 = vpack.c.bf16 %v3470, %v3470
        %v3480 = vpack.c.bf16 %v3473, %v3473
        %v3481 = vpack.c.bf16 %v3476, %v3476
        %3482 = vst.msk [vmem:[#allocation10 + $0x4] sm:$0xf] %vm2856, %v3478
        %3483 = vst.msk [vmem:[#allocation10 + $0xc] sm:$0xf] %vm2856, %v3479
        %3484 = vst.msk [vmem:[#allocation10 + $0x14] sm:$0xf] %vm2856, %v3480
        %3485 = vst.msk [vmem:[#allocation10 + $0x1c] sm:$0xf] %vm2856, %v3481
        %v3486 = vld [vmem:[#allocation10] sm:$0xff]
        %v3487 = vld [vmem:[#allocation10 + $0x8] sm:$0xff]
        %v3488 = vld [vmem:[#allocation10 + $0x10] sm:$0xff]
        %v3489 = vld [vmem:[#allocation10 + $0x18] sm:$0xff]
        %3494 = vrot.lane.b32.xlu0 %v3486, 5
        %v3495 = vpop.permute.xlu0 %3494
        %3496 = vrot.lane.b32.xlu0 %v3487, 5
        %v3497 = vpop.permute.xlu0 %3496
        %3498 = vrot.lane.b32.xlu0 %v3488, 5
        %v3499 = vpop.permute.xlu0 %3498
        %3500 = vrot.lane.b32.xlu0 %v3489, 5
        %v3501 = vpop.permute.xlu0 %3500
        %v3502 = vrot.slane %v3495, 4
        %v3503 = vrot.slane %v3497, 4
        %v3504 = vrot.slane %v3499, 4
        %v3505 = vrot.slane %v3501, 4
        %v3506 = vsel %vm2480, %v3495, %v3502
        %v3507 = vsel %vm2480, %v3497, %v3503
        %v3508 = vsel %vm2480, %v3499, %v3504
        %v3509 = vsel %vm2480, %v3501, %v3505
        %3514 = vst.msk [vmem:[#allocation14] sm:$0xf] %vm2856, %v3506
        %3515 = vst.msk [vmem:[#allocation14 + $0xc] sm:$0xf] %vm2856, %v3507
        %3516 = vst.msk [vmem:[#allocation14 + $0x18] sm:$0xf] %vm2856, %v3508
        %3517 = vst.msk [vmem:[#allocation14 + $0x24] sm:$0xf] %vm2856, %v3509
        %3518 = vrot.lane.b32.xlu0 %v3486, 4
        %v3519 = vpop.permute.xlu0 %3518
        %3520 = vrot.lane.b32.xlu0 %v3487, 4
        %v3521 = vpop.permute.xlu0 %3520
        %3522 = vrot.lane.b32.xlu0 %v3488, 4
        %v3523 = vpop.permute.xlu0 %3522
        %3524 = vrot.lane.b32.xlu0 %v3489, 4
        %v3525 = vpop.permute.xlu0 %3524
        %v3526 = vrot.slane %v3519, 4
        %v3527 = vrot.slane %v3521, 4
        %v3528 = vrot.slane %v3523, 4
        %v3529 = vrot.slane %v3525, 4
        %v3530 = vsel %vm2881, %v3519, %v3526
        %v3531 = vsel %vm2881, %v3521, %v3527
        %v3532 = vsel %vm2881, %v3523, %v3528
        %v3533 = vsel %vm2881, %v3525, %v3529
        %3538 = vst.msk [vmem:[#allocation14 + $0x30] sm:$0xf] %vm2856, %v3530
        %3539 = vst.msk [vmem:[#allocation14 + $0x3c] sm:$0xf] %vm2856, %v3531
        %3540 = vst.msk [vmem:[#allocation14 + $0x48] sm:$0xf] %vm2856, %v3532
        %3541 = vst.msk [vmem:[#allocation14 + $0x54] sm:$0xf] %vm2856, %v3533
        %3542 = vrot.lane.b32.xlu0 %v3486, 3
        %v3543 = vpop.permute.xlu0 %3542
        %3544 = vrot.lane.b32.xlu0 %v3487, 3
        %v3545 = vpop.permute.xlu0 %3544
        %3546 = vrot.lane.b32.xlu0 %v3488, 3
        %v3547 = vpop.permute.xlu0 %3546
        %3548 = vrot.lane.b32.xlu0 %v3489, 3
        %v3549 = vpop.permute.xlu0 %3548
        %v3550 = vrot.slane %v3543, 4
        %v3551 = vrot.slane %v3545, 4
        %v3552 = vrot.slane %v3547, 4
        %v3553 = vrot.slane %v3549, 4
        %v3554 = vsel %vm2894, %v3543, %v3550
        %v3555 = vsel %vm2894, %v3545, %v3551
        %v3556 = vsel %vm2894, %v3547, %v3552
        %v3557 = vsel %vm2894, %v3549, %v3553
        %3562 = vst.msk [vmem:[#allocation14 + $0x60] sm:$0xf] %vm2856, %v3554
        %3563 = vst.msk [vmem:[#allocation14 + $0x6c] sm:$0xf] %vm2856, %v3555
        %3564 = vst.msk [vmem:[#allocation14 + $0x78] sm:$0xf] %vm2856, %v3556
        %3565 = vst.msk [vmem:[#allocation14 + $0x84] sm:$0xf] %vm2856, %v3557
        %3566 = vrot.lane.b32.xlu0 %v3486, 1
        %v3567 = vpop.permute.xlu0 %3566
        %3568 = vrot.lane.b32.xlu0 %v3487, 1
        %v3569 = vpop.permute.xlu0 %3568
        %3570 = vrot.lane.b32.xlu0 %v3488, 1
        %v3571 = vpop.permute.xlu0 %3570
        %3572 = vrot.lane.b32.xlu0 %v3489, 1
        %v3573 = vpop.permute.xlu0 %3572
        %v3574 = vrot.slane %v3567, 4
        %v3575 = vrot.slane %v3569, 4
        %v3576 = vrot.slane %v3571, 4
        %v3577 = vrot.slane %v3573, 4
        %v3578 = vsel %vm1240, %v3567, %v3574
        %v3579 = vsel %vm1240, %v3569, %v3575
        %v3580 = vsel %vm1240, %v3571, %v3576
        %v3581 = vsel %vm1240, %v3573, %v3577
        %3586 = vst.msk [vmem:[#allocation14 + $0x90] sm:$0xf] %vm2856, %v3578
        %3587 = vst.msk [vmem:[#allocation14 + $0x9c] sm:$0xf] %vm2856, %v3579
        %3588 = vst.msk [vmem:[#allocation14 + $0xa8] sm:$0xf] %vm2856, %v3580
        %3589 = vst.msk [vmem:[#allocation14 + $0xb4] sm:$0xf] %vm2856, %v3581
        %v3590 = vrot.slane %v3486, 4
        %v3591 = vrot.slane %v3487, 4
        %v3592 = vrot.slane %v3488, 4
        %v3593 = vrot.slane %v3489, 4
        %3598 = vst.msk [vmem:[#allocation14 + $0xc0] sm:$0xf] %vm2856, %v3590
        %3599 = vst.msk [vmem:[#allocation14 + $0xcc] sm:$0xf] %vm2856, %v3591
        %3600 = vst.msk [vmem:[#allocation14 + $0xd8] sm:$0xf] %vm2856, %v3592
        %3601 = vst.msk [vmem:[#allocation14 + $0xe4] sm:$0xf] %vm2856, %v3593
        %3602 = vrot.lane.b32.xlu0 %v3486, 127
        %v3603 = vpop.permute.xlu0 %3602
        %3604 = vrot.lane.b32.xlu0 %v3487, 127
        %v3605 = vpop.permute.xlu0 %3604
        %3606 = vrot.lane.b32.xlu0 %v3488, 127
        %v3607 = vpop.permute.xlu0 %3606
        %3608 = vrot.lane.b32.xlu0 %v3489, 127
        %v3609 = vpop.permute.xlu0 %3608
        %v3610 = vrot.slane %v3603, 4
        %v3611 = vrot.slane %v3605, 4
        %v3612 = vrot.slane %v3607, 4
        %v3613 = vrot.slane %v3609, 4
        %3618 = vst.msk [vmem:[#allocation14 + $0xf0] sm:$0xf] %vm2856, %v3610
        %3619 = vst.msk [vmem:[#allocation14 + $0xfc] sm:$0xf] %vm2856, %v3611
        %3620 = vst.msk [vmem:[#allocation14 + $0x108] sm:$0xf] %vm2856, %v3612
        %3621 = vst.msk [vmem:[#allocation14 + $0x114] sm:$0xf] %vm2856, %v3613
        %3622 = vrot.lane.b32.xlu0 %v3486, 125
        %v3623 = vpop.permute.xlu0 %3622
        %3624 = vrot.lane.b32.xlu0 %v3487, 125
        %v3625 = vpop.permute.xlu0 %3624
        %3626 = vrot.lane.b32.xlu0 %v3488, 125
        %v3627 = vpop.permute.xlu0 %3626
        %3628 = vrot.lane.b32.xlu0 %v3489, 125
        %v3629 = vpop.permute.xlu0 %3628
        %v3630 = vrot.slane %v3623, 4
        %v3631 = vrot.slane %v3625, 4
        %v3632 = vrot.slane %v3627, 4
        %v3633 = vrot.slane %v3629, 4
        %3638 = vst.msk [vmem:[#allocation14 + $0x120] sm:$0xf] %vm2856, %v3630
        %3639 = vst.msk [vmem:[#allocation14 + $0x12c] sm:$0xf] %vm2856, %v3631
        %3640 = vst.msk [vmem:[#allocation14 + $0x138] sm:$0xf] %vm2856, %v3632
        %3641 = vst.msk [vmem:[#allocation14 + $0x144] sm:$0xf] %vm2856, %v3633
        %3642 = vrot.lane.b32.xlu0 %v3486, 124
        %v3643 = vpop.permute.xlu0 %3642
        %3644 = vrot.lane.b32.xlu0 %v3487, 124
        %v3645 = vpop.permute.xlu0 %3644
        %3646 = vrot.lane.b32.xlu0 %v3488, 124
        %v3647 = vpop.permute.xlu0 %3646
        %3648 = vrot.lane.b32.xlu0 %v3489, 124
        %v3649 = vpop.permute.xlu0 %3648
        %v3650 = vrot.slane %v3643, 4
        %v3651 = vrot.slane %v3645, 4
        %v3652 = vrot.slane %v3647, 4
        %v3653 = vrot.slane %v3649, 4
        %3658 = vst.msk [vmem:[#allocation14 + $0x150] sm:$0xf] %vm2856, %v3650
        %3659 = vst.msk [vmem:[#allocation14 + $0x15c] sm:$0xf] %vm2856, %v3651
        %3660 = vst.msk [vmem:[#allocation14 + $0x168] sm:$0xf] %vm2856, %v3652
        %3661 = vst.msk [vmem:[#allocation14 + $0x174] sm:$0xf] %vm2856, %v3653
        %3662 = vrot.lane.b32.xlu0 %v3486, 123
        %v3663 = vpop.permute.xlu0 %3662
        %3664 = vrot.lane.b32.xlu0 %v3487, 123
        %v3665 = vpop.permute.xlu0 %3664
        %3666 = vrot.lane.b32.xlu0 %v3488, 123
        %v3667 = vpop.permute.xlu0 %3666
        %3668 = vrot.lane.b32.xlu0 %v3489, 123
        %v3669 = vpop.permute.xlu0 %3668
        %v3670 = vrot.slane %v3663, 4
        %v3671 = vrot.slane %v3665, 4
        %v3672 = vrot.slane %v3667, 4
        %v3673 = vrot.slane %v3669, 4
        %3678 = vst.msk [vmem:[#allocation14 + $0x180] sm:$0xf] %vm2856, %v3670
        %3679 = vst.msk [vmem:[#allocation14 + $0x18c] sm:$0xf] %vm2856, %v3671
        %3680 = vst.msk [vmem:[#allocation14 + $0x198] sm:$0xf] %vm2856, %v3672
        %3681 = vst.msk [vmem:[#allocation14 + $0x1a4] sm:$0xf] %vm2856, %v3673
        %s3682 = scalar_lea.vmem [#allocation15], 192
        %v3683 = vld [vmem:[%s3682] sm:$0xff]
        %v3684 = vld [vmem:[%s3682 + $0x8] sm:$0xf]
        %v3685 = vld [vmem:[%s3682 + $0xc] sm:$0xff]
        %v3686 = vld [vmem:[%s3682 + $0x14] sm:$0xf]
        %v3687 = vld [vmem:[%s3682 + $0x18] sm:$0xff]
        %v3688 = vld [vmem:[%s3682 + $0x20] sm:$0xf]
        %v3689 = vld [vmem:[%s3682 + $0x24] sm:$0xff]
        %v3690 = vld [vmem:[%s3682 + $0x2c] sm:$0xf]
        %v3691 = vld [vmem:[#allocation14] sm:$0xf]
        %v3692 = vld [vmem:[#allocation14 + $0xc] sm:$0xf]
        %v3693 = vld [vmem:[#allocation14 + $0x18] sm:$0xf]
        %v3694 = vld [vmem:[#allocation14 + $0x24] sm:$0xf]
        %v3695 = vld [vmem:[#allocation14 + $0x30] sm:$0xf]
        %v3696 = vld [vmem:[#allocation14 + $0x3c] sm:$0xf]
        %v3697 = vld [vmem:[#allocation14 + $0x48] sm:$0xf]
        %v3698 = vld [vmem:[#allocation14 + $0x54] sm:$0xf]
        %v3699 = vld [vmem:[#allocation14 + $0x60] sm:$0xf]
        %v3700 = vld [vmem:[#allocation14 + $0x6c] sm:$0xf]
        %v3701 = vld [vmem:[#allocation14 + $0x78] sm:$0xf]
        %v3702 = vld [vmem:[#allocation14 + $0x84] sm:$0xf]
        %v3703 = vld [vmem:[#allocation14 + $0x90] sm:$0xf]
        %v3704 = vld [vmem:[#allocation14 + $0x9c] sm:$0xf]
        %v3705 = vld [vmem:[#allocation14 + $0xa8] sm:$0xf]
        %v3706 = vld [vmem:[#allocation14 + $0xb4] sm:$0xf]
        %v3707 = vld [vmem:[#allocation14 + $0xc0] sm:$0xf]
        %v3708 = vld [vmem:[#allocation14 + $0xcc] sm:$0xf]
        %v3709 = vld [vmem:[#allocation14 + $0xd8] sm:$0xf]
        %v3710 = vld [vmem:[#allocation14 + $0xe4] sm:$0xf]
        %v3711 = vld [vmem:[#allocation14 + $0xf0] sm:$0xf]
        %v3712 = vld [vmem:[#allocation14 + $0xfc] sm:$0xf]
        %v3713 = vld [vmem:[#allocation14 + $0x108] sm:$0xf]
        %v3714 = vld [vmem:[#allocation14 + $0x114] sm:$0xf]
        %v3715 = vld [vmem:[#allocation14 + $0x120] sm:$0xf]
        %v3716 = vld [vmem:[#allocation14 + $0x12c] sm:$0xf]
        %v3717 = vld [vmem:[#allocation14 + $0x138] sm:$0xf]
        %v3718 = vld [vmem:[#allocation14 + $0x144] sm:$0xf]
        %v3719 = vld [vmem:[#allocation14 + $0x150] sm:$0xf]
        %v3720 = vld [vmem:[#allocation14 + $0x15c] sm:$0xf]
        %v3721 = vld [vmem:[#allocation14 + $0x168] sm:$0xf]
        %v3722 = vld [vmem:[#allocation14 + $0x174] sm:$0xf]
        %v3723 = vld [vmem:[#allocation14 + $0x180] sm:$0xf]
        %v3724 = vld [vmem:[#allocation14 + $0x18c] sm:$0xf]
        %v3725 = vld [vmem:[#allocation14 + $0x198] sm:$0xf]
        %v3726 = vld [vmem:[#allocation14 + $0x1a4] sm:$0xf]
        %v3727 = vld [vmem:[#allocation9] sm:$0xff]
        %v3728 = vld [vmem:[#allocation9 + $0x8] sm:$0xff]
        %v3729 = vld [vmem:[#allocation9 + $0x10] sm:$0xff]
        %v3730 = vld [vmem:[#allocation9 + $0x18] sm:$0xff]
        %3735 = vrot.lane.b32.xlu0 %v3727, 5
        %v3736 = vpop.permute.xlu0 %3735
        %3737 = vrot.lane.b32.xlu0 %v3728, 5
        %v3738 = vpop.permute.xlu0 %3737
        %3739 = vrot.lane.b32.xlu0 %v3729, 5
        %v3740 = vpop.permute.xlu0 %3739
        %3741 = vrot.lane.b32.xlu0 %v3730, 5
        %v3742 = vpop.permute.xlu0 %3741
        %v3743 = vrot.slane %v3736, 4
        %v3744 = vrot.slane %v3738, 4
        %v3745 = vrot.slane %v3740, 4
        %v3746 = vrot.slane %v3742, 4
        %v3747 = vsel %vm2480, %v3736, %v3743
        %v3748 = vsel %vm2480, %v3738, %v3744
        %v3749 = vsel %vm2480, %v3740, %v3745
        %v3750 = vsel %vm2480, %v3742, %v3746
        %3755 = vst.msk [vmem:[#allocation14] sm:$0xf] %vm2856, %v3747
        %3756 = vst.msk [vmem:[#allocation14 + $0xc] sm:$0xf] %vm2856, %v3748
        %3757 = vst.msk [vmem:[#allocation14 + $0x18] sm:$0xf] %vm2856, %v3749
        %3758 = vst.msk [vmem:[#allocation14 + $0x24] sm:$0xf] %vm2856, %v3750
        %3759 = vrot.lane.b32.xlu0 %v3727, 4
        %v3760 = vpop.permute.xlu0 %3759
        %3761 = vrot.lane.b32.xlu0 %v3728, 4
        %v3762 = vpop.permute.xlu0 %3761
        %3763 = vrot.lane.b32.xlu0 %v3729, 4
        %v3764 = vpop.permute.xlu0 %3763
        %3765 = vrot.lane.b32.xlu0 %v3730, 4
        %v3766 = vpop.permute.xlu0 %3765
        %v3767 = vrot.slane %v3760, 4
        %v3768 = vrot.slane %v3762, 4
        %v3769 = vrot.slane %v3764, 4
        %v3770 = vrot.slane %v3766, 4
        %v3771 = vsel %vm2881, %v3760, %v3767
        %v3772 = vsel %vm2881, %v3762, %v3768
        %v3773 = vsel %vm2881, %v3764, %v3769
        %v3774 = vsel %vm2881, %v3766, %v3770
        %3779 = vst.msk [vmem:[#allocation14 + $0x30] sm:$0xf] %vm2856, %v3771
        %3780 = vst.msk [vmem:[#allocation14 + $0x3c] sm:$0xf] %vm2856, %v3772
        %3781 = vst.msk [vmem:[#allocation14 + $0x48] sm:$0xf] %vm2856, %v3773
        %3782 = vst.msk [vmem:[#allocation14 + $0x54] sm:$0xf] %vm2856, %v3774
        %3783 = vrot.lane.b32.xlu0 %v3727, 3
        %v3784 = vpop.permute.xlu0 %3783
        %3785 = vrot.lane.b32.xlu0 %v3728, 3
        %v3786 = vpop.permute.xlu0 %3785
        %3787 = vrot.lane.b32.xlu0 %v3729, 3
        %v3788 = vpop.permute.xlu0 %3787
        %3789 = vrot.lane.b32.xlu0 %v3730, 3
        %v3790 = vpop.permute.xlu0 %3789
        %v3791 = vrot.slane %v3784, 4
        %v3792 = vrot.slane %v3786, 4
        %v3793 = vrot.slane %v3788, 4
        %v3794 = vrot.slane %v3790, 4
        %v3795 = vsel %vm2894, %v3784, %v3791
        %v3796 = vsel %vm2894, %v3786, %v3792
        %v3797 = vsel %vm2894, %v3788, %v3793
        %v3798 = vsel %vm2894, %v3790, %v3794
        %3803 = vst.msk [vmem:[#allocation14 + $0x60] sm:$0xf] %vm2856, %v3795
        %3804 = vst.msk [vmem:[#allocation14 + $0x6c] sm:$0xf] %vm2856, %v3796
        %3805 = vst.msk [vmem:[#allocation14 + $0x78] sm:$0xf] %vm2856, %v3797
        %3806 = vst.msk [vmem:[#allocation14 + $0x84] sm:$0xf] %vm2856, %v3798
        %3807 = vrot.lane.b32.xlu0 %v3727, 1
        %v3808 = vpop.permute.xlu0 %3807
        %3809 = vrot.lane.b32.xlu0 %v3728, 1
        %v3810 = vpop.permute.xlu0 %3809
        %3811 = vrot.lane.b32.xlu0 %v3729, 1
        %v3812 = vpop.permute.xlu0 %3811
        %3813 = vrot.lane.b32.xlu0 %v3730, 1
        %v3814 = vpop.permute.xlu0 %3813
        %v3815 = vrot.slane %v3808, 4
        %v3816 = vrot.slane %v3810, 4
        %v3817 = vrot.slane %v3812, 4
        %v3818 = vrot.slane %v3814, 4
        %v3819 = vsel %vm1240, %v3808, %v3815
        %v3820 = vsel %vm1240, %v3810, %v3816
        %v3821 = vsel %vm1240, %v3812, %v3817
        %v3822 = vsel %vm1240, %v3814, %v3818
        %3827 = vst.msk [vmem:[#allocation14 + $0x90] sm:$0xf] %vm2856, %v3819
        %3828 = vst.msk [vmem:[#allocation14 + $0x9c] sm:$0xf] %vm2856, %v3820
        %3829 = vst.msk [vmem:[#allocation14 + $0xa8] sm:$0xf] %vm2856, %v3821
        %3830 = vst.msk [vmem:[#allocation14 + $0xb4] sm:$0xf] %vm2856, %v3822
        %v3831 = vrot.slane %v3727, 4
        %v3832 = vrot.slane %v3728, 4
        %v3833 = vrot.slane %v3729, 4
        %v3834 = vrot.slane %v3730, 4
        %3839 = vst.msk [vmem:[#allocation14 + $0xc0] sm:$0xf] %vm2856, %v3831
        %3840 = vst.msk [vmem:[#allocation14 + $0xcc] sm:$0xf] %vm2856, %v3832
        %3841 = vst.msk [vmem:[#allocation14 + $0xd8] sm:$0xf] %vm2856, %v3833
        %3842 = vst.msk [vmem:[#allocation14 + $0xe4] sm:$0xf] %vm2856, %v3834
        %3843 = vrot.lane.b32.xlu0 %v3727, 127
        %v3844 = vpop.permute.xlu0 %3843
        %3845 = vrot.lane.b32.xlu0 %v3728, 127
        %v3846 = vpop.permute.xlu0 %3845
        %3847 = vrot.lane.b32.xlu0 %v3729, 127
        %v3848 = vpop.permute.xlu0 %3847
        %3849 = vrot.lane.b32.xlu0 %v3730, 127
        %v3850 = vpop.permute.xlu0 %3849
        %v3851 = vrot.slane %v3844, 4
        %v3852 = vrot.slane %v3846, 4
        %v3853 = vrot.slane %v3848, 4
        %v3854 = vrot.slane %v3850, 4
        %3859 = vst.msk [vmem:[#allocation14 + $0xf0] sm:$0xf] %vm2856, %v3851
        %3860 = vst.msk [vmem:[#allocation14 + $0xfc] sm:$0xf] %vm2856, %v3852
        %3861 = vst.msk [vmem:[#allocation14 + $0x108] sm:$0xf] %vm2856, %v3853
        %3862 = vst.msk [vmem:[#allocation14 + $0x114] sm:$0xf] %vm2856, %v3854
        %3863 = vrot.lane.b32.xlu0 %v3727, 125
        %v3864 = vpop.permute.xlu0 %3863
        %3865 = vrot.lane.b32.xlu0 %v3728, 125
        %v3866 = vpop.permute.xlu0 %3865
        %3867 = vrot.lane.b32.xlu0 %v3729, 125
        %v3868 = vpop.permute.xlu0 %3867
        %3869 = vrot.lane.b32.xlu0 %v3730, 125
        %v3870 = vpop.permute.xlu0 %3869
        %v3871 = vrot.slane %v3864, 4
        %v3872 = vrot.slane %v3866, 4
        %v3873 = vrot.slane %v3868, 4
        %v3874 = vrot.slane %v3870, 4
        %3879 = vst.msk [vmem:[#allocation14 + $0x120] sm:$0xf] %vm2856, %v3871
        %3880 = vst.msk [vmem:[#allocation14 + $0x12c] sm:$0xf] %vm2856, %v3872
        %3881 = vst.msk [vmem:[#allocation14 + $0x138] sm:$0xf] %vm2856, %v3873
        %3882 = vst.msk [vmem:[#allocation14 + $0x144] sm:$0xf] %vm2856, %v3874
        %3883 = vrot.lane.b32.xlu0 %v3727, 124
        %v3884 = vpop.permute.xlu0 %3883
        %3885 = vrot.lane.b32.xlu0 %v3728, 124
        %v3886 = vpop.permute.xlu0 %3885
        %3887 = vrot.lane.b32.xlu0 %v3729, 124
        %v3888 = vpop.permute.xlu0 %3887
        %3889 = vrot.lane.b32.xlu0 %v3730, 124
        %v3890 = vpop.permute.xlu0 %3889
        %v3891 = vrot.slane %v3884, 4
        %v3892 = vrot.slane %v3886, 4
        %v3893 = vrot.slane %v3888, 4
        %v3894 = vrot.slane %v3890, 4
        %3899 = vst.msk [vmem:[#allocation14 + $0x150] sm:$0xf] %vm2856, %v3891
        %3900 = vst.msk [vmem:[#allocation14 + $0x15c] sm:$0xf] %vm2856, %v3892
        %3901 = vst.msk [vmem:[#allocation14 + $0x168] sm:$0xf] %vm2856, %v3893
        %3902 = vst.msk [vmem:[#allocation14 + $0x174] sm:$0xf] %vm2856, %v3894
        %3903 = vrot.lane.b32.xlu0 %v3727, 123
        %v3904 = vpop.permute.xlu0 %3903
        %3905 = vrot.lane.b32.xlu0 %v3728, 123
        %v3906 = vpop.permute.xlu0 %3905
        %3907 = vrot.lane.b32.xlu0 %v3729, 123
        %v3908 = vpop.permute.xlu0 %3907
        %3909 = vrot.lane.b32.xlu0 %v3730, 123
        %v3910 = vpop.permute.xlu0 %3909
        %v3911 = vrot.slane %v3904, 4
        %v3912 = vrot.slane %v3906, 4
        %v3913 = vrot.slane %v3908, 4
        %v3914 = vrot.slane %v3910, 4
        %3919 = vst.msk [vmem:[#allocation14 + $0x180] sm:$0xf] %vm2856, %v3911
        %3920 = vst.msk [vmem:[#allocation14 + $0x18c] sm:$0xf] %vm2856, %v3912
        %3921 = vst.msk [vmem:[#allocation14 + $0x198] sm:$0xf] %vm2856, %v3913
        %3922 = vst.msk [vmem:[#allocation14 + $0x1a4] sm:$0xf] %vm2856, %v3914
        %s3923 = scalar_lea.vmem [#allocation15], 240
        %v3924 = vld [vmem:[%s3923] sm:$0xff]
        %v3925 = vld [vmem:[%s3923 + $0x8] sm:$0xf]
        %v3926 = vld [vmem:[%s3923 + $0xc] sm:$0xff]
        %v3927 = vld [vmem:[%s3923 + $0x14] sm:$0xf]
        %v3928 = vld [vmem:[%s3923 + $0x18] sm:$0xff]
        %v3929 = vld [vmem:[%s3923 + $0x20] sm:$0xf]
        %v3930 = vld [vmem:[%s3923 + $0x24] sm:$0xff]
        %v3931 = vld [vmem:[%s3923 + $0x2c] sm:$0xf]
        %v3932 = vld [vmem:[#allocation14] sm:$0xf]
        %v3933 = vld [vmem:[#allocation14 + $0xc] sm:$0xf]
        %v3934 = vld [vmem:[#allocation14 + $0x18] sm:$0xf]
        %v3935 = vld [vmem:[#allocation14 + $0x24] sm:$0xf]
        %v3936 = vld [vmem:[#allocation14 + $0x30] sm:$0xf]
        %v3937 = vld [vmem:[#allocation14 + $0x3c] sm:$0xf]
        %v3938 = vld [vmem:[#allocation14 + $0x48] sm:$0xf]
        %v3939 = vld [vmem:[#allocation14 + $0x54] sm:$0xf]
        %v3940 = vld [vmem:[#allocation14 + $0x60] sm:$0xf]
        %v3941 = vld [vmem:[#allocation14 + $0x6c] sm:$0xf]
        %v3942 = vld [vmem:[#allocation14 + $0x78] sm:$0xf]
        %v3943 = vld [vmem:[#allocation14 + $0x84] sm:$0xf]
        %v3944 = vld [vmem:[#allocation14 + $0x90] sm:$0xf]
        %v3945 = vld [vmem:[#allocation14 + $0x9c] sm:$0xf]
        %v3946 = vld [vmem:[#allocation14 + $0xa8] sm:$0xf]
        %v3947 = vld [vmem:[#allocation14 + $0xb4] sm:$0xf]
        %v3948 = vld [vmem:[#allocation14 + $0xc0] sm:$0xf]
        %v3949 = vld [vmem:[#allocation14 + $0xcc] sm:$0xf]
        %v3950 = vld [vmem:[#allocation14 + $0xd8] sm:$0xf]
        %v3951 = vld [vmem:[#allocation14 + $0xe4] sm:$0xf]
        %v3952 = vld [vmem:[#allocation14 + $0xf0] sm:$0xf]
        %v3953 = vld [vmem:[#allocation14 + $0xfc] sm:$0xf]
        %v3954 = vld [vmem:[#allocation14 + $0x108] sm:$0xf]
        %v3955 = vld [vmem:[#allocation14 + $0x114] sm:$0xf]
        %v3956 = vld [vmem:[#allocation14 + $0x120] sm:$0xf]
        %v3957 = vld [vmem:[#allocation14 + $0x12c] sm:$0xf]
        %v3958 = vld [vmem:[#allocation14 + $0x138] sm:$0xf]
        %v3959 = vld [vmem:[#allocation14 + $0x144] sm:$0xf]
        %v3960 = vld [vmem:[#allocation14 + $0x150] sm:$0xf]
        %v3961 = vld [vmem:[#allocation14 + $0x15c] sm:$0xf]
        %v3962 = vld [vmem:[#allocation14 + $0x168] sm:$0xf]
        %v3963 = vld [vmem:[#allocation14 + $0x174] sm:$0xf]
        %v3964 = vld [vmem:[#allocation14 + $0x180] sm:$0xf]
        %v3965 = vld [vmem:[#allocation14 + $0x18c] sm:$0xf]
        %v3966 = vld [vmem:[#allocation14 + $0x198] sm:$0xf]
        %v3967 = vld [vmem:[#allocation14 + $0x1a4] sm:$0xf]
        %v3976 = vunpack.c.l.b16 %v3924
        %v3977 = vunpack.c.h.b16 %v3924
        %v3978 = vunpack.c.l.b16 %v3925
        %v3979 = vunpack.c.l.b16 %v3926
        %v3980 = vunpack.c.h.b16 %v3926
        %v3981 = vunpack.c.l.b16 %v3927
        %v3982 = vunpack.c.l.b16 %v3928
        %v3983 = vunpack.c.h.b16 %v3928
        %v3984 = vunpack.c.l.b16 %v3929
        %v3985 = vunpack.c.l.b16 %v3930
        %v3986 = vunpack.c.h.b16 %v3930
        %v3987 = vunpack.c.l.b16 %v3931
        %v3988 = vpack.c.b16 %v3979, %v3976
        %v3989 = vpack.c.b16 %v3980, %v3977
        %v3990 = vpack.c.b16 %v3981, %v3978
        %v3991 = vpack.c.b16 %v3985, %v3982
        %v3992 = vpack.c.b16 %v3986, %v3983
        %v3993 = vpack.c.b16 %v3987, %v3984
        %v4034 = vunpack.c.l.b16 %v3932
        %v4035 = vunpack.c.l.b16 %v3933
        %v4036 = vunpack.c.l.b16 %v3934
        %v4037 = vunpack.c.l.b16 %v3935
        %v4038 = vunpack.c.l.b16 %v3936
        %v4039 = vunpack.c.l.b16 %v3937
        %v4040 = vunpack.c.l.b16 %v3938
        %v4041 = vunpack.c.l.b16 %v3939
        %v4042 = vunpack.c.l.b16 %v3940
        %v4043 = vunpack.c.l.b16 %v3941
        %v4044 = vunpack.c.l.b16 %v3942
        %v4045 = vunpack.c.l.b16 %v3943
        %v4046 = vunpack.c.l.b16 %v3944
        %v4047 = vunpack.c.l.b16 %v3945
        %v4048 = vunpack.c.l.b16 %v3946
        %v4049 = vunpack.c.l.b16 %v3947
        %v4050 = vunpack.c.l.b16 %v3948
        %v4051 = vunpack.c.l.b16 %v3949
        %v4052 = vunpack.c.l.b16 %v3950
        %v4053 = vunpack.c.l.b16 %v3951
        %v4054 = vunpack.c.l.b16 %v3952
        %v4055 = vunpack.c.l.b16 %v3953
        %v4056 = vunpack.c.l.b16 %v3954
        %v4057 = vunpack.c.l.b16 %v3955
        %v4058 = vunpack.c.l.b16 %v3956
        %v4059 = vunpack.c.l.b16 %v3957
        %v4060 = vunpack.c.l.b16 %v3958
        %v4061 = vunpack.c.l.b16 %v3959
        %v4062 = vunpack.c.l.b16 %v3960
        %v4063 = vunpack.c.l.b16 %v3961
        %v4064 = vunpack.c.l.b16 %v3962
        %v4065 = vunpack.c.l.b16 %v3963
        %v4066 = vunpack.c.l.b16 %v3964
        %v4067 = vunpack.c.l.b16 %v3965
        %v4068 = vunpack.c.l.b16 %v3966
        %v4069 = vunpack.c.l.b16 %v3967
        %v4070 = vpack.c.b16 %v4035, %v4034
        %v4071 = vpack.c.b16 %v4037, %v4036
        %v4072 = vpack.c.b16 %v4039, %v4038
        %v4073 = vpack.c.b16 %v4041, %v4040
        %v4074 = vpack.c.b16 %v4043, %v4042
        %v4075 = vpack.c.b16 %v4045, %v4044
        %v4076 = vpack.c.b16 %v4047, %v4046
        %v4077 = vpack.c.b16 %v4049, %v4048
        %v4078 = vpack.c.b16 %v4051, %v4050
        %v4079 = vpack.c.b16 %v4053, %v4052
        %v4080 = vpack.c.b16 %v4055, %v4054
        %v4081 = vpack.c.b16 %v4057, %v4056
        %v4082 = vpack.c.b16 %v4059, %v4058
        %v4083 = vpack.c.b16 %v4061, %v4060
        %v4084 = vpack.c.b16 %v4063, %v4062
        %v4085 = vpack.c.b16 %v4065, %v4064
        %v4086 = vpack.c.b16 %v4067, %v4066
        %v4087 = vpack.c.b16 %v4069, %v4068
        %v4107 = vsel %vm1727, %v3990, 0
        %v4110 = vsel %vm1727, %v3993, 0
        %4112 = vmatpush.bf16.msra.mxu0 %v4077
        %4113 = vmatpush.bf16.msra.mxu0 %v4076
        %4114 = vmatpush.bf16.msra.mxu0 %v4075
        %4115 = vmatpush.bf16.msra.mxu0 %v4074
        %4116 = vmatpush.bf16.msra.mxu0 %v4073
        %4117 = vmatpush.bf16.msra.mxu0 %v4072
        %4118 = vmatpush.bf16.msra.mxu0 %v4071
        %4119 = vmatpush.bf16.msra.mxu0 %v4070
        %4120 = vmatmul.bf16.gmra.mxu0 %v3988
        %v4121 = vpop.f32.mrf.mxu0
        %v4122 = vadd.f32 0.0, %v4121
        %v4123 = vpop.f32.mrf.mxu0
        %v4124 = vadd.f32 0.0, %v4123
        %4125 = vmatmul.bf16.gmra.mxu0 %v3991
        %v4126 = vpop.f32.mrf.mxu0
        %v4127 = vadd.f32 0.0, %v4126
        %v4128 = vpop.f32.mrf.mxu0
        %v4129 = vadd.f32 0.0, %v4128
        %4130 = vdwg.mxu0
        %4131 = vmatpush.bf16.msra.mxu0 %v4085
        %4132 = vmatpush.bf16.msra.mxu0 %v4084
        %4133 = vmatpush.bf16.msra.mxu0 %v4083
        %4134 = vmatpush.bf16.msra.mxu0 %v4082
        %4135 = vmatpush.bf16.msra.mxu0 %v4081
        %4136 = vmatpush.bf16.msra.mxu0 %v4080
        %4137 = vmatpush.bf16.msra.mxu0 %v4079
        %4138 = vmatpush.bf16.msra.mxu0 %v4078
        %4139 = vmatmul.bf16.gmra.mxu0 %v3989
        %v4140 = vpop.f32.mrf.mxu0
        %v4141 = vadd.f32 %v4122, %v4140
        %v4142 = vpop.f32.mrf.mxu0
        %v4143 = vadd.f32 %v4124, %v4142
        %4144 = vmatmul.bf16.gmra.mxu0 %v3992
        %v4145 = vpop.f32.mrf.mxu0
        %v4146 = vadd.f32 %v4127, %v4145
        %v4147 = vpop.f32.mrf.mxu0
        %v4148 = vadd.f32 %v4129, %v4147
        %4149 = vdwg.mxu0
        %4150 = vmatpush.bf16.msra.mxu0 0
        %4151 = vmatpush.bf16.msra.mxu0 0
        %4152 = vmatpush.bf16.msra.mxu0 0
        %4153 = vmatpush.bf16.msra.mxu0 0
        %4154 = vmatpush.bf16.msra.mxu0 0
        %4155 = vmatpush.bf16.msra.mxu0 0
        %4156 = vmatpush.bf16.msra.mxu0 %v4087
        %4157 = vmatpush.bf16.msra.mxu0 %v4086
        %4158 = vmatmul.bf16.gmra.mxu0 %v4107
        %v4159 = vpop.f32.mrf.mxu0
        %v4160 = vadd.f32 %v4141, %v4159
        %v4161 = vpop.f32.mrf.mxu0
        %v4162 = vadd.f32 %v4143, %v4161
        %4163 = vmatmul.bf16.gmra.mxu0 %v4110
        %v4164 = vpop.f32.mrf.mxu0
        %v4165 = vadd.f32 %v4146, %v4164
        %v4166 = vpop.f32.mrf.mxu0
        %v4167 = vadd.f32 %v4148, %v4166
        %4168 = vdwg.mxu0
        %v4177 = vunpack.c.l.b16 %v3683
        %v4178 = vunpack.c.h.b16 %v3683
        %v4179 = vunpack.c.l.b16 %v3684
        %v4180 = vunpack.c.l.b16 %v3685
        %v4181 = vunpack.c.h.b16 %v3685
        %v4182 = vunpack.c.l.b16 %v3686
        %v4183 = vunpack.c.l.b16 %v3687
        %v4184 = vunpack.c.h.b16 %v3687
        %v4185 = vunpack.c.l.b16 %v3688
        %v4186 = vunpack.c.l.b16 %v3689
        %v4187 = vunpack.c.h.b16 %v3689
        %v4188 = vunpack.c.l.b16 %v3690
        %v4189 = vpack.c.b16 %v4180, %v4177
        %v4190 = vpack.c.b16 %v4181, %v4178
        %v4191 = vpack.c.b16 %v4182, %v4179
        %v4192 = vpack.c.b16 %v4186, %v4183
        %v4193 = vpack.c.b16 %v4187, %v4184
        %v4194 = vpack.c.b16 %v4188, %v4185
        %v4235 = vunpack.c.l.b16 %v3691
        %v4236 = vunpack.c.l.b16 %v3692
        %v4237 = vunpack.c.l.b16 %v3693
        %v4238 = vunpack.c.l.b16 %v3694
        %v4239 = vunpack.c.l.b16 %v3695
        %v4240 = vunpack.c.l.b16 %v3696
        %v4241 = vunpack.c.l.b16 %v3697
        %v4242 = vunpack.c.l.b16 %v3698
        %v4243 = vunpack.c.l.b16 %v3699
        %v4244 = vunpack.c.l.b16 %v3700
        %v4245 = vunpack.c.l.b16 %v3701
        %v4246 = vunpack.c.l.b16 %v3702
        %v4247 = vunpack.c.l.b16 %v3703
        %v4248 = vunpack.c.l.b16 %v3704
        %v4249 = vunpack.c.l.b16 %v3705
        %v4250 = vunpack.c.l.b16 %v3706
        %v4251 = vunpack.c.l.b16 %v3707
        %v4252 = vunpack.c.l.b16 %v3708
        %v4253 = vunpack.c.l.b16 %v3709
        %v4254 = vunpack.c.l.b16 %v3710
        %v4255 = vunpack.c.l.b16 %v3711
        %v4256 = vunpack.c.l.b16 %v3712
        %v4257 = vunpack.c.l.b16 %v3713
        %v4258 = vunpack.c.l.b16 %v3714
        %v4259 = vunpack.c.l.b16 %v3715
        %v4260 = vunpack.c.l.b16 %v3716
        %v4261 = vunpack.c.l.b16 %v3717
        %v4262 = vunpack.c.l.b16 %v3718
        %v4263 = vunpack.c.l.b16 %v3719
        %v4264 = vunpack.c.l.b16 %v3720
        %v4265 = vunpack.c.l.b16 %v3721
        %v4266 = vunpack.c.l.b16 %v3722
        %v4267 = vunpack.c.l.b16 %v3723
        %v4268 = vunpack.c.l.b16 %v3724
        %v4269 = vunpack.c.l.b16 %v3725
        %v4270 = vunpack.c.l.b16 %v3726
        %v4271 = vpack.c.b16 %v4236, %v4235
        %v4272 = vpack.c.b16 %v4238, %v4237
        %v4273 = vpack.c.b16 %v4240, %v4239
        %v4274 = vpack.c.b16 %v4242, %v4241
        %v4275 = vpack.c.b16 %v4244, %v4243
        %v4276 = vpack.c.b16 %v4246, %v4245
        %v4277 = vpack.c.b16 %v4248, %v4247
        %v4278 = vpack.c.b16 %v4250, %v4249
        %v4279 = vpack.c.b16 %v4252, %v4251
        %v4280 = vpack.c.b16 %v4254, %v4253
        %v4281 = vpack.c.b16 %v4256, %v4255
        %v4282 = vpack.c.b16 %v4258, %v4257
        %v4283 = vpack.c.b16 %v4260, %v4259
        %v4284 = vpack.c.b16 %v4262, %v4261
        %v4285 = vpack.c.b16 %v4264, %v4263
        %v4286 = vpack.c.b16 %v4266, %v4265
        %v4287 = vpack.c.b16 %v4268, %v4267
        %v4288 = vpack.c.b16 %v4270, %v4269
        %v4308 = vsel %vm1727, %v4191, 0
        %v4311 = vsel %vm1727, %v4194, 0
        %4313 = vmatpush.bf16.msra.mxu0 %v4278
        %4314 = vmatpush.bf16.msra.mxu0 %v4277
        %4315 = vmatpush.bf16.msra.mxu0 %v4276
        %4316 = vmatpush.bf16.msra.mxu0 %v4275
        %4317 = vmatpush.bf16.msra.mxu0 %v4274
        %4318 = vmatpush.bf16.msra.mxu0 %v4273
        %4319 = vmatpush.bf16.msra.mxu0 %v4272
        %4320 = vmatpush.bf16.msra.mxu0 %v4271
        %4321 = vmatmul.bf16.gmra.mxu0 %v4189
        %v4322 = vpop.f32.mrf.mxu0
        %v4323 = vadd.f32 %v4160, %v4322
        %v4324 = vpop.f32.mrf.mxu0
        %v4325 = vadd.f32 %v4162, %v4324
        %4326 = vmatmul.bf16.gmra.mxu0 %v4192
        %v4327 = vpop.f32.mrf.mxu0
        %v4328 = vadd.f32 %v4165, %v4327
        %v4329 = vpop.f32.mrf.mxu0
        %v4330 = vadd.f32 %v4167, %v4329
        %4331 = vdwg.mxu0
        %4332 = vmatpush.bf16.msra.mxu0 %v4286
        %4333 = vmatpush.bf16.msra.mxu0 %v4285
        %4334 = vmatpush.bf16.msra.mxu0 %v4284
        %4335 = vmatpush.bf16.msra.mxu0 %v4283
        %4336 = vmatpush.bf16.msra.mxu0 %v4282
        %4337 = vmatpush.bf16.msra.mxu0 %v4281
        %4338 = vmatpush.bf16.msra.mxu0 %v4280
        %4339 = vmatpush.bf16.msra.mxu0 %v4279
        %4340 = vmatmul.bf16.gmra.mxu0 %v4190
        %v4341 = vpop.f32.mrf.mxu0
        %v4342 = vadd.f32 %v4323, %v4341
        %v4343 = vpop.f32.mrf.mxu0
        %v4344 = vadd.f32 %v4325, %v4343
        %4345 = vmatmul.bf16.gmra.mxu0 %v4193
        %v4346 = vpop.f32.mrf.mxu0
        %v4347 = vadd.f32 %v4328, %v4346
        %v4348 = vpop.f32.mrf.mxu0
        %v4349 = vadd.f32 %v4330, %v4348
        %4350 = vdwg.mxu0
        %4351 = vmatpush.bf16.msra.mxu0 0
        %4352 = vmatpush.bf16.msra.mxu0 0
        %4353 = vmatpush.bf16.msra.mxu0 0
        %4354 = vmatpush.bf16.msra.mxu0 0
        %4355 = vmatpush.bf16.msra.mxu0 0
        %4356 = vmatpush.bf16.msra.mxu0 0
        %4357 = vmatpush.bf16.msra.mxu0 %v4288
        %4358 = vmatpush.bf16.msra.mxu0 %v4287
        %4359 = vmatmul.bf16.gmra.mxu0 %v4308
        %v4360 = vpop.f32.mrf.mxu0
        %v4361 = vadd.f32 %v4342, %v4360
        %v4362 = vpop.f32.mrf.mxu0
        %v4363 = vadd.f32 %v4344, %v4362
        %4364 = vmatmul.bf16.gmra.mxu0 %v4311
        %v4365 = vpop.f32.mrf.mxu0
        %v4366 = vadd.f32 %v4347, %v4365
        %v4367 = vpop.f32.mrf.mxu0
        %v4368 = vadd.f32 %v4349, %v4367
        %4369 = vdwg.mxu0
        %s4370 = scalar_lea.vmem [#allocation17], 128
        %v4371 = vld [vmem:[%s4370] sm:$0xff]
        %v4372 = vld [vmem:[%s4370 + $0x8] sm:$0xff]
        %v4373 = vld [vmem:[%s4370 + $0x10] sm:$0xff]
        %v4374 = vld [vmem:[%s4370 + $0x18] sm:$0xff]
        %4376 = vset.pattern.permute.xlu0 0
        %4377 = vperm.xlu0 %4376, %v4371
        %v4378 = vpop.permute.xlu0 %4377
        %4381 = vset.pattern.permute.xlu0 0
        %4382 = vperm.xlu0 %4381, %v4372
        %v4383 = vpop.permute.xlu0 %4382
        %4386 = vset.pattern.permute.xlu0 0
        %4387 = vperm.xlu0 %4386, %v4373
        %v4388 = vpop.permute.xlu0 %4387
        %4391 = vset.pattern.permute.xlu0 0
        %4392 = vperm.xlu0 %4391, %v4374
        %v4393 = vpop.permute.xlu0 %4392
        %v4395 = vmul.f32 %v4361, %v4378
        %v4396 = vmul.f32 %v4363, %v4383
        %v4397 = vmul.f32 %v4366, %v4388
        %v4398 = vmul.f32 %v4368, %v4393
        %s4399 = scalar_lea.vmem [#allocation19], 128
        %v4400 = vld [vmem:[%s4399] sm:$0xff]
        %v4401 = vld [vmem:[%s4399 + $0x8] sm:$0xff]
        %v4402 = vld [vmem:[%s4399 + $0x10] sm:$0xff]
        %v4403 = vld [vmem:[%s4399 + $0x18] sm:$0xff]
        %4405 = vset.pattern.permute.xlu0 0
        %4406 = vperm.xlu0 %4405, %v4400
        %v4407 = vpop.permute.xlu0 %4406
        %4410 = vset.pattern.permute.xlu0 0
        %4411 = vperm.xlu0 %4410, %v4401
        %v4412 = vpop.permute.xlu0 %4411
        %4415 = vset.pattern.permute.xlu0 0
        %4416 = vperm.xlu0 %4415, %v4402
        %v4417 = vpop.permute.xlu0 %4416
        %4420 = vset.pattern.permute.xlu0 0
        %4421 = vperm.xlu0 %4420, %v4403
        %v4422 = vpop.permute.xlu0 %4421
        %v4424 = vadd.f32 %v4395, %v4407
        %v4425 = vadd.f32 %v4396, %v4412
        %v4426 = vadd.f32 %v4397, %v4417
        %v4427 = vadd.f32 %v4398, %v4422
        %v4428 = vmax.f32 %v4424, 0.0
        %v4429 = vmax.f32 %v4425, 0.0
        %v4430 = vmax.f32 %v4426, 0.0
        %v4431 = vmax.f32 %v4427, 0.0
        %v4432 = vld [vmem:[%s12] sm:$0xff]
        %v4433 = vld [vmem:[%s12 + $0x8] sm:$0xff]
        %v4435 = vsel %vm3396, %v4428, 0
        %v4438 = vsel %vm3396, %v4429, 0
        %v4441 = vsel %vm3396, %v4430, 0
        %v4444 = vsel %vm3396, %v4431, 0
        %4446 = vmatpush.msra.mxu0 0.0
        %4447 = vmatpush.msra.mxu0 0.0
        %4448 = vmatpush.msra.mxu0 0.0
        %4449 = vmatpush.msra.mxu0 0.0
        %4450 = vmatpush.msra.mxu0 0.0
        %4451 = vmatpush.msra.mxu0 0.0
        %4452 = vmatpush.msra.mxu0 0.0
        %4453 = vmatpush.msra.mxu0 0.0
        %4454 = vmatpush.msra.mxu0 0.0
        %4455 = vmatpush.msra.mxu0 0.0
        %4456 = vmatpush.msra.mxu0 0.0
        %4457 = vmatpush.msra.mxu0 0.0
        %4458 = vmatpush.msra.mxu0 0.0
        %4459 = vmatpush.msra.mxu0 0.0
        %4460 = vmatpush.msra.mxu0 %v4433
        %4461 = vmatpush.msra.mxu0 %v4432
        %4462 = vmatmul.f32.gmra.mxu0 %v4435
        %v4463 = vpop.f32.mrf.mxu0
        %v4464 = vadd.f32 0.0, %v4463
        %4465 = vmatmul.f32.gmra.mxu0 %v4438
        %v4466 = vpop.f32.mrf.mxu0
        %v4467 = vadd.f32 0.0, %v4466
        %4468 = vmatmul.f32.gmra.mxu0 %v4441
        %v4469 = vpop.f32.mrf.mxu0
        %v4470 = vadd.f32 0.0, %v4469
        %4471 = vmatmul.f32.gmra.mxu0 %v4444
        %v4472 = vpop.f32.mrf.mxu0
        %v4473 = vadd.f32 0.0, %v4472
        %4474 = vdwg.mxu0
        %v4475 = vpack.c.bf16 %v4464, %v4464
        %v4476 = vpack.c.bf16 %v4467, %v4467
        %v4477 = vpack.c.bf16 %v4470, %v4470
        %v4478 = vpack.c.bf16 %v4473, %v4473
        %4479 = vst.msk [vmem:[#allocation11 + $0x4] sm:$0xf] %vm2459, %v4475
        %4480 = vst.msk [vmem:[#allocation11 + $0xc] sm:$0xf] %vm2459, %v4476
        %4481 = vst.msk [vmem:[#allocation11 + $0x14] sm:$0xf] %vm2459, %v4477
        %4482 = vst.msk [vmem:[#allocation11 + $0x1c] sm:$0xf] %vm2459, %v4478
        %v4483 = vld [vmem:[#allocation11] sm:$0xff]
        %v4484 = vld [vmem:[#allocation11 + $0x8] sm:$0xff]
        %v4485 = vld [vmem:[#allocation11 + $0x10] sm:$0xff]
        %v4486 = vld [vmem:[#allocation11 + $0x18] sm:$0xff]
        %4491 = vrot.lane.b32.xlu0 %v4483, 7
        %v4492 = vpop.permute.xlu0 %4491
        %4493 = vrot.lane.b32.xlu0 %v4484, 7
        %v4494 = vpop.permute.xlu0 %4493
        %4495 = vrot.lane.b32.xlu0 %v4485, 7
        %v4496 = vpop.permute.xlu0 %4495
        %4497 = vrot.lane.b32.xlu0 %v4486, 7
        %v4498 = vpop.permute.xlu0 %4497
        %v4499 = vrot.slane %v4492, 4
        %v4500 = vrot.slane %v4494, 4
        %v4501 = vrot.slane %v4496, 4
        %v4502 = vrot.slane %v4498, 4
        %v4503 = vsel %vm2466, %v4492, %v4499
        %v4504 = vsel %vm2466, %v4494, %v4500
        %v4505 = vsel %vm2466, %v4496, %v4501
        %v4506 = vsel %vm2466, %v4498, %v4502
        %4511 = vst.msk [vmem:[#allocation14] sm:$0xf] %vm2459, %v4503
        %4512 = vst.msk [vmem:[#allocation14 + $0xc] sm:$0xf] %vm2459, %v4504
        %4513 = vst.msk [vmem:[#allocation14 + $0x18] sm:$0xf] %vm2459, %v4505
        %4514 = vst.msk [vmem:[#allocation14 + $0x24] sm:$0xf] %vm2459, %v4506
        %4515 = vrot.lane.b32.xlu0 %v4483, 6
        %v4516 = vpop.permute.xlu0 %4515
        %4517 = vrot.lane.b32.xlu0 %v4484, 6
        %v4518 = vpop.permute.xlu0 %4517
        %4519 = vrot.lane.b32.xlu0 %v4485, 6
        %v4520 = vpop.permute.xlu0 %4519
        %4521 = vrot.lane.b32.xlu0 %v4486, 6
        %v4522 = vpop.permute.xlu0 %4521
        %v4523 = vrot.slane %v4516, 4
        %v4524 = vrot.slane %v4518, 4
        %v4525 = vrot.slane %v4520, 4
        %v4526 = vrot.slane %v4522, 4
        %v4527 = vsel %vm2473, %v4516, %v4523
        %v4528 = vsel %vm2473, %v4518, %v4524
        %v4529 = vsel %vm2473, %v4520, %v4525
        %v4530 = vsel %vm2473, %v4522, %v4526
        %4535 = vst.msk [vmem:[#allocation14 + $0x30] sm:$0xf] %vm2459, %v4527
        %4536 = vst.msk [vmem:[#allocation14 + $0x3c] sm:$0xf] %vm2459, %v4528
        %4537 = vst.msk [vmem:[#allocation14 + $0x48] sm:$0xf] %vm2459, %v4529
        %4538 = vst.msk [vmem:[#allocation14 + $0x54] sm:$0xf] %vm2459, %v4530
        %4539 = vrot.lane.b32.xlu0 %v4483, 5
        %v4540 = vpop.permute.xlu0 %4539
        %4541 = vrot.lane.b32.xlu0 %v4484, 5
        %v4542 = vpop.permute.xlu0 %4541
        %4543 = vrot.lane.b32.xlu0 %v4485, 5
        %v4544 = vpop.permute.xlu0 %4543
        %4545 = vrot.lane.b32.xlu0 %v4486, 5
        %v4546 = vpop.permute.xlu0 %4545
        %v4547 = vrot.slane %v4540, 4
        %v4548 = vrot.slane %v4542, 4
        %v4549 = vrot.slane %v4544, 4
        %v4550 = vrot.slane %v4546, 4
        %v4551 = vsel %vm2480, %v4540, %v4547
        %v4552 = vsel %vm2480, %v4542, %v4548
        %v4553 = vsel %vm2480, %v4544, %v4549
        %v4554 = vsel %vm2480, %v4546, %v4550
        %4559 = vst.msk [vmem:[#allocation14 + $0x60] sm:$0xf] %vm2459, %v4551
        %4560 = vst.msk [vmem:[#allocation14 + $0x6c] sm:$0xf] %vm2459, %v4552
        %4561 = vst.msk [vmem:[#allocation14 + $0x78] sm:$0xf] %vm2459, %v4553
        %4562 = vst.msk [vmem:[#allocation14 + $0x84] sm:$0xf] %vm2459, %v4554
        %4563 = vrot.lane.b32.xlu0 %v4483, 1
        %v4564 = vpop.permute.xlu0 %4563
        %4565 = vrot.lane.b32.xlu0 %v4484, 1
        %v4566 = vpop.permute.xlu0 %4565
        %4567 = vrot.lane.b32.xlu0 %v4485, 1
        %v4568 = vpop.permute.xlu0 %4567
        %4569 = vrot.lane.b32.xlu0 %v4486, 1
        %v4570 = vpop.permute.xlu0 %4569
        %v4571 = vrot.slane %v4564, 4
        %v4572 = vrot.slane %v4566, 4
        %v4573 = vrot.slane %v4568, 4
        %v4574 = vrot.slane %v4570, 4
        %v4575 = vsel %vm1240, %v4564, %v4571
        %v4576 = vsel %vm1240, %v4566, %v4572
        %v4577 = vsel %vm1240, %v4568, %v4573
        %v4578 = vsel %vm1240, %v4570, %v4574
        %4583 = vst.msk [vmem:[#allocation14 + $0x90] sm:$0xf] %vm2459, %v4575
        %4584 = vst.msk [vmem:[#allocation14 + $0x9c] sm:$0xf] %vm2459, %v4576
        %4585 = vst.msk [vmem:[#allocation14 + $0xa8] sm:$0xf] %vm2459, %v4577
        %4586 = vst.msk [vmem:[#allocation14 + $0xb4] sm:$0xf] %vm2459, %v4578
        %v4587 = vrot.slane %v4483, 4
        %v4588 = vrot.slane %v4484, 4
        %v4589 = vrot.slane %v4485, 4
        %v4590 = vrot.slane %v4486, 4
        %4595 = vst.msk [vmem:[#allocation14 + $0xc0] sm:$0xf] %vm2459, %v4587
        %4596 = vst.msk [vmem:[#allocation14 + $0xcc] sm:$0xf] %vm2459, %v4588
        %4597 = vst.msk [vmem:[#allocation14 + $0xd8] sm:$0xf] %vm2459, %v4589
        %4598 = vst.msk [vmem:[#allocation14 + $0xe4] sm:$0xf] %vm2459, %v4590
        %4599 = vrot.lane.b32.xlu0 %v4483, 127
        %v4600 = vpop.permute.xlu0 %4599
        %4601 = vrot.lane.b32.xlu0 %v4484, 127
        %v4602 = vpop.permute.xlu0 %4601
        %4603 = vrot.lane.b32.xlu0 %v4485, 127
        %v4604 = vpop.permute.xlu0 %4603
        %4605 = vrot.lane.b32.xlu0 %v4486, 127
        %v4606 = vpop.permute.xlu0 %4605
        %v4607 = vrot.slane %v4600, 4
        %v4608 = vrot.slane %v4602, 4
        %v4609 = vrot.slane %v4604, 4
        %v4610 = vrot.slane %v4606, 4
        %4615 = vst.msk [vmem:[#allocation14 + $0xf0] sm:$0xf] %vm2459, %v4607
        %4616 = vst.msk [vmem:[#allocation14 + $0xfc] sm:$0xf] %vm2459, %v4608
        %4617 = vst.msk [vmem:[#allocation14 + $0x108] sm:$0xf] %vm2459, %v4609
        %4618 = vst.msk [vmem:[#allocation14 + $0x114] sm:$0xf] %vm2459, %v4610
        %4619 = vrot.lane.b32.xlu0 %v4483, 123
        %v4620 = vpop.permute.xlu0 %4619
        %4621 = vrot.lane.b32.xlu0 %v4484, 123
        %v4622 = vpop.permute.xlu0 %4621
        %4623 = vrot.lane.b32.xlu0 %v4485, 123
        %v4624 = vpop.permute.xlu0 %4623
        %4625 = vrot.lane.b32.xlu0 %v4486, 123
        %v4626 = vpop.permute.xlu0 %4625
        %v4627 = vrot.slane %v4620, 4
        %v4628 = vrot.slane %v4622, 4
        %v4629 = vrot.slane %v4624, 4
        %v4630 = vrot.slane %v4626, 4
        %4635 = vst.msk [vmem:[#allocation14 + $0x120] sm:$0xf] %vm2459, %v4627
        %4636 = vst.msk [vmem:[#allocation14 + $0x12c] sm:$0xf] %vm2459, %v4628
        %4637 = vst.msk [vmem:[#allocation14 + $0x138] sm:$0xf] %vm2459, %v4629
        %4638 = vst.msk [vmem:[#allocation14 + $0x144] sm:$0xf] %vm2459, %v4630
        %4639 = vrot.lane.b32.xlu0 %v4483, 122
        %v4640 = vpop.permute.xlu0 %4639
        %4641 = vrot.lane.b32.xlu0 %v4484, 122
        %v4642 = vpop.permute.xlu0 %4641
        %4643 = vrot.lane.b32.xlu0 %v4485, 122
        %v4644 = vpop.permute.xlu0 %4643
        %4645 = vrot.lane.b32.xlu0 %v4486, 122
        %v4646 = vpop.permute.xlu0 %4645
        %v4647 = vrot.slane %v4640, 4
        %v4648 = vrot.slane %v4642, 4
        %v4649 = vrot.slane %v4644, 4
        %v4650 = vrot.slane %v4646, 4
        %4655 = vst.msk [vmem:[#allocation14 + $0x150] sm:$0xf] %vm2459, %v4647
        %4656 = vst.msk [vmem:[#allocation14 + $0x15c] sm:$0xf] %vm2459, %v4648
        %4657 = vst.msk [vmem:[#allocation14 + $0x168] sm:$0xf] %vm2459, %v4649
        %4658 = vst.msk [vmem:[#allocation14 + $0x174] sm:$0xf] %vm2459, %v4650
        %4659 = vrot.lane.b32.xlu0 %v4483, 121
        %v4660 = vpop.permute.xlu0 %4659
        %4661 = vrot.lane.b32.xlu0 %v4484, 121
        %v4662 = vpop.permute.xlu0 %4661
        %4663 = vrot.lane.b32.xlu0 %v4485, 121
        %v4664 = vpop.permute.xlu0 %4663
        %4665 = vrot.lane.b32.xlu0 %v4486, 121
        %v4666 = vpop.permute.xlu0 %4665
        %v4667 = vrot.slane %v4660, 4
        %v4668 = vrot.slane %v4662, 4
        %v4669 = vrot.slane %v4664, 4
        %v4670 = vrot.slane %v4666, 4
        %4675 = vst.msk [vmem:[#allocation14 + $0x180] sm:$0xf] %vm2459, %v4667
        %4676 = vst.msk [vmem:[#allocation14 + $0x18c] sm:$0xf] %vm2459, %v4668
        %4677 = vst.msk [vmem:[#allocation14 + $0x198] sm:$0xf] %vm2459, %v4669
        %4678 = vst.msk [vmem:[#allocation14 + $0x1a4] sm:$0xf] %vm2459, %v4670
        %s4679 = scalar_lea.vmem [#allocation15], 288
        %v4680 = vld [vmem:[%s4679] sm:$0xff]
        %v4681 = vld [vmem:[%s4679 + $0x8] sm:$0xf]
        %v4682 = vld [vmem:[%s4679 + $0xc] sm:$0xff]
        %v4683 = vld [vmem:[%s4679 + $0x14] sm:$0xf]
        %v4684 = vld [vmem:[#allocation14] sm:$0xf]
        %v4685 = vld [vmem:[#allocation14 + $0xc] sm:$0xf]
        %v4686 = vld [vmem:[#allocation14 + $0x18] sm:$0xf]
        %v4687 = vld [vmem:[#allocation14 + $0x24] sm:$0xf]
        %v4688 = vld [vmem:[#allocation14 + $0x30] sm:$0xf]
        %v4689 = vld [vmem:[#allocation14 + $0x3c] sm:$0xf]
        %v4690 = vld [vmem:[#allocation14 + $0x48] sm:$0xf]
        %v4691 = vld [vmem:[#allocation14 + $0x54] sm:$0xf]
        %v4692 = vld [vmem:[#allocation14 + $0x60] sm:$0xf]
        %v4693 = vld [vmem:[#allocation14 + $0x6c] sm:$0xf]
        %v4694 = vld [vmem:[#allocation14 + $0x78] sm:$0xf]
        %v4695 = vld [vmem:[#allocation14 + $0x84] sm:$0xf]
        %v4696 = vld [vmem:[#allocation14 + $0x90] sm:$0xf]
        %v4697 = vld [vmem:[#allocation14 + $0x9c] sm:$0xf]
        %v4698 = vld [vmem:[#allocation14 + $0xa8] sm:$0xf]
        %v4699 = vld [vmem:[#allocation14 + $0xb4] sm:$0xf]
        %v4700 = vld [vmem:[#allocation14 + $0xc0] sm:$0xf]
        %v4701 = vld [vmem:[#allocation14 + $0xcc] sm:$0xf]
        %v4702 = vld [vmem:[#allocation14 + $0xd8] sm:$0xf]
        %v4703 = vld [vmem:[#allocation14 + $0xe4] sm:$0xf]
        %v4704 = vld [vmem:[#allocation14 + $0xf0] sm:$0xf]
        %v4705 = vld [vmem:[#allocation14 + $0xfc] sm:$0xf]
        %v4706 = vld [vmem:[#allocation14 + $0x108] sm:$0xf]
        %v4707 = vld [vmem:[#allocation14 + $0x114] sm:$0xf]
        %v4708 = vld [vmem:[#allocation14 + $0x120] sm:$0xf]
        %v4709 = vld [vmem:[#allocation14 + $0x12c] sm:$0xf]
        %v4710 = vld [vmem:[#allocation14 + $0x138] sm:$0xf]
        %v4711 = vld [vmem:[#allocation14 + $0x144] sm:$0xf]
        %v4712 = vld [vmem:[#allocation14 + $0x150] sm:$0xf]
        %v4713 = vld [vmem:[#allocation14 + $0x15c] sm:$0xf]
        %v4714 = vld [vmem:[#allocation14 + $0x168] sm:$0xf]
        %v4715 = vld [vmem:[#allocation14 + $0x174] sm:$0xf]
        %v4716 = vld [vmem:[#allocation14 + $0x180] sm:$0xf]
        %v4717 = vld [vmem:[#allocation14 + $0x18c] sm:$0xf]
        %v4718 = vld [vmem:[#allocation14 + $0x198] sm:$0xf]
        %v4719 = vld [vmem:[#allocation14 + $0x1a4] sm:$0xf]
        %v4720 = vld [vmem:[#allocation8] sm:$0xff]
        %v4721 = vld [vmem:[#allocation8 + $0x8] sm:$0xff]
        %4724 = vrot.lane.b32.xlu0 %v4720, 7
        %v4725 = vpop.permute.xlu0 %4724
        %4726 = vrot.lane.b32.xlu0 %v4721, 7
        %v4727 = vpop.permute.xlu0 %4726
        %v4728 = vrot.slane %v4725, 4
        %v4729 = vrot.slane %v4727, 4
        %v4730 = vsel %vm2466, %v4725, %v4728
        %v4731 = vsel %vm2466, %v4727, %v4729
        %4734 = vst.msk [vmem:[#allocation14] sm:$0xf] %vm2459, %v4730
        %4735 = vst.msk [vmem:[#allocation14 + $0xc] sm:$0xf] %vm2459, %v4731
        %4736 = vrot.lane.b32.xlu0 %v4720, 6
        %v4737 = vpop.permute.xlu0 %4736
        %4738 = vrot.lane.b32.xlu0 %v4721, 6
        %v4739 = vpop.permute.xlu0 %4738
        %v4740 = vrot.slane %v4737, 4
        %v4741 = vrot.slane %v4739, 4
        %v4742 = vsel %vm2473, %v4737, %v4740
        %v4743 = vsel %vm2473, %v4739, %v4741
        %4746 = vst.msk [vmem:[#allocation14 + $0x30] sm:$0xf] %vm2459, %v4742
        %4747 = vst.msk [vmem:[#allocation14 + $0x3c] sm:$0xf] %vm2459, %v4743
        %4748 = vrot.lane.b32.xlu0 %v4720, 5
        %v4749 = vpop.permute.xlu0 %4748
        %4750 = vrot.lane.b32.xlu0 %v4721, 5
        %v4751 = vpop.permute.xlu0 %4750
        %v4752 = vrot.slane %v4749, 4
        %v4753 = vrot.slane %v4751, 4
        %v4754 = vsel %vm2480, %v4749, %v4752
        %v4755 = vsel %vm2480, %v4751, %v4753
        %4758 = vst.msk [vmem:[#allocation14 + $0x60] sm:$0xf] %vm2459, %v4754
        %4759 = vst.msk [vmem:[#allocation14 + $0x6c] sm:$0xf] %vm2459, %v4755
        %4760 = vrot.lane.b32.xlu0 %v4720, 1
        %v4761 = vpop.permute.xlu0 %4760
        %4762 = vrot.lane.b32.xlu0 %v4721, 1
        %v4763 = vpop.permute.xlu0 %4762
        %v4764 = vrot.slane %v4761, 4
        %v4765 = vrot.slane %v4763, 4
        %v4766 = vsel %vm1240, %v4761, %v4764
        %v4767 = vsel %vm1240, %v4763, %v4765
        %4770 = vst.msk [vmem:[#allocation14 + $0x90] sm:$0xf] %vm2459, %v4766
        %4771 = vst.msk [vmem:[#allocation14 + $0x9c] sm:$0xf] %vm2459, %v4767
        %v4772 = vrot.slane %v4720, 4
        %v4773 = vrot.slane %v4721, 4
        %4776 = vst.msk [vmem:[#allocation14 + $0xc0] sm:$0xf] %vm2459, %v4772
        %4777 = vst.msk [vmem:[#allocation14 + $0xcc] sm:$0xf] %vm2459, %v4773
        %4778 = vrot.lane.b32.xlu0 %v4720, 127
        %v4779 = vpop.permute.xlu0 %4778
        %4780 = vrot.lane.b32.xlu0 %v4721, 127
        %v4781 = vpop.permute.xlu0 %4780
        %v4782 = vrot.slane %v4779, 4
        %v4783 = vrot.slane %v4781, 4
        %4786 = vst.msk [vmem:[#allocation14 + $0xf0] sm:$0xf] %vm2459, %v4782
        %4787 = vst.msk [vmem:[#allocation14 + $0xfc] sm:$0xf] %vm2459, %v4783
        %4788 = vrot.lane.b32.xlu0 %v4720, 123
        %v4789 = vpop.permute.xlu0 %4788
        %4790 = vrot.lane.b32.xlu0 %v4721, 123
        %v4791 = vpop.permute.xlu0 %4790
        %v4792 = vrot.slane %v4789, 4
        %v4793 = vrot.slane %v4791, 4
        %4796 = vst.msk [vmem:[#allocation14 + $0x120] sm:$0xf] %vm2459, %v4792
        %4797 = vst.msk [vmem:[#allocation14 + $0x12c] sm:$0xf] %vm2459, %v4793
        %4798 = vrot.lane.b32.xlu0 %v4720, 122
        %v4799 = vpop.permute.xlu0 %4798
        %4800 = vrot.lane.b32.xlu0 %v4721, 122
        %v4801 = vpop.permute.xlu0 %4800
        %v4802 = vrot.slane %v4799, 4
        %v4803 = vrot.slane %v4801, 4
        %4806 = vst.msk [vmem:[#allocation14 + $0x150] sm:$0xf] %vm2459, %v4802
        %4807 = vst.msk [vmem:[#allocation14 + $0x15c] sm:$0xf] %vm2459, %v4803
        %4808 = vrot.lane.b32.xlu0 %v4720, 121
        %v4809 = vpop.permute.xlu0 %4808
        %4810 = vrot.lane.b32.xlu0 %v4721, 121
        %v4811 = vpop.permute.xlu0 %4810
        %v4812 = vrot.slane %v4809, 4
        %v4813 = vrot.slane %v4811, 4
        %4816 = vst.msk [vmem:[#allocation14 + $0x180] sm:$0xf] %vm2459, %v4812
        %4817 = vst.msk [vmem:[#allocation14 + $0x18c] sm:$0xf] %vm2459, %v4813
        %s4818 = scalar_lea.vmem [#allocation15], 336
        %v4819 = vld [vmem:[%s4818] sm:$0xff]
        %v4820 = vld [vmem:[%s4818 + $0x8] sm:$0xf]
        %v4821 = vld [vmem:[%s4818 + $0xc] sm:$0xff]
        %v4822 = vld [vmem:[%s4818 + $0x14] sm:$0xf]
        %v4823 = vld [vmem:[#allocation14] sm:$0xf]
        %v4824 = vld [vmem:[#allocation14 + $0xc] sm:$0xf]
        %v4825 = vld [vmem:[#allocation14 + $0x18] sm:$0xf]
        %v4826 = vld [vmem:[#allocation14 + $0x24] sm:$0xf]
        %v4827 = vld [vmem:[#allocation14 + $0x30] sm:$0xf]
        %v4828 = vld [vmem:[#allocation14 + $0x3c] sm:$0xf]
        %v4829 = vld [vmem:[#allocation14 + $0x48] sm:$0xf]
        %v4830 = vld [vmem:[#allocation14 + $0x54] sm:$0xf]
        %v4831 = vld [vmem:[#allocation14 + $0x60] sm:$0xf]
        %v4832 = vld [vmem:[#allocation14 + $0x6c] sm:$0xf]
        %v4833 = vld [vmem:[#allocation14 + $0x78] sm:$0xf]
        %v4834 = vld [vmem:[#allocation14 + $0x84] sm:$0xf]
        %v4835 = vld [vmem:[#allocation14 + $0x90] sm:$0xf]
        %v4836 = vld [vmem:[#allocation14 + $0x9c] sm:$0xf]
        %v4837 = vld [vmem:[#allocation14 + $0xa8] sm:$0xf]
        %v4838 = vld [vmem:[#allocation14 + $0xb4] sm:$0xf]
        %v4839 = vld [vmem:[#allocation14 + $0xc0] sm:$0xf]
        %v4840 = vld [vmem:[#allocation14 + $0xcc] sm:$0xf]
        %v4841 = vld [vmem:[#allocation14 + $0xd8] sm:$0xf]
        %v4842 = vld [vmem:[#allocation14 + $0xe4] sm:$0xf]
        %v4843 = vld [vmem:[#allocation14 + $0xf0] sm:$0xf]
        %v4844 = vld [vmem:[#allocation14 + $0xfc] sm:$0xf]
        %v4845 = vld [vmem:[#allocation14 + $0x108] sm:$0xf]
        %v4846 = vld [vmem:[#allocation14 + $0x114] sm:$0xf]
        %v4847 = vld [vmem:[#allocation14 + $0x120] sm:$0xf]
        %v4848 = vld [vmem:[#allocation14 + $0x12c] sm:$0xf]
        %v4849 = vld [vmem:[#allocation14 + $0x138] sm:$0xf]
        %v4850 = vld [vmem:[#allocation14 + $0x144] sm:$0xf]
        %v4851 = vld [vmem:[#allocation14 + $0x150] sm:$0xf]
        %v4852 = vld [vmem:[#allocation14 + $0x15c] sm:$0xf]
        %v4853 = vld [vmem:[#allocation14 + $0x168] sm:$0xf]
        %v4854 = vld [vmem:[#allocation14 + $0x174] sm:$0xf]
        %v4855 = vld [vmem:[#allocation14 + $0x180] sm:$0xf]
        %v4856 = vld [vmem:[#allocation14 + $0x18c] sm:$0xf]
        %v4857 = vld [vmem:[#allocation14 + $0x198] sm:$0xf]
        %v4858 = vld [vmem:[#allocation14 + $0x1a4] sm:$0xf]
        %v4863 = vunpack.c.l.b16 %v4819
        %v4864 = vunpack.c.h.b16 %v4819
        %v4865 = vunpack.c.l.b16 %v4820
        %v4866 = vunpack.c.l.b16 %v4821
        %v4867 = vunpack.c.h.b16 %v4821
        %v4868 = vunpack.c.l.b16 %v4822
        %v4869 = vpack.c.b16 %v4866, %v4863
        %v4870 = vpack.c.b16 %v4867, %v4864
        %v4871 = vpack.c.b16 %v4868, %v4865
        %v4910 = vunpack.c.l.b16 %v4823
        %v4911 = vunpack.c.l.b16 %v4824
        %v4912 = vunpack.c.l.b16 %v4825
        %v4913 = vunpack.c.l.b16 %v4826
        %v4914 = vunpack.c.l.b16 %v4827
        %v4915 = vunpack.c.l.b16 %v4828
        %v4916 = vunpack.c.l.b16 %v4829
        %v4917 = vunpack.c.l.b16 %v4830
        %v4918 = vunpack.c.l.b16 %v4831
        %v4919 = vunpack.c.l.b16 %v4832
        %v4920 = vunpack.c.l.b16 %v4833
        %v4921 = vunpack.c.l.b16 %v4834
        %v4922 = vunpack.c.l.b16 %v4835
        %v4923 = vunpack.c.l.b16 %v4836
        %v4924 = vunpack.c.l.b16 %v4837
        %v4925 = vunpack.c.l.b16 %v4838
        %v4926 = vunpack.c.l.b16 %v4839
        %v4927 = vunpack.c.l.b16 %v4840
        %v4928 = vunpack.c.l.b16 %v4841
        %v4929 = vunpack.c.l.b16 %v4842
        %v4930 = vunpack.c.l.b16 %v4843
        %v4931 = vunpack.c.l.b16 %v4844
        %v4932 = vunpack.c.l.b16 %v4845
        %v4933 = vunpack.c.l.b16 %v4846
        %v4934 = vunpack.c.l.b16 %v4847
        %v4935 = vunpack.c.l.b16 %v4848
        %v4936 = vunpack.c.l.b16 %v4849
        %v4937 = vunpack.c.l.b16 %v4850
        %v4938 = vunpack.c.l.b16 %v4851
        %v4939 = vunpack.c.l.b16 %v4852
        %v4940 = vunpack.c.l.b16 %v4853
        %v4941 = vunpack.c.l.b16 %v4854
        %v4942 = vunpack.c.l.b16 %v4855
        %v4943 = vunpack.c.l.b16 %v4856
        %v4944 = vunpack.c.l.b16 %v4857
        %v4945 = vunpack.c.l.b16 %v4858
        %v4946 = vpack.c.b16 %v4911, %v4910
        %v4947 = vpack.c.b16 %v4913, %v4912
        %v4948 = vpack.c.b16 %v4915, %v4914
        %v4949 = vpack.c.b16 %v4917, %v4916
        %v4950 = vpack.c.b16 %v4919, %v4918
        %v4951 = vpack.c.b16 %v4921, %v4920
        %v4952 = vpack.c.b16 %v4923, %v4922
        %v4953 = vpack.c.b16 %v4925, %v4924
        %v4954 = vpack.c.b16 %v4927, %v4926
        %v4955 = vpack.c.b16 %v4929, %v4928
        %v4956 = vpack.c.b16 %v4931, %v4930
        %v4957 = vpack.c.b16 %v4933, %v4932
        %v4958 = vpack.c.b16 %v4935, %v4934
        %v4959 = vpack.c.b16 %v4937, %v4936
        %v4960 = vpack.c.b16 %v4939, %v4938
        %v4961 = vpack.c.b16 %v4941, %v4940
        %v4962 = vpack.c.b16 %v4943, %v4942
        %v4963 = vpack.c.b16 %v4945, %v4944
        %v4983 = vsel %vm1727, %v4871, 0
        %4985 = vmatpush.bf16.msra.mxu0 %v4953
        %4986 = vmatpush.bf16.msra.mxu0 %v4952
        %4987 = vmatpush.bf16.msra.mxu0 %v4951
        %4988 = vmatpush.bf16.msra.mxu0 %v4950
        %4989 = vmatpush.bf16.msra.mxu0 %v4949
        %4990 = vmatpush.bf16.msra.mxu0 %v4948
        %4991 = vmatpush.bf16.msra.mxu0 %v4947
        %4992 = vmatpush.bf16.msra.mxu0 %v4946
        %4993 = vmatmul.bf16.gmra.mxu0 %v4869
        %v4994 = vpop.f32.mrf.mxu0
        %v4995 = vadd.f32 0.0, %v4994
        %v4996 = vpop.f32.mrf.mxu0
        %v4997 = vadd.f32 0.0, %v4996
        %4998 = vdwg.mxu0
        %4999 = vmatpush.bf16.msra.mxu0 %v4961
        %5000 = vmatpush.bf16.msra.mxu0 %v4960
        %5001 = vmatpush.bf16.msra.mxu0 %v4959
        %5002 = vmatpush.bf16.msra.mxu0 %v4958
        %5003 = vmatpush.bf16.msra.mxu0 %v4957
        %5004 = vmatpush.bf16.msra.mxu0 %v4956
        %5005 = vmatpush.bf16.msra.mxu0 %v4955
        %5006 = vmatpush.bf16.msra.mxu0 %v4954
        %5007 = vmatmul.bf16.gmra.mxu0 %v4870
        %v5008 = vpop.f32.mrf.mxu0
        %v5009 = vadd.f32 %v4995, %v5008
        %v5010 = vpop.f32.mrf.mxu0
        %v5011 = vadd.f32 %v4997, %v5010
        %5012 = vdwg.mxu0
        %5013 = vmatpush.bf16.msra.mxu0 0
        %5014 = vmatpush.bf16.msra.mxu0 0
        %5015 = vmatpush.bf16.msra.mxu0 0
        %5016 = vmatpush.bf16.msra.mxu0 0
        %5017 = vmatpush.bf16.msra.mxu0 0
        %5018 = vmatpush.bf16.msra.mxu0 0
        %5019 = vmatpush.bf16.msra.mxu0 %v4963
        %5020 = vmatpush.bf16.msra.mxu0 %v4962
        %5021 = vmatmul.bf16.gmra.mxu0 %v4983
        %v5022 = vpop.f32.mrf.mxu0
        %v5023 = vadd.f32 %v5009, %v5022
        %v5024 = vpop.f32.mrf.mxu0
        %v5025 = vadd.f32 %v5011, %v5024
        %5026 = vdwg.mxu0
        %v5031 = vunpack.c.l.b16 %v4680
        %v5032 = vunpack.c.h.b16 %v4680
        %v5033 = vunpack.c.l.b16 %v4681
        %v5034 = vunpack.c.l.b16 %v4682
        %v5035 = vunpack.c.h.b16 %v4682
        %v5036 = vunpack.c.l.b16 %v4683
        %v5037 = vpack.c.b16 %v5034, %v5031
        %v5038 = vpack.c.b16 %v5035, %v5032
        %v5039 = vpack.c.b16 %v5036, %v5033
        %v5078 = vunpack.c.l.b16 %v4684
        %v5079 = vunpack.c.l.b16 %v4685
        %v5080 = vunpack.c.l.b16 %v4686
        %v5081 = vunpack.c.l.b16 %v4687
        %v5082 = vunpack.c.l.b16 %v4688
        %v5083 = vunpack.c.l.b16 %v4689
        %v5084 = vunpack.c.l.b16 %v4690
        %v5085 = vunpack.c.l.b16 %v4691
        %v5086 = vunpack.c.l.b16 %v4692
        %v5087 = vunpack.c.l.b16 %v4693
        %v5088 = vunpack.c.l.b16 %v4694
        %v5089 = vunpack.c.l.b16 %v4695
        %v5090 = vunpack.c.l.b16 %v4696
        %v5091 = vunpack.c.l.b16 %v4697
        %v5092 = vunpack.c.l.b16 %v4698
        %v5093 = vunpack.c.l.b16 %v4699
        %v5094 = vunpack.c.l.b16 %v4700
        %v5095 = vunpack.c.l.b16 %v4701
        %v5096 = vunpack.c.l.b16 %v4702
        %v5097 = vunpack.c.l.b16 %v4703
        %v5098 = vunpack.c.l.b16 %v4704
        %v5099 = vunpack.c.l.b16 %v4705
        %v5100 = vunpack.c.l.b16 %v4706
        %v5101 = vunpack.c.l.b16 %v4707
        %v5102 = vunpack.c.l.b16 %v4708
        %v5103 = vunpack.c.l.b16 %v4709
        %v5104 = vunpack.c.l.b16 %v4710
        %v5105 = vunpack.c.l.b16 %v4711
        %v5106 = vunpack.c.l.b16 %v4712
        %v5107 = vunpack.c.l.b16 %v4713
        %v5108 = vunpack.c.l.b16 %v4714
        %v5109 = vunpack.c.l.b16 %v4715
        %v5110 = vunpack.c.l.b16 %v4716
        %v5111 = vunpack.c.l.b16 %v4717
        %v5112 = vunpack.c.l.b16 %v4718
        %v5113 = vunpack.c.l.b16 %v4719
        %v5114 = vpack.c.b16 %v5079, %v5078
        %v5115 = vpack.c.b16 %v5081, %v5080
        %v5116 = vpack.c.b16 %v5083, %v5082
        %v5117 = vpack.c.b16 %v5085, %v5084
        %v5118 = vpack.c.b16 %v5087, %v5086
        %v5119 = vpack.c.b16 %v5089, %v5088
        %v5120 = vpack.c.b16 %v5091, %v5090
        %v5121 = vpack.c.b16 %v5093, %v5092
        %v5122 = vpack.c.b16 %v5095, %v5094
        %v5123 = vpack.c.b16 %v5097, %v5096
        %v5124 = vpack.c.b16 %v5099, %v5098
        %v5125 = vpack.c.b16 %v5101, %v5100
        %v5126 = vpack.c.b16 %v5103, %v5102
        %v5127 = vpack.c.b16 %v5105, %v5104
        %v5128 = vpack.c.b16 %v5107, %v5106
        %v5129 = vpack.c.b16 %v5109, %v5108
        %v5130 = vpack.c.b16 %v5111, %v5110
        %v5131 = vpack.c.b16 %v5113, %v5112
        %v5151 = vsel %vm1727, %v5039, 0
        %5153 = vmatpush.bf16.msra.mxu0 %v5121
        %5154 = vmatpush.bf16.msra.mxu0 %v5120
        %5155 = vmatpush.bf16.msra.mxu0 %v5119
        %5156 = vmatpush.bf16.msra.mxu0 %v5118
        %5157 = vmatpush.bf16.msra.mxu0 %v5117
        %5158 = vmatpush.bf16.msra.mxu0 %v5116
        %5159 = vmatpush.bf16.msra.mxu0 %v5115
        %5160 = vmatpush.bf16.msra.mxu0 %v5114
        %5161 = vmatmul.bf16.gmra.mxu0 %v5037
        %v5162 = vpop.f32.mrf.mxu0
        %v5163 = vadd.f32 %v5023, %v5162
        %v5164 = vpop.f32.mrf.mxu0
        %v5165 = vadd.f32 %v5025, %v5164
        %5166 = vdwg.mxu0
        %5167 = vmatpush.bf16.msra.mxu0 %v5129
        %5168 = vmatpush.bf16.msra.mxu0 %v5128
        %5169 = vmatpush.bf16.msra.mxu0 %v5127
        %5170 = vmatpush.bf16.msra.mxu0 %v5126
        %5171 = vmatpush.bf16.msra.mxu0 %v5125
        %5172 = vmatpush.bf16.msra.mxu0 %v5124
        %5173 = vmatpush.bf16.msra.mxu0 %v5123
        %5174 = vmatpush.bf16.msra.mxu0 %v5122
        %5175 = vmatmul.bf16.gmra.mxu0 %v5038
        %v5176 = vpop.f32.mrf.mxu0
        %v5177 = vadd.f32 %v5163, %v5176
        %v5178 = vpop.f32.mrf.mxu0
        %v5179 = vadd.f32 %v5165, %v5178
        %5180 = vdwg.mxu0
        %5181 = vmatpush.bf16.msra.mxu0 0
        %5182 = vmatpush.bf16.msra.mxu0 0
        %5183 = vmatpush.bf16.msra.mxu0 0
        %5184 = vmatpush.bf16.msra.mxu0 0
        %5185 = vmatpush.bf16.msra.mxu0 0
        %5186 = vmatpush.bf16.msra.mxu0 0
        %5187 = vmatpush.bf16.msra.mxu0 %v5131
        %5188 = vmatpush.bf16.msra.mxu0 %v5130
        %5189 = vmatmul.bf16.gmra.mxu0 %v5151
        %v5190 = vpop.f32.mrf.mxu0
        %v5191 = vadd.f32 %v5177, %v5190
        %v5192 = vpop.f32.mrf.mxu0
        %v5193 = vadd.f32 %v5179, %v5192
        %5194 = vdwg.mxu0
        %s5195 = scalar_lea.vmem [#allocation17], 160
        %v5196 = vld [vmem:[%s5195] sm:$0xff]
        %v5197 = vld [vmem:[%s5195 + $0x8] sm:$0xff]
        %5199 = vset.pattern.permute.xlu0 0
        %5200 = vperm.xlu0 %5199, %v5196
        %v5201 = vpop.permute.xlu0 %5200
        %5204 = vset.pattern.permute.xlu0 0
        %5205 = vperm.xlu0 %5204, %v5197
        %v5206 = vpop.permute.xlu0 %5205
        %v5208 = vmul.f32 %v5191, %v5201
        %v5209 = vmul.f32 %v5193, %v5206
        %s5210 = scalar_lea.vmem [#allocation19], 160
        %v5211 = vld [vmem:[%s5210] sm:$0xff]
        %v5212 = vld [vmem:[%s5210 + $0x8] sm:$0xff]
        %5214 = vset.pattern.permute.xlu0 0
        %5215 = vperm.xlu0 %5214, %v5211
        %v5216 = vpop.permute.xlu0 %5215
        %5219 = vset.pattern.permute.xlu0 0
        %5220 = vperm.xlu0 %5219, %v5212
        %v5221 = vpop.permute.xlu0 %5220
        %v5223 = vadd.f32 %v5208, %v5216
        %v5224 = vadd.f32 %v5209, %v5221
        %v5225 = vmax.f32 %v5223, 0.0
        %v5226 = vmax.f32 %v5224, 0.0
        %v5227 = vld [vmem:[#allocation31] sm:$0xff]
        %v5228 = vld [vmem:[#allocation31 + $0x8] sm:$0xff]
        %v5229 = vld [vmem:[#allocation31 + $0x10] sm:$0xff]
        %v5230 = vld [vmem:[#allocation31 + $0x18] sm:$0xff]
        %v5231 = vld [vmem:[#allocation31 + $0x20] sm:$0xf]
        %v5233 = vsel %vm2825, %v5225, 0
        %v5236 = vsel %vm2825, %v5226, 0
        %v5239 = vsel %vm798, %v5231, 0
        %5241 = vmatpush.msra.mxu0 0.0
        %5242 = vmatpush.msra.mxu0 0.0
        %5243 = vmatpush.msra.mxu0 0.0
        %5244 = vmatpush.msra.mxu0 0.0
        %5245 = vmatpush.msra.mxu0 0.0
        %5246 = vmatpush.msra.mxu0 0.0
        %5247 = vmatpush.msra.mxu0 0.0
        %5248 = vmatpush.msra.mxu0 0.0
        %5249 = vmatpush.msra.mxu0 0.0
        %5250 = vmatpush.msra.mxu0 0.0
        %5251 = vmatpush.msra.mxu0 0.0
        %5252 = vmatpush.msra.mxu0 %v5239
        %5253 = vmatpush.msra.mxu0 %v5230
        %5254 = vmatpush.msra.mxu0 %v5229
        %5255 = vmatpush.msra.mxu0 %v5228
        %5256 = vmatpush.msra.mxu0 %v5227
        %5257 = vmatmul.f32.gmra.mxu0 %v5233
        %v5258 = vpop.f32.mrf.mxu0
        %v5259 = vadd.f32 0.0, %v5258
        %5260 = vmatmul.f32.gmra.mxu0 %v5236
        %v5261 = vpop.f32.mrf.mxu0
        %v5262 = vadd.f32 0.0, %v5261
        %5263 = vdwg.mxu0
        %v5264 = vpack.c.bf16 %v5259, %v5259
        %v5265 = vpack.c.bf16 %v5262, %v5262
        %5266 = vst.msk [vmem:[#allocation12 + $0x4] sm:$0xf] %vm2387, %v5264
        %5267 = vst.msk [vmem:[#allocation12 + $0xc] sm:$0xf] %vm2387, %v5265
        %v5268 = vld [vmem:[#allocation12] sm:$0xff]
        %v5269 = vld [vmem:[#allocation12 + $0x8] sm:$0xff]
        %5272 = vrot.lane.b32.xlu0 %v5268, 11
        %v5273 = vpop.permute.xlu0 %5272
        %5274 = vrot.lane.b32.xlu0 %v5269, 11
        %v5275 = vpop.permute.xlu0 %5274
        %v5276 = vrot.slane %v5273, 4
        %v5277 = vrot.slane %v5275, 4
        %v5278 = vsel %vm2093, %v5273, %v5276
        %v5279 = vsel %vm2093, %v5275, %v5277
        %5282 = vst.msk [vmem:[#allocation14] sm:$0xf] %vm2387, %v5278
        %5283 = vst.msk [vmem:[#allocation14 + $0xc] sm:$0xf] %vm2387, %v5279
        %5284 = vrot.lane.b32.xlu0 %v5268, 10
        %v5285 = vpop.permute.xlu0 %5284
        %5286 = vrot.lane.b32.xlu0 %v5269, 10
        %v5287 = vpop.permute.xlu0 %5286
        %v5288 = vrot.slane %v5285, 4
        %v5289 = vrot.slane %v5287, 4
        %v5290 = vsel %vm2103, %v5285, %v5288
        %v5291 = vsel %vm2103, %v5287, %v5289
        %5294 = vst.msk [vmem:[#allocation14 + $0x30] sm:$0xf] %vm2387, %v5290
        %5295 = vst.msk [vmem:[#allocation14 + $0x3c] sm:$0xf] %vm2387, %v5291
        %5296 = vrot.lane.b32.xlu0 %v5268, 9
        %v5297 = vpop.permute.xlu0 %5296
        %5298 = vrot.lane.b32.xlu0 %v5269, 9
        %v5299 = vpop.permute.xlu0 %5298
        %v5300 = vrot.slane %v5297, 4
        %v5301 = vrot.slane %v5299, 4
        %v5302 = vsel %vm2113, %v5297, %v5300
        %v5303 = vsel %vm2113, %v5299, %v5301
        %5306 = vst.msk [vmem:[#allocation14 + $0x60] sm:$0xf] %vm2387, %v5302
        %5307 = vst.msk [vmem:[#allocation14 + $0x6c] sm:$0xf] %vm2387, %v5303
        %5308 = vrot.lane.b32.xlu0 %v5268, 1
        %v5309 = vpop.permute.xlu0 %5308
        %5310 = vrot.lane.b32.xlu0 %v5269, 1
        %v5311 = vpop.permute.xlu0 %5310
        %v5312 = vrot.slane %v5309, 4
        %v5313 = vrot.slane %v5311, 4
        %v5314 = vsel %vm1240, %v5309, %v5312
        %v5315 = vsel %vm1240, %v5311, %v5313
        %5318 = vst.msk [vmem:[#allocation14 + $0x90] sm:$0xf] %vm2387, %v5314
        %5319 = vst.msk [vmem:[#allocation14 + $0x9c] sm:$0xf] %vm2387, %v5315
        %v5320 = vrot.slane %v5268, 4
        %v5321 = vrot.slane %v5269, 4
        %5324 = vst.msk [vmem:[#allocation14 + $0xc0] sm:$0xf] %vm2387, %v5320
        %5325 = vst.msk [vmem:[#allocation14 + $0xcc] sm:$0xf] %vm2387, %v5321
        %5326 = vrot.lane.b32.xlu0 %v5268, 127
        %v5327 = vpop.permute.xlu0 %5326
        %5328 = vrot.lane.b32.xlu0 %v5269, 127
        %v5329 = vpop.permute.xlu0 %5328
        %v5330 = vrot.slane %v5327, 4
        %v5331 = vrot.slane %v5329, 4
        %5334 = vst.msk [vmem:[#allocation14 + $0xf0] sm:$0xf] %vm2387, %v5330
        %5335 = vst.msk [vmem:[#allocation14 + $0xfc] sm:$0xf] %vm2387, %v5331
        %5336 = vrot.lane.b32.xlu0 %v5268, 119
        %v5337 = vpop.permute.xlu0 %5336
        %5338 = vrot.lane.b32.xlu0 %v5269, 119
        %v5339 = vpop.permute.xlu0 %5338
        %v5340 = vrot.slane %v5337, 4
        %v5341 = vrot.slane %v5339, 4
        %5344 = vst.msk [vmem:[#allocation14 + $0x120] sm:$0xf] %vm2387, %v5340
        %5345 = vst.msk [vmem:[#allocation14 + $0x12c] sm:$0xf] %vm2387, %v5341
        %5346 = vrot.lane.b32.xlu0 %v5268, 118
        %v5347 = vpop.permute.xlu0 %5346
        %5348 = vrot.lane.b32.xlu0 %v5269, 118
        %v5349 = vpop.permute.xlu0 %5348
        %v5350 = vrot.slane %v5347, 4
        %v5351 = vrot.slane %v5349, 4
        %5354 = vst.msk [vmem:[#allocation14 + $0x150] sm:$0xf] %vm2387, %v5350
        %5355 = vst.msk [vmem:[#allocation14 + $0x15c] sm:$0xf] %vm2387, %v5351
        %5356 = vrot.lane.b32.xlu0 %v5268, 117
        %v5357 = vpop.permute.xlu0 %5356
        %5358 = vrot.lane.b32.xlu0 %v5269, 117
        %v5359 = vpop.permute.xlu0 %5358
        %v5360 = vrot.slane %v5357, 4
        %v5361 = vrot.slane %v5359, 4
        %5364 = vst.msk [vmem:[#allocation14 + $0x180] sm:$0xf] %vm2387, %v5360
        %5365 = vst.msk [vmem:[#allocation14 + $0x18c] sm:$0xf] %vm2387, %v5361
        %s5366 = scalar_lea.vmem [#allocation15], 384
        %v5367 = vld [vmem:[%s5366] sm:$0xff]
        %v5368 = vld [vmem:[%s5366 + $0x8] sm:$0xf]
        %v5369 = vld [vmem:[#allocation14] sm:$0xf]
        %v5370 = vld [vmem:[#allocation14 + $0xc] sm:$0xf]
        %v5371 = vld [vmem:[#allocation14 + $0x18] sm:$0xf]
        %v5372 = vld [vmem:[#allocation14 + $0x24] sm:$0xf]
        %v5373 = vld [vmem:[#allocation14 + $0x30] sm:$0xf]
        %v5374 = vld [vmem:[#allocation14 + $0x3c] sm:$0xf]
        %v5375 = vld [vmem:[#allocation14 + $0x48] sm:$0xf]
        %v5376 = vld [vmem:[#allocation14 + $0x54] sm:$0xf]
        %v5377 = vld [vmem:[#allocation14 + $0x60] sm:$0xf]
        %v5378 = vld [vmem:[#allocation14 + $0x6c] sm:$0xf]
        %v5379 = vld [vmem:[#allocation14 + $0x78] sm:$0xf]
        %v5380 = vld [vmem:[#allocation14 + $0x84] sm:$0xf]
        %v5381 = vld [vmem:[#allocation14 + $0x90] sm:$0xf]
        %v5382 = vld [vmem:[#allocation14 + $0x9c] sm:$0xf]
        %v5383 = vld [vmem:[#allocation14 + $0xa8] sm:$0xf]
        %v5384 = vld [vmem:[#allocation14 + $0xb4] sm:$0xf]
        %v5385 = vld [vmem:[#allocation14 + $0xc0] sm:$0xf]
        %v5386 = vld [vmem:[#allocation14 + $0xcc] sm:$0xf]
        %v5387 = vld [vmem:[#allocation14 + $0xd8] sm:$0xf]
        %v5388 = vld [vmem:[#allocation14 + $0xe4] sm:$0xf]
        %v5389 = vld [vmem:[#allocation14 + $0xf0] sm:$0xf]
        %v5390 = vld [vmem:[#allocation14 + $0xfc] sm:$0xf]
        %v5391 = vld [vmem:[#allocation14 + $0x108] sm:$0xf]
        %v5392 = vld [vmem:[#allocation14 + $0x114] sm:$0xf]
        %v5393 = vld [vmem:[#allocation14 + $0x120] sm:$0xf]
        %v5394 = vld [vmem:[#allocation14 + $0x12c] sm:$0xf]
        %v5395 = vld [vmem:[#allocation14 + $0x138] sm:$0xf]
        %v5396 = vld [vmem:[#allocation14 + $0x144] sm:$0xf]
        %v5397 = vld [vmem:[#allocation14 + $0x150] sm:$0xf]
        %v5398 = vld [vmem:[#allocation14 + $0x15c] sm:$0xf]
        %v5399 = vld [vmem:[#allocation14 + $0x168] sm:$0xf]
        %v5400 = vld [vmem:[#allocation14 + $0x174] sm:$0xf]
        %v5401 = vld [vmem:[#allocation14 + $0x180] sm:$0xf]
        %v5402 = vld [vmem:[#allocation14 + $0x18c] sm:$0xf]
        %v5403 = vld [vmem:[#allocation14 + $0x198] sm:$0xf]
        %v5404 = vld [vmem:[#allocation14 + $0x1a4] sm:$0xf]
        %v5405 = vld [vmem:[#allocation7] sm:$0xff]
        %5407 = vrot.lane.b32.xlu0 %v5405, 11
        %v5408 = vpop.permute.xlu0 %5407
        %v5409 = vrot.slane %v5408, 4
        %v5410 = vsel %vm2093, %v5408, %v5409
        %5412 = vst.msk [vmem:[#allocation14] sm:$0xf] %vm2387, %v5410
        %5413 = vrot.lane.b32.xlu0 %v5405, 10
        %v5414 = vpop.permute.xlu0 %5413
        %v5415 = vrot.slane %v5414, 4
        %v5416 = vsel %vm2103, %v5414, %v5415
        %5418 = vst.msk [vmem:[#allocation14 + $0x30] sm:$0xf] %vm2387, %v5416
        %5419 = vrot.lane.b32.xlu0 %v5405, 9
        %v5420 = vpop.permute.xlu0 %5419
        %v5421 = vrot.slane %v5420, 4
        %v5422 = vsel %vm2113, %v5420, %v5421
        %5424 = vst.msk [vmem:[#allocation14 + $0x60] sm:$0xf] %vm2387, %v5422
        %5425 = vrot.lane.b32.xlu0 %v5405, 1
        %v5426 = vpop.permute.xlu0 %5425
        %v5427 = vrot.slane %v5426, 4
        %v5428 = vsel %vm1240, %v5426, %v5427
        %5430 = vst.msk [vmem:[#allocation14 + $0x90] sm:$0xf] %vm2387, %v5428
        %v5431 = vrot.slane %v5405, 4
        %5433 = vst.msk [vmem:[#allocation14 + $0xc0] sm:$0xf] %vm2387, %v5431
        %5434 = vrot.lane.b32.xlu0 %v5405, 127
        %v5435 = vpop.permute.xlu0 %5434
        %v5436 = vrot.slane %v5435, 4
        %5438 = vst.msk [vmem:[#allocation14 + $0xf0] sm:$0xf] %vm2387, %v5436
        %5439 = vrot.lane.b32.xlu0 %v5405, 119
        %v5440 = vpop.permute.xlu0 %5439
        %v5441 = vrot.slane %v5440, 4
        %5443 = vst.msk [vmem:[#allocation14 + $0x120] sm:$0xf] %vm2387, %v5441
        %5444 = vrot.lane.b32.xlu0 %v5405, 118
        %v5445 = vpop.permute.xlu0 %5444
        %v5446 = vrot.slane %v5445, 4
        %5448 = vst.msk [vmem:[#allocation14 + $0x150] sm:$0xf] %vm2387, %v5446
        %5449 = vrot.lane.b32.xlu0 %v5405, 117
        %v5450 = vpop.permute.xlu0 %5449
        %v5451 = vrot.slane %v5450, 4
        %5453 = vst.msk [vmem:[#allocation14 + $0x180] sm:$0xf] %vm2387, %v5451
        %s5454 = scalar_lea.vmem [#allocation15], 432
        %v5455 = vld [vmem:[%s5454] sm:$0xff]
        %v5456 = vld [vmem:[%s5454 + $0x8] sm:$0xf]
        %v5457 = vld [vmem:[#allocation14] sm:$0xf]
        %v5458 = vld [vmem:[#allocation14 + $0xc] sm:$0xf]
        %v5459 = vld [vmem:[#allocation14 + $0x18] sm:$0xf]
        %v5460 = vld [vmem:[#allocation14 + $0x24] sm:$0xf]
        %v5461 = vld [vmem:[#allocation14 + $0x30] sm:$0xf]
        %v5462 = vld [vmem:[#allocation14 + $0x3c] sm:$0xf]
        %v5463 = vld [vmem:[#allocation14 + $0x48] sm:$0xf]
        %v5464 = vld [vmem:[#allocation14 + $0x54] sm:$0xf]
        %v5465 = vld [vmem:[#allocation14 + $0x60] sm:$0xf]
        %v5466 = vld [vmem:[#allocation14 + $0x6c] sm:$0xf]
        %v5467 = vld [vmem:[#allocation14 + $0x78] sm:$0xf]
        %v5468 = vld [vmem:[#allocation14 + $0x84] sm:$0xf]
        %v5469 = vld [vmem:[#allocation14 + $0x90] sm:$0xf]
        %v5470 = vld [vmem:[#allocation14 + $0x9c] sm:$0xf]
        %v5471 = vld [vmem:[#allocation14 + $0xa8] sm:$0xf]
        %v5472 = vld [vmem:[#allocation14 + $0xb4] sm:$0xf]
        %v5473 = vld [vmem:[#allocation14 + $0xc0] sm:$0xf]
        %v5474 = vld [vmem:[#allocation14 + $0xcc] sm:$0xf]
        %v5475 = vld [vmem:[#allocation14 + $0xd8] sm:$0xf]
        %v5476 = vld [vmem:[#allocation14 + $0xe4] sm:$0xf]
        %v5477 = vld [vmem:[#allocation14 + $0xf0] sm:$0xf]
        %v5478 = vld [vmem:[#allocation14 + $0xfc] sm:$0xf]
        %v5479 = vld [vmem:[#allocation14 + $0x108] sm:$0xf]
        %v5480 = vld [vmem:[#allocation14 + $0x114] sm:$0xf]
        %v5481 = vld [vmem:[#allocation14 + $0x120] sm:$0xf]
        %v5482 = vld [vmem:[#allocation14 + $0x12c] sm:$0xf]
        %v5483 = vld [vmem:[#allocation14 + $0x138] sm:$0xf]
        %v5484 = vld [vmem:[#allocation14 + $0x144] sm:$0xf]
        %v5485 = vld [vmem:[#allocation14 + $0x150] sm:$0xf]
        %v5486 = vld [vmem:[#allocation14 + $0x15c] sm:$0xf]
        %v5487 = vld [vmem:[#allocation14 + $0x168] sm:$0xf]
        %v5488 = vld [vmem:[#allocation14 + $0x174] sm:$0xf]
        %v5489 = vld [vmem:[#allocation14 + $0x180] sm:$0xf]
        %v5490 = vld [vmem:[#allocation14 + $0x18c] sm:$0xf]
        %v5491 = vld [vmem:[#allocation14 + $0x198] sm:$0xf]
        %v5492 = vld [vmem:[#allocation14 + $0x1a4] sm:$0xf]
        %v5495 = vunpack.c.l.b16 %v5455
        %v5496 = vunpack.c.h.b16 %v5455
        %v5497 = vunpack.c.l.b16 %v5456
        %v5498 = vpack.c.b16 %v5495, %v5495
        %v5499 = vpack.c.b16 %v5496, %v5496
        %v5500 = vpack.c.b16 %v5497, %v5497
        %v5539 = vunpack.c.l.b16 %v5457
        %v5540 = vunpack.c.l.b16 %v5458
        %v5541 = vunpack.c.l.b16 %v5459
        %v5542 = vunpack.c.l.b16 %v5460
        %v5543 = vunpack.c.l.b16 %v5461
        %v5544 = vunpack.c.l.b16 %v5462
        %v5545 = vunpack.c.l.b16 %v5463
        %v5546 = vunpack.c.l.b16 %v5464
        %v5547 = vunpack.c.l.b16 %v5465
        %v5548 = vunpack.c.l.b16 %v5466
        %v5549 = vunpack.c.l.b16 %v5467
        %v5550 = vunpack.c.l.b16 %v5468
        %v5551 = vunpack.c.l.b16 %v5469
        %v5552 = vunpack.c.l.b16 %v5470
        %v5553 = vunpack.c.l.b16 %v5471
        %v5554 = vunpack.c.l.b16 %v5472
        %v5555 = vunpack.c.l.b16 %v5473
        %v5556 = vunpack.c.l.b16 %v5474
        %v5557 = vunpack.c.l.b16 %v5475
        %v5558 = vunpack.c.l.b16 %v5476
        %v5559 = vunpack.c.l.b16 %v5477
        %v5560 = vunpack.c.l.b16 %v5478
        %v5561 = vunpack.c.l.b16 %v5479
        %v5562 = vunpack.c.l.b16 %v5480
        %v5563 = vunpack.c.l.b16 %v5481
        %v5564 = vunpack.c.l.b16 %v5482
        %v5565 = vunpack.c.l.b16 %v5483
        %v5566 = vunpack.c.l.b16 %v5484
        %v5567 = vunpack.c.l.b16 %v5485
        %v5568 = vunpack.c.l.b16 %v5486
        %v5569 = vunpack.c.l.b16 %v5487
        %v5570 = vunpack.c.l.b16 %v5488
        %v5571 = vunpack.c.l.b16 %v5489
        %v5572 = vunpack.c.l.b16 %v5490
        %v5573 = vunpack.c.l.b16 %v5491
        %v5574 = vunpack.c.l.b16 %v5492
        %v5575 = vpack.c.b16 %v5540, %v5539
        %v5576 = vpack.c.b16 %v5542, %v5541
        %v5577 = vpack.c.b16 %v5544, %v5543
        %v5578 = vpack.c.b16 %v5546, %v5545
        %v5579 = vpack.c.b16 %v5548, %v5547
        %v5580 = vpack.c.b16 %v5550, %v5549
        %v5581 = vpack.c.b16 %v5552, %v5551
        %v5582 = vpack.c.b16 %v5554, %v5553
        %v5583 = vpack.c.b16 %v5556, %v5555
        %v5584 = vpack.c.b16 %v5558, %v5557
        %v5585 = vpack.c.b16 %v5560, %v5559
        %v5586 = vpack.c.b16 %v5562, %v5561
        %v5587 = vpack.c.b16 %v5564, %v5563
        %v5588 = vpack.c.b16 %v5566, %v5565
        %v5589 = vpack.c.b16 %v5568, %v5567
        %v5590 = vpack.c.b16 %v5570, %v5569
        %v5591 = vpack.c.b16 %v5572, %v5571
        %v5592 = vpack.c.b16 %v5574, %v5573
        %v5612 = vsel %vm1727, %v5500, 0
        %5614 = vmatpush.bf16.msra.mxu0 %v5582
        %5615 = vmatpush.bf16.msra.mxu0 %v5581
        %5616 = vmatpush.bf16.msra.mxu0 %v5580
        %5617 = vmatpush.bf16.msra.mxu0 %v5579
        %5618 = vmatpush.bf16.msra.mxu0 %v5578
        %5619 = vmatpush.bf16.msra.mxu0 %v5577
        %5620 = vmatpush.bf16.msra.mxu0 %v5576
        %5621 = vmatpush.bf16.msra.mxu0 %v5575
        %5622 = vmatmul.bf16.gmra.mxu0 %v5498
        %v5623 = vpop.f32.mrf.mxu0
        %v5624 = vadd.f32 0.0, %v5623
        %v5625 = vpop.f32.mrf.mxu0
        %5626 = vdwg.mxu0
        %5627 = vmatpush.bf16.msra.mxu0 %v5590
        %5628 = vmatpush.bf16.msra.mxu0 %v5589
        %5629 = vmatpush.bf16.msra.mxu0 %v5588
        %5630 = vmatpush.bf16.msra.mxu0 %v5587
        %5631 = vmatpush.bf16.msra.mxu0 %v5586
        %5632 = vmatpush.bf16.msra.mxu0 %v5585
        %5633 = vmatpush.bf16.msra.mxu0 %v5584
        %5634 = vmatpush.bf16.msra.mxu0 %v5583
        %5635 = vmatmul.bf16.gmra.mxu0 %v5499
        %v5636 = vpop.f32.mrf.mxu0
        %v5637 = vadd.f32 %v5624, %v5636
        %v5638 = vpop.f32.mrf.mxu0
        %5639 = vdwg.mxu0
        %5640 = vmatpush.bf16.msra.mxu0 0
        %5641 = vmatpush.bf16.msra.mxu0 0
        %5642 = vmatpush.bf16.msra.mxu0 0
        %5643 = vmatpush.bf16.msra.mxu0 0
        %5644 = vmatpush.bf16.msra.mxu0 0
        %5645 = vmatpush.bf16.msra.mxu0 0
        %5646 = vmatpush.bf16.msra.mxu0 %v5592
        %5647 = vmatpush.bf16.msra.mxu0 %v5591
        %5648 = vmatmul.bf16.gmra.mxu0 %v5612
        %v5649 = vpop.f32.mrf.mxu0
        %v5650 = vadd.f32 %v5637, %v5649
        %v5651 = vpop.f32.mrf.mxu0
        %5652 = vdwg.mxu0
        %v5655 = vunpack.c.l.b16 %v5367
        %v5656 = vunpack.c.h.b16 %v5367
        %v5657 = vunpack.c.l.b16 %v5368
        %v5658 = vpack.c.b16 %v5655, %v5655
        %v5659 = vpack.c.b16 %v5656, %v5656
        %v5660 = vpack.c.b16 %v5657, %v5657
        %v5699 = vunpack.c.l.b16 %v5369
        %v5700 = vunpack.c.l.b16 %v5370
        %v5701 = vunpack.c.l.b16 %v5371
        %v5702 = vunpack.c.l.b16 %v5372
        %v5703 = vunpack.c.l.b16 %v5373
        %v5704 = vunpack.c.l.b16 %v5374
        %v5705 = vunpack.c.l.b16 %v5375
        %v5706 = vunpack.c.l.b16 %v5376
        %v5707 = vunpack.c.l.b16 %v5377
        %v5708 = vunpack.c.l.b16 %v5378
        %v5709 = vunpack.c.l.b16 %v5379
        %v5710 = vunpack.c.l.b16 %v5380
        %v5711 = vunpack.c.l.b16 %v5381
        %v5712 = vunpack.c.l.b16 %v5382
        %v5713 = vunpack.c.l.b16 %v5383
        %v5714 = vunpack.c.l.b16 %v5384
        %v5715 = vunpack.c.l.b16 %v5385
        %v5716 = vunpack.c.l.b16 %v5386
        %v5717 = vunpack.c.l.b16 %v5387
        %v5718 = vunpack.c.l.b16 %v5388
        %v5719 = vunpack.c.l.b16 %v5389
        %v5720 = vunpack.c.l.b16 %v5390
        %v5721 = vunpack.c.l.b16 %v5391
        %v5722 = vunpack.c.l.b16 %v5392
        %v5723 = vunpack.c.l.b16 %v5393
        %v5724 = vunpack.c.l.b16 %v5394
        %v5725 = vunpack.c.l.b16 %v5395
        %v5726 = vunpack.c.l.b16 %v5396
        %v5727 = vunpack.c.l.b16 %v5397
        %v5728 = vunpack.c.l.b16 %v5398
        %v5729 = vunpack.c.l.b16 %v5399
        %v5730 = vunpack.c.l.b16 %v5400
        %v5731 = vunpack.c.l.b16 %v5401
        %v5732 = vunpack.c.l.b16 %v5402
        %v5733 = vunpack.c.l.b16 %v5403
        %v5734 = vunpack.c.l.b16 %v5404
        %v5735 = vpack.c.b16 %v5700, %v5699
        %v5736 = vpack.c.b16 %v5702, %v5701
        %v5737 = vpack.c.b16 %v5704, %v5703
        %v5738 = vpack.c.b16 %v5706, %v5705
        %v5739 = vpack.c.b16 %v5708, %v5707
        %v5740 = vpack.c.b16 %v5710, %v5709
        %v5741 = vpack.c.b16 %v5712, %v5711
        %v5742 = vpack.c.b16 %v5714, %v5713
        %v5743 = vpack.c.b16 %v5716, %v5715
        %v5744 = vpack.c.b16 %v5718, %v5717
        %v5745 = vpack.c.b16 %v5720, %v5719
        %v5746 = vpack.c.b16 %v5722, %v5721
        %v5747 = vpack.c.b16 %v5724, %v5723
        %v5748 = vpack.c.b16 %v5726, %v5725
        %v5749 = vpack.c.b16 %v5728, %v5727
        %v5750 = vpack.c.b16 %v5730, %v5729
        %v5751 = vpack.c.b16 %v5732, %v5731
        %v5752 = vpack.c.b16 %v5734, %v5733
        %v5772 = vsel %vm1727, %v5660, 0
        %5774 = vmatpush.bf16.msra.mxu0 %v5742
        %5775 = vmatpush.bf16.msra.mxu0 %v5741
        %5776 = vmatpush.bf16.msra.mxu0 %v5740
        %5777 = vmatpush.bf16.msra.mxu0 %v5739
        %5778 = vmatpush.bf16.msra.mxu0 %v5738
        %5779 = vmatpush.bf16.msra.mxu0 %v5737
        %5780 = vmatpush.bf16.msra.mxu0 %v5736
        %5781 = vmatpush.bf16.msra.mxu0 %v5735
        %5782 = vmatmul.bf16.gmra.mxu0 %v5658
        %v5783 = vpop.f32.mrf.mxu0
        %v5784 = vadd.f32 %v5650, %v5783
        %v5785 = vpop.f32.mrf.mxu0
        %5786 = vdwg.mxu0
        %5787 = vmatpush.bf16.msra.mxu0 %v5750
        %5788 = vmatpush.bf16.msra.mxu0 %v5749
        %5789 = vmatpush.bf16.msra.mxu0 %v5748
        %5790 = vmatpush.bf16.msra.mxu0 %v5747
        %5791 = vmatpush.bf16.msra.mxu0 %v5746
        %5792 = vmatpush.bf16.msra.mxu0 %v5745
        %5793 = vmatpush.bf16.msra.mxu0 %v5744
        %5794 = vmatpush.bf16.msra.mxu0 %v5743
        %5795 = vmatmul.bf16.gmra.mxu0 %v5659
        %v5796 = vpop.f32.mrf.mxu0
        %v5797 = vadd.f32 %v5784, %v5796
        %v5798 = vpop.f32.mrf.mxu0
        %5799 = vdwg.mxu0
        %5800 = vmatpush.bf16.msra.mxu0 0
        %5801 = vmatpush.bf16.msra.mxu0 0
        %5802 = vmatpush.bf16.msra.mxu0 0
        %5803 = vmatpush.bf16.msra.mxu0 0
        %5804 = vmatpush.bf16.msra.mxu0 0
        %5805 = vmatpush.bf16.msra.mxu0 0
        %5806 = vmatpush.bf16.msra.mxu0 %v5752
        %5807 = vmatpush.bf16.msra.mxu0 %v5751
        %5808 = vmatmul.bf16.gmra.mxu0 %v5772
        %v5809 = vpop.f32.mrf.mxu0
        %v5810 = vadd.f32 %v5797, %v5809
        %v5811 = vpop.f32.mrf.mxu0
        %5812 = vdwg.mxu0
        %s5813 = scalar_lea.vmem [#allocation17], 192
        %v5814 = vld [vmem:[%s5813] sm:$0xff]
        %5816 = vset.pattern.permute.xlu0 0
        %5817 = vperm.xlu0 %5816, %v5814
        %v5818 = vpop.permute.xlu0 %5817
        %v5820 = vmul.f32 %v5810, %v5818
        %s5821 = scalar_lea.vmem [#allocation19], 192
        %v5822 = vld [vmem:[%s5821] sm:$0xff]
        %5824 = vset.pattern.permute.xlu0 0
        %5825 = vperm.xlu0 %5824, %v5822
        %v5826 = vpop.permute.xlu0 %5825
        %v5828 = vadd.f32 %v5820, %v5826
        %v5829 = vmax.f32 %v5828, 0.0
        %v5830 = vld [vmem:[#allocation32] sm:$0xff]
        %v5831 = vld [vmem:[#allocation32 + $0x8] sm:$0xff]
        %v5832 = vld [vmem:[#allocation32 + $0x10] sm:$0xff]
        %v5833 = vld [vmem:[#allocation32 + $0x18] sm:$0xff]
        %v5834 = vld [vmem:[#allocation32 + $0x20] sm:$0xff]
        %v5835 = vld [vmem:[#allocation32 + $0x28] sm:$0xff]
        %v5836 = vld [vmem:[#allocation32 + $0x30] sm:$0xff]
        %v5837 = vld [vmem:[#allocation32 + $0x38] sm:$0xff]
        %v5838 = vld [vmem:[#allocation32 + $0x40] sm:$0xff]
        %v5839 = vld [vmem:[#allocation32 + $0x48] sm:$0xff]
        %v5840 = vld [vmem:[#allocation32 + $0x50] sm:$0xff]
        %v5841 = vld [vmem:[#allocation32 + $0x58] sm:$0xff]
        %v5842 = vld [vmem:[#allocation32 + $0x60] sm:$0xff]
        %v5843 = vld [vmem:[#allocation32 + $0x68] sm:$0xff]
        %v5844 = vld [vmem:[#allocation32 + $0x70] sm:$0xff]
        %v5845 = vld [vmem:[#allocation32 + $0x78] sm:$0xff]
        %v5846 = vld [vmem:[#allocation32 + $0x80] sm:$0xff]
        %v5847 = vld [vmem:[#allocation32 + $0x88] sm:$0xff]
        %v5848 = vld [vmem:[#allocation32 + $0x90] sm:$0xff]
        %v5849 = vld [vmem:[#allocation32 + $0x98] sm:$0xff]
        %v5850 = vld [vmem:[#allocation32 + $0xa0] sm:$0xff]
        %v5851 = vld [vmem:[#allocation32 + $0xa8] sm:$0xff]
        %v5852 = vld [vmem:[#allocation32 + $0xb0] sm:$0xff]
        %v5853 = vld [vmem:[#allocation32 + $0xb8] sm:$0xff]
        %v5854 = vld [vmem:[#allocation32 + $0xc0] sm:$0xff]
        %v5855 = vld [vmem:[#allocation32 + $0xc8] sm:$0xff]
        %v5856 = vld [vmem:[#allocation32 + $0xd0] sm:$0xff]
        %v5857 = vld [vmem:[#allocation32 + $0xd8] sm:$0xff]
        %v5858 = vld [vmem:[#allocation32 + $0xe0] sm:$0xff]
        %v5859 = vld [vmem:[#allocation32 + $0xe8] sm:$0xff]
        %v5860 = vld [vmem:[#allocation32 + $0xf0] sm:$0xff]
        %v5861 = vld [vmem:[#allocation32 + $0xf8] sm:$0xff]
        %v5862 = vld [vmem:[#allocation32 + $0x100] sm:$0xff]
        %v5863 = vld [vmem:[#allocation32 + $0x108] sm:$0xff]
        %v5864 = vld [vmem:[#allocation32 + $0x110] sm:$0xff]
        %v5865 = vld [vmem:[#allocation32 + $0x118] sm:$0xff]
        %v5866 = vld [vmem:[#allocation32 + $0x120] sm:$0xf]
        %v5867 = vld [vmem:[#allocation32 + $0x128] sm:$0xf]
        %v5868 = vld [vmem:[#allocation32 + $0x130] sm:$0xf]
        %v5870 = vsel %vm2430, %v5829, 0
        %v5873 = vsel %vm798, %v5866, 0
        %v5876 = vsel %vm798, %v5867, 0
        %v5879 = vsel %vm798, %v5868, 0
        %5881 = vmatpush.msra.mxu0 0.0
        %5882 = vmatpush.msra.mxu0 0.0
        %5883 = vmatpush.msra.mxu0 0.0
        %5884 = vmatpush.msra.mxu0 %v5873
        %5885 = vmatpush.msra.mxu0 %v5863
        %5886 = vmatpush.msra.mxu0 %v5860
        %5887 = vmatpush.msra.mxu0 %v5857
        %5888 = vmatpush.msra.mxu0 %v5854
        %5889 = vmatpush.msra.mxu0 %v5851
        %5890 = vmatpush.msra.mxu0 %v5848
        %5891 = vmatpush.msra.mxu0 %v5845
        %5892 = vmatpush.msra.mxu0 %v5842
        %5893 = vmatpush.msra.mxu0 %v5839
        %5894 = vmatpush.msra.mxu0 %v5836
        %5895 = vmatpush.msra.mxu0 %v5833
        %5896 = vmatpush.msra.mxu0 %v5830
        %5897 = vmatmul.f32.gmra.mxu0 %v5870
        %v5898 = vpop.f32.mrf.mxu0
        %v5899 = vadd.f32 0.0, %v5898
        %5900 = vdwg.mxu0
        %5901 = vmatpush.msra.mxu0 0.0
        %5902 = vmatpush.msra.mxu0 0.0
        %5903 = vmatpush.msra.mxu0 0.0
        %5904 = vmatpush.msra.mxu0 %v5876
        %5905 = vmatpush.msra.mxu0 %v5864
        %5906 = vmatpush.msra.mxu0 %v5861
        %5907 = vmatpush.msra.mxu0 %v5858
        %5908 = vmatpush.msra.mxu0 %v5855
        %5909 = vmatpush.msra.mxu0 %v5852
        %5910 = vmatpush.msra.mxu0 %v5849
        %5911 = vmatpush.msra.mxu0 %v5846
        %5912 = vmatpush.msra.mxu0 %v5843
        %5913 = vmatpush.msra.mxu0 %v5840
        %5914 = vmatpush.msra.mxu0 %v5837
        %5915 = vmatpush.msra.mxu0 %v5834
        %5916 = vmatpush.msra.mxu0 %v5831
        %5917 = vmatmul.f32.gmra.mxu0 %v5870
        %v5918 = vpop.f32.mrf.mxu0
        %v5919 = vadd.f32 0.0, %v5918
        %5920 = vdwg.mxu0
        %5921 = vmatpush.msra.mxu0 0.0
        %5922 = vmatpush.msra.mxu0 0.0
        %5923 = vmatpush.msra.mxu0 0.0
        %5924 = vmatpush.msra.mxu0 %v5879
        %5925 = vmatpush.msra.mxu0 %v5865
        %5926 = vmatpush.msra.mxu0 %v5862
        %5927 = vmatpush.msra.mxu0 %v5859
        %5928 = vmatpush.msra.mxu0 %v5856
        %5929 = vmatpush.msra.mxu0 %v5853
        %5930 = vmatpush.msra.mxu0 %v5850
        %5931 = vmatpush.msra.mxu0 %v5847
        %5932 = vmatpush.msra.mxu0 %v5844
        %5933 = vmatpush.msra.mxu0 %v5841
        %5934 = vmatpush.msra.mxu0 %v5838
        %5935 = vmatpush.msra.mxu0 %v5835
        %5936 = vmatpush.msra.mxu0 %v5832
        %5937 = vmatmul.f32.gmra.mxu0 %v5870
        %v5938 = vpop.f32.mrf.mxu0
        %v5939 = vadd.f32 0.0, %v5938
        %5940 = vdwg.mxu0
        %v5941 = vpack.c.bf16 %v5919, %v5899
        %v5942 = vpack.c.bf16 %v5939, %v5939
        %5943 = vst [vmem:[#allocation13 + $0x4] sm:$0xff] %v5941
        %5944 = vst.msk [vmem:[#allocation13 + $0xc] sm:$0xf] %vm837, %v5942
        %v5945 = vld [vmem:[#allocation13] sm:$0xff]
        %v5946 = vld [vmem:[#allocation13 + $0x8] sm:$0xff]
        %5949 = vrot.lane.b32.xlu0 %v5945, 19
        %v5950 = vpop.permute.xlu0 %5949
        %5951 = vrot.lane.b32.xlu0 %v5946, 19
        %v5952 = vpop.permute.xlu0 %5951
        %v5953 = vrot.slane %v5950, 4
        %v5954 = vrot.slane %v5952, 4
        %v5955 = vsel %vm1166, %v5953, %v5954
        %v5956 = vsel %vm1168, %v5950, %v5955
        %v5957 = vsel %vm1168, %v5952, %v5954
        %5960 = vst [vmem:[#allocation14] sm:$0xff] %v5956
        %5961 = vst.msk [vmem:[#allocation14 + $0x8] sm:$0xf] %vm837, %v5957
        %5962 = vrot.lane.b32.xlu0 %v5945, 18
        %v5963 = vpop.permute.xlu0 %5962
        %5964 = vrot.lane.b32.xlu0 %v5946, 18
        %v5965 = vpop.permute.xlu0 %5964
        %v5966 = vrot.slane %v5963, 4
        %v5967 = vrot.slane %v5965, 4
        %v5968 = vsel %vm1166, %v5966, %v5967
        %v5969 = vsel %vm1194, %v5963, %v5968
        %v5970 = vsel %vm1194, %v5965, %v5967
        %5973 = vst [vmem:[#allocation14 + $0x30] sm:$0xff] %v5969
        %5974 = vst.msk [vmem:[#allocation14 + $0x38] sm:$0xf] %vm837, %v5970
        %5975 = vrot.lane.b32.xlu0 %v5945, 17
        %v5976 = vpop.permute.xlu0 %5975
        %5977 = vrot.lane.b32.xlu0 %v5946, 17
        %v5978 = vpop.permute.xlu0 %5977
        %v5979 = vrot.slane %v5976, 4
        %v5980 = vrot.slane %v5978, 4
        %v5981 = vsel %vm1166, %v5979, %v5980
        %v5982 = vsel %vm1217, %v5976, %v5981
        %v5983 = vsel %vm1217, %v5978, %v5980
        %5986 = vst [vmem:[#allocation14 + $0x60] sm:$0xff] %v5982
        %5987 = vst.msk [vmem:[#allocation14 + $0x68] sm:$0xf] %vm837, %v5983
        %5988 = vrot.lane.b32.xlu0 %v5945, 1
        %v5989 = vpop.permute.xlu0 %5988
        %5990 = vrot.lane.b32.xlu0 %v5946, 1
        %v5991 = vpop.permute.xlu0 %5990
        %v5992 = vrot.slane %v5989, 4
        %v5993 = vrot.slane %v5991, 4
        %v5994 = vsel %vm1166, %v5992, %v5993
        %v5995 = vsel %vm1240, %v5989, %v5994
        %v5996 = vsel %vm1240, %v5991, %v5993
        %5999 = vst [vmem:[#allocation14 + $0x90] sm:$0xff] %v5995
        %6000 = vst.msk [vmem:[#allocation14 + $0x98] sm:$0xf] %vm837, %v5996
        %v6001 = vrot.slane %v5945, 4
        %v6002 = vrot.slane %v5946, 4
        %v6003 = vsel %vm1166, %v6001, %v6002
        %6006 = vst [vmem:[#allocation14 + $0xc0] sm:$0xff] %v6003
        %6007 = vst.msk [vmem:[#allocation14 + $0xc8] sm:$0xf] %vm837, %v6002
        %6008 = vrot.lane.b32.xlu0 %v5945, 127
        %v6009 = vpop.permute.xlu0 %6008
        %6010 = vrot.lane.b32.xlu0 %v5946, 127
        %v6011 = vpop.permute.xlu0 %6010
        %v6012 = vrot.slane %v6009, 4
        %v6013 = vrot.slane %v6011, 4
        %v6014 = vsel %vm1166, %v6012, %v6013
        %v6015 = vsel %vm1279, %v6014, %v6011
        %6018 = vst [vmem:[#allocation14 + $0xf0] sm:$0xff] %v6015
        %6019 = vst.msk [vmem:[#allocation14 + $0xf8] sm:$0xf] %vm837, %v6013
        %6020 = vrot.lane.b32.xlu0 %v5945, 111
        %v6021 = vpop.permute.xlu0 %6020
        %6022 = vrot.lane.b32.xlu0 %v5946, 111
        %v6023 = vpop.permute.xlu0 %6022
        %v6024 = vrot.slane %v6021, 4
        %v6025 = vrot.slane %v6023, 4
        %v6026 = vsel %vm1166, %v6024, %v6025
        %v6027 = vsel %vm1301, %v6026, %v6023
        %6030 = vst [vmem:[#allocation14 + $0x120] sm:$0xff] %v6027
        %6031 = vst.msk [vmem:[#allocation14 + $0x128] sm:$0xf] %vm837, %v6025
        %6032 = vrot.lane.b32.xlu0 %v5945, 110
        %v6033 = vpop.permute.xlu0 %6032
        %6034 = vrot.lane.b32.xlu0 %v5946, 110
        %v6035 = vpop.permute.xlu0 %6034
        %v6036 = vrot.slane %v6033, 4
        %v6037 = vrot.slane %v6035, 4
        %v6038 = vsel %vm1166, %v6036, %v6037
        %v6039 = vsel %vm1323, %v6038, %v6035
        %6042 = vst [vmem:[#allocation14 + $0x150] sm:$0xff] %v6039
        %6043 = vst.msk [vmem:[#allocation14 + $0x158] sm:$0xf] %vm837, %v6037
        %6044 = vrot.lane.b32.xlu0 %v5945, 109
        %v6045 = vpop.permute.xlu0 %6044
        %6046 = vrot.lane.b32.xlu0 %v5946, 109
        %v6047 = vpop.permute.xlu0 %6046
        %v6048 = vrot.slane %v6045, 4
        %v6049 = vrot.slane %v6047, 4
        %v6050 = vsel %vm1166, %v6048, %v6049
        %v6051 = vsel %vm1345, %v6050, %v6047
        %6054 = vst [vmem:[#allocation14 + $0x180] sm:$0xff] %v6051
        %6055 = vst.msk [vmem:[#allocation14 + $0x188] sm:$0xf] %vm837, %v6049
        %s6056 = scalar_lea.vmem [#allocation15], 480
        %v6057 = vld [vmem:[%s6056] sm:$0x33]
        %v6058 = vld [vmem:[%s6056 + $0x8] sm:$0x3]
        %v6059 = vld [vmem:[#allocation14] sm:$0xff]
        %v6060 = vld [vmem:[#allocation14 + $0x8] sm:$0xf]
        %v6061 = vld [vmem:[#allocation14 + $0xc] sm:$0xff]
        %v6062 = vld [vmem:[#allocation14 + $0x14] sm:$0xf]
        %v6063 = vld [vmem:[#allocation14 + $0x18] sm:$0xff]
        %v6064 = vld [vmem:[#allocation14 + $0x20] sm:$0xf]
        %v6065 = vld [vmem:[#allocation14 + $0x24] sm:$0xff]
        %v6066 = vld [vmem:[#allocation14 + $0x2c] sm:$0xf]
        %v6067 = vld [vmem:[#allocation14 + $0x30] sm:$0xff]
        %v6068 = vld [vmem:[#allocation14 + $0x38] sm:$0xf]
        %v6069 = vld [vmem:[#allocation14 + $0x3c] sm:$0xff]
        %v6070 = vld [vmem:[#allocation14 + $0x44] sm:$0xf]
        %v6071 = vld [vmem:[#allocation14 + $0x48] sm:$0xff]
        %v6072 = vld [vmem:[#allocation14 + $0x50] sm:$0xf]
        %v6073 = vld [vmem:[#allocation14 + $0x54] sm:$0xff]
        %v6074 = vld [vmem:[#allocation14 + $0x5c] sm:$0xf]
        %v6075 = vld [vmem:[#allocation14 + $0x60] sm:$0xff]
        %v6076 = vld [vmem:[#allocation14 + $0x68] sm:$0xf]
        %v6077 = vld [vmem:[#allocation14 + $0x6c] sm:$0xff]
        %v6078 = vld [vmem:[#allocation14 + $0x74] sm:$0xf]
        %v6079 = vld [vmem:[#allocation14 + $0x78] sm:$0xff]
        %v6080 = vld [vmem:[#allocation14 + $0x80] sm:$0xf]
        %v6081 = vld [vmem:[#allocation14 + $0x84] sm:$0xff]
        %v6082 = vld [vmem:[#allocation14 + $0x8c] sm:$0xf]
        %v6083 = vld [vmem:[#allocation14 + $0x90] sm:$0xff]
        %v6084 = vld [vmem:[#allocation14 + $0x98] sm:$0xf]
        %v6085 = vld [vmem:[#allocation14 + $0x9c] sm:$0xff]
        %v6086 = vld [vmem:[#allocation14 + $0xa4] sm:$0xf]
        %v6087 = vld [vmem:[#allocation14 + $0xa8] sm:$0xff]
        %v6088 = vld [vmem:[#allocation14 + $0xb0] sm:$0xf]
        %v6089 = vld [vmem:[#allocation14 + $0xb4] sm:$0xff]
        %v6090 = vld [vmem:[#allocation14 + $0xbc] sm:$0xf]
        %v6091 = vld [vmem:[#allocation14 + $0xc0] sm:$0xff]
        %v6092 = vld [vmem:[#allocation14 + $0xc8] sm:$0xf]
        %v6093 = vld [vmem:[#allocation14 + $0xcc] sm:$0xff]
        %v6094 = vld [vmem:[#allocation14 + $0xd4] sm:$0xf]
        %v6095 = vld [vmem:[#allocation14 + $0xd8] sm:$0xff]
        %v6096 = vld [vmem:[#allocation14 + $0xe0] sm:$0xf]
        %v6097 = vld [vmem:[#allocation14 + $0xe4] sm:$0xff]
        %v6098 = vld [vmem:[#allocation14 + $0xec] sm:$0xf]
        %v6099 = vld [vmem:[#allocation14 + $0xf0] sm:$0xff]
        %v6100 = vld [vmem:[#allocation14 + $0xf8] sm:$0xf]
        %v6101 = vld [vmem:[#allocation14 + $0xfc] sm:$0xff]
        %v6102 = vld [vmem:[#allocation14 + $0x104] sm:$0xf]
        %v6103 = vld [vmem:[#allocation14 + $0x108] sm:$0xff]
        %v6104 = vld [vmem:[#allocation14 + $0x110] sm:$0xf]
        %v6105 = vld [vmem:[#allocation14 + $0x114] sm:$0xff]
        %v6106 = vld [vmem:[#allocation14 + $0x11c] sm:$0xf]
        %v6107 = vld [vmem:[#allocation14 + $0x120] sm:$0xff]
        %v6108 = vld [vmem:[#allocation14 + $0x128] sm:$0xf]
        %v6109 = vld [vmem:[#allocation14 + $0x12c] sm:$0xff]
        %v6110 = vld [vmem:[#allocation14 + $0x134] sm:$0xf]
        %v6111 = vld [vmem:[#allocation14 + $0x138] sm:$0xff]
        %v6112 = vld [vmem:[#allocation14 + $0x140] sm:$0xf]
        %v6113 = vld [vmem:[#allocation14 + $0x144] sm:$0xff]
        %v6114 = vld [vmem:[#allocation14 + $0x14c] sm:$0xf]
        %v6115 = vld [vmem:[#allocation14 + $0x150] sm:$0xff]
        %v6116 = vld [vmem:[#allocation14 + $0x158] sm:$0xf]
        %v6117 = vld [vmem:[#allocation14 + $0x15c] sm:$0xff]
        %v6118 = vld [vmem:[#allocation14 + $0x164] sm:$0xf]
        %v6119 = vld [vmem:[#allocation14 + $0x168] sm:$0xff]
        %v6120 = vld [vmem:[#allocation14 + $0x170] sm:$0xf]
        %v6121 = vld [vmem:[#allocation14 + $0x174] sm:$0xff]
        %v6122 = vld [vmem:[#allocation14 + $0x17c] sm:$0xf]
        %v6123 = vld [vmem:[#allocation14 + $0x180] sm:$0xff]
        %v6124 = vld [vmem:[#allocation14 + $0x188] sm:$0xf]
        %v6125 = vld [vmem:[#allocation14 + $0x18c] sm:$0xff]
        %v6126 = vld [vmem:[#allocation14 + $0x194] sm:$0xf]
        %v6127 = vld [vmem:[#allocation14 + $0x198] sm:$0xff]
        %v6128 = vld [vmem:[#allocation14 + $0x1a0] sm:$0xf]
        %v6129 = vld [vmem:[#allocation14 + $0x1a4] sm:$0xff]
        %v6130 = vld [vmem:[#allocation14 + $0x1ac] sm:$0xf]
        %v6131 = vld [vmem:[#allocation6] sm:$0xff]
        %6133 = vst [vmem:[#allocation1] ss:$2 sm:$0xff] %v6131
        %v6134 = vld.sshfl [vmem:[#allocation1] sm:$0xff pattern:$0x75643120]
        %v6136 = vld.sshfl [vmem:[#allocation1 + $0x8] sm:$0xff pattern:$0x75643120]
        %6138 = vrot.lane.b32.xlu0 %v6134, 19
        %v6139 = vpop.permute.xlu0 %6138
        %6140 = vrot.lane.b32.xlu0 %v6136, 19
        %v6141 = vpop.permute.xlu0 %6140
        %v6142 = vrot.slane %v6139, 4
        %v6143 = vrot.slane %v6141, 4
        %v6144 = vsel %vm1166, %v6142, %v6143
        %v6145 = vsel %vm1168, %v6139, %v6144
        %v6146 = vsel %vm1168, %v6141, %v6143
        %6149 = vst [vmem:[#allocation14] sm:$0x33] %v6145
        %vm6150 = vcmask 549888
        %6151 = vst.msk [vmem:[#allocation14 + $0x8] sm:$0x3] %vm6150, %v6146
        %6152 = vst [vmem:[#allocation1] ss:$2 sm:$0xff] %v6131
        %v6153 = vld.sshfl [vmem:[#allocation1] sm:$0xff pattern:$0x75643120]
        %v6155 = vld.sshfl [vmem:[#allocation1 + $0x8] sm:$0xff pattern:$0x75643120]
        %6157 = vrot.lane.b32.xlu0 %v6153, 18
        %v6158 = vpop.permute.xlu0 %6157
        %6159 = vrot.lane.b32.xlu0 %v6155, 18
        %v6160 = vpop.permute.xlu0 %6159
        %v6161 = vrot.slane %v6158, 4
        %v6162 = vrot.slane %v6160, 4
        %v6163 = vsel %vm1166, %v6161, %v6162
        %v6164 = vsel %vm1194, %v6158, %v6163
        %v6165 = vsel %vm1194, %v6160, %v6162
        %6168 = vst [vmem:[#allocation14 + $0x30] sm:$0x33] %v6164
        %6169 = vst.msk [vmem:[#allocation14 + $0x38] sm:$0x3] %vm6150, %v6165
        %6170 = vst [vmem:[#allocation1] ss:$2 sm:$0xff] %v6131
        %v6171 = vld.sshfl [vmem:[#allocation1] sm:$0xff pattern:$0x75643120]
        %v6173 = vld.sshfl [vmem:[#allocation1 + $0x8] sm:$0xff pattern:$0x75643120]
        %6175 = vrot.lane.b32.xlu0 %v6171, 17
        %v6176 = vpop.permute.xlu0 %6175
        %6177 = vrot.lane.b32.xlu0 %v6173, 17
        %v6178 = vpop.permute.xlu0 %6177
        %v6179 = vrot.slane %v6176, 4
        %v6180 = vrot.slane %v6178, 4
        %v6181 = vsel %vm1166, %v6179, %v6180
        %v6182 = vsel %vm1217, %v6176, %v6181
        %v6183 = vsel %vm1217, %v6178, %v6180
        %6186 = vst [vmem:[#allocation14 + $0x60] sm:$0x33] %v6182
        %6187 = vst.msk [vmem:[#allocation14 + $0x68] sm:$0x3] %vm6150, %v6183
        %6188 = vst [vmem:[#allocation1] ss:$2 sm:$0xff] %v6131
        %v6189 = vld.sshfl [vmem:[#allocation1] sm:$0xff pattern:$0x75643120]
        %v6191 = vld.sshfl [vmem:[#allocation1 + $0x8] sm:$0xff pattern:$0x75643120]
        %6193 = vrot.lane.b32.xlu0 %v6189, 1
        %v6194 = vpop.permute.xlu0 %6193
        %6195 = vrot.lane.b32.xlu0 %v6191, 1
        %v6196 = vpop.permute.xlu0 %6195
        %v6197 = vrot.slane %v6194, 4
        %v6198 = vrot.slane %v6196, 4
        %v6199 = vsel %vm1166, %v6197, %v6198
        %v6200 = vsel %vm1240, %v6194, %v6199
        %v6201 = vsel %vm1240, %v6196, %v6198
        %6204 = vst [vmem:[#allocation14 + $0x90] sm:$0x33] %v6200
        %6205 = vst.msk [vmem:[#allocation14 + $0x98] sm:$0x3] %vm6150, %v6201
        %6206 = vst [vmem:[#allocation1] ss:$2 sm:$0xff] %v6131
        %v6207 = vld.sshfl [vmem:[#allocation1] sm:$0xff pattern:$0x75643120]
        %v6209 = vld.sshfl [vmem:[#allocation1 + $0x8] sm:$0xff pattern:$0x75643120]
        %v6211 = vrot.slane %v6207, 4
        %v6212 = vrot.slane %v6209, 4
        %v6213 = vsel %vm1166, %v6211, %v6212
        %6216 = vst [vmem:[#allocation14 + $0xc0] sm:$0x33] %v6213
        %6217 = vst.msk [vmem:[#allocation14 + $0xc8] sm:$0x3] %vm6150, %v6212
        %6218 = vst [vmem:[#allocation1] ss:$2 sm:$0xff] %v6131
        %v6219 = vld.sshfl [vmem:[#allocation1] sm:$0xff pattern:$0x75643120]
        %v6221 = vld.sshfl [vmem:[#allocation1 + $0x8] sm:$0xff pattern:$0x75643120]
        %6223 = vrot.lane.b32.xlu0 %v6219, 127
        %v6224 = vpop.permute.xlu0 %6223
        %6225 = vrot.lane.b32.xlu0 %v6221, 127
        %v6226 = vpop.permute.xlu0 %6225
        %v6227 = vrot.slane %v6224, 4
        %v6228 = vrot.slane %v6226, 4
        %v6229 = vsel %vm1166, %v6227, %v6228
        %v6230 = vsel %vm1279, %v6229, %v6226
        %6233 = vst [vmem:[#allocation14 + $0xf0] sm:$0x33] %v6230
        %6234 = vst.msk [vmem:[#allocation14 + $0xf8] sm:$0x3] %vm6150, %v6228
        %6235 = vst [vmem:[#allocation1] ss:$2 sm:$0xff] %v6131
        %v6236 = vld.sshfl [vmem:[#allocation1] sm:$0xff pattern:$0x75643120]
        %v6238 = vld.sshfl [vmem:[#allocation1 + $0x8] sm:$0xff pattern:$0x75643120]
        %6240 = vrot.lane.b32.xlu0 %v6236, 111
        %v6241 = vpop.permute.xlu0 %6240
        %6242 = vrot.lane.b32.xlu0 %v6238, 111
        %v6243 = vpop.permute.xlu0 %6242
        %v6244 = vrot.slane %v6241, 4
        %v6245 = vrot.slane %v6243, 4
        %v6246 = vsel %vm1166, %v6244, %v6245
        %v6247 = vsel %vm1301, %v6246, %v6243
        %6250 = vst [vmem:[#allocation14 + $0x120] sm:$0x33] %v6247
        %6251 = vst.msk [vmem:[#allocation14 + $0x128] sm:$0x3] %vm6150, %v6245
        %6252 = vst [vmem:[#allocation1] ss:$2 sm:$0xff] %v6131
        %v6253 = vld.sshfl [vmem:[#allocation1] sm:$0xff pattern:$0x75643120]
        %v6255 = vld.sshfl [vmem:[#allocation1 + $0x8] sm:$0xff pattern:$0x75643120]
        %6257 = vrot.lane.b32.xlu0 %v6253, 110
        %v6258 = vpop.permute.xlu0 %6257
        %6259 = vrot.lane.b32.xlu0 %v6255, 110
        %v6260 = vpop.permute.xlu0 %6259
        %v6261 = vrot.slane %v6258, 4
        %v6262 = vrot.slane %v6260, 4
        %v6263 = vsel %vm1166, %v6261, %v6262
        %v6264 = vsel %vm1323, %v6263, %v6260
        %6267 = vst [vmem:[#allocation14 + $0x150] sm:$0x33] %v6264
        %6268 = vst.msk [vmem:[#allocation14 + $0x158] sm:$0x3] %vm6150, %v6262
        %6269 = vst [vmem:[#allocation1] ss:$2 sm:$0xff] %v6131
        %v6270 = vld.sshfl [vmem:[#allocation1] sm:$0xff pattern:$0x75643120]
        %v6272 = vld.sshfl [vmem:[#allocation1 + $0x8] sm:$0xff pattern:$0x75643120]
        %6274 = vrot.lane.b32.xlu0 %v6270, 109
        %v6275 = vpop.permute.xlu0 %6274
        %6276 = vrot.lane.b32.xlu0 %v6272, 109
        %v6277 = vpop.permute.xlu0 %6276
        %v6278 = vrot.slane %v6275, 4
        %v6279 = vrot.slane %v6277, 4
        %v6280 = vsel %vm1166, %v6278, %v6279
        %v6281 = vsel %vm1345, %v6280, %v6277
        %6284 = vst [vmem:[#allocation14 + $0x180] sm:$0x33] %v6281
        %6285 = vst.msk [vmem:[#allocation14 + $0x188] sm:$0x3] %vm6150, %v6279
        %s6286 = scalar_lea.vmem [#allocation15], 528
        %v6287 = vld [vmem:[%s6286] sm:$0x33]
        %v6288 = vld [vmem:[%s6286 + $0x8] sm:$0x3]
        %v6289 = vld [vmem:[#allocation14] sm:$0xff]
        %v6290 = vld [vmem:[#allocation14 + $0x8] sm:$0xf]
        %v6291 = vld [vmem:[#allocation14 + $0xc] sm:$0xff]
        %v6292 = vld [vmem:[#allocation14 + $0x14] sm:$0xf]
        %v6293 = vld [vmem:[#allocation14 + $0x18] sm:$0xff]
        %v6294 = vld [vmem:[#allocation14 + $0x20] sm:$0xf]
        %v6295 = vld [vmem:[#allocation14 + $0x24] sm:$0xff]
        %v6296 = vld [vmem:[#allocation14 + $0x2c] sm:$0xf]
        %v6297 = vld [vmem:[#allocation14 + $0x30] sm:$0xff]
        %v6298 = vld [vmem:[#allocation14 + $0x38] sm:$0xf]
        %v6299 = vld [vmem:[#allocation14 + $0x3c] sm:$0xff]
        %v6300 = vld [vmem:[#allocation14 + $0x44] sm:$0xf]
        %v6301 = vld [vmem:[#allocation14 + $0x48] sm:$0xff]
        %v6302 = vld [vmem:[#allocation14 + $0x50] sm:$0xf]
        %v6303 = vld [vmem:[#allocation14 + $0x54] sm:$0xff]
        %v6304 = vld [vmem:[#allocation14 + $0x5c] sm:$0xf]
        %v6305 = vld [vmem:[#allocation14 + $0x60] sm:$0xff]
        %v6306 = vld [vmem:[#allocation14 + $0x68] sm:$0xf]
        %v6307 = vld [vmem:[#allocation14 + $0x6c] sm:$0xff]
        %v6308 = vld [vmem:[#allocation14 + $0x74] sm:$0xf]
        %v6309 = vld [vmem:[#allocation14 + $0x78] sm:$0xff]
        %v6310 = vld [vmem:[#allocation14 + $0x80] sm:$0xf]
        %v6311 = vld [vmem:[#allocation14 + $0x84] sm:$0xff]
        %v6312 = vld [vmem:[#allocation14 + $0x8c] sm:$0xf]
        %v6313 = vld [vmem:[#allocation14 + $0x90] sm:$0xff]
        %v6314 = vld [vmem:[#allocation14 + $0x98] sm:$0xf]
        %v6315 = vld [vmem:[#allocation14 + $0x9c] sm:$0xff]
        %v6316 = vld [vmem:[#allocation14 + $0xa4] sm:$0xf]
        %v6317 = vld [vmem:[#allocation14 + $0xa8] sm:$0xff]
        %v6318 = vld [vmem:[#allocation14 + $0xb0] sm:$0xf]
        %v6319 = vld [vmem:[#allocation14 + $0xb4] sm:$0xff]
        %v6320 = vld [vmem:[#allocation14 + $0xbc] sm:$0xf]
        %v6321 = vld [vmem:[#allocation14 + $0xc0] sm:$0xff]
        %v6322 = vld [vmem:[#allocation14 + $0xc8] sm:$0xf]
        %v6323 = vld [vmem:[#allocation14 + $0xcc] sm:$0xff]
        %v6324 = vld [vmem:[#allocation14 + $0xd4] sm:$0xf]
        %v6325 = vld [vmem:[#allocation14 + $0xd8] sm:$0xff]
        %v6326 = vld [vmem:[#allocation14 + $0xe0] sm:$0xf]
        %v6327 = vld [vmem:[#allocation14 + $0xe4] sm:$0xff]
        %v6328 = vld [vmem:[#allocation14 + $0xec] sm:$0xf]
        %v6329 = vld [vmem:[#allocation14 + $0xf0] sm:$0xff]
        %v6330 = vld [vmem:[#allocation14 + $0xf8] sm:$0xf]
        %v6331 = vld [vmem:[#allocation14 + $0xfc] sm:$0xff]
        %v6332 = vld [vmem:[#allocation14 + $0x104] sm:$0xf]
        %v6333 = vld [vmem:[#allocation14 + $0x108] sm:$0xff]
        %v6334 = vld [vmem:[#allocation14 + $0x110] sm:$0xf]
        %v6335 = vld [vmem:[#allocation14 + $0x114] sm:$0xff]
        %v6336 = vld [vmem:[#allocation14 + $0x11c] sm:$0xf]
        %v6337 = vld [vmem:[#allocation14 + $0x120] sm:$0xff]
        %v6338 = vld [vmem:[#allocation14 + $0x128] sm:$0xf]
        %v6339 = vld [vmem:[#allocation14 + $0x12c] sm:$0xff]
        %v6340 = vld [vmem:[#allocation14 + $0x134] sm:$0xf]
        %v6341 = vld [vmem:[#allocation14 + $0x138] sm:$0xff]
        %v6342 = vld [vmem:[#allocation14 + $0x140] sm:$0xf]
        %v6343 = vld [vmem:[#allocation14 + $0x144] sm:$0xff]
        %v6344 = vld [vmem:[#allocation14 + $0x14c] sm:$0xf]
        %v6345 = vld [vmem:[#allocation14 + $0x150] sm:$0xff]
        %v6346 = vld [vmem:[#allocation14 + $0x158] sm:$0xf]
        %v6347 = vld [vmem:[#allocation14 + $0x15c] sm:$0xff]
        %v6348 = vld [vmem:[#allocation14 + $0x164] sm:$0xf]
        %v6349 = vld [vmem:[#allocation14 + $0x168] sm:$0xff]
        %v6350 = vld [vmem:[#allocation14 + $0x170] sm:$0xf]
        %v6351 = vld [vmem:[#allocation14 + $0x174] sm:$0xff]
        %v6352 = vld [vmem:[#allocation14 + $0x17c] sm:$0xf]
        %v6353 = vld [vmem:[#allocation14 + $0x180] sm:$0xff]
        %v6354 = vld [vmem:[#allocation14 + $0x188] sm:$0xf]
        %v6355 = vld [vmem:[#allocation14 + $0x18c] sm:$0xff]
        %v6356 = vld [vmem:[#allocation14 + $0x194] sm:$0xf]
        %v6357 = vld [vmem:[#allocation14 + $0x198] sm:$0xff]
        %v6358 = vld [vmem:[#allocation14 + $0x1a0] sm:$0xf]
        %v6359 = vld [vmem:[#allocation14 + $0x1a4] sm:$0xff]
        %v6360 = vld [vmem:[#allocation14 + $0x1ac] sm:$0xf]
        %v6363 = vunpack.c.l.b16 %v6287
        %v6364 = vunpack.c.h.b16 %v6287
        %v6365 = vunpack.c.l.b16 %v6288
        %v6366 = vpack.c.b16 %v6363, %v6363
        %v6367 = vpack.c.b16 %v6364, %v6364
        %v6368 = vpack.c.b16 %v6365, %v6365
        %v6443 = vunpack.c.l.b16 %v6289
        %v6444 = vunpack.c.h.b16 %v6289
        %v6445 = vunpack.c.l.b16 %v6290
        %v6446 = vunpack.c.l.b16 %v6291
        %v6447 = vunpack.c.h.b16 %v6291
        %v6448 = vunpack.c.l.b16 %v6292
        %v6449 = vunpack.c.l.b16 %v6293
        %v6450 = vunpack.c.h.b16 %v6293
        %v6451 = vunpack.c.l.b16 %v6294
        %v6452 = vunpack.c.l.b16 %v6295
        %v6453 = vunpack.c.h.b16 %v6295
        %v6454 = vunpack.c.l.b16 %v6296
        %v6455 = vunpack.c.l.b16 %v6297
        %v6456 = vunpack.c.h.b16 %v6297
        %v6457 = vunpack.c.l.b16 %v6298
        %v6458 = vunpack.c.l.b16 %v6299
        %v6459 = vunpack.c.h.b16 %v6299
        %v6460 = vunpack.c.l.b16 %v6300
        %v6461 = vunpack.c.l.b16 %v6301
        %v6462 = vunpack.c.h.b16 %v6301
        %v6463 = vunpack.c.l.b16 %v6302
        %v6464 = vunpack.c.l.b16 %v6303
        %v6465 = vunpack.c.h.b16 %v6303
        %v6466 = vunpack.c.l.b16 %v6304
        %v6467 = vunpack.c.l.b16 %v6305
        %v6468 = vunpack.c.h.b16 %v6305
        %v6469 = vunpack.c.l.b16 %v6306
        %v6470 = vunpack.c.l.b16 %v6307
        %v6471 = vunpack.c.h.b16 %v6307
        %v6472 = vunpack.c.l.b16 %v6308
        %v6473 = vunpack.c.l.b16 %v6309
        %v6474 = vunpack.c.h.b16 %v6309
        %v6475 = vunpack.c.l.b16 %v6310
        %v6476 = vunpack.c.l.b16 %v6311
        %v6477 = vunpack.c.h.b16 %v6311
        %v6478 = vunpack.c.l.b16 %v6312
        %v6479 = vunpack.c.l.b16 %v6313
        %v6480 = vunpack.c.h.b16 %v6313
        %v6481 = vunpack.c.l.b16 %v6314
        %v6482 = vunpack.c.l.b16 %v6315
        %v6483 = vunpack.c.h.b16 %v6315
        %v6484 = vunpack.c.l.b16 %v6316
        %v6485 = vunpack.c.l.b16 %v6317
        %v6486 = vunpack.c.h.b16 %v6317
        %v6487 = vunpack.c.l.b16 %v6318
        %v6488 = vunpack.c.l.b16 %v6319
        %v6489 = vunpack.c.h.b16 %v6319
        %v6490 = vunpack.c.l.b16 %v6320
        %v6491 = vunpack.c.l.b16 %v6321
        %v6492 = vunpack.c.h.b16 %v6321
        %v6493 = vunpack.c.l.b16 %v6322
        %v6494 = vunpack.c.l.b16 %v6323
        %v6495 = vunpack.c.h.b16 %v6323
        %v6496 = vunpack.c.l.b16 %v6324
        %v6497 = vunpack.c.l.b16 %v6325
        %v6498 = vunpack.c.h.b16 %v6325
        %v6499 = vunpack.c.l.b16 %v6326
        %v6500 = vunpack.c.l.b16 %v6327
        %v6501 = vunpack.c.h.b16 %v6327
        %v6502 = vunpack.c.l.b16 %v6328
        %v6503 = vunpack.c.l.b16 %v6329
        %v6504 = vunpack.c.h.b16 %v6329
        %v6505 = vunpack.c.l.b16 %v6330
        %v6506 = vunpack.c.l.b16 %v6331
        %v6507 = vunpack.c.h.b16 %v6331
        %v6508 = vunpack.c.l.b16 %v6332
        %v6509 = vunpack.c.l.b16 %v6333
        %v6510 = vunpack.c.h.b16 %v6333
        %v6511 = vunpack.c.l.b16 %v6334
        %v6512 = vunpack.c.l.b16 %v6335
        %v6513 = vunpack.c.h.b16 %v6335
        %v6514 = vunpack.c.l.b16 %v6336
        %v6515 = vunpack.c.l.b16 %v6337
        %v6516 = vunpack.c.h.b16 %v6337
        %v6517 = vunpack.c.l.b16 %v6338
        %v6518 = vunpack.c.l.b16 %v6339
        %v6519 = vunpack.c.h.b16 %v6339
        %v6520 = vunpack.c.l.b16 %v6340
        %v6521 = vunpack.c.l.b16 %v6341
        %v6522 = vunpack.c.h.b16 %v6341
        %v6523 = vunpack.c.l.b16 %v6342
        %v6524 = vunpack.c.l.b16 %v6343
        %v6525 = vunpack.c.h.b16 %v6343
        %v6526 = vunpack.c.l.b16 %v6344
        %v6527 = vunpack.c.l.b16 %v6345
        %v6528 = vunpack.c.h.b16 %v6345
        %v6529 = vunpack.c.l.b16 %v6346
        %v6530 = vunpack.c.l.b16 %v6347
        %v6531 = vunpack.c.h.b16 %v6347
        %v6532 = vunpack.c.l.b16 %v6348
        %v6533 = vunpack.c.l.b16 %v6349
        %v6534 = vunpack.c.h.b16 %v6349
        %v6535 = vunpack.c.l.b16 %v6350
        %v6536 = vunpack.c.l.b16 %v6351
        %v6537 = vunpack.c.h.b16 %v6351
        %v6538 = vunpack.c.l.b16 %v6352
        %v6539 = vunpack.c.l.b16 %v6353
        %v6540 = vunpack.c.h.b16 %v6353
        %v6541 = vunpack.c.l.b16 %v6354
        %v6542 = vunpack.c.l.b16 %v6355
        %v6543 = vunpack.c.h.b16 %v6355
        %v6544 = vunpack.c.l.b16 %v6356
        %v6545 = vunpack.c.l.b16 %v6357
        %v6546 = vunpack.c.h.b16 %v6357
        %v6547 = vunpack.c.l.b16 %v6358
        %v6548 = vunpack.c.l.b16 %v6359
        %v6549 = vunpack.c.h.b16 %v6359
        %v6550 = vunpack.c.l.b16 %v6360
        %v6551 = vpack.c.b16 %v6446, %v6443
        %v6552 = vpack.c.b16 %v6447, %v6444
        %v6553 = vpack.c.b16 %v6448, %v6445
        %v6554 = vpack.c.b16 %v6452, %v6449
        %v6555 = vpack.c.b16 %v6453, %v6450
        %v6556 = vpack.c.b16 %v6454, %v6451
        %v6557 = vpack.c.b16 %v6458, %v6455
        %v6558 = vpack.c.b16 %v6459, %v6456
        %v6559 = vpack.c.b16 %v6460, %v6457
        %v6560 = vpack.c.b16 %v6464, %v6461
        %v6561 = vpack.c.b16 %v6465, %v6462
        %v6562 = vpack.c.b16 %v6466, %v6463
        %v6563 = vpack.c.b16 %v6470, %v6467
        %v6564 = vpack.c.b16 %v6471, %v6468
        %v6565 = vpack.c.b16 %v6472, %v6469
        %v6566 = vpack.c.b16 %v6476, %v6473
        %v6567 = vpack.c.b16 %v6477, %v6474
        %v6568 = vpack.c.b16 %v6478, %v6475
        %v6569 = vpack.c.b16 %v6482, %v6479
        %v6570 = vpack.c.b16 %v6483, %v6480
        %v6571 = vpack.c.b16 %v6484, %v6481
        %v6572 = vpack.c.b16 %v6488, %v6485
        %v6573 = vpack.c.b16 %v6489, %v6486
        %v6574 = vpack.c.b16 %v6490, %v6487
        %v6575 = vpack.c.b16 %v6494, %v6491
        %v6576 = vpack.c.b16 %v6495, %v6492
        %v6577 = vpack.c.b16 %v6496, %v6493
        %v6578 = vpack.c.b16 %v6500, %v6497
        %v6579 = vpack.c.b16 %v6501, %v6498
        %v6580 = vpack.c.b16 %v6502, %v6499
        %v6581 = vpack.c.b16 %v6506, %v6503
        %v6582 = vpack.c.b16 %v6507, %v6504
        %v6583 = vpack.c.b16 %v6508, %v6505
        %v6584 = vpack.c.b16 %v6512, %v6509
        %v6585 = vpack.c.b16 %v6513, %v6510
        %v6586 = vpack.c.b16 %v6514, %v6511
        %v6587 = vpack.c.b16 %v6518, %v6515
        %v6588 = vpack.c.b16 %v6519, %v6516
        %v6589 = vpack.c.b16 %v6520, %v6517
        %v6590 = vpack.c.b16 %v6524, %v6521
        %v6591 = vpack.c.b16 %v6525, %v6522
        %v6592 = vpack.c.b16 %v6526, %v6523
        %v6593 = vpack.c.b16 %v6530, %v6527
        %v6594 = vpack.c.b16 %v6531, %v6528
        %v6595 = vpack.c.b16 %v6532, %v6529
        %v6596 = vpack.c.b16 %v6536, %v6533
        %v6597 = vpack.c.b16 %v6537, %v6534
        %v6598 = vpack.c.b16 %v6538, %v6535
        %v6599 = vpack.c.b16 %v6542, %v6539
        %v6600 = vpack.c.b16 %v6543, %v6540
        %v6601 = vpack.c.b16 %v6544, %v6541
        %v6602 = vpack.c.b16 %v6548, %v6545
        %v6603 = vpack.c.b16 %v6549, %v6546
        %v6604 = vpack.c.b16 %v6550, %v6547
        %v6660 = vsel %vm1727, %v6368, 0
        %6662 = vmatpush.bf16.msra.mxu0 %v6572
        %6663 = vmatpush.bf16.msra.mxu0 %v6569
        %6664 = vmatpush.bf16.msra.mxu0 %v6566
        %6665 = vmatpush.bf16.msra.mxu0 %v6563
        %6666 = vmatpush.bf16.msra.mxu0 %v6560
        %6667 = vmatpush.bf16.msra.mxu0 %v6557
        %6668 = vmatpush.bf16.msra.mxu0 %v6554
        %6669 = vmatpush.bf16.msra.mxu0 %v6551
        %6670 = vmatmul.bf16.gmra.mxu0 %v6366
        %v6671 = vpop.f32.mrf.mxu0
        %v6672 = vadd.f32 0.0, %v6671
        %v6673 = vpop.f32.mrf.mxu0
        %6674 = vdwg.mxu0
        %6675 = vmatpush.bf16.msra.mxu0 %v6596
        %6676 = vmatpush.bf16.msra.mxu0 %v6593
        %6677 = vmatpush.bf16.msra.mxu0 %v6590
        %6678 = vmatpush.bf16.msra.mxu0 %v6587
        %6679 = vmatpush.bf16.msra.mxu0 %v6584
        %6680 = vmatpush.bf16.msra.mxu0 %v6581
        %6681 = vmatpush.bf16.msra.mxu0 %v6578
        %6682 = vmatpush.bf16.msra.mxu0 %v6575
        %6683 = vmatmul.bf16.gmra.mxu0 %v6367
        %v6684 = vpop.f32.mrf.mxu0
        %v6685 = vadd.f32 %v6672, %v6684
        %v6686 = vpop.f32.mrf.mxu0
        %6687 = vdwg.mxu0
        %6688 = vmatpush.bf16.msra.mxu0 0
        %6689 = vmatpush.bf16.msra.mxu0 0
        %6690 = vmatpush.bf16.msra.mxu0 0
        %6691 = vmatpush.bf16.msra.mxu0 0
        %6692 = vmatpush.bf16.msra.mxu0 0
        %6693 = vmatpush.bf16.msra.mxu0 0
        %6694 = vmatpush.bf16.msra.mxu0 %v6602
        %6695 = vmatpush.bf16.msra.mxu0 %v6599
        %6696 = vmatmul.bf16.gmra.mxu0 %v6660
        %v6697 = vpop.f32.mrf.mxu0
        %v6698 = vadd.f32 %v6685, %v6697
        %v6699 = vpop.f32.mrf.mxu0
        %6700 = vdwg.mxu0
        %6701 = vmatpush.bf16.msra.mxu0 %v6573
        %6702 = vmatpush.bf16.msra.mxu0 %v6570
        %6703 = vmatpush.bf16.msra.mxu0 %v6567
        %6704 = vmatpush.bf16.msra.mxu0 %v6564
        %6705 = vmatpush.bf16.msra.mxu0 %v6561
        %6706 = vmatpush.bf16.msra.mxu0 %v6558
        %6707 = vmatpush.bf16.msra.mxu0 %v6555
        %6708 = vmatpush.bf16.msra.mxu0 %v6552
        %6709 = vmatmul.bf16.gmra.mxu0 %v6366
        %v6710 = vpop.f32.mrf.mxu0
        %v6711 = vadd.f32 0.0, %v6710
        %v6712 = vpop.f32.mrf.mxu0
        %6713 = vdwg.mxu0
        %6714 = vmatpush.bf16.msra.mxu0 %v6597
        %6715 = vmatpush.bf16.msra.mxu0 %v6594
        %6716 = vmatpush.bf16.msra.mxu0 %v6591
        %6717 = vmatpush.bf16.msra.mxu0 %v6588
        %6718 = vmatpush.bf16.msra.mxu0 %v6585
        %6719 = vmatpush.bf16.msra.mxu0 %v6582
        %6720 = vmatpush.bf16.msra.mxu0 %v6579
        %6721 = vmatpush.bf16.msra.mxu0 %v6576
        %6722 = vmatmul.bf16.gmra.mxu0 %v6367
        %v6723 = vpop.f32.mrf.mxu0
        %v6724 = vadd.f32 %v6711, %v6723
        %v6725 = vpop.f32.mrf.mxu0
        %6726 = vdwg.mxu0
        %6727 = vmatpush.bf16.msra.mxu0 0
        %6728 = vmatpush.bf16.msra.mxu0 0
        %6729 = vmatpush.bf16.msra.mxu0 0
        %6730 = vmatpush.bf16.msra.mxu0 0
        %6731 = vmatpush.bf16.msra.mxu0 0
        %6732 = vmatpush.bf16.msra.mxu0 0
        %6733 = vmatpush.bf16.msra.mxu0 %v6603
        %6734 = vmatpush.bf16.msra.mxu0 %v6600
        %6735 = vmatmul.bf16.gmra.mxu0 %v6660
        %v6736 = vpop.f32.mrf.mxu0
        %v6737 = vadd.f32 %v6724, %v6736
        %v6738 = vpop.f32.mrf.mxu0
        %6739 = vdwg.mxu0
        %6740 = vmatpush.bf16.msra.mxu0 %v6574
        %6741 = vmatpush.bf16.msra.mxu0 %v6571
        %6742 = vmatpush.bf16.msra.mxu0 %v6568
        %6743 = vmatpush.bf16.msra.mxu0 %v6565
        %6744 = vmatpush.bf16.msra.mxu0 %v6562
        %6745 = vmatpush.bf16.msra.mxu0 %v6559
        %6746 = vmatpush.bf16.msra.mxu0 %v6556
        %6747 = vmatpush.bf16.msra.mxu0 %v6553
        %6748 = vmatmul.bf16.gmra.mxu0 %v6366
        %v6749 = vpop.f32.mrf.mxu0
        %v6750 = vadd.f32 0.0, %v6749
        %v6751 = vpop.f32.mrf.mxu0
        %6752 = vdwg.mxu0
        %6753 = vmatpush.bf16.msra.mxu0 %v6598
        %6754 = vmatpush.bf16.msra.mxu0 %v6595
        %6755 = vmatpush.bf16.msra.mxu0 %v6592
        %6756 = vmatpush.bf16.msra.mxu0 %v6589
        %6757 = vmatpush.bf16.msra.mxu0 %v6586
        %6758 = vmatpush.bf16.msra.mxu0 %v6583
        %6759 = vmatpush.bf16.msra.mxu0 %v6580
        %6760 = vmatpush.bf16.msra.mxu0 %v6577
        %6761 = vmatmul.bf16.gmra.mxu0 %v6367
        %v6762 = vpop.f32.mrf.mxu0
        %v6763 = vadd.f32 %v6750, %v6762
        %v6764 = vpop.f32.mrf.mxu0
        %6765 = vdwg.mxu0
        %6766 = vmatpush.bf16.msra.mxu0 0
        %6767 = vmatpush.bf16.msra.mxu0 0
        %6768 = vmatpush.bf16.msra.mxu0 0
        %6769 = vmatpush.bf16.msra.mxu0 0
        %6770 = vmatpush.bf16.msra.mxu0 0
        %6771 = vmatpush.bf16.msra.mxu0 0
        %6772 = vmatpush.bf16.msra.mxu0 %v6604
        %6773 = vmatpush.bf16.msra.mxu0 %v6601
        %6774 = vmatmul.bf16.gmra.mxu0 %v6660
        %v6775 = vpop.f32.mrf.mxu0
        %v6776 = vadd.f32 %v6763, %v6775
        %v6777 = vpop.f32.mrf.mxu0
        %6778 = vdwg.mxu0
        %v6781 = vunpack.c.l.b16 %v6057
        %v6782 = vunpack.c.h.b16 %v6057
        %v6783 = vunpack.c.l.b16 %v6058
        %v6784 = vpack.c.b16 %v6781, %v6781
        %v6785 = vpack.c.b16 %v6782, %v6782
        %v6786 = vpack.c.b16 %v6783, %v6783
        %v6861 = vunpack.c.l.b16 %v6059
        %v6862 = vunpack.c.h.b16 %v6059
        %v6863 = vunpack.c.l.b16 %v6060
        %v6864 = vunpack.c.l.b16 %v6061
        %v6865 = vunpack.c.h.b16 %v6061
        %v6866 = vunpack.c.l.b16 %v6062
        %v6867 = vunpack.c.l.b16 %v6063
        %v6868 = vunpack.c.h.b16 %v6063
        %v6869 = vunpack.c.l.b16 %v6064
        %v6870 = vunpack.c.l.b16 %v6065
        %v6871 = vunpack.c.h.b16 %v6065
        %v6872 = vunpack.c.l.b16 %v6066
        %v6873 = vunpack.c.l.b16 %v6067
        %v6874 = vunpack.c.h.b16 %v6067
        %v6875 = vunpack.c.l.b16 %v6068
        %v6876 = vunpack.c.l.b16 %v6069
        %v6877 = vunpack.c.h.b16 %v6069
        %v6878 = vunpack.c.l.b16 %v6070
        %v6879 = vunpack.c.l.b16 %v6071
        %v6880 = vunpack.c.h.b16 %v6071
        %v6881 = vunpack.c.l.b16 %v6072
        %v6882 = vunpack.c.l.b16 %v6073
        %v6883 = vunpack.c.h.b16 %v6073
        %v6884 = vunpack.c.l.b16 %v6074
        %v6885 = vunpack.c.l.b16 %v6075
        %v6886 = vunpack.c.h.b16 %v6075
        %v6887 = vunpack.c.l.b16 %v6076
        %v6888 = vunpack.c.l.b16 %v6077
        %v6889 = vunpack.c.h.b16 %v6077
        %v6890 = vunpack.c.l.b16 %v6078
        %v6891 = vunpack.c.l.b16 %v6079
        %v6892 = vunpack.c.h.b16 %v6079
        %v6893 = vunpack.c.l.b16 %v6080
        %v6894 = vunpack.c.l.b16 %v6081
        %v6895 = vunpack.c.h.b16 %v6081
        %v6896 = vunpack.c.l.b16 %v6082
        %v6897 = vunpack.c.l.b16 %v6083
        %v6898 = vunpack.c.h.b16 %v6083
        %v6899 = vunpack.c.l.b16 %v6084
        %v6900 = vunpack.c.l.b16 %v6085
        %v6901 = vunpack.c.h.b16 %v6085
        %v6902 = vunpack.c.l.b16 %v6086
        %v6903 = vunpack.c.l.b16 %v6087
        %v6904 = vunpack.c.h.b16 %v6087
        %v6905 = vunpack.c.l.b16 %v6088
        %v6906 = vunpack.c.l.b16 %v6089
        %v6907 = vunpack.c.h.b16 %v6089
        %v6908 = vunpack.c.l.b16 %v6090
        %v6909 = vunpack.c.l.b16 %v6091
        %v6910 = vunpack.c.h.b16 %v6091
        %v6911 = vunpack.c.l.b16 %v6092
        %v6912 = vunpack.c.l.b16 %v6093
        %v6913 = vunpack.c.h.b16 %v6093
        %v6914 = vunpack.c.l.b16 %v6094
        %v6915 = vunpack.c.l.b16 %v6095
        %v6916 = vunpack.c.h.b16 %v6095
        %v6917 = vunpack.c.l.b16 %v6096
        %v6918 = vunpack.c.l.b16 %v6097
        %v6919 = vunpack.c.h.b16 %v6097
        %v6920 = vunpack.c.l.b16 %v6098
        %v6921 = vunpack.c.l.b16 %v6099
        %v6922 = vunpack.c.h.b16 %v6099
        %v6923 = vunpack.c.l.b16 %v6100
        %v6924 = vunpack.c.l.b16 %v6101
        %v6925 = vunpack.c.h.b16 %v6101
        %v6926 = vunpack.c.l.b16 %v6102
        %v6927 = vunpack.c.l.b16 %v6103
        %v6928 = vunpack.c.h.b16 %v6103
        %v6929 = vunpack.c.l.b16 %v6104
        %v6930 = vunpack.c.l.b16 %v6105
        %v6931 = vunpack.c.h.b16 %v6105
        %v6932 = vunpack.c.l.b16 %v6106
        %v6933 = vunpack.c.l.b16 %v6107
        %v6934 = vunpack.c.h.b16 %v6107
        %v6935 = vunpack.c.l.b16 %v6108
        %v6936 = vunpack.c.l.b16 %v6109
        %v6937 = vunpack.c.h.b16 %v6109
        %v6938 = vunpack.c.l.b16 %v6110
        %v6939 = vunpack.c.l.b16 %v6111
        %v6940 = vunpack.c.h.b16 %v6111
        %v6941 = vunpack.c.l.b16 %v6112
        %v6942 = vunpack.c.l.b16 %v6113
        %v6943 = vunpack.c.h.b16 %v6113
        %v6944 = vunpack.c.l.b16 %v6114
        %v6945 = vunpack.c.l.b16 %v6115
        %v6946 = vunpack.c.h.b16 %v6115
        %v6947 = vunpack.c.l.b16 %v6116
        %v6948 = vunpack.c.l.b16 %v6117
        %v6949 = vunpack.c.h.b16 %v6117
        %v6950 = vunpack.c.l.b16 %v6118
        %v6951 = vunpack.c.l.b16 %v6119
        %v6952 = vunpack.c.h.b16 %v6119
        %v6953 = vunpack.c.l.b16 %v6120
        %v6954 = vunpack.c.l.b16 %v6121
        %v6955 = vunpack.c.h.b16 %v6121
        %v6956 = vunpack.c.l.b16 %v6122
        %v6957 = vunpack.c.l.b16 %v6123
        %v6958 = vunpack.c.h.b16 %v6123
        %v6959 = vunpack.c.l.b16 %v6124
        %v6960 = vunpack.c.l.b16 %v6125
        %v6961 = vunpack.c.h.b16 %v6125
        %v6962 = vunpack.c.l.b16 %v6126
        %v6963 = vunpack.c.l.b16 %v6127
        %v6964 = vunpack.c.h.b16 %v6127
        %v6965 = vunpack.c.l.b16 %v6128
        %v6966 = vunpack.c.l.b16 %v6129
        %v6967 = vunpack.c.h.b16 %v6129
        %v6968 = vunpack.c.l.b16 %v6130
        %v6969 = vpack.c.b16 %v6864, %v6861
        %v6970 = vpack.c.b16 %v6865, %v6862
        %v6971 = vpack.c.b16 %v6866, %v6863
        %v6972 = vpack.c.b16 %v6870, %v6867
        %v6973 = vpack.c.b16 %v6871, %v6868
        %v6974 = vpack.c.b16 %v6872, %v6869
        %v6975 = vpack.c.b16 %v6876, %v6873
        %v6976 = vpack.c.b16 %v6877, %v6874
        %v6977 = vpack.c.b16 %v6878, %v6875
        %v6978 = vpack.c.b16 %v6882, %v6879
        %v6979 = vpack.c.b16 %v6883, %v6880
        %v6980 = vpack.c.b16 %v6884, %v6881
        %v6981 = vpack.c.b16 %v6888, %v6885
        %v6982 = vpack.c.b16 %v6889, %v6886
        %v6983 = vpack.c.b16 %v6890, %v6887
        %v6984 = vpack.c.b16 %v6894, %v6891
        %v6985 = vpack.c.b16 %v6895, %v6892
        %v6986 = vpack.c.b16 %v6896, %v6893
        %v6987 = vpack.c.b16 %v6900, %v6897
        %v6988 = vpack.c.b16 %v6901, %v6898
        %v6989 = vpack.c.b16 %v6902, %v6899
        %v6990 = vpack.c.b16 %v6906, %v6903
        %v6991 = vpack.c.b16 %v6907, %v6904
        %v6992 = vpack.c.b16 %v6908, %v6905
        %v6993 = vpack.c.b16 %v6912, %v6909
        %v6994 = vpack.c.b16 %v6913, %v6910
        %v6995 = vpack.c.b16 %v6914, %v6911
        %v6996 = vpack.c.b16 %v6918, %v6915
        %v6997 = vpack.c.b16 %v6919, %v6916
        %v6998 = vpack.c.b16 %v6920, %v6917
        %v6999 = vpack.c.b16 %v6924, %v6921
        %v7000 = vpack.c.b16 %v6925, %v6922
        %v7001 = vpack.c.b16 %v6926, %v6923
        %v7002 = vpack.c.b16 %v6930, %v6927
        %v7003 = vpack.c.b16 %v6931, %v6928
        %v7004 = vpack.c.b16 %v6932, %v6929
        %v7005 = vpack.c.b16 %v6936, %v6933
        %v7006 = vpack.c.b16 %v6937, %v6934
        %v7007 = vpack.c.b16 %v6938, %v6935
        %v7008 = vpack.c.b16 %v6942, %v6939
        %v7009 = vpack.c.b16 %v6943, %v6940
        %v7010 = vpack.c.b16 %v6944, %v6941
        %v7011 = vpack.c.b16 %v6948, %v6945
        %v7012 = vpack.c.b16 %v6949, %v6946
        %v7013 = vpack.c.b16 %v6950, %v6947
        %v7014 = vpack.c.b16 %v6954, %v6951
        %v7015 = vpack.c.b16 %v6955, %v6952
        %v7016 = vpack.c.b16 %v6956, %v6953
        %v7017 = vpack.c.b16 %v6960, %v6957
        %v7018 = vpack.c.b16 %v6961, %v6958
        %v7019 = vpack.c.b16 %v6962, %v6959
        %v7020 = vpack.c.b16 %v6966, %v6963
        %v7021 = vpack.c.b16 %v6967, %v6964
        %v7022 = vpack.c.b16 %v6968, %v6965
        %v7078 = vsel %vm1727, %v6786, 0
        %7080 = vmatpush.bf16.msra.mxu0 %v6990
        %7081 = vmatpush.bf16.msra.mxu0 %v6987
        %7082 = vmatpush.bf16.msra.mxu0 %v6984
        %7083 = vmatpush.bf16.msra.mxu0 %v6981
        %7084 = vmatpush.bf16.msra.mxu0 %v6978
        %7085 = vmatpush.bf16.msra.mxu0 %v6975
        %7086 = vmatpush.bf16.msra.mxu0 %v6972
        %7087 = vmatpush.bf16.msra.mxu0 %v6969
        %7088 = vmatmul.bf16.gmra.mxu0 %v6784
        %v7089 = vpop.f32.mrf.mxu0
        %v7090 = vadd.f32 %v6698, %v7089
        %v7091 = vpop.f32.mrf.mxu0
        %7092 = vdwg.mxu0
        %7093 = vmatpush.bf16.msra.mxu0 %v7014
        %7094 = vmatpush.bf16.msra.mxu0 %v7011
        %7095 = vmatpush.bf16.msra.mxu0 %v7008
        %7096 = vmatpush.bf16.msra.mxu0 %v7005
        %7097 = vmatpush.bf16.msra.mxu0 %v7002
        %7098 = vmatpush.bf16.msra.mxu0 %v6999
        %7099 = vmatpush.bf16.msra.mxu0 %v6996
        %7100 = vmatpush.bf16.msra.mxu0 %v6993
        %7101 = vmatmul.bf16.gmra.mxu0 %v6785
        %v7102 = vpop.f32.mrf.mxu0
        %v7103 = vadd.f32 %v7090, %v7102
        %v7104 = vpop.f32.mrf.mxu0
        %7105 = vdwg.mxu0
        %7106 = vmatpush.bf16.msra.mxu0 0
        %7107 = vmatpush.bf16.msra.mxu0 0
        %7108 = vmatpush.bf16.msra.mxu0 0
        %7109 = vmatpush.bf16.msra.mxu0 0
        %7110 = vmatpush.bf16.msra.mxu0 0
        %7111 = vmatpush.bf16.msra.mxu0 0
        %7112 = vmatpush.bf16.msra.mxu0 %v7020
        %7113 = vmatpush.bf16.msra.mxu0 %v7017
        %7114 = vmatmul.bf16.gmra.mxu0 %v7078
        %v7115 = vpop.f32.mrf.mxu0
        %v7116 = vadd.f32 %v7103, %v7115
        %v7117 = vpop.f32.mrf.mxu0
        %7118 = vdwg.mxu0
        %7119 = vmatpush.bf16.msra.mxu0 %v6991
        %7120 = vmatpush.bf16.msra.mxu0 %v6988
        %7121 = vmatpush.bf16.msra.mxu0 %v6985
        %7122 = vmatpush.bf16.msra.mxu0 %v6982
        %7123 = vmatpush.bf16.msra.mxu0 %v6979
        %7124 = vmatpush.bf16.msra.mxu0 %v6976
        %7125 = vmatpush.bf16.msra.mxu0 %v6973
        %7126 = vmatpush.bf16.msra.mxu0 %v6970
        %7127 = vmatmul.bf16.gmra.mxu0 %v6784
        %v7128 = vpop.f32.mrf.mxu0
        %v7129 = vadd.f32 %v6737, %v7128
        %v7130 = vpop.f32.mrf.mxu0
        %7131 = vdwg.mxu0
        %7132 = vmatpush.bf16.msra.mxu0 %v7015
        %7133 = vmatpush.bf16.msra.mxu0 %v7012
        %7134 = vmatpush.bf16.msra.mxu0 %v7009
        %7135 = vmatpush.bf16.msra.mxu0 %v7006
        %7136 = vmatpush.bf16.msra.mxu0 %v7003
        %7137 = vmatpush.bf16.msra.mxu0 %v7000
        %7138 = vmatpush.bf16.msra.mxu0 %v6997
        %7139 = vmatpush.bf16.msra.mxu0 %v6994
        %7140 = vmatmul.bf16.gmra.mxu0 %v6785
        %v7141 = vpop.f32.mrf.mxu0
        %v7142 = vadd.f32 %v7129, %v7141
        %v7143 = vpop.f32.mrf.mxu0
        %7144 = vdwg.mxu0
        %7145 = vmatpush.bf16.msra.mxu0 0
        %7146 = vmatpush.bf16.msra.mxu0 0
        %7147 = vmatpush.bf16.msra.mxu0 0
        %7148 = vmatpush.bf16.msra.mxu0 0
        %7149 = vmatpush.bf16.msra.mxu0 0
        %7150 = vmatpush.bf16.msra.mxu0 0
        %7151 = vmatpush.bf16.msra.mxu0 %v7021
        %7152 = vmatpush.bf16.msra.mxu0 %v7018
        %7153 = vmatmul.bf16.gmra.mxu0 %v7078
        %v7154 = vpop.f32.mrf.mxu0
        %v7155 = vadd.f32 %v7142, %v7154
        %v7156 = vpop.f32.mrf.mxu0
        %7157 = vdwg.mxu0
        %7158 = vmatpush.bf16.msra.mxu0 %v6992
        %7159 = vmatpush.bf16.msra.mxu0 %v6989
        %7160 = vmatpush.bf16.msra.mxu0 %v6986
        %7161 = vmatpush.bf16.msra.mxu0 %v6983
        %7162 = vmatpush.bf16.msra.mxu0 %v6980
        %7163 = vmatpush.bf16.msra.mxu0 %v6977
        %7164 = vmatpush.bf16.msra.mxu0 %v6974
        %7165 = vmatpush.bf16.msra.mxu0 %v6971
        %7166 = vmatmul.bf16.gmra.mxu0 %v6784
        %v7167 = vpop.f32.mrf.mxu0
        %v7168 = vadd.f32 %v6776, %v7167
        %v7169 = vpop.f32.mrf.mxu0
        %7170 = vdwg.mxu0
        %7171 = vmatpush.bf16.msra.mxu0 %v7016
        %7172 = vmatpush.bf16.msra.mxu0 %v7013
        %7173 = vmatpush.bf16.msra.mxu0 %v7010
        %7174 = vmatpush.bf16.msra.mxu0 %v7007
        %7175 = vmatpush.bf16.msra.mxu0 %v7004
        %7176 = vmatpush.bf16.msra.mxu0 %v7001
        %7177 = vmatpush.bf16.msra.mxu0 %v6998
        %7178 = vmatpush.bf16.msra.mxu0 %v6995
        %7179 = vmatmul.bf16.gmra.mxu0 %v6785
        %v7180 = vpop.f32.mrf.mxu0
        %v7181 = vadd.f32 %v7168, %v7180
        %v7182 = vpop.f32.mrf.mxu0
        %7183 = vdwg.mxu0
        %7184 = vmatpush.bf16.msra.mxu0 0
        %7185 = vmatpush.bf16.msra.mxu0 0
        %7186 = vmatpush.bf16.msra.mxu0 0
        %7187 = vmatpush.bf16.msra.mxu0 0
        %7188 = vmatpush.bf16.msra.mxu0 0
        %7189 = vmatpush.bf16.msra.mxu0 0
        %7190 = vmatpush.bf16.msra.mxu0 %v7022
        %7191 = vmatpush.bf16.msra.mxu0 %v7019
        %7192 = vmatmul.bf16.gmra.mxu0 %v7078
        %v7193 = vpop.f32.mrf.mxu0
        %v7194 = vadd.f32 %v7181, %v7193
        %v7195 = vpop.f32.mrf.mxu0
        %7196 = vdwg.mxu0
        %s7197 = scalar_lea.vmem [#allocation17], 224
        %v7198 = vld [vmem:[%s7197] sm:$0xf]
        %7200 = vset.pattern.permute.xlu0 0
        %7201 = vperm.xlu0 %7200, %v7198
        %v7202 = vpop.permute.xlu0 %7201
        %v7204 = vmul.f32 %v7116, %v7202
        %v7205 = vmul.f32 %v7155, %v7202
        %v7206 = vmul.f32 %v7194, %v7202
        %s7207 = scalar_lea.vmem [#allocation19], 224
        %v7208 = vld [vmem:[%s7207] sm:$0xf]
        %7210 = vset.pattern.permute.xlu0 0
        %7211 = vperm.xlu0 %7210, %v7208
        %v7212 = vpop.permute.xlu0 %7211
        %v7214 = vadd.f32 %v7204, %v7212
        %v7215 = vadd.f32 %v7205, %v7212
        %v7216 = vadd.f32 %v7206, %v7212
        %v7217 = vmax.f32 %v7214, 0.0
        %v7218 = vmax.f32 %v7215, 0.0
        %v7219 = vmax.f32 %v7216, 0.0
        %v7220 = vld [vmem:[#allocation20] sm:$0x3]
        %v7221 = vunpack.c.l.bf16 %v7220
        %v7222 = vld [vmem:[#allocation22] sm:$0x7]
        %7224 = vset.pattern.permute.xlu0 0
        %7225 = vperm.xlu0 %7224, %v7222
        %v7226 = vpop.permute.xlu0 %7225
        %vm7228 = vcmask 31744
        %v7230 = vsel %vm7228, %v7221, 0
        %v7233 = vsel %vm798, %v7217, 0
        %v7236 = vsel %vm798, %v7218, 0
        %v7239 = vsel %vm798, %v7219, 0
        %7241 = vmatpush.msra.mxu0 0.0
        %7242 = vmatpush.msra.mxu0 0.0
        %7243 = vmatpush.msra.mxu0 0.0
        %7244 = vmatpush.msra.mxu0 0.0
        %7245 = vmatpush.msra.mxu0 0.0
        %7246 = vmatpush.msra.mxu0 0.0
        %7247 = vmatpush.msra.mxu0 0.0
        %7248 = vmatpush.msra.mxu0 0.0
        %7249 = vmatpush.msra.mxu0 0.0
        %7250 = vmatpush.msra.mxu0 0.0
        %7251 = vmatpush.msra.mxu0 0.0
        %7252 = vmatpush.msra.mxu0 0.0
        %7253 = vmatpush.msra.mxu0 0.0
        %7254 = vmatpush.msra.mxu0 0.0
        %7255 = vmatpush.msra.mxu0 0.0
        %7256 = vmatpush.msra.mxu0 %v7233
        %7257 = vmatmul.f32.gmra.mxu0 %v7230
        %v7258 = vpop.f32.mrf.mxu0
        %v7259 = vadd.f32 %v7226, %v7258
        %7260 = vdwg.mxu0
        %7261 = vmatpush.msra.mxu0 0.0
        %7262 = vmatpush.msra.mxu0 0.0
        %7263 = vmatpush.msra.mxu0 0.0
        %7264 = vmatpush.msra.mxu0 0.0
        %7265 = vmatpush.msra.mxu0 0.0
        %7266 = vmatpush.msra.mxu0 0.0
        %7267 = vmatpush.msra.mxu0 0.0
        %7268 = vmatpush.msra.mxu0 0.0
        %7269 = vmatpush.msra.mxu0 0.0
        %7270 = vmatpush.msra.mxu0 0.0
        %7271 = vmatpush.msra.mxu0 0.0
        %7272 = vmatpush.msra.mxu0 0.0
        %7273 = vmatpush.msra.mxu0 0.0
        %7274 = vmatpush.msra.mxu0 0.0
        %7275 = vmatpush.msra.mxu0 0.0
        %7276 = vmatpush.msra.mxu0 %v7236
        %7277 = vmatmul.f32.gmra.mxu0 %v7230
        %v7278 = vpop.f32.mrf.mxu0
        %v7279 = vadd.f32 %v7226, %v7278
        %7280 = vdwg.mxu0
        %7281 = vmatpush.msra.mxu0 0.0
        %7282 = vmatpush.msra.mxu0 0.0
        %7283 = vmatpush.msra.mxu0 0.0
        %7284 = vmatpush.msra.mxu0 0.0
        %7285 = vmatpush.msra.mxu0 0.0
        %7286 = vmatpush.msra.mxu0 0.0
        %7287 = vmatpush.msra.mxu0 0.0
        %7288 = vmatpush.msra.mxu0 0.0
        %7289 = vmatpush.msra.mxu0 0.0
        %7290 = vmatpush.msra.mxu0 0.0
        %7291 = vmatpush.msra.mxu0 0.0
        %7292 = vmatpush.msra.mxu0 0.0
        %7293 = vmatpush.msra.mxu0 0.0
        %7294 = vmatpush.msra.mxu0 0.0
        %7295 = vmatpush.msra.mxu0 0.0
        %7296 = vmatpush.msra.mxu0 %v7239
        %7297 = vmatmul.f32.gmra.mxu0 %v7230
        %v7298 = vpop.f32.mrf.mxu0
        %v7299 = vadd.f32 %v7226, %v7298
        %7300 = vdwg.mxu0
        %v7301 = vld [vmem:[#allocation35] sm:$0xff]
        %v7302 = vld [vmem:[#allocation35 + $0x8] sm:$0xff]
        %v7303 = vld [vmem:[#allocation35 + $0x10] sm:$0xff]
        %v7304 = vld [vmem:[#allocation35 + $0x18] sm:$0xff]
        %v7305 = vld [vmem:[#allocation35 + $0x20] sm:$0xff]
        %v7306 = vld [vmem:[#allocation35 + $0x28] sm:$0xff]
        %v7307 = vld [vmem:[#allocation35 + $0x30] sm:$0xff]
        %v7308 = vld [vmem:[#allocation35 + $0x38] sm:$0xff]
        %v7309 = vld [vmem:[#allocation35 + $0x40] sm:$0xff]
        %v7310 = vld [vmem:[#allocation35 + $0x48] sm:$0xff]
        %v7311 = vld [vmem:[#allocation35 + $0x50] sm:$0xff]
        %v7312 = vld [vmem:[#allocation35 + $0x58] sm:$0xff]
        %v7313 = vld [vmem:[#allocation35 + $0x60] sm:$0xff]
        %v7314 = vld [vmem:[#allocation35 + $0x68] sm:$0xff]
        %v7315 = vld [vmem:[#allocation35 + $0x70] sm:$0xff]
        %v7316 = vld [vmem:[#allocation35 + $0x78] sm:$0xff]
        %v7317 = vld [vmem:[#allocation35 + $0x80] sm:$0xff]
        %v7318 = vld [vmem:[#allocation35 + $0x88] sm:$0xff]
        %v7319 = vld [vmem:[#allocation35 + $0x90] sm:$0xff]
        %v7320 = vld [vmem:[#allocation35 + $0x98] sm:$0xff]
        %v7321 = vld [vmem:[#allocation35 + $0xa0] sm:$0xff]
        %v7322 = vld [vmem:[#allocation35 + $0xa8] sm:$0xff]
        %v7323 = vld [vmem:[#allocation35 + $0xb0] sm:$0xff]
        %v7324 = vld [vmem:[#allocation35 + $0xb8] sm:$0xff]
        %v7325 = vld [vmem:[#allocation35 + $0xc0] sm:$0xff]
        %v7326 = vld [vmem:[#allocation35 + $0xc8] sm:$0xff]
        %v7327 = vld [vmem:[#allocation35 + $0xd0] sm:$0xff]
        %v7328 = vld [vmem:[#allocation35 + $0xd8] sm:$0xff]
        %v7329 = vld [vmem:[#allocation35 + $0xe0] sm:$0xff]
        %v7330 = vld [vmem:[#allocation35 + $0xe8] sm:$0xff]
        %v7331 = vld [vmem:[#allocation35 + $0xf0] sm:$0xff]
        %v7332 = vld [vmem:[#allocation35 + $0xf8] sm:$0xff]
        %v7333 = vld [vmem:[#allocation35 + $0x100] sm:$0xff]
        %v7334 = vld [vmem:[#allocation35 + $0x108] sm:$0xff]
        %v7335 = vld [vmem:[#allocation35 + $0x110] sm:$0xff]
        %v7336 = vld [vmem:[#allocation35 + $0x118] sm:$0xff]
        %v7337 = vld [vmem:[#allocation35 + $0x120] sm:$0xff]
        %v7338 = vld [vmem:[#allocation35 + $0x128] sm:$0xff]
        %v7339 = vld [vmem:[#allocation35 + $0x130] sm:$0xff]
        %v7340 = vld [vmem:[#allocation35 + $0x138] sm:$0xff]
        %v7341 = vld [vmem:[#allocation35 + $0x140] sm:$0xff]
        %v7342 = vld [vmem:[#allocation35 + $0x148] sm:$0xff]
        %v7343 = vld [vmem:[#allocation35 + $0x150] sm:$0xff]
        %v7344 = vld [vmem:[#allocation35 + $0x158] sm:$0xff]
        %v7345 = vld [vmem:[#allocation35 + $0x160] sm:$0xff]
        %v7346 = vld [vmem:[#allocation35 + $0x168] sm:$0xff]
        %v7347 = vld [vmem:[#allocation35 + $0x170] sm:$0xff]
        %v7348 = vld [vmem:[#allocation35 + $0x178] sm:$0xff]
        %v7349 = vld [vmem:[#allocation35 + $0x180] sm:$0xff]
        %v7350 = vld [vmem:[#allocation35 + $0x188] sm:$0xff]
        %v7351 = vld [vmem:[#allocation35 + $0x190] sm:$0xff]
        %v7352 = vld [vmem:[#allocation35 + $0x198] sm:$0xff]
        %v7353 = vld [vmem:[#allocation35 + $0x1a0] sm:$0xff]
        %v7354 = vld [vmem:[#allocation35 + $0x1a8] sm:$0xff]
        %v7355 = vld [vmem:[#allocation35 + $0x1b0] sm:$0xff]
        %v7356 = vld [vmem:[#allocation35 + $0x1b8] sm:$0xff]
        %v7357 = vld [vmem:[#allocation35 + $0x1c0] sm:$0xff]
        %v7358 = vld [vmem:[#allocation35 + $0x1c8] sm:$0xff]
        %v7359 = vld [vmem:[#allocation35 + $0x1d0] sm:$0xff]
        %v7360 = vld [vmem:[#allocation35 + $0x1d8] sm:$0xff]
        %v7361 = vld [vmem:[#allocation35 + $0x1e0] sm:$0xff]
        %v7362 = vld [vmem:[#allocation35 + $0x1e8] sm:$0xff]
        %v7363 = vld [vmem:[#allocation35 + $0x1f0] sm:$0xff]
        %v7364 = vld [vmem:[#allocation35 + $0x1f8] sm:$0xff]
        %v7365 = vld [vmem:[#allocation35 + $0x200] sm:$0xff]
        %v7366 = vld [vmem:[#allocation35 + $0x208] sm:$0xff]
        %v7367 = vld [vmem:[#allocation35 + $0x210] sm:$0xff]
        %v7368 = vld [vmem:[#allocation35 + $0x218] sm:$0xff]
        %v7369 = vld [vmem:[#allocation35 + $0x220] sm:$0xff]
        %v7370 = vld [vmem:[#allocation35 + $0x228] sm:$0xff]
        %v7371 = vld [vmem:[#allocation35 + $0x230] sm:$0xff]
        %v7372 = vld [vmem:[#allocation35 + $0x238] sm:$0xff]
        %v7373 = vld [vmem:[#allocation35 + $0x240] sm:$0xff]
        %v7374 = vld [vmem:[#allocation35 + $0x248] sm:$0xff]
        %v7375 = vld [vmem:[#allocation35 + $0x250] sm:$0xff]
        %v7376 = vld [vmem:[#allocation35 + $0x258] sm:$0xff]
        %v7377 = vld [vmem:[#allocation35 + $0x260] sm:$0xff]
        %v7378 = vld [vmem:[#allocation35 + $0x268] sm:$0xff]
        %v7379 = vld [vmem:[#allocation35 + $0x270] sm:$0xff]
        %v7380 = vld [vmem:[#allocation35 + $0x278] sm:$0xff]
        %v7381 = vld [vmem:[#allocation35 + $0x280] sm:$0xf]
        %v7382 = vld [vmem:[#allocation35 + $0x288] sm:$0xf]
        %v7384 = vsel %vm2012, %v7299, 0
        %v7387 = vsel %vm798, %v7381, 0
        %v7390 = vsel %vm798, %v7382, 0
        %7392 = vmatpush.msra.mxu0 %v7331
        %7393 = vmatpush.msra.mxu0 %v7329
        %7394 = vmatpush.msra.mxu0 %v7327
        %7395 = vmatpush.msra.mxu0 %v7325
        %7396 = vmatpush.msra.mxu0 %v7323
        %7397 = vmatpush.msra.mxu0 %v7321
        %7398 = vmatpush.msra.mxu0 %v7319
        %7399 = vmatpush.msra.mxu0 %v7317
        %7400 = vmatpush.msra.mxu0 %v7315
        %7401 = vmatpush.msra.mxu0 %v7313
        %7402 = vmatpush.msra.mxu0 %v7311
        %7403 = vmatpush.msra.mxu0 %v7309
        %7404 = vmatpush.msra.mxu0 %v7307
        %7405 = vmatpush.msra.mxu0 %v7305
        %7406 = vmatpush.msra.mxu0 %v7303
        %7407 = vmatpush.msra.mxu0 %v7301
        %7408 = vmatmul.f32.gmra.mxu0 %v7259
        %v7409 = vpop.f32.mrf.mxu0
        %v7410 = vadd.f32 0.0, %v7409
        %7411 = vdwg.mxu0
        %7412 = vmatpush.msra.mxu0 %v7363
        %7413 = vmatpush.msra.mxu0 %v7361
        %7414 = vmatpush.msra.mxu0 %v7359
        %7415 = vmatpush.msra.mxu0 %v7357
        %7416 = vmatpush.msra.mxu0 %v7355
        %7417 = vmatpush.msra.mxu0 %v7353
        %7418 = vmatpush.msra.mxu0 %v7351
        %7419 = vmatpush.msra.mxu0 %v7349
        %7420 = vmatpush.msra.mxu0 %v7347
        %7421 = vmatpush.msra.mxu0 %v7345
        %7422 = vmatpush.msra.mxu0 %v7343
        %7423 = vmatpush.msra.mxu0 %v7341
        %7424 = vmatpush.msra.mxu0 %v7339
        %7425 = vmatpush.msra.mxu0 %v7337
        %7426 = vmatpush.msra.mxu0 %v7335
        %7427 = vmatpush.msra.mxu0 %v7333
        %7428 = vmatmul.f32.gmra.mxu0 %v7279
        %v7429 = vpop.f32.mrf.mxu0
        %v7430 = vadd.f32 %v7410, %v7429
        %7431 = vdwg.mxu0
        %7432 = vmatpush.msra.mxu0 0.0
        %7433 = vmatpush.msra.mxu0 0.0
        %7434 = vmatpush.msra.mxu0 0.0
        %7435 = vmatpush.msra.mxu0 0.0
        %7436 = vmatpush.msra.mxu0 0.0
        %7437 = vmatpush.msra.mxu0 0.0
        %7438 = vmatpush.msra.mxu0 0.0
        %7439 = vmatpush.msra.mxu0 %v7387
        %7440 = vmatpush.msra.mxu0 %v7379
        %7441 = vmatpush.msra.mxu0 %v7377
        %7442 = vmatpush.msra.mxu0 %v7375
        %7443 = vmatpush.msra.mxu0 %v7373
        %7444 = vmatpush.msra.mxu0 %v7371
        %7445 = vmatpush.msra.mxu0 %v7369
        %7446 = vmatpush.msra.mxu0 %v7367
        %7447 = vmatpush.msra.mxu0 %v7365
        %7448 = vmatmul.f32.gmra.mxu0 %v7384
        %v7449 = vpop.f32.mrf.mxu0
        %v7450 = vadd.f32 %v7430, %v7449
        %7451 = vdwg.mxu0
        %7452 = vmatpush.msra.mxu0 %v7332
        %7453 = vmatpush.msra.mxu0 %v7330
        %7454 = vmatpush.msra.mxu0 %v7328
        %7455 = vmatpush.msra.mxu0 %v7326
        %7456 = vmatpush.msra.mxu0 %v7324
        %7457 = vmatpush.msra.mxu0 %v7322
        %7458 = vmatpush.msra.mxu0 %v7320
        %7459 = vmatpush.msra.mxu0 %v7318
        %7460 = vmatpush.msra.mxu0 %v7316
        %7461 = vmatpush.msra.mxu0 %v7314
        %7462 = vmatpush.msra.mxu0 %v7312
        %7463 = vmatpush.msra.mxu0 %v7310
        %7464 = vmatpush.msra.mxu0 %v7308
        %7465 = vmatpush.msra.mxu0 %v7306
        %7466 = vmatpush.msra.mxu0 %v7304
        %7467 = vmatpush.msra.mxu0 %v7302
        %7468 = vmatmul.f32.gmra.mxu0 %v7259
        %v7469 = vpop.f32.mrf.mxu0
        %v7470 = vadd.f32 0.0, %v7469
        %7471 = vdwg.mxu0
        %7472 = vmatpush.msra.mxu0 %v7364
        %7473 = vmatpush.msra.mxu0 %v7362
        %7474 = vmatpush.msra.mxu0 %v7360
        %7475 = vmatpush.msra.mxu0 %v7358
        %7476 = vmatpush.msra.mxu0 %v7356
        %7477 = vmatpush.msra.mxu0 %v7354
        %7478 = vmatpush.msra.mxu0 %v7352
        %7479 = vmatpush.msra.mxu0 %v7350
        %7480 = vmatpush.msra.mxu0 %v7348
        %7481 = vmatpush.msra.mxu0 %v7346
        %7482 = vmatpush.msra.mxu0 %v7344
        %7483 = vmatpush.msra.mxu0 %v7342
        %7484 = vmatpush.msra.mxu0 %v7340
        %7485 = vmatpush.msra.mxu0 %v7338
        %7486 = vmatpush.msra.mxu0 %v7336
        %7487 = vmatpush.msra.mxu0 %v7334
        %7488 = vmatmul.f32.gmra.mxu0 %v7279
        %v7489 = vpop.f32.mrf.mxu0
        %v7490 = vadd.f32 %v7470, %v7489
        %7491 = vdwg.mxu0
        %7492 = vmatpush.msra.mxu0 0.0
        %7493 = vmatpush.msra.mxu0 0.0
        %7494 = vmatpush.msra.mxu0 0.0
        %7495 = vmatpush.msra.mxu0 0.0
        %7496 = vmatpush.msra.mxu0 0.0
        %7497 = vmatpush.msra.mxu0 0.0
        %7498 = vmatpush.msra.mxu0 0.0
        %7499 = vmatpush.msra.mxu0 %v7390
        %7500 = vmatpush.msra.mxu0 %v7380
        %7501 = vmatpush.msra.mxu0 %v7378
        %7502 = vmatpush.msra.mxu0 %v7376
        %7503 = vmatpush.msra.mxu0 %v7374
        %7504 = vmatpush.msra.mxu0 %v7372
        %7505 = vmatpush.msra.mxu0 %v7370
        %7506 = vmatpush.msra.mxu0 %v7368
        %7507 = vmatpush.msra.mxu0 %v7366
        %7508 = vmatmul.f32.gmra.mxu0 %v7384
        %v7509 = vpop.f32.mrf.mxu0
        %v7510 = vadd.f32 %v7490, %v7509
        %7511 = vdwg.mxu0
        %v7514 = vrot.slane %v7510, 4
        %v7515 = vsel %vm798, %v7450, %v7514
        %7517 = vst [vmem:[%s774] sm:$0x77] %v7515
        %p7518 = scmp.lt.s32.totalorder %s36, 1
        %s7519 = scalar_select %p7518, %s36, 1
        %s7520 = smul.addr %s7519, 2
        %s7521 = smul.addr %s7520, 4
        %s7522 = scalar_lea.vmem %s17, %s7521
        // Predicated region
        $region145: #{_lambda_.1} parent=87 // pred_check
          %p7523 = pneg %p416
        $region146: #{_lambda_.1} parent=87 // pred_check_branch
          %7525 = sbr.rel (%p7523) target = $region148
        $region147: #{_lambda_.1} parent=87 // pred_region
          _
        $region148: #{_lambda_.1} parent=87 // pred_fallthru
          _
      $region88: #{_lambda_.1} parent=5 // pred_fallthru
        _
      %p7526 = scmp.le.s32.totalorder 2, %s31
      // Predicated region
      $region149: #{_lambda_.1} parent=5 // pred_check
        %p7527 = pneg %p7526
      $region150: #{_lambda_.1} parent=5 // pred_check_branch
        %7529 = sbr.rel (%p7527) target = $region152
      $region151: #{_lambda_.1} parent=5 // pred_region
        %s7530 = ssub.s32 %s31, 2
        // Predicated region
        $region153: #{_lambda_.1} parent=151 // pred_check
          %p7531 = pneg %p422
        $region154: #{_lambda_.1} parent=151 // pred_check_branch
          %7533 = sbr.rel (%p7531) target = $region156
        $region155: #{_lambda_.1} parent=151 // pred_region
          %p7534 = scmp.lt.s32.totalorder %s37, 1
          %s7535 = scalar_select %p7534, %s37, 1
          %s7536 = smul.addr %s7535, 2
          %s7537 = smul.addr %s7536, 4
          %s7538 = scalar_lea.vmem %s17, %s7537
        $region156: #{_lambda_.1} parent=151 // pred_fallthru
          _
      $region152: #{_lambda_.1} parent=5 // pred_fallthru
        _
    $region6: #{_lambda_.1} parent=1 // loop_footer
      %s35 = sadd.s32 1, %s31
    $region7: #{_lambda_.1} parent=1 // loop_footer_branch
      %30 = sbr.rel target = $region3
    $region8: #{_lambda_.1} parent=1 // loop_exit
      _
    %7539 = vsyncpa [#allocation16], 1
    %s7540 = scalar_lea.sflag [#allocation16], 1
    %7541 = vsyncpa %s7540, 1
    %7542 = vsyncpa [#allocation18], 1
    %7543 = vsyncpa [#allocation21], 1
    %7544 = vsyncpa [#allocation24], 1
    %7545 = vsyncpa [#allocation27], 1
    %7546 = vsyncpa [#allocation30], 1
    %7547 = vsyncpa [#allocation33], 1
    %7548 = vsyncpa [#allocation36], 1

</llo_original>
